<compile_context>
chip_gen: v6e
topology: v6e:2x2x1
jax: 0.10.0
libtpu: 0.0.40
codegen_flags: <defaults>
</compile_context>

<pallas_src>
import functools

import jax
import jax.numpy as jnp
from jax import lax
from jax.experimental import pallas as pl
from jax.experimental.pallas import tpu as pltpu

BN_EPS = 1e-5
CPAD = 128  # output-channel padding -> full 128-lane MXU outputs / vector stores


def _row_chunks(m, chunk=128):
    out, r = [], 0
    while r < m:
        c = min(chunk, m - r)
        out.append((r, c))
        r += c
    return out


# --------------------------- the single fused kernel ---------------------------

def _encoder_kernel(n_batch,
                    p1_ref, w1_ref, w2_ref, w3_ref, bn_ref,   # inputs
                    o_ref,                                    # output (N, 16, 64) NHWC
                    c1_ref, a1p_ref, c2_ref, c3_ref):         # VMEM scratch
    f32 = jnp.float32
    N = n_batch
    M1, M2, M3 = N * 576, N * 100, N * 64    # rows of the three conv outputs

    bn = bn_ref[...]                          # (6, 128) f32
    g1, be1 = bn[0:1, :], bn[1:2, :]
    g2, be2 = bn[2:3, :], bn[3:4, :]
    g3, be3 = bn[4:5, :], bn[5:6, :]

    def bn_scale_shift(ref, m_rows, col_sum, gamma, beta):
        # Training-mode BatchNorm over the whole layer: mean from the running
        # sum collected during the conv pass; centered (numerically safe) biased
        # variance from a second chunked pass over the VMEM-resident conv output.
        mean = col_sum * (1.0 / m_rows)
        v = jnp.zeros((1, 128), f32)
        for r0, sz in _row_chunks(m_rows):
            cent = ref[pl.ds(r0, sz), :] - mean
            v = v + jnp.sum(cent * cent, axis=0, keepdims=True)
        var = v * (1.0 / m_rows)
        scale = gamma * lax.rsqrt(var + BN_EPS)
        return scale, beta - mean * scale

    def bn_relu_inplace(ref, m_rows, scale, shift):
        for r0, sz in _row_chunks(m_rows):
            ref[pl.ds(r0, sz), :] = jnp.maximum(
                ref[pl.ds(r0, sz), :] * scale + shift, 0.0)

    # ---- layer 1: conv1_1 (5x5, cin=1) as a chunked im2col matmul, then BN+ReLU ----
    w1 = w1_ref[...]                                          # (25, 128)
    s1 = jnp.zeros((1, 128), f32)
    for r0, sz in _row_chunks(M1):
        blk = jnp.dot(p1_ref[pl.ds(r0, sz), :], w1, preferred_element_type=f32)
        c1_ref[pl.ds(r0, sz), :] = blk
        s1 = s1 + jnp.sum(blk, axis=0, keepdims=True)
    scale1, shift1 = bn_scale_shift(c1_ref, M1, s1, g1, be1)
    bn_relu_inplace(c1_ref, M1, scale1, shift1)

    # ---- pool1: 2x2/2 max pool; keep only the 32 real channels for layer 2 ----
    # c1 rows are flattened (n, i, j) with j minor; even/odd columns via stride-2 loads.
    for n in range(N):
        for ip in range(12):
            base = n * 576 + (2 * ip) * 24
            top_e = c1_ref[pl.ds(base,      12, stride=2), :]
            top_o = c1_ref[pl.ds(base + 1,  12, stride=2), :]
            bot_e = c1_ref[pl.ds(base + 24, 12, stride=2), :]
            bot_o = c1_ref[pl.ds(base + 25, 12, stride=2), :]
            m = jnp.maximum(jnp.maximum(top_e, top_o), jnp.maximum(bot_e, bot_o))
            a1p_ref[pl.ds(n * 144 + ip * 12, 12), :] = m[:, :32]

    # ---- layer 2: conv2_1 (3x3, 32->64) via in-kernel shifted-window matmuls ----
    s2 = jnp.zeros((1, 128), f32)
    for n in range(N):
        def conv2_row(i, s, n=n):
            acc = jnp.zeros((10, 128), f32)
            for di in range(3):
                src = n * 144 + (i + di) * 12
                for dj in range(3):
                    win = a1p_ref[pl.ds(src + dj, 10), :]          # (10, 32) real cin
                    acc = acc + jnp.dot(win, w2_ref[di * 3 + dj],
                                        preferred_element_type=f32)
            c2_ref[pl.ds(n * 100 + i * 10, 10), :] = acc
            return s + jnp.sum(acc, axis=0, keepdims=True)
        s2 = lax.fori_loop(0, 10, conv2_row, s2)
    scale2, shift2 = bn_scale_shift(c2_ref, M2, s2, g2, be2)
    bn_relu_inplace(c2_ref, M2, scale2, shift2)

    # ---- layer 3: conv2_2 (3x3, 64->64) ----
    s3 = jnp.zeros((1, 128), f32)
    for n in range(N):
        def conv3_row(i, s, n=n):
            acc = jnp.zeros((8, 128), f32)
            for di in range(3):
                src = n * 100 + (i + di) * 10
                for dj in range(3):
                    win = c2_ref[pl.ds(src + dj, 8), :][:, :64]    # (8, 64) real cin
                    acc = acc + jnp.dot(win, w3_ref[di * 3 + dj],
                                        preferred_element_type=f32)
            c3_ref[pl.ds(n * 64 + i * 8, 8), :] = acc
            return s + jnp.sum(acc, axis=0, keepdims=True)
        s3 = lax.fori_loop(0, 8, conv3_row, s3)
    scale3, shift3 = bn_scale_shift(c3_ref, M3, s3, g3, be3)
    bn_relu_inplace(c3_ref, M3, scale3, shift3)

    # ---- pool2 + NHWC output (real 64 channels) ----
    for n in range(N):
        for hp in range(4):
            base = n * 64 + (2 * hp) * 8
            top_e = c3_ref[pl.ds(base,     4, stride=2), :]
            top_o = c3_ref[pl.ds(base + 1, 4, stride=2), :]
            bot_e = c3_ref[pl.ds(base + 8, 4, stride=2), :]
            bot_o = c3_ref[pl.ds(base + 9, 4, stride=2), :]
            m = jnp.maximum(jnp.maximum(top_e, top_o), jnp.maximum(bot_e, bot_o))
            o_ref[n, pl.ds(hp * 4, 4), :] = m[:, :64]


# --------------------------- one-time parameter packing ---------------------------

def prepare_encoder_params(params):
    """Pack PyTorch-layout weights into kernel layout (done once, outside forward)."""
    def pack_w(w):  # (cout, cin, kh, kw) -> (kh*kw, cin, 128)
        cout, cin, kh, kw = w.shape
        wt = jnp.transpose(w, (2, 3, 1, 0)).reshape(kh * kw, cin, cout)
        return jnp.pad(wt, ((0, 0), (0, 0), (0, CPAD - cout))).astype(jnp.float32)

    def pad_vec(v):
        return jnp.pad(v.astype(jnp.float32), (0, CPAD - v.shape[0]))

    return {
        "w1": pack_w(params["w1"]).reshape(25, CPAD),   # (25, 128)
        "w2": pack_w(params["w2"]),                     # (9, 32, 128)
        "w3": pack_w(params["w3"]),                     # (9, 64, 128)
        "bn": jnp.stack([pad_vec(params["g1"]), pad_vec(params["be1"]),
                         pad_vec(params["g2"]), pad_vec(params["be2"]),
                         pad_vec(params["g3"]), pad_vec(params["be3"])]),  # (6, 128)
    }


# --------------------------- forward pass ---------------------------

def _im2col_5x5(img):
    # img: (N, 28, 28) -> (N*24*24, 25) patches, K ordered (di, dj) to match w1 packing.
    N = img.shape[0]
    cols = [img[:, di:di + 24, dj:dj + 24] for di in range(5) for dj in range(5)]
    return jnp.stack(cols, axis=-1).reshape(N * 576, 25)


@jax.jit
def encoder_forward(x_nchw, packed):
    N = x_nchw.shape[0]
    img = x_nchw[:, 0, :, :].astype(jnp.float32)            # (N, 28, 28), cin == 1
    p1 = _im2col_5x5(img)                                    # (N*576, 25)

    vmem = pl.BlockSpec(memory_space=pltpu.MemorySpace.VMEM)
    out = pl.pallas_call(
        functools.partial(_encoder_kernel, N),
        out_shape=jax.ShapeDtypeStruct((N, 16, 64), jnp.float32),
        in_specs=[vmem, vmem, vmem, vmem, vmem],
        out_specs=vmem,
        scratch_shapes=[
            pltpu.VMEM((N * 576, 128), jnp.float32),   # conv1 activations (24x24 grid)
            pltpu.VMEM((N * 144, 32), jnp.float32),    # pooled layer-1 acts (12x12x32)
            pltpu.VMEM((N * 100, 128), jnp.float32),   # conv2_1 activations (10x10 grid)
            pltpu.VMEM((N * 64, 128), jnp.float32),    # conv2_2 activations (8x8 grid)
        ],
    )(p1, packed["w1"], packed["w2"], packed["w3"], packed["bn"])

    # kernel output is NHWC (n, 4*hp + wp, c); PyTorch's view(-1, 1024) flattens NCHW.
    nhwc = out.reshape(N, 4, 4, 64)
    return jnp.transpose(nhwc, (0, 3, 1, 2)).reshape(N, 1024)


# --------------------------- pure-JAX reference (for self-check) ---------------------------

def _reference_forward(x, params):
    hp = lax.Precision.HIGHEST

    def conv(h, w, b):
        y = lax.conv_general_dilated(h, w, (1, 1), "VALID",
                                     dimension_numbers=("NCHW", "OIHW", "NCHW"),
                                     precision=hp)
        return y + b.reshape(1, -1, 1, 1)

    def bn_relu(h, g, b):
        mean = jnp.mean(h, axis=(0, 2, 3), keepdims=True)
        var = jnp.mean(jnp.square(h - mean), axis=(0, 2, 3), keepdims=True)
        y = (h - mean) * lax.rsqrt(var + BN_EPS)
        return jnp.maximum(y * g.reshape(1, -1, 1, 1) + b.reshape(1, -1, 1, 1), 0.0)

    def pool(h):
        return lax.reduce_window(h, -jnp.inf, lax.max, (1, 1, 2, 2), (1, 1, 2, 2), "VALID")

    h = pool(bn_relu(conv(x, params["w1"], params["b1"]), params["g1"], params["be1"]))
    h = bn_relu(conv(h, params["w2"], params["b2"]), params["g2"], params["be2"])
    h = pool(bn_relu(conv(h, params["w3"], params["b3"]), params["g3"], params["be3"]))
    return h.reshape(h.shape[0], -1)


if __name__ == "__main__":
    key = jax.random.PRNGKey(0)
    keys = jax.random.split(key, 13)

    def winit(k, shape, scale=0.1):
        return scale * jax.random.normal(k, shape, dtype=jnp.float32)

    params = {
        "w1": winit(keys[0], (32, 1, 5, 5)),
        "b1": winit(keys[1], (32,)),   # conv biases cancel exactly under batch-stat BN
        "g1": 1.0 + 0.1 * jax.random.normal(keys[2], (32,), dtype=jnp.float32),
        "be1": winit(keys[3], (32,)),
        "w2": winit(keys[4], (64, 32, 3, 3)),
        "b2": winit(keys[5], (64,)),
        "g2": 1.0 + 0.1 * jax.random.normal(keys[6], (64,), dtype=jnp.float32),
        "be2": winit(keys[7], (64,)),
        "w3": winit(keys[8], (64, 64, 3, 3)),
        "b3": winit(keys[9], (64,)),
        "g3": 1.0 + 0.1 * jax.random.normal(keys[10], (64,), dtype=jnp.float32),
        "be3": winit(keys[11], (64,)),
    }

    # 28x28x1 input is forced by the final view(-1, 1024); batch kept small (2).
    x = jax.random.normal(keys[12], (2, 1, 28, 28), dtype=jnp.float32)

    packed = prepare_encoder_params(params)       # one-time weight packing (hoisted)
    out = jax.block_until_ready(encoder_forward(x, packed))

    assert out.shape == (2, 1024) and out.dtype == jnp.float32
    assert bool(jnp.all(jnp.isfinite(out)))

    ref = _reference_forward(x, params)
    err = float(jnp.max(jnp.abs(out - ref)))
    assert err < 1e-1, f"mismatch vs reference: max abs err = {err}"

    print("KERNEL_OK")
</pallas_src>

<mosaic_0001>
module attributes {stable_mosaic.version = 11 : i64} {
  func.func @_encoder_kernel(%arg0: memref<1152x25xf32, #tpu.memory_space<vmem>>, %arg1: memref<25x128xf32, #tpu.memory_space<vmem>>, %arg2: memref<9x32x128xf32, #tpu.memory_space<vmem>>, %arg3: memref<9x64x128xf32, #tpu.memory_space<vmem>>, %arg4: memref<6x128xf32, #tpu.memory_space<vmem>>, %arg5: memref<2x16x64xf32, #tpu.memory_space<vmem>>, %arg6: memref<1152x128xf32, #tpu.memory_space<vmem>>, %arg7: memref<288x32xf32, #tpu.memory_space<vmem>>, %arg8: memref<200x128xf32, #tpu.memory_space<vmem>>, %arg9: memref<128x128xf32, #tpu.memory_space<vmem>>) attributes {dimension_semantics = [], scalar_prefetch = 0 : i64, scratch_operands = 4 : i64, tpu.core_type = #tpu.core_type<tc>} {
    %c0 = arith.constant 0 : index
    %c0_0 = arith.constant 0 : index
    %0 = vector.load %arg4[%c0, %c0_0] : memref<6x128xf32, #tpu.memory_space<vmem>>, vector<6x128xf32>
    %1 = vector.extract_strided_slice %0 {offsets = [0, 0], sizes = [1, 128], strides = [1, 1]} : vector<6x128xf32> to vector<1x128xf32>
    %2 = vector.extract_strided_slice %0 {offsets = [1, 0], sizes = [1, 128], strides = [1, 1]} : vector<6x128xf32> to vector<1x128xf32>
    %3 = vector.extract_strided_slice %0 {offsets = [2, 0], sizes = [1, 128], strides = [1, 1]} : vector<6x128xf32> to vector<1x128xf32>
    %4 = vector.extract_strided_slice %0 {offsets = [3, 0], sizes = [1, 128], strides = [1, 1]} : vector<6x128xf32> to vector<1x128xf32>
    %5 = vector.extract_strided_slice %0 {offsets = [4, 0], sizes = [1, 128], strides = [1, 1]} : vector<6x128xf32> to vector<1x128xf32>
    %6 = vector.extract_strided_slice %0 {offsets = [5, 0], sizes = [1, 128], strides = [1, 1]} : vector<6x128xf32> to vector<1x128xf32>
    %c0_1 = arith.constant 0 : index
    %c0_2 = arith.constant 0 : index
    %7 = vector.load %arg1[%c0_1, %c0_2] : memref<25x128xf32, #tpu.memory_space<vmem>>, vector<25x128xf32>
    %cst = arith.constant 0.000000e+00 : f32
    %8 = vector.broadcast %cst : f32 to vector<1x128xf32>
    %c0_3 = arith.constant 0 : index
    %c0_4 = arith.constant 0 : index
    %9 = vector.load %arg0[%c0_3, %c0_4] : memref<1152x25xf32, #tpu.memory_space<vmem>>, vector<128x25xf32>
    %cst_5 = arith.constant dense<0.000000e+00> : vector<128x128xf32>
    %10 = tpu.matmul %9, %7, %cst_5 {dimension_numbers = #tpu.dot_dimension_numbers<[1], [0], [0], [1], [0, 0, 1, 1], [], []>} : vector<128x25xf32>, vector<25x128xf32>, vector<128x128xf32> -> vector<128x128xf32>
    %c0_6 = arith.constant 0 : index
    %c0_7 = arith.constant 0 : index
    %11 = vector.load %arg6[%c0_6, %c0_7] : memref<1152x128xf32, #tpu.memory_space<vmem>>, vector<128x128xf32>
    tpu.vector_store %arg6[%c0_6, %c0_7], %10 {strides = array<i32>} : memref<1152x128xf32, #tpu.memory_space<vmem>>, vector<128x128xf32>,
    %cst_8 = arith.constant dense<0.000000e+00> : vector<128xf32>
    %12 = vector.multi_reduction <add>, %10, %cst_8 [0] : vector<128x128xf32> to vector<128xf32>
    %13 = vector.shape_cast %12 : vector<128xf32> to vector<1x128xf32>
    %14 = arith.addf %8, %13 : vector<1x128xf32>
    %c128 = arith.constant 128 : index
    %c0_9 = arith.constant 0 : index
    %15 = vector.load %arg0[%c128, %c0_9] : memref<1152x25xf32, #tpu.memory_space<vmem>>, vector<128x25xf32>
    %cst_10 = arith.constant dense<0.000000e+00> : vector<128x128xf32>
    %16 = tpu.matmul %15, %7, %cst_10 {dimension_numbers = #tpu.dot_dimension_numbers<[1], [0], [0], [1], [0, 0, 1, 1], [], []>} : vector<128x25xf32>, vector<25x128xf32>, vector<128x128xf32> -> vector<128x128xf32>
    %c128_11 = arith.constant 128 : index
    %c0_12 = arith.constant 0 : index
    %17 = vector.load %arg6[%c128_11, %c0_12] : memref<1152x128xf32, #tpu.memory_space<vmem>>, vector<128x128xf32>
    tpu.vector_store %arg6[%c128_11, %c0_12], %16 {strides = array<i32>} : memref<1152x128xf32, #tpu.memory_space<vmem>>, vector<128x128xf32>,
    %cst_13 = arith.constant dense<0.000000e+00> : vector<128xf32>
    %18 = vector.multi_reduction <add>, %16, %cst_13 [0] : vector<128x128xf32> to vector<128xf32>
    %19 = vector.shape_cast %18 : vector<128xf32> to vector<1x128xf32>
    %20 = arith.addf %14, %19 : vector<1x128xf32>
    %c256 = arith.constant 256 : index
    %c0_14 = arith.constant 0 : index
    %21 = vector.load %arg0[%c256, %c0_14] : memref<1152x25xf32, #tpu.memory_space<vmem>>, vector<128x25xf32>
    %cst_15 = arith.constant dense<0.000000e+00> : vector<128x128xf32>
    %22 = tpu.matmul %21, %7, %cst_15 {dimension_numbers = #tpu.dot_dimension_numbers<[1], [0], [0], [1], [0, 0, 1, 1], [], []>} : vector<128x25xf32>, vector<25x128xf32>, vector<128x128xf32> -> vector<128x128xf32>
    %c256_16 = arith.constant 256 : index
    %c0_17 = arith.constant 0 : index
    %23 = vector.load %arg6[%c256_16, %c0_17] : memref<1152x128xf32, #tpu.memory_space<vmem>>, vector<128x128xf32>
    tpu.vector_store %arg6[%c256_16, %c0_17], %22 {strides = array<i32>} : memref<1152x128xf32, #tpu.memory_space<vmem>>, vector<128x128xf32>,
    %cst_18 = arith.constant dense<0.000000e+00> : vector<128xf32>
    %24 = vector.multi_reduction <add>, %22, %cst_18 [0] : vector<128x128xf32> to vector<128xf32>
    %25 = vector.shape_cast %24 : vector<128xf32> to vector<1x128xf32>
    %26 = arith.addf %20, %25 : vector<1x128xf32>
    %c384 = arith.constant 384 : index
    %c0_19 = arith.constant 0 : index
    %27 = vector.load %arg0[%c384, %c0_19] : memref<1152x25xf32, #tpu.memory_space<vmem>>, vector<128x25xf32>
    %cst_20 = arith.constant dense<0.000000e+00> : vector<128x128xf32>
    %28 = tpu.matmul %27, %7, %cst_20 {dimension_numbers = #tpu.dot_dimension_numbers<[1], [0], [0], [1], [0, 0, 1, 1], [], []>} : vector<128x25xf32>, vector<25x128xf32>, vector<128x128xf32> -> vector<128x128xf32>
    %c384_21 = arith.constant 384 : index
    %c0_22 = arith.constant 0 : index
    %29 = vector.load %arg6[%c384_21, %c0_22] : memref<1152x128xf32, #tpu.memory_space<vmem>>, vector<128x128xf32>
    tpu.vector_store %arg6[%c384_21, %c0_22], %28 {strides = array<i32>} : memref<1152x128xf32, #tpu.memory_space<vmem>>, vector<128x128xf32>,
    %cst_23 = arith.constant dense<0.000000e+00> : vector<128xf32>
    %30 = vector.multi_reduction <add>, %28, %cst_23 [0] : vector<128x128xf32> to vector<128xf32>
    %31 = vector.shape_cast %30 : vector<128xf32> to vector<1x128xf32>
    %32 = arith.addf %26, %31 : vector<1x128xf32>
    %c512 = arith.constant 512 : index
    %c0_24 = arith.constant 0 : index
    %33 = vector.load %arg0[%c512, %c0_24] : memref<1152x25xf32, #tpu.memory_space<vmem>>, vector<128x25xf32>
    %cst_25 = arith.constant dense<0.000000e+00> : vector<128x128xf32>
    %34 = tpu.matmul %33, %7, %cst_25 {dimension_numbers = #tpu.dot_dimension_numbers<[1], [0], [0], [1], [0, 0, 1, 1], [], []>} : vector<128x25xf32>, vector<25x128xf32>, vector<128x128xf32> -> vector<128x128xf32>
    %c512_26 = arith.constant 512 : index
    %c0_27 = arith.constant 0 : index
    %35 = vector.load %arg6[%c512_26, %c0_27] : memref<1152x128xf32, #tpu.memory_space<vmem>>, vector<128x128xf32>
    tpu.vector_store %arg6[%c512_26, %c0_27], %34 {strides = array<i32>} : memref<1152x128xf32, #tpu.memory_space<vmem>>, vector<128x128xf32>,
    %cst_28 = arith.constant dense<0.000000e+00> : vector<128xf32>
    %36 = vector.multi_reduction <add>, %34, %cst_28 [0] : vector<128x128xf32> to vector<128xf32>
    %37 = vector.shape_cast %36 : vector<128xf32> to vector<1x128xf32>
    %38 = arith.addf %32, %37 : vector<1x128xf32>
    %c640 = arith.constant 640 : index
    %c0_29 = arith.constant 0 : index
    %39 = vector.load %arg0[%c640, %c0_29] : memref<1152x25xf32, #tpu.memory_space<vmem>>, vector<128x25xf32>
    %cst_30 = arith.constant dense<0.000000e+00> : vector<128x128xf32>
    %40 = tpu.matmul %39, %7, %cst_30 {dimension_numbers = #tpu.dot_dimension_numbers<[1], [0], [0], [1], [0, 0, 1, 1], [], []>} : vector<128x25xf32>, vector<25x128xf32>, vector<128x128xf32> -> vector<128x128xf32>
    %c640_31 = arith.constant 640 : index
    %c0_32 = arith.constant 0 : index
    %41 = vector.load %arg6[%c640_31, %c0_32] : memref<1152x128xf32, #tpu.memory_space<vmem>>, vector<128x128xf32>
    tpu.vector_store %arg6[%c640_31, %c0_32], %40 {strides = array<i32>} : memref<1152x128xf32, #tpu.memory_space<vmem>>, vector<128x128xf32>,
    %cst_33 = arith.constant dense<0.000000e+00> : vector<128xf32>
    %42 = vector.multi_reduction <add>, %40, %cst_33 [0] : vector<128x128xf32> to vector<128xf32>
    %43 = vector.shape_cast %42 : vector<128xf32> to vector<1x128xf32>
    %44 = arith.addf %38, %43 : vector<1x128xf32>
    %c768 = arith.constant 768 : index
    %c0_34 = arith.constant 0 : index
    %45 = vector.load %arg0[%c768, %c0_34] : memref<1152x25xf32, #tpu.memory_space<vmem>>, vector<128x25xf32>
    %cst_35 = arith.constant dense<0.000000e+00> : vector<128x128xf32>
    %46 = tpu.matmul %45, %7, %cst_35 {dimension_numbers = #tpu.dot_dimension_numbers<[1], [0], [0], [1], [0, 0, 1, 1], [], []>} : vector<128x25xf32>, vector<25x128xf32>, vector<128x128xf32> -> vector<128x128xf32>
    %c768_36 = arith.constant 768 : index
    %c0_37 = arith.constant 0 : index
    %47 = vector.load %arg6[%c768_36, %c0_37] : memref<1152x128xf32, #tpu.memory_space<vmem>>, vector<128x128xf32>
    tpu.vector_store %arg6[%c768_36, %c0_37], %46 {strides = array<i32>} : memref<1152x128xf32, #tpu.memory_space<vmem>>, vector<128x128xf32>,
    %cst_38 = arith.constant dense<0.000000e+00> : vector<128xf32>
    %48 = vector.multi_reduction <add>, %46, %cst_38 [0] : vector<128x128xf32> to vector<128xf32>
    %49 = vector.shape_cast %48 : vector<128xf32> to vector<1x128xf32>
    %50 = arith.addf %44, %49 : vector<1x128xf32>
    %c896 = arith.constant 896 : index
    %c0_39 = arith.constant 0 : index
    %51 = vector.load %arg0[%c896, %c0_39] : memref<1152x25xf32, #tpu.memory_space<vmem>>, vector<128x25xf32>
    %cst_40 = arith.constant dense<0.000000e+00> : vector<128x128xf32>
    %52 = tpu.matmul %51, %7, %cst_40 {dimension_numbers = #tpu.dot_dimension_numbers<[1], [0], [0], [1], [0, 0, 1, 1], [], []>} : vector<128x25xf32>, vector<25x128xf32>, vector<128x128xf32> -> vector<128x128xf32>
    %c896_41 = arith.constant 896 : index
    %c0_42 = arith.constant 0 : index
    %53 = vector.load %arg6[%c896_41, %c0_42] : memref<1152x128xf32, #tpu.memory_space<vmem>>, vector<128x128xf32>
    tpu.vector_store %arg6[%c896_41, %c0_42], %52 {strides = array<i32>} : memref<1152x128xf32, #tpu.memory_space<vmem>>, vector<128x128xf32>,
    %cst_43 = arith.constant dense<0.000000e+00> : vector<128xf32>
    %54 = vector.multi_reduction <add>, %52, %cst_43 [0] : vector<128x128xf32> to vector<128xf32>
    %55 = vector.shape_cast %54 : vector<128xf32> to vector<1x128xf32>
    %56 = arith.addf %50, %55 : vector<1x128xf32>
    %c1024 = arith.constant 1024 : index
    %c0_44 = arith.constant 0 : index
    %57 = vector.load %arg0[%c1024, %c0_44] : memref<1152x25xf32, #tpu.memory_space<vmem>>, vector<128x25xf32>
    %cst_45 = arith.constant dense<0.000000e+00> : vector<128x128xf32>
    %58 = tpu.matmul %57, %7, %cst_45 {dimension_numbers = #tpu.dot_dimension_numbers<[1], [0], [0], [1], [0, 0, 1, 1], [], []>} : vector<128x25xf32>, vector<25x128xf32>, vector<128x128xf32> -> vector<128x128xf32>
    %c1024_46 = arith.constant 1024 : index
    %c0_47 = arith.constant 0 : index
    %59 = vector.load %arg6[%c1024_46, %c0_47] : memref<1152x128xf32, #tpu.memory_space<vmem>>, vector<128x128xf32>
    tpu.vector_store %arg6[%c1024_46, %c0_47], %58 {strides = array<i32>} : memref<1152x128xf32, #tpu.memory_space<vmem>>, vector<128x128xf32>,
    %cst_48 = arith.constant dense<0.000000e+00> : vector<128xf32>
    %60 = vector.multi_reduction <add>, %58, %cst_48 [0] : vector<128x128xf32> to vector<128xf32>
    %61 = vector.shape_cast %60 : vector<128xf32> to vector<1x128xf32>
    %62 = arith.addf %56, %61 : vector<1x128xf32>
    %cst_49 = arith.constant 8.68055562E-4 : f32
    %63 = vector.broadcast %cst_49 : f32 to vector<1x128xf32>
    %64 = arith.mulf %62, %63 : vector<1x128xf32>
    %cst_50 = arith.constant 0.000000e+00 : f32
    %65 = vector.broadcast %cst_50 : f32 to vector<1x128xf32>
    %c0_51 = arith.constant 0 : index
    %c0_52 = arith.constant 0 : index
    %66 = vector.load %arg6[%c0_51, %c0_52] : memref<1152x128xf32, #tpu.memory_space<vmem>>, vector<128x128xf32>
    %67 = vector.broadcast %64 : vector<1x128xf32> to vector<128x128xf32>
    %68 = arith.subf %66, %67 : vector<128x128xf32>
    %69 = arith.mulf %68, %68 : vector<128x128xf32>
    %cst_53 = arith.constant dense<0.000000e+00> : vector<128xf32>
    %70 = vector.multi_reduction <add>, %69, %cst_53 [0] : vector<128x128xf32> to vector<128xf32>
    %71 = vector.shape_cast %70 : vector<128xf32> to vector<1x128xf32>
    %72 = arith.addf %65, %71 : vector<1x128xf32>
    %c128_54 = arith.constant 128 : index
    %c0_55 = arith.constant 0 : index
    %73 = vector.load %arg6[%c128_54, %c0_55] : memref<1152x128xf32, #tpu.memory_space<vmem>>, vector<128x128xf32>
    %74 = vector.broadcast %64 : vector<1x128xf32> to vector<128x128xf32>
    %75 = arith.subf %73, %74 : vector<128x128xf32>
    %76 = arith.mulf %75, %75 : vector<128x128xf32>
    %cst_56 = arith.constant dense<0.000000e+00> : vector<128xf32>
    %77 = vector.multi_reduction <add>, %76, %cst_56 [0] : vector<128x128xf32> to vector<128xf32>
    %78 = vector.shape_cast %77 : vector<128xf32> to vector<1x128xf32>
    %79 = arith.addf %72, %78 : vector<1x128xf32>
    %c256_57 = arith.constant 256 : index
    %c0_58 = arith.constant 0 : index
    %80 = vector.load %arg6[%c256_57, %c0_58] : memref<1152x128xf32, #tpu.memory_space<vmem>>, vector<128x128xf32>
    %81 = vector.broadcast %64 : vector<1x128xf32> to vector<128x128xf32>
    %82 = arith.subf %80, %81 : vector<128x128xf32>
    %83 = arith.mulf %82, %82 : vector<128x128xf32>
    %cst_59 = arith.constant dense<0.000000e+00> : vector<128xf32>
    %84 = vector.multi_reduction <add>, %83, %cst_59 [0] : vector<128x128xf32> to vector<128xf32>
    %85 = vector.shape_cast %84 : vector<128xf32> to vector<1x128xf32>
    %86 = arith.addf %79, %85 : vector<1x128xf32>
    %c384_60 = arith.constant 384 : index
    %c0_61 = arith.constant 0 : index
    %87 = vector.load %arg6[%c384_60, %c0_61] : memref<1152x128xf32, #tpu.memory_space<vmem>>, vector<128x128xf32>
    %88 = vector.broadcast %64 : vector<1x128xf32> to vector<128x128xf32>
    %89 = arith.subf %87, %88 : vector<128x128xf32>
    %90 = arith.mulf %89, %89 : vector<128x128xf32>
    %cst_62 = arith.constant dense<0.000000e+00> : vector<128xf32>
    %91 = vector.multi_reduction <add>, %90, %cst_62 [0] : vector<128x128xf32> to vector<128xf32>
    %92 = vector.shape_cast %91 : vector<128xf32> to vector<1x128xf32>
    %93 = arith.addf %86, %92 : vector<1x128xf32>
    %c512_63 = arith.constant 512 : index
    %c0_64 = arith.constant 0 : index
    %94 = vector.load %arg6[%c512_63, %c0_64] : memref<1152x128xf32, #tpu.memory_space<vmem>>, vector<128x128xf32>
    %95 = vector.broadcast %64 : vector<1x128xf32> to vector<128x128xf32>
    %96 = arith.subf %94, %95 : vector<128x128xf32>
    %97 = arith.mulf %96, %96 : vector<128x128xf32>
    %cst_65 = arith.constant dense<0.000000e+00> : vector<128xf32>
    %98 = vector.multi_reduction <add>, %97, %cst_65 [0] : vector<128x128xf32> to vector<128xf32>
    %99 = vector.shape_cast %98 : vector<128xf32> to vector<1x128xf32>
    %100 = arith.addf %93, %99 : vector<1x128xf32>
    %c640_66 = arith.constant 640 : index
    %c0_67 = arith.constant 0 : index
    %101 = vector.load %arg6[%c640_66, %c0_67] : memref<1152x128xf32, #tpu.memory_space<vmem>>, vector<128x128xf32>
    %102 = vector.broadcast %64 : vector<1x128xf32> to vector<128x128xf32>
    %103 = arith.subf %101, %102 : vector<128x128xf32>
    %104 = arith.mulf %103, %103 : vector<128x128xf32>
    %cst_68 = arith.constant dense<0.000000e+00> : vector<128xf32>
    %105 = vector.multi_reduction <add>, %104, %cst_68 [0] : vector<128x128xf32> to vector<128xf32>
    %106 = vector.shape_cast %105 : vector<128xf32> to vector<1x128xf32>
    %107 = arith.addf %100, %106 : vector<1x128xf32>
    %c768_69 = arith.constant 768 : index
    %c0_70 = arith.constant 0 : index
    %108 = vector.load %arg6[%c768_69, %c0_70] : memref<1152x128xf32, #tpu.memory_space<vmem>>, vector<128x128xf32>
    %109 = vector.broadcast %64 : vector<1x128xf32> to vector<128x128xf32>
    %110 = arith.subf %108, %109 : vector<128x128xf32>
    %111 = arith.mulf %110, %110 : vector<128x128xf32>
    %cst_71 = arith.constant dense<0.000000e+00> : vector<128xf32>
    %112 = vector.multi_reduction <add>, %111, %cst_71 [0] : vector<128x128xf32> to vector<128xf32>
    %113 = vector.shape_cast %112 : vector<128xf32> to vector<1x128xf32>
    %114 = arith.addf %107, %113 : vector<1x128xf32>
    %c896_72 = arith.constant 896 : index
    %c0_73 = arith.constant 0 : index
    %115 = vector.load %arg6[%c896_72, %c0_73] : memref<1152x128xf32, #tpu.memory_space<vmem>>, vector<128x128xf32>
    %116 = vector.broadcast %64 : vector<1x128xf32> to vector<128x128xf32>
    %117 = arith.subf %115, %116 : vector<128x128xf32>
    %118 = arith.mulf %117, %117 : vector<128x128xf32>
    %cst_74 = arith.constant dense<0.000000e+00> : vector<128xf32>
    %119 = vector.multi_reduction <add>, %118, %cst_74 [0] : vector<128x128xf32> to vector<128xf32>
    %120 = vector.shape_cast %119 : vector<128xf32> to vector<1x128xf32>
    %121 = arith.addf %114, %120 : vector<1x128xf32>
    %c1024_75 = arith.constant 1024 : index
    %c0_76 = arith.constant 0 : index
    %122 = vector.load %arg6[%c1024_75, %c0_76] : memref<1152x128xf32, #tpu.memory_space<vmem>>, vector<128x128xf32>
    %123 = vector.broadcast %64 : vector<1x128xf32> to vector<128x128xf32>
    %124 = arith.subf %122, %123 : vector<128x128xf32>
    %125 = arith.mulf %124, %124 : vector<128x128xf32>
    %cst_77 = arith.constant dense<0.000000e+00> : vector<128xf32>
    %126 = vector.multi_reduction <add>, %125, %cst_77 [0] : vector<128x128xf32> to vector<128xf32>
    %127 = vector.shape_cast %126 : vector<128xf32> to vector<1x128xf32>
    %128 = arith.addf %121, %127 : vector<1x128xf32>
    %cst_78 = arith.constant 8.68055562E-4 : f32
    %129 = vector.broadcast %cst_78 : f32 to vector<1x128xf32>
    %130 = arith.mulf %128, %129 : vector<1x128xf32>
    %cst_79 = arith.constant 9.99999974E-6 : f32
    %131 = vector.broadcast %cst_79 : f32 to vector<1x128xf32>
    %132 = arith.addf %130, %131 : vector<1x128xf32>
    %133 = math.rsqrt %132 : vector<1x128xf32>
    %134 = arith.mulf %1, %133 : vector<1x128xf32>
    %135 = arith.mulf %64, %134 : vector<1x128xf32>
    %136 = arith.subf %2, %135 : vector<1x128xf32>
    %c0_80 = arith.constant 0 : index
    %c0_81 = arith.constant 0 : index
    %137 = vector.load %arg6[%c0_80, %c0_81] : memref<1152x128xf32, #tpu.memory_space<vmem>>, vector<128x128xf32>
    %138 = vector.broadcast %134 : vector<1x128xf32> to vector<128x128xf32>
    %139 = arith.mulf %137, %138 : vector<128x128xf32>
    %140 = vector.broadcast %136 : vector<1x128xf32> to vector<128x128xf32>
    %141 = arith.addf %139, %140 : vector<128x128xf32>
    %cst_82 = arith.constant 0.000000e+00 : f32
    %142 = vector.broadcast %cst_82 : f32 to vector<128x128xf32>
    %143 = arith.maximumf %141, %142 : vector<128x128xf32>
    %c0_83 = arith.constant 0 : index
    %c0_84 = arith.constant 0 : index
    %144 = vector.load %arg6[%c0_83, %c0_84] : memref<1152x128xf32, #tpu.memory_space<vmem>>, vector<128x128xf32>
    tpu.vector_store %arg6[%c0_83, %c0_84], %143 {strides = array<i32>} : memref<1152x128xf32, #tpu.memory_space<vmem>>, vector<128x128xf32>,
    %c128_85 = arith.constant 128 : index
    %c0_86 = arith.constant 0 : index
    %145 = vector.load %arg6[%c128_85, %c0_86] : memref<1152x128xf32, #tpu.memory_space<vmem>>, vector<128x128xf32>
    %146 = vector.broadcast %134 : vector<1x128xf32> to vector<128x128xf32>
    %147 = arith.mulf %145, %146 : vector<128x128xf32>
    %148 = vector.broadcast %136 : vector<1x128xf32> to vector<128x128xf32>
    %149 = arith.addf %147, %148 : vector<128x128xf32>
    %cst_87 = arith.constant 0.000000e+00 : f32
    %150 = vector.broadcast %cst_87 : f32 to vector<128x128xf32>
    %151 = arith.maximumf %149, %150 : vector<128x128xf32>
    %c128_88 = arith.constant 128 : index
    %c0_89 = arith.constant 0 : index
    %152 = vector.load %arg6[%c128_88, %c0_89] : memref<1152x128xf32, #tpu.memory_space<vmem>>, vector<128x128xf32>
    tpu.vector_store %arg6[%c128_88, %c0_89], %151 {strides = array<i32>} : memref<1152x128xf32, #tpu.memory_space<vmem>>, vector<128x128xf32>,
    %c256_90 = arith.constant 256 : index
    %c0_91 = arith.constant 0 : index
    %153 = vector.load %arg6[%c256_90, %c0_91] : memref<1152x128xf32, #tpu.memory_space<vmem>>, vector<128x128xf32>
    %154 = vector.broadcast %134 : vector<1x128xf32> to vector<128x128xf32>
    %155 = arith.mulf %153, %154 : vector<128x128xf32>
    %156 = vector.broadcast %136 : vector<1x128xf32> to vector<128x128xf32>
    %157 = arith.addf %155, %156 : vector<128x128xf32>
    %cst_92 = arith.constant 0.000000e+00 : f32
    %158 = vector.broadcast %cst_92 : f32 to vector<128x128xf32>
    %159 = arith.maximumf %157, %158 : vector<128x128xf32>
    %c256_93 = arith.constant 256 : index
    %c0_94 = arith.constant 0 : index
    %160 = vector.load %arg6[%c256_93, %c0_94] : memref<1152x128xf32, #tpu.memory_space<vmem>>, vector<128x128xf32>
    tpu.vector_store %arg6[%c256_93, %c0_94], %159 {strides = array<i32>} : memref<1152x128xf32, #tpu.memory_space<vmem>>, vector<128x128xf32>,
    %c384_95 = arith.constant 384 : index
    %c0_96 = arith.constant 0 : index
    %161 = vector.load %arg6[%c384_95, %c0_96] : memref<1152x128xf32, #tpu.memory_space<vmem>>, vector<128x128xf32>
    %162 = vector.broadcast %134 : vector<1x128xf32> to vector<128x128xf32>
    %163 = arith.mulf %161, %162 : vector<128x128xf32>
    %164 = vector.broadcast %136 : vector<1x128xf32> to vector<128x128xf32>
    %165 = arith.addf %163, %164 : vector<128x128xf32>
    %cst_97 = arith.constant 0.000000e+00 : f32
    %166 = vector.broadcast %cst_97 : f32 to vector<128x128xf32>
    %167 = arith.maximumf %165, %166 : vector<128x128xf32>
    %c384_98 = arith.constant 384 : index
    %c0_99 = arith.constant 0 : index
    %168 = vector.load %arg6[%c384_98, %c0_99] : memref<1152x128xf32, #tpu.memory_space<vmem>>, vector<128x128xf32>
    tpu.vector_store %arg6[%c384_98, %c0_99], %167 {strides = array<i32>} : memref<1152x128xf32, #tpu.memory_space<vmem>>, vector<128x128xf32>,
    %c512_100 = arith.constant 512 : index
    %c0_101 = arith.constant 0 : index
    %169 = vector.load %arg6[%c512_100, %c0_101] : memref<1152x128xf32, #tpu.memory_space<vmem>>, vector<128x128xf32>
    %170 = vector.broadcast %134 : vector<1x128xf32> to vector<128x128xf32>
    %171 = arith.mulf %169, %170 : vector<128x128xf32>
    %172 = vector.broadcast %136 : vector<1x128xf32> to vector<128x128xf32>
    %173 = arith.addf %171, %172 : vector<128x128xf32>
    %cst_102 = arith.constant 0.000000e+00 : f32
    %174 = vector.broadcast %cst_102 : f32 to vector<128x128xf32>
    %175 = arith.maximumf %173, %174 : vector<128x128xf32>
    %c512_103 = arith.constant 512 : index
    %c0_104 = arith.constant 0 : index
    %176 = vector.load %arg6[%c512_103, %c0_104] : memref<1152x128xf32, #tpu.memory_space<vmem>>, vector<128x128xf32>
    tpu.vector_store %arg6[%c512_103, %c0_104], %175 {strides = array<i32>} : memref<1152x128xf32, #tpu.memory_space<vmem>>, vector<128x128xf32>,
    %c640_105 = arith.constant 640 : index
    %c0_106 = arith.constant 0 : index
    %177 = vector.load %arg6[%c640_105, %c0_106] : memref<1152x128xf32, #tpu.memory_space<vmem>>, vector<128x128xf32>
    %178 = vector.broadcast %134 : vector<1x128xf32> to vector<128x128xf32>
    %179 = arith.mulf %177, %178 : vector<128x128xf32>
    %180 = vector.broadcast %136 : vector<1x128xf32> to vector<128x128xf32>
    %181 = arith.addf %179, %180 : vector<128x128xf32>
    %cst_107 = arith.constant 0.000000e+00 : f32
    %182 = vector.broadcast %cst_107 : f32 to vector<128x128xf32>
    %183 = arith.maximumf %181, %182 : vector<128x128xf32>
    %c640_108 = arith.constant 640 : index
    %c0_109 = arith.constant 0 : index
    %184 = vector.load %arg6[%c640_108, %c0_109] : memref<1152x128xf32, #tpu.memory_space<vmem>>, vector<128x128xf32>
    tpu.vector_store %arg6[%c640_108, %c0_109], %183 {strides = array<i32>} : memref<1152x128xf32, #tpu.memory_space<vmem>>, vector<128x128xf32>,
    %c768_110 = arith.constant 768 : index
    %c0_111 = arith.constant 0 : index
    %185 = vector.load %arg6[%c768_110, %c0_111] : memref<1152x128xf32, #tpu.memory_space<vmem>>, vector<128x128xf32>
    %186 = vector.broadcast %134 : vector<1x128xf32> to vector<128x128xf32>
    %187 = arith.mulf %185, %186 : vector<128x128xf32>
    %188 = vector.broadcast %136 : vector<1x128xf32> to vector<128x128xf32>
    %189 = arith.addf %187, %188 : vector<128x128xf32>
    %cst_112 = arith.constant 0.000000e+00 : f32
    %190 = vector.broadcast %cst_112 : f32 to vector<128x128xf32>
    %191 = arith.maximumf %189, %190 : vector<128x128xf32>
    %c768_113 = arith.constant 768 : index
    %c0_114 = arith.constant 0 : index
    %192 = vector.load %arg6[%c768_113, %c0_114] : memref<1152x128xf32, #tpu.memory_space<vmem>>, vector<128x128xf32>
    tpu.vector_store %arg6[%c768_113, %c0_114], %191 {strides = array<i32>} : memref<1152x128xf32, #tpu.memory_space<vmem>>, vector<128x128xf32>,
    %c896_115 = arith.constant 896 : index
    %c0_116 = arith.constant 0 : index
    %193 = vector.load %arg6[%c896_115, %c0_116] : memref<1152x128xf32, #tpu.memory_space<vmem>>, vector<128x128xf32>
    %194 = vector.broadcast %134 : vector<1x128xf32> to vector<128x128xf32>
    %195 = arith.mulf %193, %194 : vector<128x128xf32>
    %196 = vector.broadcast %136 : vector<1x128xf32> to vector<128x128xf32>
    %197 = arith.addf %195, %196 : vector<128x128xf32>
    %cst_117 = arith.constant 0.000000e+00 : f32
    %198 = vector.broadcast %cst_117 : f32 to vector<128x128xf32>
    %199 = arith.maximumf %197, %198 : vector<128x128xf32>
    %c896_118 = arith.constant 896 : index
    %c0_119 = arith.constant 0 : index
    %200 = vector.load %arg6[%c896_118, %c0_119] : memref<1152x128xf32, #tpu.memory_space<vmem>>, vector<128x128xf32>
    tpu.vector_store %arg6[%c896_118, %c0_119], %199 {strides = array<i32>} : memref<1152x128xf32, #tpu.memory_space<vmem>>, vector<128x128xf32>,
    %c1024_120 = arith.constant 1024 : index
    %c0_121 = arith.constant 0 : index
    %201 = vector.load %arg6[%c1024_120, %c0_121] : memref<1152x128xf32, #tpu.memory_space<vmem>>, vector<128x128xf32>
    %202 = vector.broadcast %134 : vector<1x128xf32> to vector<128x128xf32>
    %203 = arith.mulf %201, %202 : vector<128x128xf32>
    %204 = vector.broadcast %136 : vector<1x128xf32> to vector<128x128xf32>
    %205 = arith.addf %203, %204 : vector<128x128xf32>
    %cst_122 = arith.constant 0.000000e+00 : f32
    %206 = vector.broadcast %cst_122 : f32 to vector<128x128xf32>
    %207 = arith.maximumf %205, %206 : vector<128x128xf32>
    %c1024_123 = arith.constant 1024 : index
    %c0_124 = arith.constant 0 : index
    %208 = vector.load %arg6[%c1024_123, %c0_124] : memref<1152x128xf32, #tpu.memory_space<vmem>>, vector<128x128xf32>
    tpu.vector_store %arg6[%c1024_123, %c0_124], %207 {strides = array<i32>} : memref<1152x128xf32, #tpu.memory_space<vmem>>, vector<128x128xf32>,
    %c0_125 = arith.constant 0 : index
    %c0_126 = arith.constant 0 : index
    %209 = tpu.strided_load %arg6[%c0_125, %c0_126] {strides = array<i32: 2, 1>} : memref<1152x128xf32, #tpu.memory_space<vmem>>, vector<12x128xf32>
    %c1 = arith.constant 1 : index
    %c0_127 = arith.constant 0 : index
    %210 = tpu.strided_load %arg6[%c1, %c0_127] {strides = array<i32: 2, 1>} : memref<1152x128xf32, #tpu.memory_space<vmem>>, vector<12x128xf32>
    %c24 = arith.constant 24 : index
    %c0_128 = arith.constant 0 : index
    %211 = tpu.strided_load %arg6[%c24, %c0_128] {strides = array<i32: 2, 1>} : memref<1152x128xf32, #tpu.memory_space<vmem>>, vector<12x128xf32>
    %c25 = arith.constant 25 : index
    %c0_129 = arith.constant 0 : index
    %212 = tpu.strided_load %arg6[%c25, %c0_129] {strides = array<i32: 2, 1>} : memref<1152x128xf32, #tpu.memory_space<vmem>>, vector<12x128xf32>
    %213 = arith.maximumf %209, %210 : vector<12x128xf32>
    %214 = arith.maximumf %211, %212 : vector<12x128xf32>
    %215 = arith.maximumf %213, %214 : vector<12x128xf32>
    %216 = vector.extract_strided_slice %215 {offsets = [0, 0], sizes = [12, 32], strides = [1, 1]} : vector<12x128xf32> to vector<12x32xf32>
    %c0_130 = arith.constant 0 : index
    %c0_131 = arith.constant 0 : index
    %217 = vector.load %arg7[%c0_130, %c0_131] : memref<288x32xf32, #tpu.memory_space<vmem>>, vector<12x32xf32>
    tpu.vector_store %arg7[%c0_130, %c0_131], %216 {strides = array<i32>} : memref<288x32xf32, #tpu.memory_space<vmem>>, vector<12x32xf32>,
    %c48 = arith.constant 48 : index
    %c0_132 = arith.constant 0 : index
    %218 = tpu.strided_load %arg6[%c48, %c0_132] {strides = array<i32: 2, 1>} : memref<1152x128xf32, #tpu.memory_space<vmem>>, vector<12x128xf32>
    %c49 = arith.constant 49 : index
    %c0_133 = arith.constant 0 : index
    %219 = tpu.strided_load %arg6[%c49, %c0_133] {strides = array<i32: 2, 1>} : memref<1152x128xf32, #tpu.memory_space<vmem>>, vector<12x128xf32>
    %c72 = arith.constant 72 : index
    %c0_134 = arith.constant 0 : index
    %220 = tpu.strided_load %arg6[%c72, %c0_134] {strides = array<i32: 2, 1>} : memref<1152x128xf32, #tpu.memory_space<vmem>>, vector<12x128xf32>
    %c73 = arith.constant 73 : index
    %c0_135 = arith.constant 0 : index
    %221 = tpu.strided_load %arg6[%c73, %c0_135] {strides = array<i32: 2, 1>} : memref<1152x128xf32, #tpu.memory_space<vmem>>, vector<12x128xf32>
    %222 = arith.maximumf %218, %219 : vector<12x128xf32>
    %223 = arith.maximumf %220, %221 : vector<12x128xf32>
    %224 = arith.maximumf %222, %223 : vector<12x128xf32>
    %225 = vector.extract_strided_slice %224 {offsets = [0, 0], sizes = [12, 32], strides = [1, 1]} : vector<12x128xf32> to vector<12x32xf32>
    %c12 = arith.constant 12 : index
    %c0_136 = arith.constant 0 : index
    %226 = vector.load %arg7[%c12, %c0_136] : memref<288x32xf32, #tpu.memory_space<vmem>>, vector<12x32xf32>
    tpu.vector_store %arg7[%c12, %c0_136], %225 {strides = array<i32>} : memref<288x32xf32, #tpu.memory_space<vmem>>, vector<12x32xf32>,
    %c96 = arith.constant 96 : index
    %c0_137 = arith.constant 0 : index
    %227 = tpu.strided_load %arg6[%c96, %c0_137] {strides = array<i32: 2, 1>} : memref<1152x128xf32, #tpu.memory_space<vmem>>, vector<12x128xf32>
    %c97 = arith.constant 97 : index
    %c0_138 = arith.constant 0 : index
    %228 = tpu.strided_load %arg6[%c97, %c0_138] {strides = array<i32: 2, 1>} : memref<1152x128xf32, #tpu.memory_space<vmem>>, vector<12x128xf32>
    %c120 = arith.constant 120 : index
    %c0_139 = arith.constant 0 : index
    %229 = tpu.strided_load %arg6[%c120, %c0_139] {strides = array<i32: 2, 1>} : memref<1152x128xf32, #tpu.memory_space<vmem>>, vector<12x128xf32>
    %c121 = arith.constant 121 : index
    %c0_140 = arith.constant 0 : index
    %230 = tpu.strided_load %arg6[%c121, %c0_140] {strides = array<i32: 2, 1>} : memref<1152x128xf32, #tpu.memory_space<vmem>>, vector<12x128xf32>
    %231 = arith.maximumf %227, %228 : vector<12x128xf32>
    %232 = arith.maximumf %229, %230 : vector<12x128xf32>
    %233 = arith.maximumf %231, %232 : vector<12x128xf32>
    %234 = vector.extract_strided_slice %233 {offsets = [0, 0], sizes = [12, 32], strides = [1, 1]} : vector<12x128xf32> to vector<12x32xf32>
    %c24_141 = arith.constant 24 : index
    %c0_142 = arith.constant 0 : index
    %235 = vector.load %arg7[%c24_141, %c0_142] : memref<288x32xf32, #tpu.memory_space<vmem>>, vector<12x32xf32>
    tpu.vector_store %arg7[%c24_141, %c0_142], %234 {strides = array<i32>} : memref<288x32xf32, #tpu.memory_space<vmem>>, vector<12x32xf32>,
    %c144 = arith.constant 144 : index
    %c0_143 = arith.constant 0 : index
    %236 = tpu.strided_load %arg6[%c144, %c0_143] {strides = array<i32: 2, 1>} : memref<1152x128xf32, #tpu.memory_space<vmem>>, vector<12x128xf32>
    %c145 = arith.constant 145 : index
    %c0_144 = arith.constant 0 : index
    %237 = tpu.strided_load %arg6[%c145, %c0_144] {strides = array<i32: 2, 1>} : memref<1152x128xf32, #tpu.memory_space<vmem>>, vector<12x128xf32>
    %c168 = arith.constant 168 : index
    %c0_145 = arith.constant 0 : index
    %238 = tpu.strided_load %arg6[%c168, %c0_145] {strides = array<i32: 2, 1>} : memref<1152x128xf32, #tpu.memory_space<vmem>>, vector<12x128xf32>
    %c169 = arith.constant 169 : index
    %c0_146 = arith.constant 0 : index
    %239 = tpu.strided_load %arg6[%c169, %c0_146] {strides = array<i32: 2, 1>} : memref<1152x128xf32, #tpu.memory_space<vmem>>, vector<12x128xf32>
    %240 = arith.maximumf %236, %237 : vector<12x128xf32>
    %241 = arith.maximumf %238, %239 : vector<12x128xf32>
    %242 = arith.maximumf %240, %241 : vector<12x128xf32>
    %243 = vector.extract_strided_slice %242 {offsets = [0, 0], sizes = [12, 32], strides = [1, 1]} : vector<12x128xf32> to vector<12x32xf32>
    %c36 = arith.constant 36 : index
    %c0_147 = arith.constant 0 : index
    %244 = vector.load %arg7[%c36, %c0_147] : memref<288x32xf32, #tpu.memory_space<vmem>>, vector<12x32xf32>
    tpu.vector_store %arg7[%c36, %c0_147], %243 {strides = array<i32>} : memref<288x32xf32, #tpu.memory_space<vmem>>, vector<12x32xf32>,
    %c192 = arith.constant 192 : index
    %c0_148 = arith.constant 0 : index
    %245 = tpu.strided_load %arg6[%c192, %c0_148] {strides = array<i32: 2, 1>} : memref<1152x128xf32, #tpu.memory_space<vmem>>, vector<12x128xf32>
    %c193 = arith.constant 193 : index
    %c0_149 = arith.constant 0 : index
    %246 = tpu.strided_load %arg6[%c193, %c0_149] {strides = array<i32: 2, 1>} : memref<1152x128xf32, #tpu.memory_space<vmem>>, vector<12x128xf32>
    %c216 = arith.constant 216 : index
    %c0_150 = arith.constant 0 : index
    %247 = tpu.strided_load %arg6[%c216, %c0_150] {strides = array<i32: 2, 1>} : memref<1152x128xf32, #tpu.memory_space<vmem>>, vector<12x128xf32>
    %c217 = arith.constant 217 : index
    %c0_151 = arith.constant 0 : index
    %248 = tpu.strided_load %arg6[%c217, %c0_151] {strides = array<i32: 2, 1>} : memref<1152x128xf32, #tpu.memory_space<vmem>>, vector<12x128xf32>
    %249 = arith.maximumf %245, %246 : vector<12x128xf32>
    %250 = arith.maximumf %247, %248 : vector<12x128xf32>
    %251 = arith.maximumf %249, %250 : vector<12x128xf32>
    %252 = vector.extract_strided_slice %251 {offsets = [0, 0], sizes = [12, 32], strides = [1, 1]} : vector<12x128xf32> to vector<12x32xf32>
    %c48_152 = arith.constant 48 : index
    %c0_153 = arith.constant 0 : index
    %253 = vector.load %arg7[%c48_152, %c0_153] : memref<288x32xf32, #tpu.memory_space<vmem>>, vector<12x32xf32>
    tpu.vector_store %arg7[%c48_152, %c0_153], %252 {strides = array<i32>} : memref<288x32xf32, #tpu.memory_space<vmem>>, vector<12x32xf32>,
    %c240 = arith.constant 240 : index
    %c0_154 = arith.constant 0 : index
    %254 = tpu.strided_load %arg6[%c240, %c0_154] {strides = array<i32: 2, 1>} : memref<1152x128xf32, #tpu.memory_space<vmem>>, vector<12x128xf32>
    %c241 = arith.constant 241 : index
    %c0_155 = arith.constant 0 : index
    %255 = tpu.strided_load %arg6[%c241, %c0_155] {strides = array<i32: 2, 1>} : memref<1152x128xf32, #tpu.memory_space<vmem>>, vector<12x128xf32>
    %c264 = arith.constant 264 : index
    %c0_156 = arith.constant 0 : index
    %256 = tpu.strided_load %arg6[%c264, %c0_156] {strides = array<i32: 2, 1>} : memref<1152x128xf32, #tpu.memory_space<vmem>>, vector<12x128xf32>
    %c265 = arith.constant 265 : index
    %c0_157 = arith.constant 0 : index
    %257 = tpu.strided_load %arg6[%c265, %c0_157] {strides = array<i32: 2, 1>} : memref<1152x128xf32, #tpu.memory_space<vmem>>, vector<12x128xf32>
    %258 = arith.maximumf %254, %255 : vector<12x128xf32>
    %259 = arith.maximumf %256, %257 : vector<12x128xf32>
    %260 = arith.maximumf %258, %259 : vector<12x128xf32>
    %261 = vector.extract_strided_slice %260 {offsets = [0, 0], sizes = [12, 32], strides = [1, 1]} : vector<12x128xf32> to vector<12x32xf32>
    %c60 = arith.constant 60 : index
    %c0_158 = arith.constant 0 : index
    %262 = vector.load %arg7[%c60, %c0_158] : memref<288x32xf32, #tpu.memory_space<vmem>>, vector<12x32xf32>
    tpu.vector_store %arg7[%c60, %c0_158], %261 {strides = array<i32>} : memref<288x32xf32, #tpu.memory_space<vmem>>, vector<12x32xf32>,
    %c288 = arith.constant 288 : index
    %c0_159 = arith.constant 0 : index
    %263 = tpu.strided_load %arg6[%c288, %c0_159] {strides = array<i32: 2, 1>} : memref<1152x128xf32, #tpu.memory_space<vmem>>, vector<12x128xf32>
    %c289 = arith.constant 289 : index
    %c0_160 = arith.constant 0 : index
    %264 = tpu.strided_load %arg6[%c289, %c0_160] {strides = array<i32: 2, 1>} : memref<1152x128xf32, #tpu.memory_space<vmem>>, vector<12x128xf32>
    %c312 = arith.constant 312 : index
    %c0_161 = arith.constant 0 : index
    %265 = tpu.strided_load %arg6[%c312, %c0_161] {strides = array<i32: 2, 1>} : memref<1152x128xf32, #tpu.memory_space<vmem>>, vector<12x128xf32>
    %c313 = arith.constant 313 : index
    %c0_162 = arith.constant 0 : index
    %266 = tpu.strided_load %arg6[%c313, %c0_162] {strides = array<i32: 2, 1>} : memref<1152x128xf32, #tpu.memory_space<vmem>>, vector<12x128xf32>
    %267 = arith.maximumf %263, %264 : vector<12x128xf32>
    %268 = arith.maximumf %265, %266 : vector<12x128xf32>
    %269 = arith.maximumf %267, %268 : vector<12x128xf32>
    %270 = vector.extract_strided_slice %269 {offsets = [0, 0], sizes = [12, 32], strides = [1, 1]} : vector<12x128xf32> to vector<12x32xf32>
    %c72_163 = arith.constant 72 : index
    %c0_164 = arith.constant 0 : index
    %271 = vector.load %arg7[%c72_163, %c0_164] : memref<288x32xf32, #tpu.memory_space<vmem>>, vector<12x32xf32>
    tpu.vector_store %arg7[%c72_163, %c0_164], %270 {strides = array<i32>} : memref<288x32xf32, #tpu.memory_space<vmem>>, vector<12x32xf32>,
    %c336 = arith.constant 336 : index
    %c0_165 = arith.constant 0 : index
    %272 = tpu.strided_load %arg6[%c336, %c0_165] {strides = array<i32: 2, 1>} : memref<1152x128xf32, #tpu.memory_space<vmem>>, vector<12x128xf32>
    %c337 = arith.constant 337 : index
    %c0_166 = arith.constant 0 : index
    %273 = tpu.strided_load %arg6[%c337, %c0_166] {strides = array<i32: 2, 1>} : memref<1152x128xf32, #tpu.memory_space<vmem>>, vector<12x128xf32>
    %c360 = arith.constant 360 : index
    %c0_167 = arith.constant 0 : index
    %274 = tpu.strided_load %arg6[%c360, %c0_167] {strides = array<i32: 2, 1>} : memref<1152x128xf32, #tpu.memory_space<vmem>>, vector<12x128xf32>
    %c361 = arith.constant 361 : index
    %c0_168 = arith.constant 0 : index
    %275 = tpu.strided_load %arg6[%c361, %c0_168] {strides = array<i32: 2, 1>} : memref<1152x128xf32, #tpu.memory_space<vmem>>, vector<12x128xf32>
    %276 = arith.maximumf %272, %273 : vector<12x128xf32>
    %277 = arith.maximumf %274, %275 : vector<12x128xf32>
    %278 = arith.maximumf %276, %277 : vector<12x128xf32>
    %279 = vector.extract_strided_slice %278 {offsets = [0, 0], sizes = [12, 32], strides = [1, 1]} : vector<12x128xf32> to vector<12x32xf32>
    %c84 = arith.constant 84 : index
    %c0_169 = arith.constant 0 : index
    %280 = vector.load %arg7[%c84, %c0_169] : memref<288x32xf32, #tpu.memory_space<vmem>>, vector<12x32xf32>
    tpu.vector_store %arg7[%c84, %c0_169], %279 {strides = array<i32>} : memref<288x32xf32, #tpu.memory_space<vmem>>, vector<12x32xf32>,
    %c384_170 = arith.constant 384 : index
    %c0_171 = arith.constant 0 : index
    %281 = tpu.strided_load %arg6[%c384_170, %c0_171] {strides = array<i32: 2, 1>} : memref<1152x128xf32, #tpu.memory_space<vmem>>, vector<12x128xf32>
    %c385 = arith.constant 385 : index
    %c0_172 = arith.constant 0 : index
    %282 = tpu.strided_load %arg6[%c385, %c0_172] {strides = array<i32: 2, 1>} : memref<1152x128xf32, #tpu.memory_space<vmem>>, vector<12x128xf32>
    %c408 = arith.constant 408 : index
    %c0_173 = arith.constant 0 : index
    %283 = tpu.strided_load %arg6[%c408, %c0_173] {strides = array<i32: 2, 1>} : memref<1152x128xf32, #tpu.memory_space<vmem>>, vector<12x128xf32>
    %c409 = arith.constant 409 : index
    %c0_174 = arith.constant 0 : index
    %284 = tpu.strided_load %arg6[%c409, %c0_174] {strides = array<i32: 2, 1>} : memref<1152x128xf32, #tpu.memory_space<vmem>>, vector<12x128xf32>
    %285 = arith.maximumf %281, %282 : vector<12x128xf32>
    %286 = arith.maximumf %283, %284 : vector<12x128xf32>
    %287 = arith.maximumf %285, %286 : vector<12x128xf32>
    %288 = vector.extract_strided_slice %287 {offsets = [0, 0], sizes = [12, 32], strides = [1, 1]} : vector<12x128xf32> to vector<12x32xf32>
    %c96_175 = arith.constant 96 : index
    %c0_176 = arith.constant 0 : index
    %289 = vector.load %arg7[%c96_175, %c0_176] : memref<288x32xf32, #tpu.memory_space<vmem>>, vector<12x32xf32>
    tpu.vector_store %arg7[%c96_175, %c0_176], %288 {strides = array<i32>} : memref<288x32xf32, #tpu.memory_space<vmem>>, vector<12x32xf32>,
    %c432 = arith.constant 432 : index
    %c0_177 = arith.constant 0 : index
    %290 = tpu.strided_load %arg6[%c432, %c0_177] {strides = array<i32: 2, 1>} : memref<1152x128xf32, #tpu.memory_space<vmem>>, vector<12x128xf32>
    %c433 = arith.constant 433 : index
    %c0_178 = arith.constant 0 : index
    %291 = tpu.strided_load %arg6[%c433, %c0_178] {strides = array<i32: 2, 1>} : memref<1152x128xf32, #tpu.memory_space<vmem>>, vector<12x128xf32>
    %c456 = arith.constant 456 : index
    %c0_179 = arith.constant 0 : index
    %292 = tpu.strided_load %arg6[%c456, %c0_179] {strides = array<i32: 2, 1>} : memref<1152x128xf32, #tpu.memory_space<vmem>>, vector<12x128xf32>
    %c457 = arith.constant 457 : index
    %c0_180 = arith.constant 0 : index
    %293 = tpu.strided_load %arg6[%c457, %c0_180] {strides = array<i32: 2, 1>} : memref<1152x128xf32, #tpu.memory_space<vmem>>, vector<12x128xf32>
    %294 = arith.maximumf %290, %291 : vector<12x128xf32>
    %295 = arith.maximumf %292, %293 : vector<12x128xf32>
    %296 = arith.maximumf %294, %295 : vector<12x128xf32>
    %297 = vector.extract_strided_slice %296 {offsets = [0, 0], sizes = [12, 32], strides = [1, 1]} : vector<12x128xf32> to vector<12x32xf32>
    %c108 = arith.constant 108 : index
    %c0_181 = arith.constant 0 : index
    %298 = vector.load %arg7[%c108, %c0_181] : memref<288x32xf32, #tpu.memory_space<vmem>>, vector<12x32xf32>
    tpu.vector_store %arg7[%c108, %c0_181], %297 {strides = array<i32>} : memref<288x32xf32, #tpu.memory_space<vmem>>, vector<12x32xf32>,
    %c480 = arith.constant 480 : index
    %c0_182 = arith.constant 0 : index
    %299 = tpu.strided_load %arg6[%c480, %c0_182] {strides = array<i32: 2, 1>} : memref<1152x128xf32, #tpu.memory_space<vmem>>, vector<12x128xf32>
    %c481 = arith.constant 481 : index
    %c0_183 = arith.constant 0 : index
    %300 = tpu.strided_load %arg6[%c481, %c0_183] {strides = array<i32: 2, 1>} : memref<1152x128xf32, #tpu.memory_space<vmem>>, vector<12x128xf32>
    %c504 = arith.constant 504 : index
    %c0_184 = arith.constant 0 : index
    %301 = tpu.strided_load %arg6[%c504, %c0_184] {strides = array<i32: 2, 1>} : memref<1152x128xf32, #tpu.memory_space<vmem>>, vector<12x128xf32>
    %c505 = arith.constant 505 : index
    %c0_185 = arith.constant 0 : index
    %302 = tpu.strided_load %arg6[%c505, %c0_185] {strides = array<i32: 2, 1>} : memref<1152x128xf32, #tpu.memory_space<vmem>>, vector<12x128xf32>
    %303 = arith.maximumf %299, %300 : vector<12x128xf32>
    %304 = arith.maximumf %301, %302 : vector<12x128xf32>
    %305 = arith.maximumf %303, %304 : vector<12x128xf32>
    %306 = vector.extract_strided_slice %305 {offsets = [0, 0], sizes = [12, 32], strides = [1, 1]} : vector<12x128xf32> to vector<12x32xf32>
    %c120_186 = arith.constant 120 : index
    %c0_187 = arith.constant 0 : index
    %307 = vector.load %arg7[%c120_186, %c0_187] : memref<288x32xf32, #tpu.memory_space<vmem>>, vector<12x32xf32>
    tpu.vector_store %arg7[%c120_186, %c0_187], %306 {strides = array<i32>} : memref<288x32xf32, #tpu.memory_space<vmem>>, vector<12x32xf32>,
    %c528 = arith.constant 528 : index
    %c0_188 = arith.constant 0 : index
    %308 = tpu.strided_load %arg6[%c528, %c0_188] {strides = array<i32: 2, 1>} : memref<1152x128xf32, #tpu.memory_space<vmem>>, vector<12x128xf32>
    %c529 = arith.constant 529 : index
    %c0_189 = arith.constant 0 : index
    %309 = tpu.strided_load %arg6[%c529, %c0_189] {strides = array<i32: 2, 1>} : memref<1152x128xf32, #tpu.memory_space<vmem>>, vector<12x128xf32>
    %c552 = arith.constant 552 : index
    %c0_190 = arith.constant 0 : index
    %310 = tpu.strided_load %arg6[%c552, %c0_190] {strides = array<i32: 2, 1>} : memref<1152x128xf32, #tpu.memory_space<vmem>>, vector<12x128xf32>
    %c553 = arith.constant 553 : index
    %c0_191 = arith.constant 0 : index
    %311 = tpu.strided_load %arg6[%c553, %c0_191] {strides = array<i32: 2, 1>} : memref<1152x128xf32, #tpu.memory_space<vmem>>, vector<12x128xf32>
    %312 = arith.maximumf %308, %309 : vector<12x128xf32>
    %313 = arith.maximumf %310, %311 : vector<12x128xf32>
    %314 = arith.maximumf %312, %313 : vector<12x128xf32>
    %315 = vector.extract_strided_slice %314 {offsets = [0, 0], sizes = [12, 32], strides = [1, 1]} : vector<12x128xf32> to vector<12x32xf32>
    %c132 = arith.constant 132 : index
    %c0_192 = arith.constant 0 : index
    %316 = vector.load %arg7[%c132, %c0_192] : memref<288x32xf32, #tpu.memory_space<vmem>>, vector<12x32xf32>
    tpu.vector_store %arg7[%c132, %c0_192], %315 {strides = array<i32>} : memref<288x32xf32, #tpu.memory_space<vmem>>, vector<12x32xf32>,
    %c576 = arith.constant 576 : index
    %c0_193 = arith.constant 0 : index
    %317 = tpu.strided_load %arg6[%c576, %c0_193] {strides = array<i32: 2, 1>} : memref<1152x128xf32, #tpu.memory_space<vmem>>, vector<12x128xf32>
    %c577 = arith.constant 577 : index
    %c0_194 = arith.constant 0 : index
    %318 = tpu.strided_load %arg6[%c577, %c0_194] {strides = array<i32: 2, 1>} : memref<1152x128xf32, #tpu.memory_space<vmem>>, vector<12x128xf32>
    %c600 = arith.constant 600 : index
    %c0_195 = arith.constant 0 : index
    %319 = tpu.strided_load %arg6[%c600, %c0_195] {strides = array<i32: 2, 1>} : memref<1152x128xf32, #tpu.memory_space<vmem>>, vector<12x128xf32>
    %c601 = arith.constant 601 : index
    %c0_196 = arith.constant 0 : index
    %320 = tpu.strided_load %arg6[%c601, %c0_196] {strides = array<i32: 2, 1>} : memref<1152x128xf32, #tpu.memory_space<vmem>>, vector<12x128xf32>
    %321 = arith.maximumf %317, %318 : vector<12x128xf32>
    %322 = arith.maximumf %319, %320 : vector<12x128xf32>
    %323 = arith.maximumf %321, %322 : vector<12x128xf32>
    %324 = vector.extract_strided_slice %323 {offsets = [0, 0], sizes = [12, 32], strides = [1, 1]} : vector<12x128xf32> to vector<12x32xf32>
    %c144_197 = arith.constant 144 : index
    %c0_198 = arith.constant 0 : index
    %325 = vector.load %arg7[%c144_197, %c0_198] : memref<288x32xf32, #tpu.memory_space<vmem>>, vector<12x32xf32>
    tpu.vector_store %arg7[%c144_197, %c0_198], %324 {strides = array<i32>} : memref<288x32xf32, #tpu.memory_space<vmem>>, vector<12x32xf32>,
    %c624 = arith.constant 624 : index
    %c0_199 = arith.constant 0 : index
    %326 = tpu.strided_load %arg6[%c624, %c0_199] {strides = array<i32: 2, 1>} : memref<1152x128xf32, #tpu.memory_space<vmem>>, vector<12x128xf32>
    %c625 = arith.constant 625 : index
    %c0_200 = arith.constant 0 : index
    %327 = tpu.strided_load %arg6[%c625, %c0_200] {strides = array<i32: 2, 1>} : memref<1152x128xf32, #tpu.memory_space<vmem>>, vector<12x128xf32>
    %c648 = arith.constant 648 : index
    %c0_201 = arith.constant 0 : index
    %328 = tpu.strided_load %arg6[%c648, %c0_201] {strides = array<i32: 2, 1>} : memref<1152x128xf32, #tpu.memory_space<vmem>>, vector<12x128xf32>
    %c649 = arith.constant 649 : index
    %c0_202 = arith.constant 0 : index
    %329 = tpu.strided_load %arg6[%c649, %c0_202] {strides = array<i32: 2, 1>} : memref<1152x128xf32, #tpu.memory_space<vmem>>, vector<12x128xf32>
    %330 = arith.maximumf %326, %327 : vector<12x128xf32>
    %331 = arith.maximumf %328, %329 : vector<12x128xf32>
    %332 = arith.maximumf %330, %331 : vector<12x128xf32>
    %333 = vector.extract_strided_slice %332 {offsets = [0, 0], sizes = [12, 32], strides = [1, 1]} : vector<12x128xf32> to vector<12x32xf32>
    %c156 = arith.constant 156 : index
    %c0_203 = arith.constant 0 : index
    %334 = vector.load %arg7[%c156, %c0_203] : memref<288x32xf32, #tpu.memory_space<vmem>>, vector<12x32xf32>
    tpu.vector_store %arg7[%c156, %c0_203], %333 {strides = array<i32>} : memref<288x32xf32, #tpu.memory_space<vmem>>, vector<12x32xf32>,
    %c672 = arith.constant 672 : index
    %c0_204 = arith.constant 0 : index
    %335 = tpu.strided_load %arg6[%c672, %c0_204] {strides = array<i32: 2, 1>} : memref<1152x128xf32, #tpu.memory_space<vmem>>, vector<12x128xf32>
    %c673 = arith.constant 673 : index
    %c0_205 = arith.constant 0 : index
    %336 = tpu.strided_load %arg6[%c673, %c0_205] {strides = array<i32: 2, 1>} : memref<1152x128xf32, #tpu.memory_space<vmem>>, vector<12x128xf32>
    %c696 = arith.constant 696 : index
    %c0_206 = arith.constant 0 : index
    %337 = tpu.strided_load %arg6[%c696, %c0_206] {strides = array<i32: 2, 1>} : memref<1152x128xf32, #tpu.memory_space<vmem>>, vector<12x128xf32>
    %c697 = arith.constant 697 : index
    %c0_207 = arith.constant 0 : index
    %338 = tpu.strided_load %arg6[%c697, %c0_207] {strides = array<i32: 2, 1>} : memref<1152x128xf32, #tpu.memory_space<vmem>>, vector<12x128xf32>
    %339 = arith.maximumf %335, %336 : vector<12x128xf32>
    %340 = arith.maximumf %337, %338 : vector<12x128xf32>
    %341 = arith.maximumf %339, %340 : vector<12x128xf32>
    %342 = vector.extract_strided_slice %341 {offsets = [0, 0], sizes = [12, 32], strides = [1, 1]} : vector<12x128xf32> to vector<12x32xf32>
    %c168_208 = arith.constant 168 : index
    %c0_209 = arith.constant 0 : index
    %343 = vector.load %arg7[%c168_208, %c0_209] : memref<288x32xf32, #tpu.memory_space<vmem>>, vector<12x32xf32>
    tpu.vector_store %arg7[%c168_208, %c0_209], %342 {strides = array<i32>} : memref<288x32xf32, #tpu.memory_space<vmem>>, vector<12x32xf32>,
    %c720 = arith.constant 720 : index
    %c0_210 = arith.constant 0 : index
    %344 = tpu.strided_load %arg6[%c720, %c0_210] {strides = array<i32: 2, 1>} : memref<1152x128xf32, #tpu.memory_space<vmem>>, vector<12x128xf32>
    %c721 = arith.constant 721 : index
    %c0_211 = arith.constant 0 : index
    %345 = tpu.strided_load %arg6[%c721, %c0_211] {strides = array<i32: 2, 1>} : memref<1152x128xf32, #tpu.memory_space<vmem>>, vector<12x128xf32>
    %c744 = arith.constant 744 : index
    %c0_212 = arith.constant 0 : index
    %346 = tpu.strided_load %arg6[%c744, %c0_212] {strides = array<i32: 2, 1>} : memref<1152x128xf32, #tpu.memory_space<vmem>>, vector<12x128xf32>
    %c745 = arith.constant 745 : index
    %c0_213 = arith.constant 0 : index
    %347 = tpu.strided_load %arg6[%c745, %c0_213] {strides = array<i32: 2, 1>} : memref<1152x128xf32, #tpu.memory_space<vmem>>, vector<12x128xf32>
    %348 = arith.maximumf %344, %345 : vector<12x128xf32>
    %349 = arith.maximumf %346, %347 : vector<12x128xf32>
    %350 = arith.maximumf %348, %349 : vector<12x128xf32>
    %351 = vector.extract_strided_slice %350 {offsets = [0, 0], sizes = [12, 32], strides = [1, 1]} : vector<12x128xf32> to vector<12x32xf32>
    %c180 = arith.constant 180 : index
    %c0_214 = arith.constant 0 : index
    %352 = vector.load %arg7[%c180, %c0_214] : memref<288x32xf32, #tpu.memory_space<vmem>>, vector<12x32xf32>
    tpu.vector_store %arg7[%c180, %c0_214], %351 {strides = array<i32>} : memref<288x32xf32, #tpu.memory_space<vmem>>, vector<12x32xf32>,
    %c768_215 = arith.constant 768 : index
    %c0_216 = arith.constant 0 : index
    %353 = tpu.strided_load %arg6[%c768_215, %c0_216] {strides = array<i32: 2, 1>} : memref<1152x128xf32, #tpu.memory_space<vmem>>, vector<12x128xf32>
    %c769 = arith.constant 769 : index
    %c0_217 = arith.constant 0 : index
    %354 = tpu.strided_load %arg6[%c769, %c0_217] {strides = array<i32: 2, 1>} : memref<1152x128xf32, #tpu.memory_space<vmem>>, vector<12x128xf32>
    %c792 = arith.constant 792 : index
    %c0_218 = arith.constant 0 : index
    %355 = tpu.strided_load %arg6[%c792, %c0_218] {strides = array<i32: 2, 1>} : memref<1152x128xf32, #tpu.memory_space<vmem>>, vector<12x128xf32>
    %c793 = arith.constant 793 : index
    %c0_219 = arith.constant 0 : index
    %356 = tpu.strided_load %arg6[%c793, %c0_219] {strides = array<i32: 2, 1>} : memref<1152x128xf32, #tpu.memory_space<vmem>>, vector<12x128xf32>
    %357 = arith.maximumf %353, %354 : vector<12x128xf32>
    %358 = arith.maximumf %355, %356 : vector<12x128xf32>
    %359 = arith.maximumf %357, %358 : vector<12x128xf32>
    %360 = vector.extract_strided_slice %359 {offsets = [0, 0], sizes = [12, 32], strides = [1, 1]} : vector<12x128xf32> to vector<12x32xf32>
    %c192_220 = arith.constant 192 : index
    %c0_221 = arith.constant 0 : index
    %361 = vector.load %arg7[%c192_220, %c0_221] : memref<288x32xf32, #tpu.memory_space<vmem>>, vector<12x32xf32>
    tpu.vector_store %arg7[%c192_220, %c0_221], %360 {strides = array<i32>} : memref<288x32xf32, #tpu.memory_space<vmem>>, vector<12x32xf32>,
    %c816 = arith.constant 816 : index
    %c0_222 = arith.constant 0 : index
    %362 = tpu.strided_load %arg6[%c816, %c0_222] {strides = array<i32: 2, 1>} : memref<1152x128xf32, #tpu.memory_space<vmem>>, vector<12x128xf32>
    %c817 = arith.constant 817 : index
    %c0_223 = arith.constant 0 : index
    %363 = tpu.strided_load %arg6[%c817, %c0_223] {strides = array<i32: 2, 1>} : memref<1152x128xf32, #tpu.memory_space<vmem>>, vector<12x128xf32>
    %c840 = arith.constant 840 : index
    %c0_224 = arith.constant 0 : index
    %364 = tpu.strided_load %arg6[%c840, %c0_224] {strides = array<i32: 2, 1>} : memref<1152x128xf32, #tpu.memory_space<vmem>>, vector<12x128xf32>
    %c841 = arith.constant 841 : index
    %c0_225 = arith.constant 0 : index
    %365 = tpu.strided_load %arg6[%c841, %c0_225] {strides = array<i32: 2, 1>} : memref<1152x128xf32, #tpu.memory_space<vmem>>, vector<12x128xf32>
    %366 = arith.maximumf %362, %363 : vector<12x128xf32>
    %367 = arith.maximumf %364, %365 : vector<12x128xf32>
    %368 = arith.maximumf %366, %367 : vector<12x128xf32>
    %369 = vector.extract_strided_slice %368 {offsets = [0, 0], sizes = [12, 32], strides = [1, 1]} : vector<12x128xf32> to vector<12x32xf32>
    %c204 = arith.constant 204 : index
    %c0_226 = arith.constant 0 : index
    %370 = vector.load %arg7[%c204, %c0_226] : memref<288x32xf32, #tpu.memory_space<vmem>>, vector<12x32xf32>
    tpu.vector_store %arg7[%c204, %c0_226], %369 {strides = array<i32>} : memref<288x32xf32, #tpu.memory_space<vmem>>, vector<12x32xf32>,
    %c864 = arith.constant 864 : index
    %c0_227 = arith.constant 0 : index
    %371 = tpu.strided_load %arg6[%c864, %c0_227] {strides = array<i32: 2, 1>} : memref<1152x128xf32, #tpu.memory_space<vmem>>, vector<12x128xf32>
    %c865 = arith.constant 865 : index
    %c0_228 = arith.constant 0 : index
    %372 = tpu.strided_load %arg6[%c865, %c0_228] {strides = array<i32: 2, 1>} : memref<1152x128xf32, #tpu.memory_space<vmem>>, vector<12x128xf32>
    %c888 = arith.constant 888 : index
    %c0_229 = arith.constant 0 : index
    %373 = tpu.strided_load %arg6[%c888, %c0_229] {strides = array<i32: 2, 1>} : memref<1152x128xf32, #tpu.memory_space<vmem>>, vector<12x128xf32>
    %c889 = arith.constant 889 : index
    %c0_230 = arith.constant 0 : index
    %374 = tpu.strided_load %arg6[%c889, %c0_230] {strides = array<i32: 2, 1>} : memref<1152x128xf32, #tpu.memory_space<vmem>>, vector<12x128xf32>
    %375 = arith.maximumf %371, %372 : vector<12x128xf32>
    %376 = arith.maximumf %373, %374 : vector<12x128xf32>
    %377 = arith.maximumf %375, %376 : vector<12x128xf32>
    %378 = vector.extract_strided_slice %377 {offsets = [0, 0], sizes = [12, 32], strides = [1, 1]} : vector<12x128xf32> to vector<12x32xf32>
    %c216_231 = arith.constant 216 : index
    %c0_232 = arith.constant 0 : index
    %379 = vector.load %arg7[%c216_231, %c0_232] : memref<288x32xf32, #tpu.memory_space<vmem>>, vector<12x32xf32>
    tpu.vector_store %arg7[%c216_231, %c0_232], %378 {strides = array<i32>} : memref<288x32xf32, #tpu.memory_space<vmem>>, vector<12x32xf32>,
    %c912 = arith.constant 912 : index
    %c0_233 = arith.constant 0 : index
    %380 = tpu.strided_load %arg6[%c912, %c0_233] {strides = array<i32: 2, 1>} : memref<1152x128xf32, #tpu.memory_space<vmem>>, vector<12x128xf32>
    %c913 = arith.constant 913 : index
    %c0_234 = arith.constant 0 : index
    %381 = tpu.strided_load %arg6[%c913, %c0_234] {strides = array<i32: 2, 1>} : memref<1152x128xf32, #tpu.memory_space<vmem>>, vector<12x128xf32>
    %c936 = arith.constant 936 : index
    %c0_235 = arith.constant 0 : index
    %382 = tpu.strided_load %arg6[%c936, %c0_235] {strides = array<i32: 2, 1>} : memref<1152x128xf32, #tpu.memory_space<vmem>>, vector<12x128xf32>
    %c937 = arith.constant 937 : index
    %c0_236 = arith.constant 0 : index
    %383 = tpu.strided_load %arg6[%c937, %c0_236] {strides = array<i32: 2, 1>} : memref<1152x128xf32, #tpu.memory_space<vmem>>, vector<12x128xf32>
    %384 = arith.maximumf %380, %381 : vector<12x128xf32>
    %385 = arith.maximumf %382, %383 : vector<12x128xf32>
    %386 = arith.maximumf %384, %385 : vector<12x128xf32>
    %387 = vector.extract_strided_slice %386 {offsets = [0, 0], sizes = [12, 32], strides = [1, 1]} : vector<12x128xf32> to vector<12x32xf32>
    %c228 = arith.constant 228 : index
    %c0_237 = arith.constant 0 : index
    %388 = vector.load %arg7[%c228, %c0_237] : memref<288x32xf32, #tpu.memory_space<vmem>>, vector<12x32xf32>
    tpu.vector_store %arg7[%c228, %c0_237], %387 {strides = array<i32>} : memref<288x32xf32, #tpu.memory_space<vmem>>, vector<12x32xf32>,
    %c960 = arith.constant 960 : index
    %c0_238 = arith.constant 0 : index
    %389 = tpu.strided_load %arg6[%c960, %c0_238] {strides = array<i32: 2, 1>} : memref<1152x128xf32, #tpu.memory_space<vmem>>, vector<12x128xf32>
    %c961 = arith.constant 961 : index
    %c0_239 = arith.constant 0 : index
    %390 = tpu.strided_load %arg6[%c961, %c0_239] {strides = array<i32: 2, 1>} : memref<1152x128xf32, #tpu.memory_space<vmem>>, vector<12x128xf32>
    %c984 = arith.constant 984 : index
    %c0_240 = arith.constant 0 : index
    %391 = tpu.strided_load %arg6[%c984, %c0_240] {strides = array<i32: 2, 1>} : memref<1152x128xf32, #tpu.memory_space<vmem>>, vector<12x128xf32>
    %c985 = arith.constant 985 : index
    %c0_241 = arith.constant 0 : index
    %392 = tpu.strided_load %arg6[%c985, %c0_241] {strides = array<i32: 2, 1>} : memref<1152x128xf32, #tpu.memory_space<vmem>>, vector<12x128xf32>
    %393 = arith.maximumf %389, %390 : vector<12x128xf32>
    %394 = arith.maximumf %391, %392 : vector<12x128xf32>
    %395 = arith.maximumf %393, %394 : vector<12x128xf32>
    %396 = vector.extract_strided_slice %395 {offsets = [0, 0], sizes = [12, 32], strides = [1, 1]} : vector<12x128xf32> to vector<12x32xf32>
    %c240_242 = arith.constant 240 : index
    %c0_243 = arith.constant 0 : index
    %397 = vector.load %arg7[%c240_242, %c0_243] : memref<288x32xf32, #tpu.memory_space<vmem>>, vector<12x32xf32>
    tpu.vector_store %arg7[%c240_242, %c0_243], %396 {strides = array<i32>} : memref<288x32xf32, #tpu.memory_space<vmem>>, vector<12x32xf32>,
    %c1008 = arith.constant 1008 : index
    %c0_244 = arith.constant 0 : index
    %398 = tpu.strided_load %arg6[%c1008, %c0_244] {strides = array<i32: 2, 1>} : memref<1152x128xf32, #tpu.memory_space<vmem>>, vector<12x128xf32>
    %c1009 = arith.constant 1009 : index
    %c0_245 = arith.constant 0 : index
    %399 = tpu.strided_load %arg6[%c1009, %c0_245] {strides = array<i32: 2, 1>} : memref<1152x128xf32, #tpu.memory_space<vmem>>, vector<12x128xf32>
    %c1032 = arith.constant 1032 : index
    %c0_246 = arith.constant 0 : index
    %400 = tpu.strided_load %arg6[%c1032, %c0_246] {strides = array<i32: 2, 1>} : memref<1152x128xf32, #tpu.memory_space<vmem>>, vector<12x128xf32>
    %c1033 = arith.constant 1033 : index
    %c0_247 = arith.constant 0 : index
    %401 = tpu.strided_load %arg6[%c1033, %c0_247] {strides = array<i32: 2, 1>} : memref<1152x128xf32, #tpu.memory_space<vmem>>, vector<12x128xf32>
    %402 = arith.maximumf %398, %399 : vector<12x128xf32>
    %403 = arith.maximumf %400, %401 : vector<12x128xf32>
    %404 = arith.maximumf %402, %403 : vector<12x128xf32>
    %405 = vector.extract_strided_slice %404 {offsets = [0, 0], sizes = [12, 32], strides = [1, 1]} : vector<12x128xf32> to vector<12x32xf32>
    %c252 = arith.constant 252 : index
    %c0_248 = arith.constant 0 : index
    %406 = vector.load %arg7[%c252, %c0_248] : memref<288x32xf32, #tpu.memory_space<vmem>>, vector<12x32xf32>
    tpu.vector_store %arg7[%c252, %c0_248], %405 {strides = array<i32>} : memref<288x32xf32, #tpu.memory_space<vmem>>, vector<12x32xf32>,
    %c1056 = arith.constant 1056 : index
    %c0_249 = arith.constant 0 : index
    %407 = tpu.strided_load %arg6[%c1056, %c0_249] {strides = array<i32: 2, 1>} : memref<1152x128xf32, #tpu.memory_space<vmem>>, vector<12x128xf32>
    %c1057 = arith.constant 1057 : index
    %c0_250 = arith.constant 0 : index
    %408 = tpu.strided_load %arg6[%c1057, %c0_250] {strides = array<i32: 2, 1>} : memref<1152x128xf32, #tpu.memory_space<vmem>>, vector<12x128xf32>
    %c1080 = arith.constant 1080 : index
    %c0_251 = arith.constant 0 : index
    %409 = tpu.strided_load %arg6[%c1080, %c0_251] {strides = array<i32: 2, 1>} : memref<1152x128xf32, #tpu.memory_space<vmem>>, vector<12x128xf32>
    %c1081 = arith.constant 1081 : index
    %c0_252 = arith.constant 0 : index
    %410 = tpu.strided_load %arg6[%c1081, %c0_252] {strides = array<i32: 2, 1>} : memref<1152x128xf32, #tpu.memory_space<vmem>>, vector<12x128xf32>
    %411 = arith.maximumf %407, %408 : vector<12x128xf32>
    %412 = arith.maximumf %409, %410 : vector<12x128xf32>
    %413 = arith.maximumf %411, %412 : vector<12x128xf32>
    %414 = vector.extract_strided_slice %413 {offsets = [0, 0], sizes = [12, 32], strides = [1, 1]} : vector<12x128xf32> to vector<12x32xf32>
    %c264_253 = arith.constant 264 : index
    %c0_254 = arith.constant 0 : index
    %415 = vector.load %arg7[%c264_253, %c0_254] : memref<288x32xf32, #tpu.memory_space<vmem>>, vector<12x32xf32>
    tpu.vector_store %arg7[%c264_253, %c0_254], %414 {strides = array<i32>} : memref<288x32xf32, #tpu.memory_space<vmem>>, vector<12x32xf32>,
    %c1104 = arith.constant 1104 : index
    %c0_255 = arith.constant 0 : index
    %416 = tpu.strided_load %arg6[%c1104, %c0_255] {strides = array<i32: 2, 1>} : memref<1152x128xf32, #tpu.memory_space<vmem>>, vector<12x128xf32>
    %c1105 = arith.constant 1105 : index
    %c0_256 = arith.constant 0 : index
    %417 = tpu.strided_load %arg6[%c1105, %c0_256] {strides = array<i32: 2, 1>} : memref<1152x128xf32, #tpu.memory_space<vmem>>, vector<12x128xf32>
    %c1128 = arith.constant 1128 : index
    %c0_257 = arith.constant 0 : index
    %418 = tpu.strided_load %arg6[%c1128, %c0_257] {strides = array<i32: 2, 1>} : memref<1152x128xf32, #tpu.memory_space<vmem>>, vector<12x128xf32>
    %c1129 = arith.constant 1129 : index
    %c0_258 = arith.constant 0 : index
    %419 = tpu.strided_load %arg6[%c1129, %c0_258] {strides = array<i32: 2, 1>} : memref<1152x128xf32, #tpu.memory_space<vmem>>, vector<12x128xf32>
    %420 = arith.maximumf %416, %417 : vector<12x128xf32>
    %421 = arith.maximumf %418, %419 : vector<12x128xf32>
    %422 = arith.maximumf %420, %421 : vector<12x128xf32>
    %423 = vector.extract_strided_slice %422 {offsets = [0, 0], sizes = [12, 32], strides = [1, 1]} : vector<12x128xf32> to vector<12x32xf32>
    %c276 = arith.constant 276 : index
    %c0_259 = arith.constant 0 : index
    %424 = vector.load %arg7[%c276, %c0_259] : memref<288x32xf32, #tpu.memory_space<vmem>>, vector<12x32xf32>
    tpu.vector_store %arg7[%c276, %c0_259], %423 {strides = array<i32>} : memref<288x32xf32, #tpu.memory_space<vmem>>, vector<12x32xf32>,
    %cst_260 = arith.constant 0.000000e+00 : f32
    %425 = vector.broadcast %cst_260 : f32 to vector<1x128xf32>
    %c0_i32 = arith.constant 0 : i32
    %c10_i32 = arith.constant 10 : i32
    %426 = arith.addi %c0_i32, %c10_i32 : i32
    %c1_i32 = arith.constant 1 : i32
    %427 = scf.for %arg10 = %c0_i32 to %426 step %c1_i32 iter_args(%arg11 = %425) -> (vector<1x128xf32>)  : i32 {
      %cst_373 = arith.constant 0.000000e+00 : f32
      %590 = vector.broadcast %cst_373 : f32 to vector<10x128xf32>
      %c0_i32_374 = arith.constant 0 : i32
      %591 = arith.addi %arg10, %c0_i32_374 : i32
      %c12_i32 = arith.constant 12 : i32
      %592 = arith.muli %591, %c12_i32 : i32
      %c0_i32_375 = arith.constant 0 : i32
      %593 = arith.addi %c0_i32_375, %592 : i32
      %c0_i32_376 = arith.constant 0 : i32
      %594 = arith.addi %593, %c0_i32_376 : i32
      %595 = arith.index_cast %594 : i32 to index
      %c0_377 = arith.constant 0 : index
      %596 = vector.load %arg7[%595, %c0_377] : memref<288x32xf32, #tpu.memory_space<vmem>>, vector<10x32xf32>
      %c0_378 = arith.constant 0 : index
      %c0_379 = arith.constant 0 : index
      %c0_380 = arith.constant 0 : index
      %597 = vector.load %arg2[%c0_378, %c0_379, %c0_380] : memref<9x32x128xf32, #tpu.memory_space<vmem>>, vector<1x32x128xf32>
      %598 = vector.shape_cast %597 : vector<1x32x128xf32> to vector<32x128xf32>
      %cst_381 = arith.constant dense<0.000000e+00> : vector<10x128xf32>
      %599 = tpu.matmul %596, %598, %cst_381 {dimension_numbers = #tpu.dot_dimension_numbers<[1], [0], [0], [1], [0, 0, 1, 1], [], []>} : vector<10x32xf32>, vector<32x128xf32>, vector<10x128xf32> -> vector<10x128xf32>
      %600 = arith.addf %590, %599 : vector<10x128xf32>
      %c1_i32_382 = arith.constant 1 : i32
      %601 = arith.addi %593, %c1_i32_382 : i32
      %602 = arith.index_cast %601 : i32 to index
      %c0_383 = arith.constant 0 : index
      %603 = vector.load %arg7[%602, %c0_383] : memref<288x32xf32, #tpu.memory_space<vmem>>, vector<10x32xf32>
      %c1_384 = arith.constant 1 : index
      %c0_385 = arith.constant 0 : index
      %c0_386 = arith.constant 0 : index
      %604 = vector.load %arg2[%c1_384, %c0_385, %c0_386] : memref<9x32x128xf32, #tpu.memory_space<vmem>>, vector<1x32x128xf32>
      %605 = vector.shape_cast %604 : vector<1x32x128xf32> to vector<32x128xf32>
      %cst_387 = arith.constant dense<0.000000e+00> : vector<10x128xf32>
      %606 = tpu.matmul %603, %605, %cst_387 {dimension_numbers = #tpu.dot_dimension_numbers<[1], [0], [0], [1], [0, 0, 1, 1], [], []>} : vector<10x32xf32>, vector<32x128xf32>, vector<10x128xf32> -> vector<10x128xf32>
      %607 = arith.addf %600, %606 : vector<10x128xf32>
      %c2_i32 = arith.constant 2 : i32
      %608 = arith.addi %593, %c2_i32 : i32
      %609 = arith.index_cast %608 : i32 to index
      %c0_388 = arith.constant 0 : index
      %610 = vector.load %arg7[%609, %c0_388] : memref<288x32xf32, #tpu.memory_space<vmem>>, vector<10x32xf32>
      %c2 = arith.constant 2 : index
      %c0_389 = arith.constant 0 : index
      %c0_390 = arith.constant 0 : index
      %611 = vector.load %arg2[%c2, %c0_389, %c0_390] : memref<9x32x128xf32, #tpu.memory_space<vmem>>, vector<1x32x128xf32>
      %612 = vector.shape_cast %611 : vector<1x32x128xf32> to vector<32x128xf32>
      %cst_391 = arith.constant dense<0.000000e+00> : vector<10x128xf32>
      %613 = tpu.matmul %610, %612, %cst_391 {dimension_numbers = #tpu.dot_dimension_numbers<[1], [0], [0], [1], [0, 0, 1, 1], [], []>} : vector<10x32xf32>, vector<32x128xf32>, vector<10x128xf32> -> vector<10x128xf32>
      %614 = arith.addf %607, %613 : vector<10x128xf32>
      %c1_i32_392 = arith.constant 1 : i32
      %615 = arith.addi %arg10, %c1_i32_392 : i32
      %c12_i32_393 = arith.constant 12 : i32
      %616 = arith.muli %615, %c12_i32_393 : i32
      %c0_i32_394 = arith.constant 0 : i32
      %617 = arith.addi %c0_i32_394, %616 : i32
      %c0_i32_395 = arith.constant 0 : i32
      %618 = arith.addi %617, %c0_i32_395 : i32
      %619 = arith.index_cast %618 : i32 to index
      %c0_396 = arith.constant 0 : index
      %620 = vector.load %arg7[%619, %c0_396] : memref<288x32xf32, #tpu.memory_space<vmem>>, vector<10x32xf32>
      %c3 = arith.constant 3 : index
      %c0_397 = arith.constant 0 : index
      %c0_398 = arith.constant 0 : index
      %621 = vector.load %arg2[%c3, %c0_397, %c0_398] : memref<9x32x128xf32, #tpu.memory_space<vmem>>, vector<1x32x128xf32>
      %622 = vector.shape_cast %621 : vector<1x32x128xf32> to vector<32x128xf32>
      %cst_399 = arith.constant dense<0.000000e+00> : vector<10x128xf32>
      %623 = tpu.matmul %620, %622, %cst_399 {dimension_numbers = #tpu.dot_dimension_numbers<[1], [0], [0], [1], [0, 0, 1, 1], [], []>} : vector<10x32xf32>, vector<32x128xf32>, vector<10x128xf32> -> vector<10x128xf32>
      %624 = arith.addf %614, %623 : vector<10x128xf32>
      %c1_i32_400 = arith.constant 1 : i32
      %625 = arith.addi %617, %c1_i32_400 : i32
      %626 = arith.index_cast %625 : i32 to index
      %c0_401 = arith.constant 0 : index
      %627 = vector.load %arg7[%626, %c0_401] : memref<288x32xf32, #tpu.memory_space<vmem>>, vector<10x32xf32>
      %c4_402 = arith.constant 4 : index
      %c0_403 = arith.constant 0 : index
      %c0_404 = arith.constant 0 : index
      %628 = vector.load %arg2[%c4_402, %c0_403, %c0_404] : memref<9x32x128xf32, #tpu.memory_space<vmem>>, vector<1x32x128xf32>
      %629 = vector.shape_cast %628 : vector<1x32x128xf32> to vector<32x128xf32>
      %cst_405 = arith.constant dense<0.000000e+00> : vector<10x128xf32>
      %630 = tpu.matmul %627, %629, %cst_405 {dimension_numbers = #tpu.dot_dimension_numbers<[1], [0], [0], [1], [0, 0, 1, 1], [], []>} : vector<10x32xf32>, vector<32x128xf32>, vector<10x128xf32> -> vector<10x128xf32>
      %631 = arith.addf %624, %630 : vector<10x128xf32>
      %c2_i32_406 = arith.constant 2 : i32
      %632 = arith.addi %617, %c2_i32_406 : i32
      %633 = arith.index_cast %632 : i32 to index
      %c0_407 = arith.constant 0 : index
      %634 = vector.load %arg7[%633, %c0_407] : memref<288x32xf32, #tpu.memory_space<vmem>>, vector<10x32xf32>
      %c5 = arith.constant 5 : index
      %c0_408 = arith.constant 0 : index
      %c0_409 = arith.constant 0 : index
      %635 = vector.load %arg2[%c5, %c0_408, %c0_409] : memref<9x32x128xf32, #tpu.memory_space<vmem>>, vector<1x32x128xf32>
      %636 = vector.shape_cast %635 : vector<1x32x128xf32> to vector<32x128xf32>
      %cst_410 = arith.constant dense<0.000000e+00> : vector<10x128xf32>
      %637 = tpu.matmul %634, %636, %cst_410 {dimension_numbers = #tpu.dot_dimension_numbers<[1], [0], [0], [1], [0, 0, 1, 1], [], []>} : vector<10x32xf32>, vector<32x128xf32>, vector<10x128xf32> -> vector<10x128xf32>
      %638 = arith.addf %631, %637 : vector<10x128xf32>
      %c2_i32_411 = arith.constant 2 : i32
      %639 = arith.addi %arg10, %c2_i32_411 : i32
      %c12_i32_412 = arith.constant 12 : i32
      %640 = arith.muli %639, %c12_i32_412 : i32
      %c0_i32_413 = arith.constant 0 : i32
      %641 = arith.addi %c0_i32_413, %640 : i32
      %c0_i32_414 = arith.constant 0 : i32
      %642 = arith.addi %641, %c0_i32_414 : i32
      %643 = arith.index_cast %642 : i32 to index
      %c0_415 = arith.constant 0 : index
      %644 = vector.load %arg7[%643, %c0_415] : memref<288x32xf32, #tpu.memory_space<vmem>>, vector<10x32xf32>
      %c6 = arith.constant 6 : index
      %c0_416 = arith.constant 0 : index
      %c0_417 = arith.constant 0 : index
      %645 = vector.load %arg2[%c6, %c0_416, %c0_417] : memref<9x32x128xf32, #tpu.memory_space<vmem>>, vector<1x32x128xf32>
      %646 = vector.shape_cast %645 : vector<1x32x128xf32> to vector<32x128xf32>
      %cst_418 = arith.constant dense<0.000000e+00> : vector<10x128xf32>
      %647 = tpu.matmul %644, %646, %cst_418 {dimension_numbers = #tpu.dot_dimension_numbers<[1], [0], [0], [1], [0, 0, 1, 1], [], []>} : vector<10x32xf32>, vector<32x128xf32>, vector<10x128xf32> -> vector<10x128xf32>
      %648 = arith.addf %638, %647 : vector<10x128xf32>
      %c1_i32_419 = arith.constant 1 : i32
      %649 = arith.addi %641, %c1_i32_419 : i32
      %650 = arith.index_cast %649 : i32 to index
      %c0_420 = arith.constant 0 : index
      %651 = vector.load %arg7[%650, %c0_420] : memref<288x32xf32, #tpu.memory_space<vmem>>, vector<10x32xf32>
      %c7 = arith.constant 7 : index
      %c0_421 = arith.constant 0 : index
      %c0_422 = arith.constant 0 : index
      %652 = vector.load %arg2[%c7, %c0_421, %c0_422] : memref<9x32x128xf32, #tpu.memory_space<vmem>>, vector<1x32x128xf32>
      %653 = vector.shape_cast %652 : vector<1x32x128xf32> to vector<32x128xf32>
      %cst_423 = arith.constant dense<0.000000e+00> : vector<10x128xf32>
      %654 = tpu.matmul %651, %653, %cst_423 {dimension_numbers = #tpu.dot_dimension_numbers<[1], [0], [0], [1], [0, 0, 1, 1], [], []>} : vector<10x32xf32>, vector<32x128xf32>, vector<10x128xf32> -> vector<10x128xf32>
      %655 = arith.addf %648, %654 : vector<10x128xf32>
      %c2_i32_424 = arith.constant 2 : i32
      %656 = arith.addi %641, %c2_i32_424 : i32
      %657 = arith.index_cast %656 : i32 to index
      %c0_425 = arith.constant 0 : index
      %658 = vector.load %arg7[%657, %c0_425] : memref<288x32xf32, #tpu.memory_space<vmem>>, vector<10x32xf32>
      %c8_426 = arith.constant 8 : index
      %c0_427 = arith.constant 0 : index
      %c0_428 = arith.constant 0 : index
      %659 = vector.load %arg2[%c8_426, %c0_427, %c0_428] : memref<9x32x128xf32, #tpu.memory_space<vmem>>, vector<1x32x128xf32>
      %660 = vector.shape_cast %659 : vector<1x32x128xf32> to vector<32x128xf32>
      %cst_429 = arith.constant dense<0.000000e+00> : vector<10x128xf32>
      %661 = tpu.matmul %658, %660, %cst_429 {dimension_numbers = #tpu.dot_dimension_numbers<[1], [0], [0], [1], [0, 0, 1, 1], [], []>} : vector<10x32xf32>, vector<32x128xf32>, vector<10x128xf32> -> vector<10x128xf32>
      %662 = arith.addf %655, %661 : vector<10x128xf32>
      %c10_i32_430 = arith.constant 10 : i32
      %663 = arith.muli %arg10, %c10_i32_430 : i32
      %c0_i32_431 = arith.constant 0 : i32
      %664 = arith.addi %c0_i32_431, %663 : i32
      %665 = arith.index_cast %664 : i32 to index
      %c0_432 = arith.constant 0 : index
      %666 = vector.load %arg8[%665, %c0_432] : memref<200x128xf32, #tpu.memory_space<vmem>>, vector<10x128xf32>
      tpu.vector_store %arg8[%665, %c0_432], %662 {strides = array<i32>} : memref<200x128xf32, #tpu.memory_space<vmem>>, vector<10x128xf32>,
      %cst_433 = arith.constant dense<0.000000e+00> : vector<128xf32>
      %667 = vector.multi_reduction <add>, %662, %cst_433 [0] : vector<10x128xf32> to vector<128xf32>
      %668 = vector.shape_cast %667 : vector<128xf32> to vector<1x128xf32>
      %669 = arith.addf %arg11, %668 : vector<1x128xf32>
      scf.yield %669 : vector<1x128xf32>
    }
    %c10_i32_261 = arith.constant 10 : i32
    %c0_i32_262 = arith.constant 0 : i32
    %c10_i32_263 = arith.constant 10 : i32
    %428 = arith.addi %c0_i32_262, %c10_i32_263 : i32
    %c1_i32_264 = arith.constant 1 : i32
    %429 = scf.for %arg10 = %c0_i32_262 to %428 step %c1_i32_264 iter_args(%arg11 = %427) -> (vector<1x128xf32>)  : i32 {
      %cst_373 = arith.constant 0.000000e+00 : f32
      %590 = vector.broadcast %cst_373 : f32 to vector<10x128xf32>
      %c0_i32_374 = arith.constant 0 : i32
      %591 = arith.addi %arg10, %c0_i32_374 : i32
      %c12_i32 = arith.constant 12 : i32
      %592 = arith.muli %591, %c12_i32 : i32
      %c144_i32 = arith.constant 144 : i32
      %593 = arith.addi %c144_i32, %592 : i32
      %c0_i32_375 = arith.constant 0 : i32
      %594 = arith.addi %593, %c0_i32_375 : i32
      %595 = arith.index_cast %594 : i32 to index
      %c0_376 = arith.constant 0 : index
      %596 = vector.load %arg7[%595, %c0_376] : memref<288x32xf32, #tpu.memory_space<vmem>>, vector<10x32xf32>
      %c0_377 = arith.constant 0 : index
      %c0_378 = arith.constant 0 : index
      %c0_379 = arith.constant 0 : index
      %597 = vector.load %arg2[%c0_377, %c0_378, %c0_379] : memref<9x32x128xf32, #tpu.memory_space<vmem>>, vector<1x32x128xf32>
      %598 = vector.shape_cast %597 : vector<1x32x128xf32> to vector<32x128xf32>
      %cst_380 = arith.constant dense<0.000000e+00> : vector<10x128xf32>
      %599 = tpu.matmul %596, %598, %cst_380 {dimension_numbers = #tpu.dot_dimension_numbers<[1], [0], [0], [1], [0, 0, 1, 1], [], []>} : vector<10x32xf32>, vector<32x128xf32>, vector<10x128xf32> -> vector<10x128xf32>
      %600 = arith.addf %590, %599 : vector<10x128xf32>
      %c1_i32_381 = arith.constant 1 : i32
      %601 = arith.addi %593, %c1_i32_381 : i32
      %602 = arith.index_cast %601 : i32 to index
      %c0_382 = arith.constant 0 : index
      %603 = vector.load %arg7[%602, %c0_382] : memref<288x32xf32, #tpu.memory_space<vmem>>, vector<10x32xf32>
      %c1_383 = arith.constant 1 : index
      %c0_384 = arith.constant 0 : index
      %c0_385 = arith.constant 0 : index
      %604 = vector.load %arg2[%c1_383, %c0_384, %c0_385] : memref<9x32x128xf32, #tpu.memory_space<vmem>>, vector<1x32x128xf32>
      %605 = vector.shape_cast %604 : vector<1x32x128xf32> to vector<32x128xf32>
      %cst_386 = arith.constant dense<0.000000e+00> : vector<10x128xf32>
      %606 = tpu.matmul %603, %605, %cst_386 {dimension_numbers = #tpu.dot_dimension_numbers<[1], [0], [0], [1], [0, 0, 1, 1], [], []>} : vector<10x32xf32>, vector<32x128xf32>, vector<10x128xf32> -> vector<10x128xf32>
      %607 = arith.addf %600, %606 : vector<10x128xf32>
      %c2_i32 = arith.constant 2 : i32
      %608 = arith.addi %593, %c2_i32 : i32
      %609 = arith.index_cast %608 : i32 to index
      %c0_387 = arith.constant 0 : index
      %610 = vector.load %arg7[%609, %c0_387] : memref<288x32xf32, #tpu.memory_space<vmem>>, vector<10x32xf32>
      %c2 = arith.constant 2 : index
      %c0_388 = arith.constant 0 : index
      %c0_389 = arith.constant 0 : index
      %611 = vector.load %arg2[%c2, %c0_388, %c0_389] : memref<9x32x128xf32, #tpu.memory_space<vmem>>, vector<1x32x128xf32>
      %612 = vector.shape_cast %611 : vector<1x32x128xf32> to vector<32x128xf32>
      %cst_390 = arith.constant dense<0.000000e+00> : vector<10x128xf32>
      %613 = tpu.matmul %610, %612, %cst_390 {dimension_numbers = #tpu.dot_dimension_numbers<[1], [0], [0], [1], [0, 0, 1, 1], [], []>} : vector<10x32xf32>, vector<32x128xf32>, vector<10x128xf32> -> vector<10x128xf32>
      %614 = arith.addf %607, %613 : vector<10x128xf32>
      %c1_i32_391 = arith.constant 1 : i32
      %615 = arith.addi %arg10, %c1_i32_391 : i32
      %c12_i32_392 = arith.constant 12 : i32
      %616 = arith.muli %615, %c12_i32_392 : i32
      %c144_i32_393 = arith.constant 144 : i32
      %617 = arith.addi %c144_i32_393, %616 : i32
      %c0_i32_394 = arith.constant 0 : i32
      %618 = arith.addi %617, %c0_i32_394 : i32
      %619 = arith.index_cast %618 : i32 to index
      %c0_395 = arith.constant 0 : index
      %620 = vector.load %arg7[%619, %c0_395] : memref<288x32xf32, #tpu.memory_space<vmem>>, vector<10x32xf32>
      %c3 = arith.constant 3 : index
      %c0_396 = arith.constant 0 : index
      %c0_397 = arith.constant 0 : index
      %621 = vector.load %arg2[%c3, %c0_396, %c0_397] : memref<9x32x128xf32, #tpu.memory_space<vmem>>, vector<1x32x128xf32>
      %622 = vector.shape_cast %621 : vector<1x32x128xf32> to vector<32x128xf32>
      %cst_398 = arith.constant dense<0.000000e+00> : vector<10x128xf32>
      %623 = tpu.matmul %620, %622, %cst_398 {dimension_numbers = #tpu.dot_dimension_numbers<[1], [0], [0], [1], [0, 0, 1, 1], [], []>} : vector<10x32xf32>, vector<32x128xf32>, vector<10x128xf32> -> vector<10x128xf32>
      %624 = arith.addf %614, %623 : vector<10x128xf32>
      %c1_i32_399 = arith.constant 1 : i32
      %625 = arith.addi %617, %c1_i32_399 : i32
      %626 = arith.index_cast %625 : i32 to index
      %c0_400 = arith.constant 0 : index
      %627 = vector.load %arg7[%626, %c0_400] : memref<288x32xf32, #tpu.memory_space<vmem>>, vector<10x32xf32>
      %c4_401 = arith.constant 4 : index
      %c0_402 = arith.constant 0 : index
      %c0_403 = arith.constant 0 : index
      %628 = vector.load %arg2[%c4_401, %c0_402, %c0_403] : memref<9x32x128xf32, #tpu.memory_space<vmem>>, vector<1x32x128xf32>
      %629 = vector.shape_cast %628 : vector<1x32x128xf32> to vector<32x128xf32>
      %cst_404 = arith.constant dense<0.000000e+00> : vector<10x128xf32>
      %630 = tpu.matmul %627, %629, %cst_404 {dimension_numbers = #tpu.dot_dimension_numbers<[1], [0], [0], [1], [0, 0, 1, 1], [], []>} : vector<10x32xf32>, vector<32x128xf32>, vector<10x128xf32> -> vector<10x128xf32>
      %631 = arith.addf %624, %630 : vector<10x128xf32>
      %c2_i32_405 = arith.constant 2 : i32
      %632 = arith.addi %617, %c2_i32_405 : i32
      %633 = arith.index_cast %632 : i32 to index
      %c0_406 = arith.constant 0 : index
      %634 = vector.load %arg7[%633, %c0_406] : memref<288x32xf32, #tpu.memory_space<vmem>>, vector<10x32xf32>
      %c5 = arith.constant 5 : index
      %c0_407 = arith.constant 0 : index
      %c0_408 = arith.constant 0 : index
      %635 = vector.load %arg2[%c5, %c0_407, %c0_408] : memref<9x32x128xf32, #tpu.memory_space<vmem>>, vector<1x32x128xf32>
      %636 = vector.shape_cast %635 : vector<1x32x128xf32> to vector<32x128xf32>
      %cst_409 = arith.constant dense<0.000000e+00> : vector<10x128xf32>
      %637 = tpu.matmul %634, %636, %cst_409 {dimension_numbers = #tpu.dot_dimension_numbers<[1], [0], [0], [1], [0, 0, 1, 1], [], []>} : vector<10x32xf32>, vector<32x128xf32>, vector<10x128xf32> -> vector<10x128xf32>
      %638 = arith.addf %631, %637 : vector<10x128xf32>
      %c2_i32_410 = arith.constant 2 : i32
      %639 = arith.addi %arg10, %c2_i32_410 : i32
      %c12_i32_411 = arith.constant 12 : i32
      %640 = arith.muli %639, %c12_i32_411 : i32
      %c144_i32_412 = arith.constant 144 : i32
      %641 = arith.addi %c144_i32_412, %640 : i32
      %c0_i32_413 = arith.constant 0 : i32
      %642 = arith.addi %641, %c0_i32_413 : i32
      %643 = arith.index_cast %642 : i32 to index
      %c0_414 = arith.constant 0 : index
      %644 = vector.load %arg7[%643, %c0_414] : memref<288x32xf32, #tpu.memory_space<vmem>>, vector<10x32xf32>
      %c6 = arith.constant 6 : index
      %c0_415 = arith.constant 0 : index
      %c0_416 = arith.constant 0 : index
      %645 = vector.load %arg2[%c6, %c0_415, %c0_416] : memref<9x32x128xf32, #tpu.memory_space<vmem>>, vector<1x32x128xf32>
      %646 = vector.shape_cast %645 : vector<1x32x128xf32> to vector<32x128xf32>
      %cst_417 = arith.constant dense<0.000000e+00> : vector<10x128xf32>
      %647 = tpu.matmul %644, %646, %cst_417 {dimension_numbers = #tpu.dot_dimension_numbers<[1], [0], [0], [1], [0, 0, 1, 1], [], []>} : vector<10x32xf32>, vector<32x128xf32>, vector<10x128xf32> -> vector<10x128xf32>
      %648 = arith.addf %638, %647 : vector<10x128xf32>
      %c1_i32_418 = arith.constant 1 : i32
      %649 = arith.addi %641, %c1_i32_418 : i32
      %650 = arith.index_cast %649 : i32 to index
      %c0_419 = arith.constant 0 : index
      %651 = vector.load %arg7[%650, %c0_419] : memref<288x32xf32, #tpu.memory_space<vmem>>, vector<10x32xf32>
      %c7 = arith.constant 7 : index
      %c0_420 = arith.constant 0 : index
      %c0_421 = arith.constant 0 : index
      %652 = vector.load %arg2[%c7, %c0_420, %c0_421] : memref<9x32x128xf32, #tpu.memory_space<vmem>>, vector<1x32x128xf32>
      %653 = vector.shape_cast %652 : vector<1x32x128xf32> to vector<32x128xf32>
      %cst_422 = arith.constant dense<0.000000e+00> : vector<10x128xf32>
      %654 = tpu.matmul %651, %653, %cst_422 {dimension_numbers = #tpu.dot_dimension_numbers<[1], [0], [0], [1], [0, 0, 1, 1], [], []>} : vector<10x32xf32>, vector<32x128xf32>, vector<10x128xf32> -> vector<10x128xf32>
      %655 = arith.addf %648, %654 : vector<10x128xf32>
      %c2_i32_423 = arith.constant 2 : i32
      %656 = arith.addi %641, %c2_i32_423 : i32
      %657 = arith.index_cast %656 : i32 to index
      %c0_424 = arith.constant 0 : index
      %658 = vector.load %arg7[%657, %c0_424] : memref<288x32xf32, #tpu.memory_space<vmem>>, vector<10x32xf32>
      %c8_425 = arith.constant 8 : index
      %c0_426 = arith.constant 0 : index
      %c0_427 = arith.constant 0 : index
      %659 = vector.load %arg2[%c8_425, %c0_426, %c0_427] : memref<9x32x128xf32, #tpu.memory_space<vmem>>, vector<1x32x128xf32>
      %660 = vector.shape_cast %659 : vector<1x32x128xf32> to vector<32x128xf32>
      %cst_428 = arith.constant dense<0.000000e+00> : vector<10x128xf32>
      %661 = tpu.matmul %658, %660, %cst_428 {dimension_numbers = #tpu.dot_dimension_numbers<[1], [0], [0], [1], [0, 0, 1, 1], [], []>} : vector<10x32xf32>, vector<32x128xf32>, vector<10x128xf32> -> vector<10x128xf32>
      %662 = arith.addf %655, %661 : vector<10x128xf32>
      %c10_i32_429 = arith.constant 10 : i32
      %663 = arith.muli %arg10, %c10_i32_429 : i32
      %c100_i32 = arith.constant 100 : i32
      %664 = arith.addi %c100_i32, %663 : i32
      %665 = arith.index_cast %664 : i32 to index
      %c0_430 = arith.constant 0 : index
      %666 = vector.load %arg8[%665, %c0_430] : memref<200x128xf32, #tpu.memory_space<vmem>>, vector<10x128xf32>
      tpu.vector_store %arg8[%665, %c0_430], %662 {strides = array<i32>} : memref<200x128xf32, #tpu.memory_space<vmem>>, vector<10x128xf32>,
      %cst_431 = arith.constant dense<0.000000e+00> : vector<128xf32>
      %667 = vector.multi_reduction <add>, %662, %cst_431 [0] : vector<10x128xf32> to vector<128xf32>
      %668 = vector.shape_cast %667 : vector<128xf32> to vector<1x128xf32>
      %669 = arith.addf %arg11, %668 : vector<1x128xf32>
      scf.yield %669 : vector<1x128xf32>
    }
    %c10_i32_265 = arith.constant 10 : i32
    %cst_266 = arith.constant 5.000000e-03 : f32
    %430 = vector.broadcast %cst_266 : f32 to vector<1x128xf32>
    %431 = arith.mulf %429, %430 : vector<1x128xf32>
    %cst_267 = arith.constant 0.000000e+00 : f32
    %432 = vector.broadcast %cst_267 : f32 to vector<1x128xf32>
    %c0_268 = arith.constant 0 : index
    %c0_269 = arith.constant 0 : index
    %433 = vector.load %arg8[%c0_268, %c0_269] : memref<200x128xf32, #tpu.memory_space<vmem>>, vector<128x128xf32>
    %434 = vector.broadcast %431 : vector<1x128xf32> to vector<128x128xf32>
    %435 = arith.subf %433, %434 : vector<128x128xf32>
    %436 = arith.mulf %435, %435 : vector<128x128xf32>
    %cst_270 = arith.constant dense<0.000000e+00> : vector<128xf32>
    %437 = vector.multi_reduction <add>, %436, %cst_270 [0] : vector<128x128xf32> to vector<128xf32>
    %438 = vector.shape_cast %437 : vector<128xf32> to vector<1x128xf32>
    %439 = arith.addf %432, %438 : vector<1x128xf32>
    %c128_271 = arith.constant 128 : index
    %c0_272 = arith.constant 0 : index
    %440 = vector.load %arg8[%c128_271, %c0_272] : memref<200x128xf32, #tpu.memory_space<vmem>>, vector<72x128xf32>
    %441 = vector.broadcast %431 : vector<1x128xf32> to vector<72x128xf32>
    %442 = arith.subf %440, %441 : vector<72x128xf32>
    %443 = arith.mulf %442, %442 : vector<72x128xf32>
    %cst_273 = arith.constant dense<0.000000e+00> : vector<128xf32>
    %444 = vector.multi_reduction <add>, %443, %cst_273 [0] : vector<72x128xf32> to vector<128xf32>
    %445 = vector.shape_cast %444 : vector<128xf32> to vector<1x128xf32>
    %446 = arith.addf %439, %445 : vector<1x128xf32>
    %cst_274 = arith.constant 5.000000e-03 : f32
    %447 = vector.broadcast %cst_274 : f32 to vector<1x128xf32>
    %448 = arith.mulf %446, %447 : vector<1x128xf32>
    %cst_275 = arith.constant 9.99999974E-6 : f32
    %449 = vector.broadcast %cst_275 : f32 to vector<1x128xf32>
    %450 = arith.addf %448, %449 : vector<1x128xf32>
    %451 = math.rsqrt %450 : vector<1x128xf32>
    %452 = arith.mulf %3, %451 : vector<1x128xf32>
    %453 = arith.mulf %431, %452 : vector<1x128xf32>
    %454 = arith.subf %4, %453 : vector<1x128xf32>
    %c0_276 = arith.constant 0 : index
    %c0_277 = arith.constant 0 : index
    %455 = vector.load %arg8[%c0_276, %c0_277] : memref<200x128xf32, #tpu.memory_space<vmem>>, vector<128x128xf32>
    %456 = vector.broadcast %452 : vector<1x128xf32> to vector<128x128xf32>
    %457 = arith.mulf %455, %456 : vector<128x128xf32>
    %458 = vector.broadcast %454 : vector<1x128xf32> to vector<128x128xf32>
    %459 = arith.addf %457, %458 : vector<128x128xf32>
    %cst_278 = arith.constant 0.000000e+00 : f32
    %460 = vector.broadcast %cst_278 : f32 to vector<128x128xf32>
    %461 = arith.maximumf %459, %460 : vector<128x128xf32>
    %c0_279 = arith.constant 0 : index
    %c0_280 = arith.constant 0 : index
    %462 = vector.load %arg8[%c0_279, %c0_280] : memref<200x128xf32, #tpu.memory_space<vmem>>, vector<128x128xf32>
    tpu.vector_store %arg8[%c0_279, %c0_280], %461 {strides = array<i32>} : memref<200x128xf32, #tpu.memory_space<vmem>>, vector<128x128xf32>,
    %c128_281 = arith.constant 128 : index
    %c0_282 = arith.constant 0 : index
    %463 = vector.load %arg8[%c128_281, %c0_282] : memref<200x128xf32, #tpu.memory_space<vmem>>, vector<72x128xf32>
    %464 = vector.broadcast %452 : vector<1x128xf32> to vector<72x128xf32>
    %465 = arith.mulf %463, %464 : vector<72x128xf32>
    %466 = vector.broadcast %454 : vector<1x128xf32> to vector<72x128xf32>
    %467 = arith.addf %465, %466 : vector<72x128xf32>
    %cst_283 = arith.constant 0.000000e+00 : f32
    %468 = vector.broadcast %cst_283 : f32 to vector<72x128xf32>
    %469 = arith.maximumf %467, %468 : vector<72x128xf32>
    %c128_284 = arith.constant 128 : index
    %c0_285 = arith.constant 0 : index
    %470 = vector.load %arg8[%c128_284, %c0_285] : memref<200x128xf32, #tpu.memory_space<vmem>>, vector<72x128xf32>
    tpu.vector_store %arg8[%c128_284, %c0_285], %469 {strides = array<i32>} : memref<200x128xf32, #tpu.memory_space<vmem>>, vector<72x128xf32>,
    %cst_286 = arith.constant 0.000000e+00 : f32
    %471 = vector.broadcast %cst_286 : f32 to vector<1x128xf32>
    %c0_i32_287 = arith.constant 0 : i32
    %c8_i32 = arith.constant 8 : i32
    %472 = arith.addi %c0_i32_287, %c8_i32 : i32
    %c1_i32_288 = arith.constant 1 : i32
    %473 = scf.for %arg10 = %c0_i32_287 to %472 step %c1_i32_288 iter_args(%arg11 = %471) -> (vector<1x128xf32>)  : i32 {
      %cst_373 = arith.constant 0.000000e+00 : f32
      %590 = vector.broadcast %cst_373 : f32 to vector<8x128xf32>
      %c0_i32_374 = arith.constant 0 : i32
      %591 = arith.addi %arg10, %c0_i32_374 : i32
      %c10_i32_375 = arith.constant 10 : i32
      %592 = arith.muli %591, %c10_i32_375 : i32
      %c0_i32_376 = arith.constant 0 : i32
      %593 = arith.addi %c0_i32_376, %592 : i32
      %c0_i32_377 = arith.constant 0 : i32
      %594 = arith.addi %593, %c0_i32_377 : i32
      %595 = arith.index_cast %594 : i32 to index
      %c0_378 = arith.constant 0 : index
      %596 = vector.load %arg8[%595, %c0_378] : memref<200x128xf32, #tpu.memory_space<vmem>>, vector<8x128xf32>
      %597 = vector.extract_strided_slice %596 {offsets = [0, 0], sizes = [8, 64], strides = [1, 1]} : vector<8x128xf32> to vector<8x64xf32>
      %c0_379 = arith.constant 0 : index
      %c0_380 = arith.constant 0 : index
      %c0_381 = arith.constant 0 : index
      %598 = vector.load %arg3[%c0_379, %c0_380, %c0_381] : memref<9x64x128xf32, #tpu.memory_space<vmem>>, vector<1x64x128xf32>
      %599 = vector.shape_cast %598 : vector<1x64x128xf32> to vector<64x128xf32>
      %cst_382 = arith.constant dense<0.000000e+00> : vector<8x128xf32>
      %600 = tpu.matmul %597, %599, %cst_382 {dimension_numbers = #tpu.dot_dimension_numbers<[1], [0], [0], [1], [0, 0, 1, 1], [], []>} : vector<8x64xf32>, vector<64x128xf32>, vector<8x128xf32> -> vector<8x128xf32>
      %601 = arith.addf %590, %600 : vector<8x128xf32>
      %c1_i32_383 = arith.constant 1 : i32
      %602 = arith.addi %593, %c1_i32_383 : i32
      %603 = arith.index_cast %602 : i32 to index
      %c0_384 = arith.constant 0 : index
      %604 = vector.load %arg8[%603, %c0_384] : memref<200x128xf32, #tpu.memory_space<vmem>>, vector<8x128xf32>
      %605 = vector.extract_strided_slice %604 {offsets = [0, 0], sizes = [8, 64], strides = [1, 1]} : vector<8x128xf32> to vector<8x64xf32>
      %c1_385 = arith.constant 1 : index
      %c0_386 = arith.constant 0 : index
      %c0_387 = arith.constant 0 : index
      %606 = vector.load %arg3[%c1_385, %c0_386, %c0_387] : memref<9x64x128xf32, #tpu.memory_space<vmem>>, vector<1x64x128xf32>
      %607 = vector.shape_cast %606 : vector<1x64x128xf32> to vector<64x128xf32>
      %cst_388 = arith.constant dense<0.000000e+00> : vector<8x128xf32>
      %608 = tpu.matmul %605, %607, %cst_388 {dimension_numbers = #tpu.dot_dimension_numbers<[1], [0], [0], [1], [0, 0, 1, 1], [], []>} : vector<8x64xf32>, vector<64x128xf32>, vector<8x128xf32> -> vector<8x128xf32>
      %609 = arith.addf %601, %608 : vector<8x128xf32>
      %c2_i32 = arith.constant 2 : i32
      %610 = arith.addi %593, %c2_i32 : i32
      %611 = arith.index_cast %610 : i32 to index
      %c0_389 = arith.constant 0 : index
      %612 = vector.load %arg8[%611, %c0_389] : memref<200x128xf32, #tpu.memory_space<vmem>>, vector<8x128xf32>
      %613 = vector.extract_strided_slice %612 {offsets = [0, 0], sizes = [8, 64], strides = [1, 1]} : vector<8x128xf32> to vector<8x64xf32>
      %c2 = arith.constant 2 : index
      %c0_390 = arith.constant 0 : index
      %c0_391 = arith.constant 0 : index
      %614 = vector.load %arg3[%c2, %c0_390, %c0_391] : memref<9x64x128xf32, #tpu.memory_space<vmem>>, vector<1x64x128xf32>
      %615 = vector.shape_cast %614 : vector<1x64x128xf32> to vector<64x128xf32>
      %cst_392 = arith.constant dense<0.000000e+00> : vector<8x128xf32>
      %616 = tpu.matmul %613, %615, %cst_392 {dimension_numbers = #tpu.dot_dimension_numbers<[1], [0], [0], [1], [0, 0, 1, 1], [], []>} : vector<8x64xf32>, vector<64x128xf32>, vector<8x128xf32> -> vector<8x128xf32>
      %617 = arith.addf %609, %616 : vector<8x128xf32>
      %c1_i32_393 = arith.constant 1 : i32
      %618 = arith.addi %arg10, %c1_i32_393 : i32
      %c10_i32_394 = arith.constant 10 : i32
      %619 = arith.muli %618, %c10_i32_394 : i32
      %c0_i32_395 = arith.constant 0 : i32
      %620 = arith.addi %c0_i32_395, %619 : i32
      %c0_i32_396 = arith.constant 0 : i32
      %621 = arith.addi %620, %c0_i32_396 : i32
      %622 = arith.index_cast %621 : i32 to index
      %c0_397 = arith.constant 0 : index
      %623 = vector.load %arg8[%622, %c0_397] : memref<200x128xf32, #tpu.memory_space<vmem>>, vector<8x128xf32>
      %624 = vector.extract_strided_slice %623 {offsets = [0, 0], sizes = [8, 64], strides = [1, 1]} : vector<8x128xf32> to vector<8x64xf32>
      %c3 = arith.constant 3 : index
      %c0_398 = arith.constant 0 : index
      %c0_399 = arith.constant 0 : index
      %625 = vector.load %arg3[%c3, %c0_398, %c0_399] : memref<9x64x128xf32, #tpu.memory_space<vmem>>, vector<1x64x128xf32>
      %626 = vector.shape_cast %625 : vector<1x64x128xf32> to vector<64x128xf32>
      %cst_400 = arith.constant dense<0.000000e+00> : vector<8x128xf32>
      %627 = tpu.matmul %624, %626, %cst_400 {dimension_numbers = #tpu.dot_dimension_numbers<[1], [0], [0], [1], [0, 0, 1, 1], [], []>} : vector<8x64xf32>, vector<64x128xf32>, vector<8x128xf32> -> vector<8x128xf32>
      %628 = arith.addf %617, %627 : vector<8x128xf32>
      %c1_i32_401 = arith.constant 1 : i32
      %629 = arith.addi %620, %c1_i32_401 : i32
      %630 = arith.index_cast %629 : i32 to index
      %c0_402 = arith.constant 0 : index
      %631 = vector.load %arg8[%630, %c0_402] : memref<200x128xf32, #tpu.memory_space<vmem>>, vector<8x128xf32>
      %632 = vector.extract_strided_slice %631 {offsets = [0, 0], sizes = [8, 64], strides = [1, 1]} : vector<8x128xf32> to vector<8x64xf32>
      %c4_403 = arith.constant 4 : index
      %c0_404 = arith.constant 0 : index
      %c0_405 = arith.constant 0 : index
      %633 = vector.load %arg3[%c4_403, %c0_404, %c0_405] : memref<9x64x128xf32, #tpu.memory_space<vmem>>, vector<1x64x128xf32>
      %634 = vector.shape_cast %633 : vector<1x64x128xf32> to vector<64x128xf32>
      %cst_406 = arith.constant dense<0.000000e+00> : vector<8x128xf32>
      %635 = tpu.matmul %632, %634, %cst_406 {dimension_numbers = #tpu.dot_dimension_numbers<[1], [0], [0], [1], [0, 0, 1, 1], [], []>} : vector<8x64xf32>, vector<64x128xf32>, vector<8x128xf32> -> vector<8x128xf32>
      %636 = arith.addf %628, %635 : vector<8x128xf32>
      %c2_i32_407 = arith.constant 2 : i32
      %637 = arith.addi %620, %c2_i32_407 : i32
      %638 = arith.index_cast %637 : i32 to index
      %c0_408 = arith.constant 0 : index
      %639 = vector.load %arg8[%638, %c0_408] : memref<200x128xf32, #tpu.memory_space<vmem>>, vector<8x128xf32>
      %640 = vector.extract_strided_slice %639 {offsets = [0, 0], sizes = [8, 64], strides = [1, 1]} : vector<8x128xf32> to vector<8x64xf32>
      %c5 = arith.constant 5 : index
      %c0_409 = arith.constant 0 : index
      %c0_410 = arith.constant 0 : index
      %641 = vector.load %arg3[%c5, %c0_409, %c0_410] : memref<9x64x128xf32, #tpu.memory_space<vmem>>, vector<1x64x128xf32>
      %642 = vector.shape_cast %641 : vector<1x64x128xf32> to vector<64x128xf32>
      %cst_411 = arith.constant dense<0.000000e+00> : vector<8x128xf32>
      %643 = tpu.matmul %640, %642, %cst_411 {dimension_numbers = #tpu.dot_dimension_numbers<[1], [0], [0], [1], [0, 0, 1, 1], [], []>} : vector<8x64xf32>, vector<64x128xf32>, vector<8x128xf32> -> vector<8x128xf32>
      %644 = arith.addf %636, %643 : vector<8x128xf32>
      %c2_i32_412 = arith.constant 2 : i32
      %645 = arith.addi %arg10, %c2_i32_412 : i32
      %c10_i32_413 = arith.constant 10 : i32
      %646 = arith.muli %645, %c10_i32_413 : i32
      %c0_i32_414 = arith.constant 0 : i32
      %647 = arith.addi %c0_i32_414, %646 : i32
      %c0_i32_415 = arith.constant 0 : i32
      %648 = arith.addi %647, %c0_i32_415 : i32
      %649 = arith.index_cast %648 : i32 to index
      %c0_416 = arith.constant 0 : index
      %650 = vector.load %arg8[%649, %c0_416] : memref<200x128xf32, #tpu.memory_space<vmem>>, vector<8x128xf32>
      %651 = vector.extract_strided_slice %650 {offsets = [0, 0], sizes = [8, 64], strides = [1, 1]} : vector<8x128xf32> to vector<8x64xf32>
      %c6 = arith.constant 6 : index
      %c0_417 = arith.constant 0 : index
      %c0_418 = arith.constant 0 : index
      %652 = vector.load %arg3[%c6, %c0_417, %c0_418] : memref<9x64x128xf32, #tpu.memory_space<vmem>>, vector<1x64x128xf32>
      %653 = vector.shape_cast %652 : vector<1x64x128xf32> to vector<64x128xf32>
      %cst_419 = arith.constant dense<0.000000e+00> : vector<8x128xf32>
      %654 = tpu.matmul %651, %653, %cst_419 {dimension_numbers = #tpu.dot_dimension_numbers<[1], [0], [0], [1], [0, 0, 1, 1], [], []>} : vector<8x64xf32>, vector<64x128xf32>, vector<8x128xf32> -> vector<8x128xf32>
      %655 = arith.addf %644, %654 : vector<8x128xf32>
      %c1_i32_420 = arith.constant 1 : i32
      %656 = arith.addi %647, %c1_i32_420 : i32
      %657 = arith.index_cast %656 : i32 to index
      %c0_421 = arith.constant 0 : index
      %658 = vector.load %arg8[%657, %c0_421] : memref<200x128xf32, #tpu.memory_space<vmem>>, vector<8x128xf32>
      %659 = vector.extract_strided_slice %658 {offsets = [0, 0], sizes = [8, 64], strides = [1, 1]} : vector<8x128xf32> to vector<8x64xf32>
      %c7 = arith.constant 7 : index
      %c0_422 = arith.constant 0 : index
      %c0_423 = arith.constant 0 : index
      %660 = vector.load %arg3[%c7, %c0_422, %c0_423] : memref<9x64x128xf32, #tpu.memory_space<vmem>>, vector<1x64x128xf32>
      %661 = vector.shape_cast %660 : vector<1x64x128xf32> to vector<64x128xf32>
      %cst_424 = arith.constant dense<0.000000e+00> : vector<8x128xf32>
      %662 = tpu.matmul %659, %661, %cst_424 {dimension_numbers = #tpu.dot_dimension_numbers<[1], [0], [0], [1], [0, 0, 1, 1], [], []>} : vector<8x64xf32>, vector<64x128xf32>, vector<8x128xf32> -> vector<8x128xf32>
      %663 = arith.addf %655, %662 : vector<8x128xf32>
      %c2_i32_425 = arith.constant 2 : i32
      %664 = arith.addi %647, %c2_i32_425 : i32
      %665 = arith.index_cast %664 : i32 to index
      %c0_426 = arith.constant 0 : index
      %666 = vector.load %arg8[%665, %c0_426] : memref<200x128xf32, #tpu.memory_space<vmem>>, vector<8x128xf32>
      %667 = vector.extract_strided_slice %666 {offsets = [0, 0], sizes = [8, 64], strides = [1, 1]} : vector<8x128xf32> to vector<8x64xf32>
      %c8_427 = arith.constant 8 : index
      %c0_428 = arith.constant 0 : index
      %c0_429 = arith.constant 0 : index
      %668 = vector.load %arg3[%c8_427, %c0_428, %c0_429] : memref<9x64x128xf32, #tpu.memory_space<vmem>>, vector<1x64x128xf32>
      %669 = vector.shape_cast %668 : vector<1x64x128xf32> to vector<64x128xf32>
      %cst_430 = arith.constant dense<0.000000e+00> : vector<8x128xf32>
      %670 = tpu.matmul %667, %669, %cst_430 {dimension_numbers = #tpu.dot_dimension_numbers<[1], [0], [0], [1], [0, 0, 1, 1], [], []>} : vector<8x64xf32>, vector<64x128xf32>, vector<8x128xf32> -> vector<8x128xf32>
      %671 = arith.addf %663, %670 : vector<8x128xf32>
      %c8_i32_431 = arith.constant 8 : i32
      %672 = arith.muli %arg10, %c8_i32_431 : i32
      %c0_i32_432 = arith.constant 0 : i32
      %673 = arith.addi %c0_i32_432, %672 : i32
      %674 = arith.index_cast %673 : i32 to index
      %c0_433 = arith.constant 0 : index
      %675 = vector.load %arg9[%674, %c0_433] : memref<128x128xf32, #tpu.memory_space<vmem>>, vector<8x128xf32>
      tpu.vector_store %arg9[%674, %c0_433], %671 {strides = array<i32>} : memref<128x128xf32, #tpu.memory_space<vmem>>, vector<8x128xf32>,
      %cst_434 = arith.constant dense<0.000000e+00> : vector<128xf32>
      %676 = vector.multi_reduction <add>, %671, %cst_434 [0] : vector<8x128xf32> to vector<128xf32>
      %677 = vector.shape_cast %676 : vector<128xf32> to vector<1x128xf32>
      %678 = arith.addf %arg11, %677 : vector<1x128xf32>
      scf.yield %678 : vector<1x128xf32>
    }
    %c8_i32_289 = arith.constant 8 : i32
    %c0_i32_290 = arith.constant 0 : i32
    %c8_i32_291 = arith.constant 8 : i32
    %474 = arith.addi %c0_i32_290, %c8_i32_291 : i32
    %c1_i32_292 = arith.constant 1 : i32
    %475 = scf.for %arg10 = %c0_i32_290 to %474 step %c1_i32_292 iter_args(%arg11 = %473) -> (vector<1x128xf32>)  : i32 {
      %cst_373 = arith.constant 0.000000e+00 : f32
      %590 = vector.broadcast %cst_373 : f32 to vector<8x128xf32>
      %c0_i32_374 = arith.constant 0 : i32
      %591 = arith.addi %arg10, %c0_i32_374 : i32
      %c10_i32_375 = arith.constant 10 : i32
      %592 = arith.muli %591, %c10_i32_375 : i32
      %c100_i32 = arith.constant 100 : i32
      %593 = arith.addi %c100_i32, %592 : i32
      %c0_i32_376 = arith.constant 0 : i32
      %594 = arith.addi %593, %c0_i32_376 : i32
      %595 = arith.index_cast %594 : i32 to index
      %c0_377 = arith.constant 0 : index
      %596 = vector.load %arg8[%595, %c0_377] : memref<200x128xf32, #tpu.memory_space<vmem>>, vector<8x128xf32>
      %597 = vector.extract_strided_slice %596 {offsets = [0, 0], sizes = [8, 64], strides = [1, 1]} : vector<8x128xf32> to vector<8x64xf32>
      %c0_378 = arith.constant 0 : index
      %c0_379 = arith.constant 0 : index
      %c0_380 = arith.constant 0 : index
      %598 = vector.load %arg3[%c0_378, %c0_379, %c0_380] : memref<9x64x128xf32, #tpu.memory_space<vmem>>, vector<1x64x128xf32>
      %599 = vector.shape_cast %598 : vector<1x64x128xf32> to vector<64x128xf32>
      %cst_381 = arith.constant dense<0.000000e+00> : vector<8x128xf32>
      %600 = tpu.matmul %597, %599, %cst_381 {dimension_numbers = #tpu.dot_dimension_numbers<[1], [0], [0], [1], [0, 0, 1, 1], [], []>} : vector<8x64xf32>, vector<64x128xf32>, vector<8x128xf32> -> vector<8x128xf32>
      %601 = arith.addf %590, %600 : vector<8x128xf32>
      %c1_i32_382 = arith.constant 1 : i32
      %602 = arith.addi %593, %c1_i32_382 : i32
      %603 = arith.index_cast %602 : i32 to index
      %c0_383 = arith.constant 0 : index
      %604 = vector.load %arg8[%603, %c0_383] : memref<200x128xf32, #tpu.memory_space<vmem>>, vector<8x128xf32>
      %605 = vector.extract_strided_slice %604 {offsets = [0, 0], sizes = [8, 64], strides = [1, 1]} : vector<8x128xf32> to vector<8x64xf32>
      %c1_384 = arith.constant 1 : index
      %c0_385 = arith.constant 0 : index
      %c0_386 = arith.constant 0 : index
      %606 = vector.load %arg3[%c1_384, %c0_385, %c0_386] : memref<9x64x128xf32, #tpu.memory_space<vmem>>, vector<1x64x128xf32>
      %607 = vector.shape_cast %606 : vector<1x64x128xf32> to vector<64x128xf32>
      %cst_387 = arith.constant dense<0.000000e+00> : vector<8x128xf32>
      %608 = tpu.matmul %605, %607, %cst_387 {dimension_numbers = #tpu.dot_dimension_numbers<[1], [0], [0], [1], [0, 0, 1, 1], [], []>} : vector<8x64xf32>, vector<64x128xf32>, vector<8x128xf32> -> vector<8x128xf32>
      %609 = arith.addf %601, %608 : vector<8x128xf32>
      %c2_i32 = arith.constant 2 : i32
      %610 = arith.addi %593, %c2_i32 : i32
      %611 = arith.index_cast %610 : i32 to index
      %c0_388 = arith.constant 0 : index
      %612 = vector.load %arg8[%611, %c0_388] : memref<200x128xf32, #tpu.memory_space<vmem>>, vector<8x128xf32>
      %613 = vector.extract_strided_slice %612 {offsets = [0, 0], sizes = [8, 64], strides = [1, 1]} : vector<8x128xf32> to vector<8x64xf32>
      %c2 = arith.constant 2 : index
      %c0_389 = arith.constant 0 : index
      %c0_390 = arith.constant 0 : index
      %614 = vector.load %arg3[%c2, %c0_389, %c0_390] : memref<9x64x128xf32, #tpu.memory_space<vmem>>, vector<1x64x128xf32>
      %615 = vector.shape_cast %614 : vector<1x64x128xf32> to vector<64x128xf32>
      %cst_391 = arith.constant dense<0.000000e+00> : vector<8x128xf32>
      %616 = tpu.matmul %613, %615, %cst_391 {dimension_numbers = #tpu.dot_dimension_numbers<[1], [0], [0], [1], [0, 0, 1, 1], [], []>} : vector<8x64xf32>, vector<64x128xf32>, vector<8x128xf32> -> vector<8x128xf32>
      %617 = arith.addf %609, %616 : vector<8x128xf32>
      %c1_i32_392 = arith.constant 1 : i32
      %618 = arith.addi %arg10, %c1_i32_392 : i32
      %c10_i32_393 = arith.constant 10 : i32
      %619 = arith.muli %618, %c10_i32_393 : i32
      %c100_i32_394 = arith.constant 100 : i32
      %620 = arith.addi %c100_i32_394, %619 : i32
      %c0_i32_395 = arith.constant 0 : i32
      %621 = arith.addi %620, %c0_i32_395 : i32
      %622 = arith.index_cast %621 : i32 to index
      %c0_396 = arith.constant 0 : index
      %623 = vector.load %arg8[%622, %c0_396] : memref<200x128xf32, #tpu.memory_space<vmem>>, vector<8x128xf32>
      %624 = vector.extract_strided_slice %623 {offsets = [0, 0], sizes = [8, 64], strides = [1, 1]} : vector<8x128xf32> to vector<8x64xf32>
      %c3 = arith.constant 3 : index
      %c0_397 = arith.constant 0 : index
      %c0_398 = arith.constant 0 : index
      %625 = vector.load %arg3[%c3, %c0_397, %c0_398] : memref<9x64x128xf32, #tpu.memory_space<vmem>>, vector<1x64x128xf32>
      %626 = vector.shape_cast %625 : vector<1x64x128xf32> to vector<64x128xf32>
      %cst_399 = arith.constant dense<0.000000e+00> : vector<8x128xf32>
      %627 = tpu.matmul %624, %626, %cst_399 {dimension_numbers = #tpu.dot_dimension_numbers<[1], [0], [0], [1], [0, 0, 1, 1], [], []>} : vector<8x64xf32>, vector<64x128xf32>, vector<8x128xf32> -> vector<8x128xf32>
      %628 = arith.addf %617, %627 : vector<8x128xf32>
      %c1_i32_400 = arith.constant 1 : i32
      %629 = arith.addi %620, %c1_i32_400 : i32
      %630 = arith.index_cast %629 : i32 to index
      %c0_401 = arith.constant 0 : index
      %631 = vector.load %arg8[%630, %c0_401] : memref<200x128xf32, #tpu.memory_space<vmem>>, vector<8x128xf32>
      %632 = vector.extract_strided_slice %631 {offsets = [0, 0], sizes = [8, 64], strides = [1, 1]} : vector<8x128xf32> to vector<8x64xf32>
      %c4_402 = arith.constant 4 : index
      %c0_403 = arith.constant 0 : index
      %c0_404 = arith.constant 0 : index
      %633 = vector.load %arg3[%c4_402, %c0_403, %c0_404] : memref<9x64x128xf32, #tpu.memory_space<vmem>>, vector<1x64x128xf32>
      %634 = vector.shape_cast %633 : vector<1x64x128xf32> to vector<64x128xf32>
      %cst_405 = arith.constant dense<0.000000e+00> : vector<8x128xf32>
      %635 = tpu.matmul %632, %634, %cst_405 {dimension_numbers = #tpu.dot_dimension_numbers<[1], [0], [0], [1], [0, 0, 1, 1], [], []>} : vector<8x64xf32>, vector<64x128xf32>, vector<8x128xf32> -> vector<8x128xf32>
      %636 = arith.addf %628, %635 : vector<8x128xf32>
      %c2_i32_406 = arith.constant 2 : i32
      %637 = arith.addi %620, %c2_i32_406 : i32
      %638 = arith.index_cast %637 : i32 to index
      %c0_407 = arith.constant 0 : index
      %639 = vector.load %arg8[%638, %c0_407] : memref<200x128xf32, #tpu.memory_space<vmem>>, vector<8x128xf32>
      %640 = vector.extract_strided_slice %639 {offsets = [0, 0], sizes = [8, 64], strides = [1, 1]} : vector<8x128xf32> to vector<8x64xf32>
      %c5 = arith.constant 5 : index
      %c0_408 = arith.constant 0 : index
      %c0_409 = arith.constant 0 : index
      %641 = vector.load %arg3[%c5, %c0_408, %c0_409] : memref<9x64x128xf32, #tpu.memory_space<vmem>>, vector<1x64x128xf32>
      %642 = vector.shape_cast %641 : vector<1x64x128xf32> to vector<64x128xf32>
      %cst_410 = arith.constant dense<0.000000e+00> : vector<8x128xf32>
      %643 = tpu.matmul %640, %642, %cst_410 {dimension_numbers = #tpu.dot_dimension_numbers<[1], [0], [0], [1], [0, 0, 1, 1], [], []>} : vector<8x64xf32>, vector<64x128xf32>, vector<8x128xf32> -> vector<8x128xf32>
      %644 = arith.addf %636, %643 : vector<8x128xf32>
      %c2_i32_411 = arith.constant 2 : i32
      %645 = arith.addi %arg10, %c2_i32_411 : i32
      %c10_i32_412 = arith.constant 10 : i32
      %646 = arith.muli %645, %c10_i32_412 : i32
      %c100_i32_413 = arith.constant 100 : i32
      %647 = arith.addi %c100_i32_413, %646 : i32
      %c0_i32_414 = arith.constant 0 : i32
      %648 = arith.addi %647, %c0_i32_414 : i32
      %649 = arith.index_cast %648 : i32 to index
      %c0_415 = arith.constant 0 : index
      %650 = vector.load %arg8[%649, %c0_415] : memref<200x128xf32, #tpu.memory_space<vmem>>, vector<8x128xf32>
      %651 = vector.extract_strided_slice %650 {offsets = [0, 0], sizes = [8, 64], strides = [1, 1]} : vector<8x128xf32> to vector<8x64xf32>
      %c6 = arith.constant 6 : index
      %c0_416 = arith.constant 0 : index
      %c0_417 = arith.constant 0 : index
      %652 = vector.load %arg3[%c6, %c0_416, %c0_417] : memref<9x64x128xf32, #tpu.memory_space<vmem>>, vector<1x64x128xf32>
      %653 = vector.shape_cast %652 : vector<1x64x128xf32> to vector<64x128xf32>
      %cst_418 = arith.constant dense<0.000000e+00> : vector<8x128xf32>
      %654 = tpu.matmul %651, %653, %cst_418 {dimension_numbers = #tpu.dot_dimension_numbers<[1], [0], [0], [1], [0, 0, 1, 1], [], []>} : vector<8x64xf32>, vector<64x128xf32>, vector<8x128xf32> -> vector<8x128xf32>
      %655 = arith.addf %644, %654 : vector<8x128xf32>
      %c1_i32_419 = arith.constant 1 : i32
      %656 = arith.addi %647, %c1_i32_419 : i32
      %657 = arith.index_cast %656 : i32 to index
      %c0_420 = arith.constant 0 : index
      %658 = vector.load %arg8[%657, %c0_420] : memref<200x128xf32, #tpu.memory_space<vmem>>, vector<8x128xf32>
      %659 = vector.extract_strided_slice %658 {offsets = [0, 0], sizes = [8, 64], strides = [1, 1]} : vector<8x128xf32> to vector<8x64xf32>
      %c7 = arith.constant 7 : index
      %c0_421 = arith.constant 0 : index
      %c0_422 = arith.constant 0 : index
      %660 = vector.load %arg3[%c7, %c0_421, %c0_422] : memref<9x64x128xf32, #tpu.memory_space<vmem>>, vector<1x64x128xf32>
      %661 = vector.shape_cast %660 : vector<1x64x128xf32> to vector<64x128xf32>
      %cst_423 = arith.constant dense<0.000000e+00> : vector<8x128xf32>
      %662 = tpu.matmul %659, %661, %cst_423 {dimension_numbers = #tpu.dot_dimension_numbers<[1], [0], [0], [1], [0, 0, 1, 1], [], []>} : vector<8x64xf32>, vector<64x128xf32>, vector<8x128xf32> -> vector<8x128xf32>
      %663 = arith.addf %655, %662 : vector<8x128xf32>
      %c2_i32_424 = arith.constant 2 : i32
      %664 = arith.addi %647, %c2_i32_424 : i32
      %665 = arith.index_cast %664 : i32 to index
      %c0_425 = arith.constant 0 : index
      %666 = vector.load %arg8[%665, %c0_425] : memref<200x128xf32, #tpu.memory_space<vmem>>, vector<8x128xf32>
      %667 = vector.extract_strided_slice %666 {offsets = [0, 0], sizes = [8, 64], strides = [1, 1]} : vector<8x128xf32> to vector<8x64xf32>
      %c8_426 = arith.constant 8 : index
      %c0_427 = arith.constant 0 : index
      %c0_428 = arith.constant 0 : index
      %668 = vector.load %arg3[%c8_426, %c0_427, %c0_428] : memref<9x64x128xf32, #tpu.memory_space<vmem>>, vector<1x64x128xf32>
      %669 = vector.shape_cast %668 : vector<1x64x128xf32> to vector<64x128xf32>
      %cst_429 = arith.constant dense<0.000000e+00> : vector<8x128xf32>
      %670 = tpu.matmul %667, %669, %cst_429 {dimension_numbers = #tpu.dot_dimension_numbers<[1], [0], [0], [1], [0, 0, 1, 1], [], []>} : vector<8x64xf32>, vector<64x128xf32>, vector<8x128xf32> -> vector<8x128xf32>
      %671 = arith.addf %663, %670 : vector<8x128xf32>
      %c8_i32_430 = arith.constant 8 : i32
      %672 = arith.muli %arg10, %c8_i32_430 : i32
      %c64_i32 = arith.constant 64 : i32
      %673 = arith.addi %c64_i32, %672 : i32
      %674 = arith.index_cast %673 : i32 to index
      %c0_431 = arith.constant 0 : index
      %675 = vector.load %arg9[%674, %c0_431] : memref<128x128xf32, #tpu.memory_space<vmem>>, vector<8x128xf32>
      tpu.vector_store %arg9[%674, %c0_431], %671 {strides = array<i32>} : memref<128x128xf32, #tpu.memory_space<vmem>>, vector<8x128xf32>,
      %cst_432 = arith.constant dense<0.000000e+00> : vector<128xf32>
      %676 = vector.multi_reduction <add>, %671, %cst_432 [0] : vector<8x128xf32> to vector<128xf32>
      %677 = vector.shape_cast %676 : vector<128xf32> to vector<1x128xf32>
      %678 = arith.addf %arg11, %677 : vector<1x128xf32>
      scf.yield %678 : vector<1x128xf32>
    }
    %c8_i32_293 = arith.constant 8 : i32
    %cst_294 = arith.constant 7.812500e-03 : f32
    %476 = vector.broadcast %cst_294 : f32 to vector<1x128xf32>
    %477 = arith.mulf %475, %476 : vector<1x128xf32>
    %cst_295 = arith.constant 0.000000e+00 : f32
    %478 = vector.broadcast %cst_295 : f32 to vector<1x128xf32>
    %c0_296 = arith.constant 0 : index
    %c0_297 = arith.constant 0 : index
    %479 = vector.load %arg9[%c0_296, %c0_297] : memref<128x128xf32, #tpu.memory_space<vmem>>, vector<128x128xf32>
    %480 = vector.broadcast %477 : vector<1x128xf32> to vector<128x128xf32>
    %481 = arith.subf %479, %480 : vector<128x128xf32>
    %482 = arith.mulf %481, %481 : vector<128x128xf32>
    %cst_298 = arith.constant dense<0.000000e+00> : vector<128xf32>
    %483 = vector.multi_reduction <add>, %482, %cst_298 [0] : vector<128x128xf32> to vector<128xf32>
    %484 = vector.shape_cast %483 : vector<128xf32> to vector<1x128xf32>
    %485 = arith.addf %478, %484 : vector<1x128xf32>
    %cst_299 = arith.constant 7.812500e-03 : f32
    %486 = vector.broadcast %cst_299 : f32 to vector<1x128xf32>
    %487 = arith.mulf %485, %486 : vector<1x128xf32>
    %cst_300 = arith.constant 9.99999974E-6 : f32
    %488 = vector.broadcast %cst_300 : f32 to vector<1x128xf32>
    %489 = arith.addf %487, %488 : vector<1x128xf32>
    %490 = math.rsqrt %489 : vector<1x128xf32>
    %491 = arith.mulf %5, %490 : vector<1x128xf32>
    %492 = arith.mulf %477, %491 : vector<1x128xf32>
    %493 = arith.subf %6, %492 : vector<1x128xf32>
    %c0_301 = arith.constant 0 : index
    %c0_302 = arith.constant 0 : index
    %494 = vector.load %arg9[%c0_301, %c0_302] : memref<128x128xf32, #tpu.memory_space<vmem>>, vector<128x128xf32>
    %495 = vector.broadcast %491 : vector<1x128xf32> to vector<128x128xf32>
    %496 = arith.mulf %494, %495 : vector<128x128xf32>
    %497 = vector.broadcast %493 : vector<1x128xf32> to vector<128x128xf32>
    %498 = arith.addf %496, %497 : vector<128x128xf32>
    %cst_303 = arith.constant 0.000000e+00 : f32
    %499 = vector.broadcast %cst_303 : f32 to vector<128x128xf32>
    %500 = arith.maximumf %498, %499 : vector<128x128xf32>
    %c0_304 = arith.constant 0 : index
    %c0_305 = arith.constant 0 : index
    %501 = vector.load %arg9[%c0_304, %c0_305] : memref<128x128xf32, #tpu.memory_space<vmem>>, vector<128x128xf32>
    tpu.vector_store %arg9[%c0_304, %c0_305], %500 {strides = array<i32>} : memref<128x128xf32, #tpu.memory_space<vmem>>, vector<128x128xf32>,
    %c0_306 = arith.constant 0 : index
    %c0_307 = arith.constant 0 : index
    %502 = tpu.strided_load %arg9[%c0_306, %c0_307] {strides = array<i32: 2, 1>} : memref<128x128xf32, #tpu.memory_space<vmem>>, vector<4x128xf32>
    %c1_308 = arith.constant 1 : index
    %c0_309 = arith.constant 0 : index
    %503 = tpu.strided_load %arg9[%c1_308, %c0_309] {strides = array<i32: 2, 1>} : memref<128x128xf32, #tpu.memory_space<vmem>>, vector<4x128xf32>
    %c8 = arith.constant 8 : index
    %c0_310 = arith.constant 0 : index
    %504 = tpu.strided_load %arg9[%c8, %c0_310] {strides = array<i32: 2, 1>} : memref<128x128xf32, #tpu.memory_space<vmem>>, vector<4x128xf32>
    %c9 = arith.constant 9 : index
    %c0_311 = arith.constant 0 : index
    %505 = tpu.strided_load %arg9[%c9, %c0_311] {strides = array<i32: 2, 1>} : memref<128x128xf32, #tpu.memory_space<vmem>>, vector<4x128xf32>
    %506 = arith.maximumf %502, %503 : vector<4x128xf32>
    %507 = arith.maximumf %504, %505 : vector<4x128xf32>
    %508 = arith.maximumf %506, %507 : vector<4x128xf32>
    %509 = vector.extract_strided_slice %508 {offsets = [0, 0], sizes = [4, 64], strides = [1, 1]} : vector<4x128xf32> to vector<4x64xf32>
    %c0_312 = arith.constant 0 : index
    %c0_313 = arith.constant 0 : index
    %c0_314 = arith.constant 0 : index
    %510 = vector.load %arg5[%c0_312, %c0_313, %c0_314] : memref<2x16x64xf32, #tpu.memory_space<vmem>>, vector<1x4x64xf32>
    %511 = vector.shape_cast %510 : vector<1x4x64xf32> to vector<4x64xf32>
    %512 = vector.shape_cast %509 : vector<4x64xf32> to vector<1x4x64xf32>
    tpu.vector_store %arg5[%c0_312, %c0_313, %c0_314], %512 {strides = array<i32>} : memref<2x16x64xf32, #tpu.memory_space<vmem>>, vector<1x4x64xf32>,
    %c16 = arith.constant 16 : index
    %c0_315 = arith.constant 0 : index
    %513 = tpu.strided_load %arg9[%c16, %c0_315] {strides = array<i32: 2, 1>} : memref<128x128xf32, #tpu.memory_space<vmem>>, vector<4x128xf32>
    %c17 = arith.constant 17 : index
    %c0_316 = arith.constant 0 : index
    %514 = tpu.strided_load %arg9[%c17, %c0_316] {strides = array<i32: 2, 1>} : memref<128x128xf32, #tpu.memory_space<vmem>>, vector<4x128xf32>
    %c24_317 = arith.constant 24 : index
    %c0_318 = arith.constant 0 : index
    %515 = tpu.strided_load %arg9[%c24_317, %c0_318] {strides = array<i32: 2, 1>} : memref<128x128xf32, #tpu.memory_space<vmem>>, vector<4x128xf32>
    %c25_319 = arith.constant 25 : index
    %c0_320 = arith.constant 0 : index
    %516 = tpu.strided_load %arg9[%c25_319, %c0_320] {strides = array<i32: 2, 1>} : memref<128x128xf32, #tpu.memory_space<vmem>>, vector<4x128xf32>
    %517 = arith.maximumf %513, %514 : vector<4x128xf32>
    %518 = arith.maximumf %515, %516 : vector<4x128xf32>
    %519 = arith.maximumf %517, %518 : vector<4x128xf32>
    %520 = vector.extract_strided_slice %519 {offsets = [0, 0], sizes = [4, 64], strides = [1, 1]} : vector<4x128xf32> to vector<4x64xf32>
    %c0_321 = arith.constant 0 : index
    %c4 = arith.constant 4 : index
    %c0_322 = arith.constant 0 : index
    %521 = vector.load %arg5[%c0_321, %c4, %c0_322] : memref<2x16x64xf32, #tpu.memory_space<vmem>>, vector<1x4x64xf32>
    %522 = vector.shape_cast %521 : vector<1x4x64xf32> to vector<4x64xf32>
    %523 = vector.shape_cast %520 : vector<4x64xf32> to vector<1x4x64xf32>
    tpu.vector_store %arg5[%c0_321, %c4, %c0_322], %523 {strides = array<i32>} : memref<2x16x64xf32, #tpu.memory_space<vmem>>, vector<1x4x64xf32>,
    %c32 = arith.constant 32 : index
    %c0_323 = arith.constant 0 : index
    %524 = tpu.strided_load %arg9[%c32, %c0_323] {strides = array<i32: 2, 1>} : memref<128x128xf32, #tpu.memory_space<vmem>>, vector<4x128xf32>
    %c33 = arith.constant 33 : index
    %c0_324 = arith.constant 0 : index
    %525 = tpu.strided_load %arg9[%c33, %c0_324] {strides = array<i32: 2, 1>} : memref<128x128xf32, #tpu.memory_space<vmem>>, vector<4x128xf32>
    %c40 = arith.constant 40 : index
    %c0_325 = arith.constant 0 : index
    %526 = tpu.strided_load %arg9[%c40, %c0_325] {strides = array<i32: 2, 1>} : memref<128x128xf32, #tpu.memory_space<vmem>>, vector<4x128xf32>
    %c41 = arith.constant 41 : index
    %c0_326 = arith.constant 0 : index
    %527 = tpu.strided_load %arg9[%c41, %c0_326] {strides = array<i32: 2, 1>} : memref<128x128xf32, #tpu.memory_space<vmem>>, vector<4x128xf32>
    %528 = arith.maximumf %524, %525 : vector<4x128xf32>
    %529 = arith.maximumf %526, %527 : vector<4x128xf32>
    %530 = arith.maximumf %528, %529 : vector<4x128xf32>
    %531 = vector.extract_strided_slice %530 {offsets = [0, 0], sizes = [4, 64], strides = [1, 1]} : vector<4x128xf32> to vector<4x64xf32>
    %c0_327 = arith.constant 0 : index
    %c8_328 = arith.constant 8 : index
    %c0_329 = arith.constant 0 : index
    %532 = vector.load %arg5[%c0_327, %c8_328, %c0_329] : memref<2x16x64xf32, #tpu.memory_space<vmem>>, vector<1x4x64xf32>
    %533 = vector.shape_cast %532 : vector<1x4x64xf32> to vector<4x64xf32>
    %534 = vector.shape_cast %531 : vector<4x64xf32> to vector<1x4x64xf32>
    tpu.vector_store %arg5[%c0_327, %c8_328, %c0_329], %534 {strides = array<i32>} : memref<2x16x64xf32, #tpu.memory_space<vmem>>, vector<1x4x64xf32>,
    %c48_330 = arith.constant 48 : index
    %c0_331 = arith.constant 0 : index
    %535 = tpu.strided_load %arg9[%c48_330, %c0_331] {strides = array<i32: 2, 1>} : memref<128x128xf32, #tpu.memory_space<vmem>>, vector<4x128xf32>
    %c49_332 = arith.constant 49 : index
    %c0_333 = arith.constant 0 : index
    %536 = tpu.strided_load %arg9[%c49_332, %c0_333] {strides = array<i32: 2, 1>} : memref<128x128xf32, #tpu.memory_space<vmem>>, vector<4x128xf32>
    %c56 = arith.constant 56 : index
    %c0_334 = arith.constant 0 : index
    %537 = tpu.strided_load %arg9[%c56, %c0_334] {strides = array<i32: 2, 1>} : memref<128x128xf32, #tpu.memory_space<vmem>>, vector<4x128xf32>
    %c57 = arith.constant 57 : index
    %c0_335 = arith.constant 0 : index
    %538 = tpu.strided_load %arg9[%c57, %c0_335] {strides = array<i32: 2, 1>} : memref<128x128xf32, #tpu.memory_space<vmem>>, vector<4x128xf32>
    %539 = arith.maximumf %535, %536 : vector<4x128xf32>
    %540 = arith.maximumf %537, %538 : vector<4x128xf32>
    %541 = arith.maximumf %539, %540 : vector<4x128xf32>
    %542 = vector.extract_strided_slice %541 {offsets = [0, 0], sizes = [4, 64], strides = [1, 1]} : vector<4x128xf32> to vector<4x64xf32>
    %c0_336 = arith.constant 0 : index
    %c12_337 = arith.constant 12 : index
    %c0_338 = arith.constant 0 : index
    %543 = vector.load %arg5[%c0_336, %c12_337, %c0_338] : memref<2x16x64xf32, #tpu.memory_space<vmem>>, vector<1x4x64xf32>
    %544 = vector.shape_cast %543 : vector<1x4x64xf32> to vector<4x64xf32>
    %545 = vector.shape_cast %542 : vector<4x64xf32> to vector<1x4x64xf32>
    tpu.vector_store %arg5[%c0_336, %c12_337, %c0_338], %545 {strides = array<i32>} : memref<2x16x64xf32, #tpu.memory_space<vmem>>, vector<1x4x64xf32>,
    %c64 = arith.constant 64 : index
    %c0_339 = arith.constant 0 : index
    %546 = tpu.strided_load %arg9[%c64, %c0_339] {strides = array<i32: 2, 1>} : memref<128x128xf32, #tpu.memory_space<vmem>>, vector<4x128xf32>
    %c65 = arith.constant 65 : index
    %c0_340 = arith.constant 0 : index
    %547 = tpu.strided_load %arg9[%c65, %c0_340] {strides = array<i32: 2, 1>} : memref<128x128xf32, #tpu.memory_space<vmem>>, vector<4x128xf32>
    %c72_341 = arith.constant 72 : index
    %c0_342 = arith.constant 0 : index
    %548 = tpu.strided_load %arg9[%c72_341, %c0_342] {strides = array<i32: 2, 1>} : memref<128x128xf32, #tpu.memory_space<vmem>>, vector<4x128xf32>
    %c73_343 = arith.constant 73 : index
    %c0_344 = arith.constant 0 : index
    %549 = tpu.strided_load %arg9[%c73_343, %c0_344] {strides = array<i32: 2, 1>} : memref<128x128xf32, #tpu.memory_space<vmem>>, vector<4x128xf32>
    %550 = arith.maximumf %546, %547 : vector<4x128xf32>
    %551 = arith.maximumf %548, %549 : vector<4x128xf32>
    %552 = arith.maximumf %550, %551 : vector<4x128xf32>
    %553 = vector.extract_strided_slice %552 {offsets = [0, 0], sizes = [4, 64], strides = [1, 1]} : vector<4x128xf32> to vector<4x64xf32>
    %c1_345 = arith.constant 1 : index
    %c0_346 = arith.constant 0 : index
    %c0_347 = arith.constant 0 : index
    %554 = vector.load %arg5[%c1_345, %c0_346, %c0_347] : memref<2x16x64xf32, #tpu.memory_space<vmem>>, vector<1x4x64xf32>
    %555 = vector.shape_cast %554 : vector<1x4x64xf32> to vector<4x64xf32>
    %556 = vector.shape_cast %553 : vector<4x64xf32> to vector<1x4x64xf32>
    tpu.vector_store %arg5[%c1_345, %c0_346, %c0_347], %556 {strides = array<i32>} : memref<2x16x64xf32, #tpu.memory_space<vmem>>, vector<1x4x64xf32>,
    %c80 = arith.constant 80 : index
    %c0_348 = arith.constant 0 : index
    %557 = tpu.strided_load %arg9[%c80, %c0_348] {strides = array<i32: 2, 1>} : memref<128x128xf32, #tpu.memory_space<vmem>>, vector<4x128xf32>
    %c81 = arith.constant 81 : index
    %c0_349 = arith.constant 0 : index
    %558 = tpu.strided_load %arg9[%c81, %c0_349] {strides = array<i32: 2, 1>} : memref<128x128xf32, #tpu.memory_space<vmem>>, vector<4x128xf32>
    %c88 = arith.constant 88 : index
    %c0_350 = arith.constant 0 : index
    %559 = tpu.strided_load %arg9[%c88, %c0_350] {strides = array<i32: 2, 1>} : memref<128x128xf32, #tpu.memory_space<vmem>>, vector<4x128xf32>
    %c89 = arith.constant 89 : index
    %c0_351 = arith.constant 0 : index
    %560 = tpu.strided_load %arg9[%c89, %c0_351] {strides = array<i32: 2, 1>} : memref<128x128xf32, #tpu.memory_space<vmem>>, vector<4x128xf32>
    %561 = arith.maximumf %557, %558 : vector<4x128xf32>
    %562 = arith.maximumf %559, %560 : vector<4x128xf32>
    %563 = arith.maximumf %561, %562 : vector<4x128xf32>
    %564 = vector.extract_strided_slice %563 {offsets = [0, 0], sizes = [4, 64], strides = [1, 1]} : vector<4x128xf32> to vector<4x64xf32>
    %c1_352 = arith.constant 1 : index
    %c4_353 = arith.constant 4 : index
    %c0_354 = arith.constant 0 : index
    %565 = vector.load %arg5[%c1_352, %c4_353, %c0_354] : memref<2x16x64xf32, #tpu.memory_space<vmem>>, vector<1x4x64xf32>
    %566 = vector.shape_cast %565 : vector<1x4x64xf32> to vector<4x64xf32>
    %567 = vector.shape_cast %564 : vector<4x64xf32> to vector<1x4x64xf32>
    tpu.vector_store %arg5[%c1_352, %c4_353, %c0_354], %567 {strides = array<i32>} : memref<2x16x64xf32, #tpu.memory_space<vmem>>, vector<1x4x64xf32>,
    %c96_355 = arith.constant 96 : index
    %c0_356 = arith.constant 0 : index
    %568 = tpu.strided_load %arg9[%c96_355, %c0_356] {strides = array<i32: 2, 1>} : memref<128x128xf32, #tpu.memory_space<vmem>>, vector<4x128xf32>
    %c97_357 = arith.constant 97 : index
    %c0_358 = arith.constant 0 : index
    %569 = tpu.strided_load %arg9[%c97_357, %c0_358] {strides = array<i32: 2, 1>} : memref<128x128xf32, #tpu.memory_space<vmem>>, vector<4x128xf32>
    %c104 = arith.constant 104 : index
    %c0_359 = arith.constant 0 : index
    %570 = tpu.strided_load %arg9[%c104, %c0_359] {strides = array<i32: 2, 1>} : memref<128x128xf32, #tpu.memory_space<vmem>>, vector<4x128xf32>
    %c105 = arith.constant 105 : index
    %c0_360 = arith.constant 0 : index
    %571 = tpu.strided_load %arg9[%c105, %c0_360] {strides = array<i32: 2, 1>} : memref<128x128xf32, #tpu.memory_space<vmem>>, vector<4x128xf32>
    %572 = arith.maximumf %568, %569 : vector<4x128xf32>
    %573 = arith.maximumf %570, %571 : vector<4x128xf32>
    %574 = arith.maximumf %572, %573 : vector<4x128xf32>
    %575 = vector.extract_strided_slice %574 {offsets = [0, 0], sizes = [4, 64], strides = [1, 1]} : vector<4x128xf32> to vector<4x64xf32>
    %c1_361 = arith.constant 1 : index
    %c8_362 = arith.constant 8 : index
    %c0_363 = arith.constant 0 : index
    %576 = vector.load %arg5[%c1_361, %c8_362, %c0_363] : memref<2x16x64xf32, #tpu.memory_space<vmem>>, vector<1x4x64xf32>
    %577 = vector.shape_cast %576 : vector<1x4x64xf32> to vector<4x64xf32>
    %578 = vector.shape_cast %575 : vector<4x64xf32> to vector<1x4x64xf32>
    tpu.vector_store %arg5[%c1_361, %c8_362, %c0_363], %578 {strides = array<i32>} : memref<2x16x64xf32, #tpu.memory_space<vmem>>, vector<1x4x64xf32>,
    %c112 = arith.constant 112 : index
    %c0_364 = arith.constant 0 : index
    %579 = tpu.strided_load %arg9[%c112, %c0_364] {strides = array<i32: 2, 1>} : memref<128x128xf32, #tpu.memory_space<vmem>>, vector<4x128xf32>
    %c113 = arith.constant 113 : index
    %c0_365 = arith.constant 0 : index
    %580 = tpu.strided_load %arg9[%c113, %c0_365] {strides = array<i32: 2, 1>} : memref<128x128xf32, #tpu.memory_space<vmem>>, vector<4x128xf32>
    %c120_366 = arith.constant 120 : index
    %c0_367 = arith.constant 0 : index
    %581 = tpu.strided_load %arg9[%c120_366, %c0_367] {strides = array<i32: 2, 1>} : memref<128x128xf32, #tpu.memory_space<vmem>>, vector<4x128xf32>
    %c121_368 = arith.constant 121 : index
    %c0_369 = arith.constant 0 : index
    %582 = tpu.strided_load %arg9[%c121_368, %c0_369] {strides = array<i32: 2, 1>} : memref<128x128xf32, #tpu.memory_space<vmem>>, vector<4x128xf32>
    %583 = arith.maximumf %579, %580 : vector<4x128xf32>
    %584 = arith.maximumf %581, %582 : vector<4x128xf32>
    %585 = arith.maximumf %583, %584 : vector<4x128xf32>
    %586 = vector.extract_strided_slice %585 {offsets = [0, 0], sizes = [4, 64], strides = [1, 1]} : vector<4x128xf32> to vector<4x64xf32>
    %c1_370 = arith.constant 1 : index
    %c12_371 = arith.constant 12 : index
    %c0_372 = arith.constant 0 : index
    %587 = vector.load %arg5[%c1_370, %c12_371, %c0_372] : memref<2x16x64xf32, #tpu.memory_space<vmem>>, vector<1x4x64xf32>
    %588 = vector.shape_cast %587 : vector<1x4x64xf32> to vector<4x64xf32>
    %589 = vector.shape_cast %586 : vector<4x64xf32> to vector<1x4x64xf32>
    tpu.vector_store %arg5[%c1_370, %c12_371, %c0_372], %589 {strides = array<i32>} : memref<2x16x64xf32, #tpu.memory_space<vmem>>, vector<1x4x64xf32>,
    return
  }
}

</mosaic_0001>

<llo_original>
// kernel: encoder_forward.1
$region0: #{encoder_forward.1}
  #allocation0 [shape = 'u32[]', space=smem, size = 0x4, offset = 0x4, fixed_abs, tag = 'smem constant byte address 0x4 - core index']
  #allocation1 [shape = 'u32[144,128]{1,0:T(1,128)}', space=vmem, size = 0x12000, scoped, tag = 'internal scratch']
  #allocation2 [shape = 'f32[1152,128]{1,0:T(8,128)}', space=vmem, size = 0x90000, scoped, tag = 'scratch operand']
  #allocation3 [shape = 'f32[288,32]{1,0:T(8,128)}', space=vmem, size = 0x24000, scoped, tag = 'scratch operand']
  #allocation4 [shape = 'f32[200,128]{1,0:T(8,128)}', space=vmem, size = 0x19000, scoped, tag = 'scratch operand']
  #allocation5 [shape = 'f32[128,128]{1,0:T(8,128)}', space=vmem, size = 0x10000, scoped, tag = 'scratch operand']
  %s0 = inlined_call_operand.vmem [shape: f32[1152,25], index: 0, kind: input, shape index: {}]
  %s1 = inlined_call_operand.vmem [shape: f32[25,128], index: 1, kind: input, shape index: {}]
  %s2 = inlined_call_operand.vmem [shape: f32[9,32,128], index: 2, kind: input, shape index: {}]
  %s3 = inlined_call_operand.vmem [shape: f32[9,64,128], index: 3, kind: input, shape index: {}]
  %s4 = inlined_call_operand.vmem [shape: f32[6,128], index: 4, kind: input, shape index: {}]
  %s5 = inlined_call_operand.vmem [shape: f32[2,16,64], index: 5, kind: output, shape index: {}]
  %s6 = sld [smem:[#allocation0]]
  $region58: #{encoder_forward.1} parent=0
    _
  %s8 = ssub.s32 1, %s6
  %s9 = scalar_select 0, %s8, %s6
  // Predicated region
  $region2: #{encoder_forward.1} parent=0 // pred_check
    _
  $region3: #{encoder_forward.1} parent=0 // pred_check_branch
    %11 = sbr.rel (0) target = $region5
  $region4: #{encoder_forward.1} parent=0 // pred_region
    _
  $region5: #{encoder_forward.1} parent=0 // pred_fallthru
    _
  // Predicated region
  $region6: #{encoder_forward.1} parent=0 // pred_check
    _
  $region7: #{encoder_forward.1} parent=0 // pred_check_branch
    %13 = sbr.rel (0) target = $region9
  $region8: #{encoder_forward.1} parent=0 // pred_region
    _
  $region9: #{encoder_forward.1} parent=0 // pred_fallthru
    _
  // Predicated region
  $region10: #{encoder_forward.1} parent=0 // pred_check
    _
  $region11: #{encoder_forward.1} parent=0 // pred_check_branch
    %15 = sbr.rel (0) target = $region13
  $region12: #{encoder_forward.1} parent=0 // pred_region
    _
  $region13: #{encoder_forward.1} parent=0 // pred_fallthru
    _
  // Predicated region
  $region14: #{encoder_forward.1} parent=0 // pred_check
    _
  $region15: #{encoder_forward.1} parent=0 // pred_check_branch
    %17 = sbr.rel (0) target = $region17
  $region16: #{encoder_forward.1} parent=0 // pred_region
    _
  $region17: #{encoder_forward.1} parent=0 // pred_fallthru
    _
  // Predicated region
  $region18: #{encoder_forward.1} parent=0 // pred_check
    _
  $region19: #{encoder_forward.1} parent=0 // pred_check_branch
    %19 = sbr.rel (0) target = $region21
  $region20: #{encoder_forward.1} parent=0 // pred_region
    _
  $region21: #{encoder_forward.1} parent=0 // pred_fallthru
    _
  %v20 = vld [vmem:[%s4] sm:$0x3f]
  %v21 = vld [vmem:[%s1] sm:$0xff]
  %v22 = vld [vmem:[%s1 + $0x8] sm:$0xff]
  %v23 = vld [vmem:[%s1 + $0x10] sm:$0xff]
  %v24 = vld [vmem:[%s1 + $0x18] sm:$0x1]
  %v25 = vld [vmem:[%s0] sm:$0xff]
  %v26 = vld [vmem:[%s0 + $0x8] sm:$0xff]
  %v27 = vld [vmem:[%s0 + $0x10] sm:$0xff]
  %v28 = vld [vmem:[%s0 + $0x18] sm:$0xff]
  %v29 = vld [vmem:[%s0 + $0x20] sm:$0xff]
  %v30 = vld [vmem:[%s0 + $0x28] sm:$0xff]
  %v31 = vld [vmem:[%s0 + $0x30] sm:$0xff]
  %v32 = vld [vmem:[%s0 + $0x38] sm:$0xff]
  %v33 = vld [vmem:[%s0 + $0x40] sm:$0xff]
  %v34 = vld [vmem:[%s0 + $0x48] sm:$0xff]
  %v35 = vld [vmem:[%s0 + $0x50] sm:$0xff]
  %v36 = vld [vmem:[%s0 + $0x58] sm:$0xff]
  %v37 = vld [vmem:[%s0 + $0x60] sm:$0xff]
  %v38 = vld [vmem:[%s0 + $0x68] sm:$0xff]
  %v39 = vld [vmem:[%s0 + $0x70] sm:$0xff]
  %v40 = vld [vmem:[%s0 + $0x78] sm:$0xff]
  %vm41 = vcmask 203776
  %v43 = vsel %vm41, %v25, 0
  %v46 = vsel %vm41, %v26, 0
  %v49 = vsel %vm41, %v27, 0
  %v52 = vsel %vm41, %v28, 0
  %v55 = vsel %vm41, %v29, 0
  %v58 = vsel %vm41, %v30, 0
  %v61 = vsel %vm41, %v31, 0
  %v64 = vsel %vm41, %v32, 0
  %v67 = vsel %vm41, %v33, 0
  %v70 = vsel %vm41, %v34, 0
  %v73 = vsel %vm41, %v35, 0
  %v76 = vsel %vm41, %v36, 0
  %v79 = vsel %vm41, %v37, 0
  %v82 = vsel %vm41, %v38, 0
  %v85 = vsel %vm41, %v39, 0
  %v88 = vsel %vm41, %v40, 0
  %vm90 = vcmask 1040384
  %v92 = vsel %vm90, %v24, 0
  %94 = vmatprep.subr.mxu0 0.0
  %95 = vmatpush1.msra.mxu0 0.0
  %96 = vmatprep.subr.mxu0 0.0
  %97 = vmatpush1.msra.mxu0 0.0
  %98 = vmatprep.subr.mxu0 0.0
  %99 = vmatpush1.msra.mxu0 0.0
  %100 = vmatprep.subr.mxu0 0.0
  %101 = vmatpush1.msra.mxu0 0.0
  %102 = vmatprep.subr.mxu0 0.0
  %103 = vmatpush1.msra.mxu0 0.0
  %104 = vmatprep.subr.mxu0 0.0
  %105 = vmatpush1.msra.mxu0 0.0
  %106 = vmatprep.subr.mxu0 0.0
  %107 = vmatpush1.msra.mxu0 0.0
  %108 = vmatprep.subr.mxu0 0.0
  %109 = vmatpush1.msra.mxu0 0.0
  %110 = vmatprep.subr.mxu0 0.0
  %111 = vmatpush1.msra.mxu0 0.0
  %112 = vmatprep.subr.mxu0 0.0
  %113 = vmatpush1.msra.mxu0 0.0
  %114 = vmatprep.subr.mxu0 0.0
  %115 = vmatpush1.msra.mxu0 0.0
  %116 = vmatprep.subr.mxu0 0.0
  %117 = vmatpush1.msra.mxu0 0.0
  %118 = vmatprep.subr.mxu0 0.0
  %119 = vmatpush1.msra.mxu0 %v92
  %120 = vmatprep.subr.mxu0 0.0
  %121 = vmatpush1.msra.mxu0 %v23
  %122 = vmatprep.subr.mxu0 0.0
  %123 = vmatpush1.msra.mxu0 %v22
  %124 = vmatprep.subr.mxu0 0.0
  %125 = vmatpush1.msra.mxu0 %v21
  %126 = vmatprep.subr.mxu0 0.0
  %127 = vmatpush2.msra.mxu0 0.0
  %128 = vmatprep.subr.mxu0 0.0
  %129 = vmatpush2.msra.mxu0 0.0
  %130 = vmatprep.subr.mxu0 0.0
  %131 = vmatpush2.msra.mxu0 0.0
  %132 = vmatprep.subr.mxu0 0.0
  %133 = vmatpush2.msra.mxu0 0.0
  %134 = vmatprep.subr.mxu0 0.0
  %135 = vmatpush2.msra.mxu0 0.0
  %136 = vmatprep.subr.mxu0 0.0
  %137 = vmatpush2.msra.mxu0 0.0
  %138 = vmatprep.subr.mxu0 0.0
  %139 = vmatpush2.msra.mxu0 0.0
  %140 = vmatprep.subr.mxu0 0.0
  %141 = vmatpush2.msra.mxu0 0.0
  %142 = vmatprep.subr.mxu0 0.0
  %143 = vmatpush2.msra.mxu0 0.0
  %144 = vmatprep.subr.mxu0 0.0
  %145 = vmatpush2.msra.mxu0 0.0
  %146 = vmatprep.subr.mxu0 0.0
  %147 = vmatpush2.msra.mxu0 0.0
  %148 = vmatprep.subr.mxu0 0.0
  %149 = vmatpush2.msra.mxu0 0.0
  %150 = vmatprep.subr.mxu0 0.0
  %151 = vmatpush2.msra.mxu0 0.0
  %152 = vmatprep.subr.mxu0 0.0
  %153 = vmatpush2.msra.mxu0 0.0
  %154 = vmatprep.subr.mxu0 0.0
  %155 = vmatpush2.msra.mxu0 0.0
  %156 = vmatprep.subr.mxu0 0.0
  %157 = vmatpush2.msra.mxu0 0.0
  %158 = vmatprep.mubr.f32.mxu0 0.0
  %159 = vmatmul.mubr.f32.gmra.mxu0 %v43
  %v160 = vpop.f32.mrf.mxu0
  %v161 = vadd.f32 0.0, %v160
  %v162 = vpop.f32.mrf.mxu0
  %163 = vmatprep.mubr.f32.mxu0 0.0
  %164 = vmatmul.mubr.f32.gmra.mxu0 %v46
  %v165 = vpop.f32.mrf.mxu0
  %v166 = vadd.f32 0.0, %v165
  %v167 = vpop.f32.mrf.mxu0
  %168 = vmatprep.mubr.f32.mxu0 0.0
  %169 = vmatmul.mubr.f32.gmra.mxu0 %v49
  %v170 = vpop.f32.mrf.mxu0
  %v171 = vadd.f32 0.0, %v170
  %v172 = vpop.f32.mrf.mxu0
  %173 = vmatprep.mubr.f32.mxu0 0.0
  %174 = vmatmul.mubr.f32.gmra.mxu0 %v52
  %v175 = vpop.f32.mrf.mxu0
  %v176 = vadd.f32 0.0, %v175
  %v177 = vpop.f32.mrf.mxu0
  %178 = vmatprep.mubr.f32.mxu0 0.0
  %179 = vmatmul.mubr.f32.gmra.mxu0 %v55
  %v180 = vpop.f32.mrf.mxu0
  %v181 = vadd.f32 0.0, %v180
  %v182 = vpop.f32.mrf.mxu0
  %183 = vmatprep.mubr.f32.mxu0 0.0
  %184 = vmatmul.mubr.f32.gmra.mxu0 %v58
  %v185 = vpop.f32.mrf.mxu0
  %v186 = vadd.f32 0.0, %v185
  %v187 = vpop.f32.mrf.mxu0
  %188 = vmatprep.mubr.f32.mxu0 0.0
  %189 = vmatmul.mubr.f32.gmra.mxu0 %v61
  %v190 = vpop.f32.mrf.mxu0
  %v191 = vadd.f32 0.0, %v190
  %v192 = vpop.f32.mrf.mxu0
  %193 = vmatprep.mubr.f32.mxu0 0.0
  %194 = vmatmul.mubr.f32.gmra.mxu0 %v64
  %v195 = vpop.f32.mrf.mxu0
  %v196 = vadd.f32 0.0, %v195
  %v197 = vpop.f32.mrf.mxu0
  %198 = vmatprep.mubr.f32.mxu0 0.0
  %199 = vmatmul.mubr.f32.gmra.mxu0 %v67
  %v200 = vpop.f32.mrf.mxu0
  %v201 = vadd.f32 0.0, %v200
  %v202 = vpop.f32.mrf.mxu0
  %203 = vmatprep.mubr.f32.mxu0 0.0
  %204 = vmatmul.mubr.f32.gmra.mxu0 %v70
  %v205 = vpop.f32.mrf.mxu0
  %v206 = vadd.f32 0.0, %v205
  %v207 = vpop.f32.mrf.mxu0
  %208 = vmatprep.mubr.f32.mxu0 0.0
  %209 = vmatmul.mubr.f32.gmra.mxu0 %v73
  %v210 = vpop.f32.mrf.mxu0
  %v211 = vadd.f32 0.0, %v210
  %v212 = vpop.f32.mrf.mxu0
  %213 = vmatprep.mubr.f32.mxu0 0.0
  %214 = vmatmul.mubr.f32.gmra.mxu0 %v76
  %v215 = vpop.f32.mrf.mxu0
  %v216 = vadd.f32 0.0, %v215
  %v217 = vpop.f32.mrf.mxu0
  %218 = vmatprep.mubr.f32.mxu0 0.0
  %219 = vmatmul.mubr.f32.gmra.mxu0 %v79
  %v220 = vpop.f32.mrf.mxu0
  %v221 = vadd.f32 0.0, %v220
  %v222 = vpop.f32.mrf.mxu0
  %223 = vmatprep.mubr.f32.mxu0 0.0
  %224 = vmatmul.mubr.f32.gmra.mxu0 %v82
  %v225 = vpop.f32.mrf.mxu0
  %v226 = vadd.f32 0.0, %v225
  %v227 = vpop.f32.mrf.mxu0
  %228 = vmatprep.mubr.f32.mxu0 0.0
  %229 = vmatmul.mubr.f32.gmra.mxu0 %v85
  %v230 = vpop.f32.mrf.mxu0
  %v231 = vadd.f32 0.0, %v230
  %v232 = vpop.f32.mrf.mxu0
  %233 = vmatprep.mubr.f32.mxu0 0.0
  %234 = vmatmul.mubr.f32.gmra.mxu0 %v88
  %v235 = vpop.f32.mrf.mxu0
  %v236 = vadd.f32 0.0, %v235
  %v237 = vpop.f32.mrf.mxu0
  %238 = vdwg.mxu0
  %239 = vst [vmem:[#allocation2] sm:$0xff] %v161
  %240 = vst [vmem:[#allocation2 + $0x8] sm:$0xff] %v166
  %241 = vst [vmem:[#allocation2 + $0x10] sm:$0xff] %v171
  %242 = vst [vmem:[#allocation2 + $0x18] sm:$0xff] %v176
  %243 = vst [vmem:[#allocation2 + $0x20] sm:$0xff] %v181
  %244 = vst [vmem:[#allocation2 + $0x28] sm:$0xff] %v186
  %245 = vst [vmem:[#allocation2 + $0x30] sm:$0xff] %v191
  %246 = vst [vmem:[#allocation2 + $0x38] sm:$0xff] %v196
  %247 = vst [vmem:[#allocation2 + $0x40] sm:$0xff] %v201
  %248 = vst [vmem:[#allocation2 + $0x48] sm:$0xff] %v206
  %249 = vst [vmem:[#allocation2 + $0x50] sm:$0xff] %v211
  %250 = vst [vmem:[#allocation2 + $0x58] sm:$0xff] %v216
  %251 = vst [vmem:[#allocation2 + $0x60] sm:$0xff] %v221
  %252 = vst [vmem:[#allocation2 + $0x68] sm:$0xff] %v226
  %253 = vst [vmem:[#allocation2 + $0x70] sm:$0xff] %v231
  %254 = vst [vmem:[#allocation2 + $0x78] sm:$0xff] %v236
  %v255 = vadd.f32 %v161, %v166
  %v256 = vadd.f32 %v255, %v171
  %v257 = vadd.f32 %v256, %v176
  %v258 = vadd.f32 %v257, %v181
  %v259 = vadd.f32 %v258, %v186
  %v260 = vadd.f32 %v259, %v191
  %v261 = vadd.f32 %v260, %v196
  %v262 = vadd.f32 %v261, %v201
  %v263 = vadd.f32 %v262, %v206
  %v264 = vadd.f32 %v263, %v211
  %v265 = vadd.f32 %v264, %v216
  %v266 = vadd.f32 %v265, %v221
  %v267 = vadd.f32 %v266, %v226
  %v268 = vadd.f32 %v267, %v231
  %v269 = vadd.f32 %v268, %v236
  %v270 = vrot.slane %v269, 4
  %v271 = vadd.f32 %v269, %v270
  %v272 = vrot.slane %v271, 2
  %v273 = vadd.f32 %v271, %v272
  %v274 = vrot.slane %v273, 1
  %v275 = vadd.f32 %v273, %v274
  %v276 = vadd.f32 %v275, 0.0
  %v277 = vld [vmem:[%s0 + $0x80] sm:$0xff]
  %v278 = vld [vmem:[%s0 + $0x88] sm:$0xff]
  %v279 = vld [vmem:[%s0 + $0x90] sm:$0xff]
  %v280 = vld [vmem:[%s0 + $0x98] sm:$0xff]
  %v281 = vld [vmem:[%s0 + $0xa0] sm:$0xff]
  %v282 = vld [vmem:[%s0 + $0xa8] sm:$0xff]
  %v283 = vld [vmem:[%s0 + $0xb0] sm:$0xff]
  %v284 = vld [vmem:[%s0 + $0xb8] sm:$0xff]
  %v285 = vld [vmem:[%s0 + $0xc0] sm:$0xff]
  %v286 = vld [vmem:[%s0 + $0xc8] sm:$0xff]
  %v287 = vld [vmem:[%s0 + $0xd0] sm:$0xff]
  %v288 = vld [vmem:[%s0 + $0xd8] sm:$0xff]
  %v289 = vld [vmem:[%s0 + $0xe0] sm:$0xff]
  %v290 = vld [vmem:[%s0 + $0xe8] sm:$0xff]
  %v291 = vld [vmem:[%s0 + $0xf0] sm:$0xff]
  %v292 = vld [vmem:[%s0 + $0xf8] sm:$0xff]
  %v294 = vsel %vm41, %v277, 0
  %v297 = vsel %vm41, %v278, 0
  %v300 = vsel %vm41, %v279, 0
  %v303 = vsel %vm41, %v280, 0
  %v306 = vsel %vm41, %v281, 0
  %v309 = vsel %vm41, %v282, 0
  %v312 = vsel %vm41, %v283, 0
  %v315 = vsel %vm41, %v284, 0
  %v318 = vsel %vm41, %v285, 0
  %v321 = vsel %vm41, %v286, 0
  %v324 = vsel %vm41, %v287, 0
  %v327 = vsel %vm41, %v288, 0
  %v330 = vsel %vm41, %v289, 0
  %v333 = vsel %vm41, %v290, 0
  %v336 = vsel %vm41, %v291, 0
  %v339 = vsel %vm41, %v292, 0
  %341 = vmatprep.subr.mxu0 0.0
  %342 = vmatpush1.msra.mxu0 0.0
  %343 = vmatprep.subr.mxu0 0.0
  %344 = vmatpush1.msra.mxu0 0.0
  %345 = vmatprep.subr.mxu0 0.0
  %346 = vmatpush1.msra.mxu0 0.0
  %347 = vmatprep.subr.mxu0 0.0
  %348 = vmatpush1.msra.mxu0 0.0
  %349 = vmatprep.subr.mxu0 0.0
  %350 = vmatpush1.msra.mxu0 0.0
  %351 = vmatprep.subr.mxu0 0.0
  %352 = vmatpush1.msra.mxu0 0.0
  %353 = vmatprep.subr.mxu0 0.0
  %354 = vmatpush1.msra.mxu0 0.0
  %355 = vmatprep.subr.mxu0 0.0
  %356 = vmatpush1.msra.mxu0 0.0
  %357 = vmatprep.subr.mxu0 0.0
  %358 = vmatpush1.msra.mxu0 0.0
  %359 = vmatprep.subr.mxu0 0.0
  %360 = vmatpush1.msra.mxu0 0.0
  %361 = vmatprep.subr.mxu0 0.0
  %362 = vmatpush1.msra.mxu0 0.0
  %363 = vmatprep.subr.mxu0 0.0
  %364 = vmatpush1.msra.mxu0 0.0
  %365 = vmatprep.subr.mxu0 0.0
  %366 = vmatpush1.msra.mxu0 %v92
  %367 = vmatprep.subr.mxu0 0.0
  %368 = vmatpush1.msra.mxu0 %v23
  %369 = vmatprep.subr.mxu0 0.0
  %370 = vmatpush1.msra.mxu0 %v22
  %371 = vmatprep.subr.mxu0 0.0
  %372 = vmatpush1.msra.mxu0 %v21
  %373 = vmatprep.subr.mxu0 0.0
  %374 = vmatpush2.msra.mxu0 0.0
  %375 = vmatprep.subr.mxu0 0.0
  %376 = vmatpush2.msra.mxu0 0.0
  %377 = vmatprep.subr.mxu0 0.0
  %378 = vmatpush2.msra.mxu0 0.0
  %379 = vmatprep.subr.mxu0 0.0
  %380 = vmatpush2.msra.mxu0 0.0
  %381 = vmatprep.subr.mxu0 0.0
  %382 = vmatpush2.msra.mxu0 0.0
  %383 = vmatprep.subr.mxu0 0.0
  %384 = vmatpush2.msra.mxu0 0.0
  %385 = vmatprep.subr.mxu0 0.0
  %386 = vmatpush2.msra.mxu0 0.0
  %387 = vmatprep.subr.mxu0 0.0
  %388 = vmatpush2.msra.mxu0 0.0
  %389 = vmatprep.subr.mxu0 0.0
  %390 = vmatpush2.msra.mxu0 0.0
  %391 = vmatprep.subr.mxu0 0.0
  %392 = vmatpush2.msra.mxu0 0.0
  %393 = vmatprep.subr.mxu0 0.0
  %394 = vmatpush2.msra.mxu0 0.0
  %395 = vmatprep.subr.mxu0 0.0
  %396 = vmatpush2.msra.mxu0 0.0
  %397 = vmatprep.subr.mxu0 0.0
  %398 = vmatpush2.msra.mxu0 0.0
  %399 = vmatprep.subr.mxu0 0.0
  %400 = vmatpush2.msra.mxu0 0.0
  %401 = vmatprep.subr.mxu0 0.0
  %402 = vmatpush2.msra.mxu0 0.0
  %403 = vmatprep.subr.mxu0 0.0
  %404 = vmatpush2.msra.mxu0 0.0
  %405 = vmatprep.mubr.f32.mxu0 0.0
  %406 = vmatmul.mubr.f32.gmra.mxu0 %v294
  %v407 = vpop.f32.mrf.mxu0
  %v408 = vadd.f32 0.0, %v407
  %v409 = vpop.f32.mrf.mxu0
  %410 = vmatprep.mubr.f32.mxu0 0.0
  %411 = vmatmul.mubr.f32.gmra.mxu0 %v297
  %v412 = vpop.f32.mrf.mxu0
  %v413 = vadd.f32 0.0, %v412
  %v414 = vpop.f32.mrf.mxu0
  %415 = vmatprep.mubr.f32.mxu0 0.0
  %416 = vmatmul.mubr.f32.gmra.mxu0 %v300
  %v417 = vpop.f32.mrf.mxu0
  %v418 = vadd.f32 0.0, %v417
  %v419 = vpop.f32.mrf.mxu0
  %420 = vmatprep.mubr.f32.mxu0 0.0
  %421 = vmatmul.mubr.f32.gmra.mxu0 %v303
  %v422 = vpop.f32.mrf.mxu0
  %v423 = vadd.f32 0.0, %v422
  %v424 = vpop.f32.mrf.mxu0
  %425 = vmatprep.mubr.f32.mxu0 0.0
  %426 = vmatmul.mubr.f32.gmra.mxu0 %v306
  %v427 = vpop.f32.mrf.mxu0
  %v428 = vadd.f32 0.0, %v427
  %v429 = vpop.f32.mrf.mxu0
  %430 = vmatprep.mubr.f32.mxu0 0.0
  %431 = vmatmul.mubr.f32.gmra.mxu0 %v309
  %v432 = vpop.f32.mrf.mxu0
  %v433 = vadd.f32 0.0, %v432
  %v434 = vpop.f32.mrf.mxu0
  %435 = vmatprep.mubr.f32.mxu0 0.0
  %436 = vmatmul.mubr.f32.gmra.mxu0 %v312
  %v437 = vpop.f32.mrf.mxu0
  %v438 = vadd.f32 0.0, %v437
  %v439 = vpop.f32.mrf.mxu0
  %440 = vmatprep.mubr.f32.mxu0 0.0
  %441 = vmatmul.mubr.f32.gmra.mxu0 %v315
  %v442 = vpop.f32.mrf.mxu0
  %v443 = vadd.f32 0.0, %v442
  %v444 = vpop.f32.mrf.mxu0
  %445 = vmatprep.mubr.f32.mxu0 0.0
  %446 = vmatmul.mubr.f32.gmra.mxu0 %v318
  %v447 = vpop.f32.mrf.mxu0
  %v448 = vadd.f32 0.0, %v447
  %v449 = vpop.f32.mrf.mxu0
  %450 = vmatprep.mubr.f32.mxu0 0.0
  %451 = vmatmul.mubr.f32.gmra.mxu0 %v321
  %v452 = vpop.f32.mrf.mxu0
  %v453 = vadd.f32 0.0, %v452
  %v454 = vpop.f32.mrf.mxu0
  %455 = vmatprep.mubr.f32.mxu0 0.0
  %456 = vmatmul.mubr.f32.gmra.mxu0 %v324
  %v457 = vpop.f32.mrf.mxu0
  %v458 = vadd.f32 0.0, %v457
  %v459 = vpop.f32.mrf.mxu0
  %460 = vmatprep.mubr.f32.mxu0 0.0
  %461 = vmatmul.mubr.f32.gmra.mxu0 %v327
  %v462 = vpop.f32.mrf.mxu0
  %v463 = vadd.f32 0.0, %v462
  %v464 = vpop.f32.mrf.mxu0
  %465 = vmatprep.mubr.f32.mxu0 0.0
  %466 = vmatmul.mubr.f32.gmra.mxu0 %v330
  %v467 = vpop.f32.mrf.mxu0
  %v468 = vadd.f32 0.0, %v467
  %v469 = vpop.f32.mrf.mxu0
  %470 = vmatprep.mubr.f32.mxu0 0.0
  %471 = vmatmul.mubr.f32.gmra.mxu0 %v333
  %v472 = vpop.f32.mrf.mxu0
  %v473 = vadd.f32 0.0, %v472
  %v474 = vpop.f32.mrf.mxu0
  %475 = vmatprep.mubr.f32.mxu0 0.0
  %476 = vmatmul.mubr.f32.gmra.mxu0 %v336
  %v477 = vpop.f32.mrf.mxu0
  %v478 = vadd.f32 0.0, %v477
  %v479 = vpop.f32.mrf.mxu0
  %480 = vmatprep.mubr.f32.mxu0 0.0
  %481 = vmatmul.mubr.f32.gmra.mxu0 %v339
  %v482 = vpop.f32.mrf.mxu0
  %v483 = vadd.f32 0.0, %v482
  %v484 = vpop.f32.mrf.mxu0
  %485 = vdwg.mxu0
  %486 = vst [vmem:[#allocation2 + $0x80] sm:$0xff] %v408
  %487 = vst [vmem:[#allocation2 + $0x88] sm:$0xff] %v413
  %488 = vst [vmem:[#allocation2 + $0x90] sm:$0xff] %v418
  %489 = vst [vmem:[#allocation2 + $0x98] sm:$0xff] %v423
  %490 = vst [vmem:[#allocation2 + $0xa0] sm:$0xff] %v428
  %491 = vst [vmem:[#allocation2 + $0xa8] sm:$0xff] %v433
  %492 = vst [vmem:[#allocation2 + $0xb0] sm:$0xff] %v438
  %493 = vst [vmem:[#allocation2 + $0xb8] sm:$0xff] %v443
  %494 = vst [vmem:[#allocation2 + $0xc0] sm:$0xff] %v448
  %495 = vst [vmem:[#allocation2 + $0xc8] sm:$0xff] %v453
  %496 = vst [vmem:[#allocation2 + $0xd0] sm:$0xff] %v458
  %497 = vst [vmem:[#allocation2 + $0xd8] sm:$0xff] %v463
  %498 = vst [vmem:[#allocation2 + $0xe0] sm:$0xff] %v468
  %499 = vst [vmem:[#allocation2 + $0xe8] sm:$0xff] %v473
  %500 = vst [vmem:[#allocation2 + $0xf0] sm:$0xff] %v478
  %501 = vst [vmem:[#allocation2 + $0xf8] sm:$0xff] %v483
  %v502 = vadd.f32 %v408, %v413
  %v503 = vadd.f32 %v502, %v418
  %v504 = vadd.f32 %v503, %v423
  %v505 = vadd.f32 %v504, %v428
  %v506 = vadd.f32 %v505, %v433
  %v507 = vadd.f32 %v506, %v438
  %v508 = vadd.f32 %v507, %v443
  %v509 = vadd.f32 %v508, %v448
  %v510 = vadd.f32 %v509, %v453
  %v511 = vadd.f32 %v510, %v458
  %v512 = vadd.f32 %v511, %v463
  %v513 = vadd.f32 %v512, %v468
  %v514 = vadd.f32 %v513, %v473
  %v515 = vadd.f32 %v514, %v478
  %v516 = vadd.f32 %v515, %v483
  %v517 = vrot.slane %v516, 4
  %v518 = vadd.f32 %v516, %v517
  %v519 = vrot.slane %v518, 2
  %v520 = vadd.f32 %v518, %v519
  %v521 = vrot.slane %v520, 1
  %v522 = vadd.f32 %v520, %v521
  %v523 = vadd.f32 %v276, %v522
  %v524 = vld [vmem:[%s0 + $0x100] sm:$0xff]
  %v525 = vld [vmem:[%s0 + $0x108] sm:$0xff]
  %v526 = vld [vmem:[%s0 + $0x110] sm:$0xff]
  %v527 = vld [vmem:[%s0 + $0x118] sm:$0xff]
  %v528 = vld [vmem:[%s0 + $0x120] sm:$0xff]
  %v529 = vld [vmem:[%s0 + $0x128] sm:$0xff]
  %v530 = vld [vmem:[%s0 + $0x130] sm:$0xff]
  %v531 = vld [vmem:[%s0 + $0x138] sm:$0xff]
  %v532 = vld [vmem:[%s0 + $0x140] sm:$0xff]
  %v533 = vld [vmem:[%s0 + $0x148] sm:$0xff]
  %v534 = vld [vmem:[%s0 + $0x150] sm:$0xff]
  %v535 = vld [vmem:[%s0 + $0x158] sm:$0xff]
  %v536 = vld [vmem:[%s0 + $0x160] sm:$0xff]
  %v537 = vld [vmem:[%s0 + $0x168] sm:$0xff]
  %v538 = vld [vmem:[%s0 + $0x170] sm:$0xff]
  %v539 = vld [vmem:[%s0 + $0x178] sm:$0xff]
  %v541 = vsel %vm41, %v524, 0
  %v544 = vsel %vm41, %v525, 0
  %v547 = vsel %vm41, %v526, 0
  %v550 = vsel %vm41, %v527, 0
  %v553 = vsel %vm41, %v528, 0
  %v556 = vsel %vm41, %v529, 0
  %v559 = vsel %vm41, %v530, 0
  %v562 = vsel %vm41, %v531, 0
  %v565 = vsel %vm41, %v532, 0
  %v568 = vsel %vm41, %v533, 0
  %v571 = vsel %vm41, %v534, 0
  %v574 = vsel %vm41, %v535, 0
  %v577 = vsel %vm41, %v536, 0
  %v580 = vsel %vm41, %v537, 0
  %v583 = vsel %vm41, %v538, 0
  %v586 = vsel %vm41, %v539, 0
  %588 = vmatprep.subr.mxu0 0.0
  %589 = vmatpush1.msra.mxu0 0.0
  %590 = vmatprep.subr.mxu0 0.0
  %591 = vmatpush1.msra.mxu0 0.0
  %592 = vmatprep.subr.mxu0 0.0
  %593 = vmatpush1.msra.mxu0 0.0
  %594 = vmatprep.subr.mxu0 0.0
  %595 = vmatpush1.msra.mxu0 0.0
  %596 = vmatprep.subr.mxu0 0.0
  %597 = vmatpush1.msra.mxu0 0.0
  %598 = vmatprep.subr.mxu0 0.0
  %599 = vmatpush1.msra.mxu0 0.0
  %600 = vmatprep.subr.mxu0 0.0
  %601 = vmatpush1.msra.mxu0 0.0
  %602 = vmatprep.subr.mxu0 0.0
  %603 = vmatpush1.msra.mxu0 0.0
  %604 = vmatprep.subr.mxu0 0.0
  %605 = vmatpush1.msra.mxu0 0.0
  %606 = vmatprep.subr.mxu0 0.0
  %607 = vmatpush1.msra.mxu0 0.0
  %608 = vmatprep.subr.mxu0 0.0
  %609 = vmatpush1.msra.mxu0 0.0
  %610 = vmatprep.subr.mxu0 0.0
  %611 = vmatpush1.msra.mxu0 0.0
  %612 = vmatprep.subr.mxu0 0.0
  %613 = vmatpush1.msra.mxu0 %v92
  %614 = vmatprep.subr.mxu0 0.0
  %615 = vmatpush1.msra.mxu0 %v23
  %616 = vmatprep.subr.mxu0 0.0
  %617 = vmatpush1.msra.mxu0 %v22
  %618 = vmatprep.subr.mxu0 0.0
  %619 = vmatpush1.msra.mxu0 %v21
  %620 = vmatprep.subr.mxu0 0.0
  %621 = vmatpush2.msra.mxu0 0.0
  %622 = vmatprep.subr.mxu0 0.0
  %623 = vmatpush2.msra.mxu0 0.0
  %624 = vmatprep.subr.mxu0 0.0
  %625 = vmatpush2.msra.mxu0 0.0
  %626 = vmatprep.subr.mxu0 0.0
  %627 = vmatpush2.msra.mxu0 0.0
  %628 = vmatprep.subr.mxu0 0.0
  %629 = vmatpush2.msra.mxu0 0.0
  %630 = vmatprep.subr.mxu0 0.0
  %631 = vmatpush2.msra.mxu0 0.0
  %632 = vmatprep.subr.mxu0 0.0
  %633 = vmatpush2.msra.mxu0 0.0
  %634 = vmatprep.subr.mxu0 0.0
  %635 = vmatpush2.msra.mxu0 0.0
  %636 = vmatprep.subr.mxu0 0.0
  %637 = vmatpush2.msra.mxu0 0.0
  %638 = vmatprep.subr.mxu0 0.0
  %639 = vmatpush2.msra.mxu0 0.0
  %640 = vmatprep.subr.mxu0 0.0
  %641 = vmatpush2.msra.mxu0 0.0
  %642 = vmatprep.subr.mxu0 0.0
  %643 = vmatpush2.msra.mxu0 0.0
  %644 = vmatprep.subr.mxu0 0.0
  %645 = vmatpush2.msra.mxu0 0.0
  %646 = vmatprep.subr.mxu0 0.0
  %647 = vmatpush2.msra.mxu0 0.0
  %648 = vmatprep.subr.mxu0 0.0
  %649 = vmatpush2.msra.mxu0 0.0
  %650 = vmatprep.subr.mxu0 0.0
  %651 = vmatpush2.msra.mxu0 0.0
  %652 = vmatprep.mubr.f32.mxu0 0.0
  %653 = vmatmul.mubr.f32.gmra.mxu0 %v541
  %v654 = vpop.f32.mrf.mxu0
  %v655 = vadd.f32 0.0, %v654
  %v656 = vpop.f32.mrf.mxu0
  %657 = vmatprep.mubr.f32.mxu0 0.0
  %658 = vmatmul.mubr.f32.gmra.mxu0 %v544
  %v659 = vpop.f32.mrf.mxu0
  %v660 = vadd.f32 0.0, %v659
  %v661 = vpop.f32.mrf.mxu0
  %662 = vmatprep.mubr.f32.mxu0 0.0
  %663 = vmatmul.mubr.f32.gmra.mxu0 %v547
  %v664 = vpop.f32.mrf.mxu0
  %v665 = vadd.f32 0.0, %v664
  %v666 = vpop.f32.mrf.mxu0
  %667 = vmatprep.mubr.f32.mxu0 0.0
  %668 = vmatmul.mubr.f32.gmra.mxu0 %v550
  %v669 = vpop.f32.mrf.mxu0
  %v670 = vadd.f32 0.0, %v669
  %v671 = vpop.f32.mrf.mxu0
  %672 = vmatprep.mubr.f32.mxu0 0.0
  %673 = vmatmul.mubr.f32.gmra.mxu0 %v553
  %v674 = vpop.f32.mrf.mxu0
  %v675 = vadd.f32 0.0, %v674
  %v676 = vpop.f32.mrf.mxu0
  %677 = vmatprep.mubr.f32.mxu0 0.0
  %678 = vmatmul.mubr.f32.gmra.mxu0 %v556
  %v679 = vpop.f32.mrf.mxu0
  %v680 = vadd.f32 0.0, %v679
  %v681 = vpop.f32.mrf.mxu0
  %682 = vmatprep.mubr.f32.mxu0 0.0
  %683 = vmatmul.mubr.f32.gmra.mxu0 %v559
  %v684 = vpop.f32.mrf.mxu0
  %v685 = vadd.f32 0.0, %v684
  %v686 = vpop.f32.mrf.mxu0
  %687 = vmatprep.mubr.f32.mxu0 0.0
  %688 = vmatmul.mubr.f32.gmra.mxu0 %v562
  %v689 = vpop.f32.mrf.mxu0
  %v690 = vadd.f32 0.0, %v689
  %v691 = vpop.f32.mrf.mxu0
  %692 = vmatprep.mubr.f32.mxu0 0.0
  %693 = vmatmul.mubr.f32.gmra.mxu0 %v565
  %v694 = vpop.f32.mrf.mxu0
  %v695 = vadd.f32 0.0, %v694
  %v696 = vpop.f32.mrf.mxu0
  %697 = vmatprep.mubr.f32.mxu0 0.0
  %698 = vmatmul.mubr.f32.gmra.mxu0 %v568
  %v699 = vpop.f32.mrf.mxu0
  %v700 = vadd.f32 0.0, %v699
  %v701 = vpop.f32.mrf.mxu0
  %702 = vmatprep.mubr.f32.mxu0 0.0
  %703 = vmatmul.mubr.f32.gmra.mxu0 %v571
  %v704 = vpop.f32.mrf.mxu0
  %v705 = vadd.f32 0.0, %v704
  %v706 = vpop.f32.mrf.mxu0
  %707 = vmatprep.mubr.f32.mxu0 0.0
  %708 = vmatmul.mubr.f32.gmra.mxu0 %v574
  %v709 = vpop.f32.mrf.mxu0
  %v710 = vadd.f32 0.0, %v709
  %v711 = vpop.f32.mrf.mxu0
  %712 = vmatprep.mubr.f32.mxu0 0.0
  %713 = vmatmul.mubr.f32.gmra.mxu0 %v577
  %v714 = vpop.f32.mrf.mxu0
  %v715 = vadd.f32 0.0, %v714
  %v716 = vpop.f32.mrf.mxu0
  %717 = vmatprep.mubr.f32.mxu0 0.0
  %718 = vmatmul.mubr.f32.gmra.mxu0 %v580
  %v719 = vpop.f32.mrf.mxu0
  %v720 = vadd.f32 0.0, %v719
  %v721 = vpop.f32.mrf.mxu0
  %722 = vmatprep.mubr.f32.mxu0 0.0
  %723 = vmatmul.mubr.f32.gmra.mxu0 %v583
  %v724 = vpop.f32.mrf.mxu0
  %v725 = vadd.f32 0.0, %v724
  %v726 = vpop.f32.mrf.mxu0
  %727 = vmatprep.mubr.f32.mxu0 0.0
  %728 = vmatmul.mubr.f32.gmra.mxu0 %v586
  %v729 = vpop.f32.mrf.mxu0
  %v730 = vadd.f32 0.0, %v729
  %v731 = vpop.f32.mrf.mxu0
  %732 = vdwg.mxu0
  %733 = vst [vmem:[#allocation2 + $0x100] sm:$0xff] %v655
  %734 = vst [vmem:[#allocation2 + $0x108] sm:$0xff] %v660
  %735 = vst [vmem:[#allocation2 + $0x110] sm:$0xff] %v665
  %736 = vst [vmem:[#allocation2 + $0x118] sm:$0xff] %v670
  %737 = vst [vmem:[#allocation2 + $0x120] sm:$0xff] %v675
  %738 = vst [vmem:[#allocation2 + $0x128] sm:$0xff] %v680
  %739 = vst [vmem:[#allocation2 + $0x130] sm:$0xff] %v685
  %740 = vst [vmem:[#allocation2 + $0x138] sm:$0xff] %v690
  %741 = vst [vmem:[#allocation2 + $0x140] sm:$0xff] %v695
  %742 = vst [vmem:[#allocation2 + $0x148] sm:$0xff] %v700
  %743 = vst [vmem:[#allocation2 + $0x150] sm:$0xff] %v705
  %744 = vst [vmem:[#allocation2 + $0x158] sm:$0xff] %v710
  %745 = vst [vmem:[#allocation2 + $0x160] sm:$0xff] %v715
  %746 = vst [vmem:[#allocation2 + $0x168] sm:$0xff] %v720
  %747 = vst [vmem:[#allocation2 + $0x170] sm:$0xff] %v725
  %748 = vst [vmem:[#allocation2 + $0x178] sm:$0xff] %v730
  %v749 = vadd.f32 %v655, %v660
  %v750 = vadd.f32 %v749, %v665
  %v751 = vadd.f32 %v750, %v670
  %v752 = vadd.f32 %v751, %v675
  %v753 = vadd.f32 %v752, %v680
  %v754 = vadd.f32 %v753, %v685
  %v755 = vadd.f32 %v754, %v690
  %v756 = vadd.f32 %v755, %v695
  %v757 = vadd.f32 %v756, %v700
  %v758 = vadd.f32 %v757, %v705
  %v759 = vadd.f32 %v758, %v710
  %v760 = vadd.f32 %v759, %v715
  %v761 = vadd.f32 %v760, %v720
  %v762 = vadd.f32 %v761, %v725
  %v763 = vadd.f32 %v762, %v730
  %v764 = vrot.slane %v763, 4
  %v765 = vadd.f32 %v763, %v764
  %v766 = vrot.slane %v765, 2
  %v767 = vadd.f32 %v765, %v766
  %v768 = vrot.slane %v767, 1
  %v769 = vadd.f32 %v767, %v768
  %v770 = vadd.f32 %v523, %v769
  %v771 = vld [vmem:[%s0 + $0x180] sm:$0xff]
  %v772 = vld [vmem:[%s0 + $0x188] sm:$0xff]
  %v773 = vld [vmem:[%s0 + $0x190] sm:$0xff]
  %v774 = vld [vmem:[%s0 + $0x198] sm:$0xff]
  %v775 = vld [vmem:[%s0 + $0x1a0] sm:$0xff]
  %v776 = vld [vmem:[%s0 + $0x1a8] sm:$0xff]
  %v777 = vld [vmem:[%s0 + $0x1b0] sm:$0xff]
  %v778 = vld [vmem:[%s0 + $0x1b8] sm:$0xff]
  %v779 = vld [vmem:[%s0 + $0x1c0] sm:$0xff]
  %v780 = vld [vmem:[%s0 + $0x1c8] sm:$0xff]
  %v781 = vld [vmem:[%s0 + $0x1d0] sm:$0xff]
  %v782 = vld [vmem:[%s0 + $0x1d8] sm:$0xff]
  %v783 = vld [vmem:[%s0 + $0x1e0] sm:$0xff]
  %v784 = vld [vmem:[%s0 + $0x1e8] sm:$0xff]
  %v785 = vld [vmem:[%s0 + $0x1f0] sm:$0xff]
  %v786 = vld [vmem:[%s0 + $0x1f8] sm:$0xff]
  %v788 = vsel %vm41, %v771, 0
  %v791 = vsel %vm41, %v772, 0
  %v794 = vsel %vm41, %v773, 0
  %v797 = vsel %vm41, %v774, 0
  %v800 = vsel %vm41, %v775, 0
  %v803 = vsel %vm41, %v776, 0
  %v806 = vsel %vm41, %v777, 0
  %v809 = vsel %vm41, %v778, 0
  %v812 = vsel %vm41, %v779, 0
  %v815 = vsel %vm41, %v780, 0
  %v818 = vsel %vm41, %v781, 0
  %v821 = vsel %vm41, %v782, 0
  %v824 = vsel %vm41, %v783, 0
  %v827 = vsel %vm41, %v784, 0
  %v830 = vsel %vm41, %v785, 0
  %v833 = vsel %vm41, %v786, 0
  %835 = vmatprep.subr.mxu0 0.0
  %836 = vmatpush1.msra.mxu0 0.0
  %837 = vmatprep.subr.mxu0 0.0
  %838 = vmatpush1.msra.mxu0 0.0
  %839 = vmatprep.subr.mxu0 0.0
  %840 = vmatpush1.msra.mxu0 0.0
  %841 = vmatprep.subr.mxu0 0.0
  %842 = vmatpush1.msra.mxu0 0.0
  %843 = vmatprep.subr.mxu0 0.0
  %844 = vmatpush1.msra.mxu0 0.0
  %845 = vmatprep.subr.mxu0 0.0
  %846 = vmatpush1.msra.mxu0 0.0
  %847 = vmatprep.subr.mxu0 0.0
  %848 = vmatpush1.msra.mxu0 0.0
  %849 = vmatprep.subr.mxu0 0.0
  %850 = vmatpush1.msra.mxu0 0.0
  %851 = vmatprep.subr.mxu0 0.0
  %852 = vmatpush1.msra.mxu0 0.0
  %853 = vmatprep.subr.mxu0 0.0
  %854 = vmatpush1.msra.mxu0 0.0
  %855 = vmatprep.subr.mxu0 0.0
  %856 = vmatpush1.msra.mxu0 0.0
  %857 = vmatprep.subr.mxu0 0.0
  %858 = vmatpush1.msra.mxu0 0.0
  %859 = vmatprep.subr.mxu0 0.0
  %860 = vmatpush1.msra.mxu0 %v92
  %861 = vmatprep.subr.mxu0 0.0
  %862 = vmatpush1.msra.mxu0 %v23
  %863 = vmatprep.subr.mxu0 0.0
  %864 = vmatpush1.msra.mxu0 %v22
  %865 = vmatprep.subr.mxu0 0.0
  %866 = vmatpush1.msra.mxu0 %v21
  %867 = vmatprep.subr.mxu0 0.0
  %868 = vmatpush2.msra.mxu0 0.0
  %869 = vmatprep.subr.mxu0 0.0
  %870 = vmatpush2.msra.mxu0 0.0
  %871 = vmatprep.subr.mxu0 0.0
  %872 = vmatpush2.msra.mxu0 0.0
  %873 = vmatprep.subr.mxu0 0.0
  %874 = vmatpush2.msra.mxu0 0.0
  %875 = vmatprep.subr.mxu0 0.0
  %876 = vmatpush2.msra.mxu0 0.0
  %877 = vmatprep.subr.mxu0 0.0
  %878 = vmatpush2.msra.mxu0 0.0
  %879 = vmatprep.subr.mxu0 0.0
  %880 = vmatpush2.msra.mxu0 0.0
  %881 = vmatprep.subr.mxu0 0.0
  %882 = vmatpush2.msra.mxu0 0.0
  %883 = vmatprep.subr.mxu0 0.0
  %884 = vmatpush2.msra.mxu0 0.0
  %885 = vmatprep.subr.mxu0 0.0
  %886 = vmatpush2.msra.mxu0 0.0
  %887 = vmatprep.subr.mxu0 0.0
  %888 = vmatpush2.msra.mxu0 0.0
  %889 = vmatprep.subr.mxu0 0.0
  %890 = vmatpush2.msra.mxu0 0.0
  %891 = vmatprep.subr.mxu0 0.0
  %892 = vmatpush2.msra.mxu0 0.0
  %893 = vmatprep.subr.mxu0 0.0
  %894 = vmatpush2.msra.mxu0 0.0
  %895 = vmatprep.subr.mxu0 0.0
  %896 = vmatpush2.msra.mxu0 0.0
  %897 = vmatprep.subr.mxu0 0.0
  %898 = vmatpush2.msra.mxu0 0.0
  %899 = vmatprep.mubr.f32.mxu0 0.0
  %900 = vmatmul.mubr.f32.gmra.mxu0 %v788
  %v901 = vpop.f32.mrf.mxu0
  %v902 = vadd.f32 0.0, %v901
  %v903 = vpop.f32.mrf.mxu0
  %904 = vmatprep.mubr.f32.mxu0 0.0
  %905 = vmatmul.mubr.f32.gmra.mxu0 %v791
  %v906 = vpop.f32.mrf.mxu0
  %v907 = vadd.f32 0.0, %v906
  %v908 = vpop.f32.mrf.mxu0
  %909 = vmatprep.mubr.f32.mxu0 0.0
  %910 = vmatmul.mubr.f32.gmra.mxu0 %v794
  %v911 = vpop.f32.mrf.mxu0
  %v912 = vadd.f32 0.0, %v911
  %v913 = vpop.f32.mrf.mxu0
  %914 = vmatprep.mubr.f32.mxu0 0.0
  %915 = vmatmul.mubr.f32.gmra.mxu0 %v797
  %v916 = vpop.f32.mrf.mxu0
  %v917 = vadd.f32 0.0, %v916
  %v918 = vpop.f32.mrf.mxu0
  %919 = vmatprep.mubr.f32.mxu0 0.0
  %920 = vmatmul.mubr.f32.gmra.mxu0 %v800
  %v921 = vpop.f32.mrf.mxu0
  %v922 = vadd.f32 0.0, %v921
  %v923 = vpop.f32.mrf.mxu0
  %924 = vmatprep.mubr.f32.mxu0 0.0
  %925 = vmatmul.mubr.f32.gmra.mxu0 %v803
  %v926 = vpop.f32.mrf.mxu0
  %v927 = vadd.f32 0.0, %v926
  %v928 = vpop.f32.mrf.mxu0
  %929 = vmatprep.mubr.f32.mxu0 0.0
  %930 = vmatmul.mubr.f32.gmra.mxu0 %v806
  %v931 = vpop.f32.mrf.mxu0
  %v932 = vadd.f32 0.0, %v931
  %v933 = vpop.f32.mrf.mxu0
  %934 = vmatprep.mubr.f32.mxu0 0.0
  %935 = vmatmul.mubr.f32.gmra.mxu0 %v809
  %v936 = vpop.f32.mrf.mxu0
  %v937 = vadd.f32 0.0, %v936
  %v938 = vpop.f32.mrf.mxu0
  %939 = vmatprep.mubr.f32.mxu0 0.0
  %940 = vmatmul.mubr.f32.gmra.mxu0 %v812
  %v941 = vpop.f32.mrf.mxu0
  %v942 = vadd.f32 0.0, %v941
  %v943 = vpop.f32.mrf.mxu0
  %944 = vmatprep.mubr.f32.mxu0 0.0
  %945 = vmatmul.mubr.f32.gmra.mxu0 %v815
  %v946 = vpop.f32.mrf.mxu0
  %v947 = vadd.f32 0.0, %v946
  %v948 = vpop.f32.mrf.mxu0
  %949 = vmatprep.mubr.f32.mxu0 0.0
  %950 = vmatmul.mubr.f32.gmra.mxu0 %v818
  %v951 = vpop.f32.mrf.mxu0
  %v952 = vadd.f32 0.0, %v951
  %v953 = vpop.f32.mrf.mxu0
  %954 = vmatprep.mubr.f32.mxu0 0.0
  %955 = vmatmul.mubr.f32.gmra.mxu0 %v821
  %v956 = vpop.f32.mrf.mxu0
  %v957 = vadd.f32 0.0, %v956
  %v958 = vpop.f32.mrf.mxu0
  %959 = vmatprep.mubr.f32.mxu0 0.0
  %960 = vmatmul.mubr.f32.gmra.mxu0 %v824
  %v961 = vpop.f32.mrf.mxu0
  %v962 = vadd.f32 0.0, %v961
  %v963 = vpop.f32.mrf.mxu0
  %964 = vmatprep.mubr.f32.mxu0 0.0
  %965 = vmatmul.mubr.f32.gmra.mxu0 %v827
  %v966 = vpop.f32.mrf.mxu0
  %v967 = vadd.f32 0.0, %v966
  %v968 = vpop.f32.mrf.mxu0
  %969 = vmatprep.mubr.f32.mxu0 0.0
  %970 = vmatmul.mubr.f32.gmra.mxu0 %v830
  %v971 = vpop.f32.mrf.mxu0
  %v972 = vadd.f32 0.0, %v971
  %v973 = vpop.f32.mrf.mxu0
  %974 = vmatprep.mubr.f32.mxu0 0.0
  %975 = vmatmul.mubr.f32.gmra.mxu0 %v833
  %v976 = vpop.f32.mrf.mxu0
  %v977 = vadd.f32 0.0, %v976
  %v978 = vpop.f32.mrf.mxu0
  %979 = vdwg.mxu0
  %980 = vst [vmem:[#allocation2 + $0x180] sm:$0xff] %v902
  %981 = vst [vmem:[#allocation2 + $0x188] sm:$0xff] %v907
  %982 = vst [vmem:[#allocation2 + $0x190] sm:$0xff] %v912
  %983 = vst [vmem:[#allocation2 + $0x198] sm:$0xff] %v917
  %984 = vst [vmem:[#allocation2 + $0x1a0] sm:$0xff] %v922
  %985 = vst [vmem:[#allocation2 + $0x1a8] sm:$0xff] %v927
  %986 = vst [vmem:[#allocation2 + $0x1b0] sm:$0xff] %v932
  %987 = vst [vmem:[#allocation2 + $0x1b8] sm:$0xff] %v937
  %988 = vst [vmem:[#allocation2 + $0x1c0] sm:$0xff] %v942
  %989 = vst [vmem:[#allocation2 + $0x1c8] sm:$0xff] %v947
  %990 = vst [vmem:[#allocation2 + $0x1d0] sm:$0xff] %v952
  %991 = vst [vmem:[#allocation2 + $0x1d8] sm:$0xff] %v957
  %992 = vst [vmem:[#allocation2 + $0x1e0] sm:$0xff] %v962
  %993 = vst [vmem:[#allocation2 + $0x1e8] sm:$0xff] %v967
  %994 = vst [vmem:[#allocation2 + $0x1f0] sm:$0xff] %v972
  %995 = vst [vmem:[#allocation2 + $0x1f8] sm:$0xff] %v977
  %v996 = vadd.f32 %v902, %v907
  %v997 = vadd.f32 %v996, %v912
  %v998 = vadd.f32 %v997, %v917
  %v999 = vadd.f32 %v998, %v922
  %v1000 = vadd.f32 %v999, %v927
  %v1001 = vadd.f32 %v1000, %v932
  %v1002 = vadd.f32 %v1001, %v937
  %v1003 = vadd.f32 %v1002, %v942
  %v1004 = vadd.f32 %v1003, %v947
  %v1005 = vadd.f32 %v1004, %v952
  %v1006 = vadd.f32 %v1005, %v957
  %v1007 = vadd.f32 %v1006, %v962
  %v1008 = vadd.f32 %v1007, %v967
  %v1009 = vadd.f32 %v1008, %v972
  %v1010 = vadd.f32 %v1009, %v977
  %v1011 = vrot.slane %v1010, 4
  %v1012 = vadd.f32 %v1010, %v1011
  %v1013 = vrot.slane %v1012, 2
  %v1014 = vadd.f32 %v1012, %v1013
  %v1015 = vrot.slane %v1014, 1
  %v1016 = vadd.f32 %v1014, %v1015
  %v1017 = vadd.f32 %v770, %v1016
  %v1018 = vld [vmem:[%s0 + $0x200] sm:$0xff]
  %v1019 = vld [vmem:[%s0 + $0x208] sm:$0xff]
  %v1020 = vld [vmem:[%s0 + $0x210] sm:$0xff]
  %v1021 = vld [vmem:[%s0 + $0x218] sm:$0xff]
  %v1022 = vld [vmem:[%s0 + $0x220] sm:$0xff]
  %v1023 = vld [vmem:[%s0 + $0x228] sm:$0xff]
  %v1024 = vld [vmem:[%s0 + $0x230] sm:$0xff]
  %v1025 = vld [vmem:[%s0 + $0x238] sm:$0xff]
  %v1026 = vld [vmem:[%s0 + $0x240] sm:$0xff]
  %v1027 = vld [vmem:[%s0 + $0x248] sm:$0xff]
  %v1028 = vld [vmem:[%s0 + $0x250] sm:$0xff]
  %v1029 = vld [vmem:[%s0 + $0x258] sm:$0xff]
  %v1030 = vld [vmem:[%s0 + $0x260] sm:$0xff]
  %v1031 = vld [vmem:[%s0 + $0x268] sm:$0xff]
  %v1032 = vld [vmem:[%s0 + $0x270] sm:$0xff]
  %v1033 = vld [vmem:[%s0 + $0x278] sm:$0xff]
  %v1035 = vsel %vm41, %v1018, 0
  %v1038 = vsel %vm41, %v1019, 0
  %v1041 = vsel %vm41, %v1020, 0
  %v1044 = vsel %vm41, %v1021, 0
  %v1047 = vsel %vm41, %v1022, 0
  %v1050 = vsel %vm41, %v1023, 0
  %v1053 = vsel %vm41, %v1024, 0
  %v1056 = vsel %vm41, %v1025, 0
  %v1059 = vsel %vm41, %v1026, 0
  %v1062 = vsel %vm41, %v1027, 0
  %v1065 = vsel %vm41, %v1028, 0
  %v1068 = vsel %vm41, %v1029, 0
  %v1071 = vsel %vm41, %v1030, 0
  %v1074 = vsel %vm41, %v1031, 0
  %v1077 = vsel %vm41, %v1032, 0
  %v1080 = vsel %vm41, %v1033, 0
  %1082 = vmatprep.subr.mxu0 0.0
  %1083 = vmatpush1.msra.mxu0 0.0
  %1084 = vmatprep.subr.mxu0 0.0
  %1085 = vmatpush1.msra.mxu0 0.0
  %1086 = vmatprep.subr.mxu0 0.0
  %1087 = vmatpush1.msra.mxu0 0.0
  %1088 = vmatprep.subr.mxu0 0.0
  %1089 = vmatpush1.msra.mxu0 0.0
  %1090 = vmatprep.subr.mxu0 0.0
  %1091 = vmatpush1.msra.mxu0 0.0
  %1092 = vmatprep.subr.mxu0 0.0
  %1093 = vmatpush1.msra.mxu0 0.0
  %1094 = vmatprep.subr.mxu0 0.0
  %1095 = vmatpush1.msra.mxu0 0.0
  %1096 = vmatprep.subr.mxu0 0.0
  %1097 = vmatpush1.msra.mxu0 0.0
  %1098 = vmatprep.subr.mxu0 0.0
  %1099 = vmatpush1.msra.mxu0 0.0
  %1100 = vmatprep.subr.mxu0 0.0
  %1101 = vmatpush1.msra.mxu0 0.0
  %1102 = vmatprep.subr.mxu0 0.0
  %1103 = vmatpush1.msra.mxu0 0.0
  %1104 = vmatprep.subr.mxu0 0.0
  %1105 = vmatpush1.msra.mxu0 0.0
  %1106 = vmatprep.subr.mxu0 0.0
  %1107 = vmatpush1.msra.mxu0 %v92
  %1108 = vmatprep.subr.mxu0 0.0
  %1109 = vmatpush1.msra.mxu0 %v23
  %1110 = vmatprep.subr.mxu0 0.0
  %1111 = vmatpush1.msra.mxu0 %v22
  %1112 = vmatprep.subr.mxu0 0.0
  %1113 = vmatpush1.msra.mxu0 %v21
  %1114 = vmatprep.subr.mxu0 0.0
  %1115 = vmatpush2.msra.mxu0 0.0
  %1116 = vmatprep.subr.mxu0 0.0
  %1117 = vmatpush2.msra.mxu0 0.0
  %1118 = vmatprep.subr.mxu0 0.0
  %1119 = vmatpush2.msra.mxu0 0.0
  %1120 = vmatprep.subr.mxu0 0.0
  %1121 = vmatpush2.msra.mxu0 0.0
  %1122 = vmatprep.subr.mxu0 0.0
  %1123 = vmatpush2.msra.mxu0 0.0
  %1124 = vmatprep.subr.mxu0 0.0
  %1125 = vmatpush2.msra.mxu0 0.0
  %1126 = vmatprep.subr.mxu0 0.0
  %1127 = vmatpush2.msra.mxu0 0.0
  %1128 = vmatprep.subr.mxu0 0.0
  %1129 = vmatpush2.msra.mxu0 0.0
  %1130 = vmatprep.subr.mxu0 0.0
  %1131 = vmatpush2.msra.mxu0 0.0
  %1132 = vmatprep.subr.mxu0 0.0
  %1133 = vmatpush2.msra.mxu0 0.0
  %1134 = vmatprep.subr.mxu0 0.0
  %1135 = vmatpush2.msra.mxu0 0.0
  %1136 = vmatprep.subr.mxu0 0.0
  %1137 = vmatpush2.msra.mxu0 0.0
  %1138 = vmatprep.subr.mxu0 0.0
  %1139 = vmatpush2.msra.mxu0 0.0
  %1140 = vmatprep.subr.mxu0 0.0
  %1141 = vmatpush2.msra.mxu0 0.0
  %1142 = vmatprep.subr.mxu0 0.0
  %1143 = vmatpush2.msra.mxu0 0.0
  %1144 = vmatprep.subr.mxu0 0.0
  %1145 = vmatpush2.msra.mxu0 0.0
  %1146 = vmatprep.mubr.f32.mxu0 0.0
  %1147 = vmatmul.mubr.f32.gmra.mxu0 %v1035
  %v1148 = vpop.f32.mrf.mxu0
  %v1149 = vadd.f32 0.0, %v1148
  %v1150 = vpop.f32.mrf.mxu0
  %1151 = vmatprep.mubr.f32.mxu0 0.0
  %1152 = vmatmul.mubr.f32.gmra.mxu0 %v1038
  %v1153 = vpop.f32.mrf.mxu0
  %v1154 = vadd.f32 0.0, %v1153
  %v1155 = vpop.f32.mrf.mxu0
  %1156 = vmatprep.mubr.f32.mxu0 0.0
  %1157 = vmatmul.mubr.f32.gmra.mxu0 %v1041
  %v1158 = vpop.f32.mrf.mxu0
  %v1159 = vadd.f32 0.0, %v1158
  %v1160 = vpop.f32.mrf.mxu0
  %1161 = vmatprep.mubr.f32.mxu0 0.0
  %1162 = vmatmul.mubr.f32.gmra.mxu0 %v1044
  %v1163 = vpop.f32.mrf.mxu0
  %v1164 = vadd.f32 0.0, %v1163
  %v1165 = vpop.f32.mrf.mxu0
  %1166 = vmatprep.mubr.f32.mxu0 0.0
  %1167 = vmatmul.mubr.f32.gmra.mxu0 %v1047
  %v1168 = vpop.f32.mrf.mxu0
  %v1169 = vadd.f32 0.0, %v1168
  %v1170 = vpop.f32.mrf.mxu0
  %1171 = vmatprep.mubr.f32.mxu0 0.0
  %1172 = vmatmul.mubr.f32.gmra.mxu0 %v1050
  %v1173 = vpop.f32.mrf.mxu0
  %v1174 = vadd.f32 0.0, %v1173
  %v1175 = vpop.f32.mrf.mxu0
  %1176 = vmatprep.mubr.f32.mxu0 0.0
  %1177 = vmatmul.mubr.f32.gmra.mxu0 %v1053
  %v1178 = vpop.f32.mrf.mxu0
  %v1179 = vadd.f32 0.0, %v1178
  %v1180 = vpop.f32.mrf.mxu0
  %1181 = vmatprep.mubr.f32.mxu0 0.0
  %1182 = vmatmul.mubr.f32.gmra.mxu0 %v1056
  %v1183 = vpop.f32.mrf.mxu0
  %v1184 = vadd.f32 0.0, %v1183
  %v1185 = vpop.f32.mrf.mxu0
  %1186 = vmatprep.mubr.f32.mxu0 0.0
  %1187 = vmatmul.mubr.f32.gmra.mxu0 %v1059
  %v1188 = vpop.f32.mrf.mxu0
  %v1189 = vadd.f32 0.0, %v1188
  %v1190 = vpop.f32.mrf.mxu0
  %1191 = vmatprep.mubr.f32.mxu0 0.0
  %1192 = vmatmul.mubr.f32.gmra.mxu0 %v1062
  %v1193 = vpop.f32.mrf.mxu0
  %v1194 = vadd.f32 0.0, %v1193
  %v1195 = vpop.f32.mrf.mxu0
  %1196 = vmatprep.mubr.f32.mxu0 0.0
  %1197 = vmatmul.mubr.f32.gmra.mxu0 %v1065
  %v1198 = vpop.f32.mrf.mxu0
  %v1199 = vadd.f32 0.0, %v1198
  %v1200 = vpop.f32.mrf.mxu0
  %1201 = vmatprep.mubr.f32.mxu0 0.0
  %1202 = vmatmul.mubr.f32.gmra.mxu0 %v1068
  %v1203 = vpop.f32.mrf.mxu0
  %v1204 = vadd.f32 0.0, %v1203
  %v1205 = vpop.f32.mrf.mxu0
  %1206 = vmatprep.mubr.f32.mxu0 0.0
  %1207 = vmatmul.mubr.f32.gmra.mxu0 %v1071
  %v1208 = vpop.f32.mrf.mxu0
  %v1209 = vadd.f32 0.0, %v1208
  %v1210 = vpop.f32.mrf.mxu0
  %1211 = vmatprep.mubr.f32.mxu0 0.0
  %1212 = vmatmul.mubr.f32.gmra.mxu0 %v1074
  %v1213 = vpop.f32.mrf.mxu0
  %v1214 = vadd.f32 0.0, %v1213
  %v1215 = vpop.f32.mrf.mxu0
  %1216 = vmatprep.mubr.f32.mxu0 0.0
  %1217 = vmatmul.mubr.f32.gmra.mxu0 %v1077
  %v1218 = vpop.f32.mrf.mxu0
  %v1219 = vadd.f32 0.0, %v1218
  %v1220 = vpop.f32.mrf.mxu0
  %1221 = vmatprep.mubr.f32.mxu0 0.0
  %1222 = vmatmul.mubr.f32.gmra.mxu0 %v1080
  %v1223 = vpop.f32.mrf.mxu0
  %v1224 = vadd.f32 0.0, %v1223
  %v1225 = vpop.f32.mrf.mxu0
  %1226 = vdwg.mxu0
  %1227 = vst [vmem:[#allocation2 + $0x200] sm:$0xff] %v1149
  %1228 = vst [vmem:[#allocation2 + $0x208] sm:$0xff] %v1154
  %1229 = vst [vmem:[#allocation2 + $0x210] sm:$0xff] %v1159
  %1230 = vst [vmem:[#allocation2 + $0x218] sm:$0xff] %v1164
  %1231 = vst [vmem:[#allocation2 + $0x220] sm:$0xff] %v1169
  %1232 = vst [vmem:[#allocation2 + $0x228] sm:$0xff] %v1174
  %1233 = vst [vmem:[#allocation2 + $0x230] sm:$0xff] %v1179
  %1234 = vst [vmem:[#allocation2 + $0x238] sm:$0xff] %v1184
  %1235 = vst [vmem:[#allocation2 + $0x240] sm:$0xff] %v1189
  %1236 = vst [vmem:[#allocation2 + $0x248] sm:$0xff] %v1194
  %1237 = vst [vmem:[#allocation2 + $0x250] sm:$0xff] %v1199
  %1238 = vst [vmem:[#allocation2 + $0x258] sm:$0xff] %v1204
  %1239 = vst [vmem:[#allocation2 + $0x260] sm:$0xff] %v1209
  %1240 = vst [vmem:[#allocation2 + $0x268] sm:$0xff] %v1214
  %1241 = vst [vmem:[#allocation2 + $0x270] sm:$0xff] %v1219
  %1242 = vst [vmem:[#allocation2 + $0x278] sm:$0xff] %v1224
  %v1243 = vadd.f32 %v1149, %v1154
  %v1244 = vadd.f32 %v1243, %v1159
  %v1245 = vadd.f32 %v1244, %v1164
  %v1246 = vadd.f32 %v1245, %v1169
  %v1247 = vadd.f32 %v1246, %v1174
  %v1248 = vadd.f32 %v1247, %v1179
  %v1249 = vadd.f32 %v1248, %v1184
  %v1250 = vadd.f32 %v1249, %v1189
  %v1251 = vadd.f32 %v1250, %v1194
  %v1252 = vadd.f32 %v1251, %v1199
  %v1253 = vadd.f32 %v1252, %v1204
  %v1254 = vadd.f32 %v1253, %v1209
  %v1255 = vadd.f32 %v1254, %v1214
  %v1256 = vadd.f32 %v1255, %v1219
  %v1257 = vadd.f32 %v1256, %v1224
  %v1258 = vrot.slane %v1257, 4
  %v1259 = vadd.f32 %v1257, %v1258
  %v1260 = vrot.slane %v1259, 2
  %v1261 = vadd.f32 %v1259, %v1260
  %v1262 = vrot.slane %v1261, 1
  %v1263 = vadd.f32 %v1261, %v1262
  %v1264 = vadd.f32 %v1017, %v1263
  %v1265 = vld [vmem:[%s0 + $0x280] sm:$0xff]
  %v1266 = vld [vmem:[%s0 + $0x288] sm:$0xff]
  %v1267 = vld [vmem:[%s0 + $0x290] sm:$0xff]
  %v1268 = vld [vmem:[%s0 + $0x298] sm:$0xff]
  %v1269 = vld [vmem:[%s0 + $0x2a0] sm:$0xff]
  %v1270 = vld [vmem:[%s0 + $0x2a8] sm:$0xff]
  %v1271 = vld [vmem:[%s0 + $0x2b0] sm:$0xff]
  %v1272 = vld [vmem:[%s0 + $0x2b8] sm:$0xff]
  %v1273 = vld [vmem:[%s0 + $0x2c0] sm:$0xff]
  %v1274 = vld [vmem:[%s0 + $0x2c8] sm:$0xff]
  %v1275 = vld [vmem:[%s0 + $0x2d0] sm:$0xff]
  %v1276 = vld [vmem:[%s0 + $0x2d8] sm:$0xff]
  %v1277 = vld [vmem:[%s0 + $0x2e0] sm:$0xff]
  %v1278 = vld [vmem:[%s0 + $0x2e8] sm:$0xff]
  %v1279 = vld [vmem:[%s0 + $0x2f0] sm:$0xff]
  %v1280 = vld [vmem:[%s0 + $0x2f8] sm:$0xff]
  %v1282 = vsel %vm41, %v1265, 0
  %v1285 = vsel %vm41, %v1266, 0
  %v1288 = vsel %vm41, %v1267, 0
  %v1291 = vsel %vm41, %v1268, 0
  %v1294 = vsel %vm41, %v1269, 0
  %v1297 = vsel %vm41, %v1270, 0
  %v1300 = vsel %vm41, %v1271, 0
  %v1303 = vsel %vm41, %v1272, 0
  %v1306 = vsel %vm41, %v1273, 0
  %v1309 = vsel %vm41, %v1274, 0
  %v1312 = vsel %vm41, %v1275, 0
  %v1315 = vsel %vm41, %v1276, 0
  %v1318 = vsel %vm41, %v1277, 0
  %v1321 = vsel %vm41, %v1278, 0
  %v1324 = vsel %vm41, %v1279, 0
  %v1327 = vsel %vm41, %v1280, 0
  %1329 = vmatprep.subr.mxu0 0.0
  %1330 = vmatpush1.msra.mxu0 0.0
  %1331 = vmatprep.subr.mxu0 0.0
  %1332 = vmatpush1.msra.mxu0 0.0
  %1333 = vmatprep.subr.mxu0 0.0
  %1334 = vmatpush1.msra.mxu0 0.0
  %1335 = vmatprep.subr.mxu0 0.0
  %1336 = vmatpush1.msra.mxu0 0.0
  %1337 = vmatprep.subr.mxu0 0.0
  %1338 = vmatpush1.msra.mxu0 0.0
  %1339 = vmatprep.subr.mxu0 0.0
  %1340 = vmatpush1.msra.mxu0 0.0
  %1341 = vmatprep.subr.mxu0 0.0
  %1342 = vmatpush1.msra.mxu0 0.0
  %1343 = vmatprep.subr.mxu0 0.0
  %1344 = vmatpush1.msra.mxu0 0.0
  %1345 = vmatprep.subr.mxu0 0.0
  %1346 = vmatpush1.msra.mxu0 0.0
  %1347 = vmatprep.subr.mxu0 0.0
  %1348 = vmatpush1.msra.mxu0 0.0
  %1349 = vmatprep.subr.mxu0 0.0
  %1350 = vmatpush1.msra.mxu0 0.0
  %1351 = vmatprep.subr.mxu0 0.0
  %1352 = vmatpush1.msra.mxu0 0.0
  %1353 = vmatprep.subr.mxu0 0.0
  %1354 = vmatpush1.msra.mxu0 %v92
  %1355 = vmatprep.subr.mxu0 0.0
  %1356 = vmatpush1.msra.mxu0 %v23
  %1357 = vmatprep.subr.mxu0 0.0
  %1358 = vmatpush1.msra.mxu0 %v22
  %1359 = vmatprep.subr.mxu0 0.0
  %1360 = vmatpush1.msra.mxu0 %v21
  %1361 = vmatprep.subr.mxu0 0.0
  %1362 = vmatpush2.msra.mxu0 0.0
  %1363 = vmatprep.subr.mxu0 0.0
  %1364 = vmatpush2.msra.mxu0 0.0
  %1365 = vmatprep.subr.mxu0 0.0
  %1366 = vmatpush2.msra.mxu0 0.0
  %1367 = vmatprep.subr.mxu0 0.0
  %1368 = vmatpush2.msra.mxu0 0.0
  %1369 = vmatprep.subr.mxu0 0.0
  %1370 = vmatpush2.msra.mxu0 0.0
  %1371 = vmatprep.subr.mxu0 0.0
  %1372 = vmatpush2.msra.mxu0 0.0
  %1373 = vmatprep.subr.mxu0 0.0
  %1374 = vmatpush2.msra.mxu0 0.0
  %1375 = vmatprep.subr.mxu0 0.0
  %1376 = vmatpush2.msra.mxu0 0.0
  %1377 = vmatprep.subr.mxu0 0.0
  %1378 = vmatpush2.msra.mxu0 0.0
  %1379 = vmatprep.subr.mxu0 0.0
  %1380 = vmatpush2.msra.mxu0 0.0
  %1381 = vmatprep.subr.mxu0 0.0
  %1382 = vmatpush2.msra.mxu0 0.0
  %1383 = vmatprep.subr.mxu0 0.0
  %1384 = vmatpush2.msra.mxu0 0.0
  %1385 = vmatprep.subr.mxu0 0.0
  %1386 = vmatpush2.msra.mxu0 0.0
  %1387 = vmatprep.subr.mxu0 0.0
  %1388 = vmatpush2.msra.mxu0 0.0
  %1389 = vmatprep.subr.mxu0 0.0
  %1390 = vmatpush2.msra.mxu0 0.0
  %1391 = vmatprep.subr.mxu0 0.0
  %1392 = vmatpush2.msra.mxu0 0.0
  %1393 = vmatprep.mubr.f32.mxu0 0.0
  %1394 = vmatmul.mubr.f32.gmra.mxu0 %v1282
  %v1395 = vpop.f32.mrf.mxu0
  %v1396 = vadd.f32 0.0, %v1395
  %v1397 = vpop.f32.mrf.mxu0
  %1398 = vmatprep.mubr.f32.mxu0 0.0
  %1399 = vmatmul.mubr.f32.gmra.mxu0 %v1285
  %v1400 = vpop.f32.mrf.mxu0
  %v1401 = vadd.f32 0.0, %v1400
  %v1402 = vpop.f32.mrf.mxu0
  %1403 = vmatprep.mubr.f32.mxu0 0.0
  %1404 = vmatmul.mubr.f32.gmra.mxu0 %v1288
  %v1405 = vpop.f32.mrf.mxu0
  %v1406 = vadd.f32 0.0, %v1405
  %v1407 = vpop.f32.mrf.mxu0
  %1408 = vmatprep.mubr.f32.mxu0 0.0
  %1409 = vmatmul.mubr.f32.gmra.mxu0 %v1291
  %v1410 = vpop.f32.mrf.mxu0
  %v1411 = vadd.f32 0.0, %v1410
  %v1412 = vpop.f32.mrf.mxu0
  %1413 = vmatprep.mubr.f32.mxu0 0.0
  %1414 = vmatmul.mubr.f32.gmra.mxu0 %v1294
  %v1415 = vpop.f32.mrf.mxu0
  %v1416 = vadd.f32 0.0, %v1415
  %v1417 = vpop.f32.mrf.mxu0
  %1418 = vmatprep.mubr.f32.mxu0 0.0
  %1419 = vmatmul.mubr.f32.gmra.mxu0 %v1297
  %v1420 = vpop.f32.mrf.mxu0
  %v1421 = vadd.f32 0.0, %v1420
  %v1422 = vpop.f32.mrf.mxu0
  %1423 = vmatprep.mubr.f32.mxu0 0.0
  %1424 = vmatmul.mubr.f32.gmra.mxu0 %v1300
  %v1425 = vpop.f32.mrf.mxu0
  %v1426 = vadd.f32 0.0, %v1425
  %v1427 = vpop.f32.mrf.mxu0
  %1428 = vmatprep.mubr.f32.mxu0 0.0
  %1429 = vmatmul.mubr.f32.gmra.mxu0 %v1303
  %v1430 = vpop.f32.mrf.mxu0
  %v1431 = vadd.f32 0.0, %v1430
  %v1432 = vpop.f32.mrf.mxu0
  %1433 = vmatprep.mubr.f32.mxu0 0.0
  %1434 = vmatmul.mubr.f32.gmra.mxu0 %v1306
  %v1435 = vpop.f32.mrf.mxu0
  %v1436 = vadd.f32 0.0, %v1435
  %v1437 = vpop.f32.mrf.mxu0
  %1438 = vmatprep.mubr.f32.mxu0 0.0
  %1439 = vmatmul.mubr.f32.gmra.mxu0 %v1309
  %v1440 = vpop.f32.mrf.mxu0
  %v1441 = vadd.f32 0.0, %v1440
  %v1442 = vpop.f32.mrf.mxu0
  %1443 = vmatprep.mubr.f32.mxu0 0.0
  %1444 = vmatmul.mubr.f32.gmra.mxu0 %v1312
  %v1445 = vpop.f32.mrf.mxu0
  %v1446 = vadd.f32 0.0, %v1445
  %v1447 = vpop.f32.mrf.mxu0
  %1448 = vmatprep.mubr.f32.mxu0 0.0
  %1449 = vmatmul.mubr.f32.gmra.mxu0 %v1315
  %v1450 = vpop.f32.mrf.mxu0
  %v1451 = vadd.f32 0.0, %v1450
  %v1452 = vpop.f32.mrf.mxu0
  %1453 = vmatprep.mubr.f32.mxu0 0.0
  %1454 = vmatmul.mubr.f32.gmra.mxu0 %v1318
  %v1455 = vpop.f32.mrf.mxu0
  %v1456 = vadd.f32 0.0, %v1455
  %v1457 = vpop.f32.mrf.mxu0
  %1458 = vmatprep.mubr.f32.mxu0 0.0
  %1459 = vmatmul.mubr.f32.gmra.mxu0 %v1321
  %v1460 = vpop.f32.mrf.mxu0
  %v1461 = vadd.f32 0.0, %v1460
  %v1462 = vpop.f32.mrf.mxu0
  %1463 = vmatprep.mubr.f32.mxu0 0.0
  %1464 = vmatmul.mubr.f32.gmra.mxu0 %v1324
  %v1465 = vpop.f32.mrf.mxu0
  %v1466 = vadd.f32 0.0, %v1465
  %v1467 = vpop.f32.mrf.mxu0
  %1468 = vmatprep.mubr.f32.mxu0 0.0
  %1469 = vmatmul.mubr.f32.gmra.mxu0 %v1327
  %v1470 = vpop.f32.mrf.mxu0
  %v1471 = vadd.f32 0.0, %v1470
  %v1472 = vpop.f32.mrf.mxu0
  %1473 = vdwg.mxu0
  %1474 = vst [vmem:[#allocation2 + $0x280] sm:$0xff] %v1396
  %1475 = vst [vmem:[#allocation2 + $0x288] sm:$0xff] %v1401
  %1476 = vst [vmem:[#allocation2 + $0x290] sm:$0xff] %v1406
  %1477 = vst [vmem:[#allocation2 + $0x298] sm:$0xff] %v1411
  %1478 = vst [vmem:[#allocation2 + $0x2a0] sm:$0xff] %v1416
  %1479 = vst [vmem:[#allocation2 + $0x2a8] sm:$0xff] %v1421
  %1480 = vst [vmem:[#allocation2 + $0x2b0] sm:$0xff] %v1426
  %1481 = vst [vmem:[#allocation2 + $0x2b8] sm:$0xff] %v1431
  %1482 = vst [vmem:[#allocation2 + $0x2c0] sm:$0xff] %v1436
  %1483 = vst [vmem:[#allocation2 + $0x2c8] sm:$0xff] %v1441
  %1484 = vst [vmem:[#allocation2 + $0x2d0] sm:$0xff] %v1446
  %1485 = vst [vmem:[#allocation2 + $0x2d8] sm:$0xff] %v1451
  %1486 = vst [vmem:[#allocation2 + $0x2e0] sm:$0xff] %v1456
  %1487 = vst [vmem:[#allocation2 + $0x2e8] sm:$0xff] %v1461
  %1488 = vst [vmem:[#allocation2 + $0x2f0] sm:$0xff] %v1466
  %1489 = vst [vmem:[#allocation2 + $0x2f8] sm:$0xff] %v1471
  %v1490 = vadd.f32 %v1396, %v1401
  %v1491 = vadd.f32 %v1490, %v1406
  %v1492 = vadd.f32 %v1491, %v1411
  %v1493 = vadd.f32 %v1492, %v1416
  %v1494 = vadd.f32 %v1493, %v1421
  %v1495 = vadd.f32 %v1494, %v1426
  %v1496 = vadd.f32 %v1495, %v1431
  %v1497 = vadd.f32 %v1496, %v1436
  %v1498 = vadd.f32 %v1497, %v1441
  %v1499 = vadd.f32 %v1498, %v1446
  %v1500 = vadd.f32 %v1499, %v1451
  %v1501 = vadd.f32 %v1500, %v1456
  %v1502 = vadd.f32 %v1501, %v1461
  %v1503 = vadd.f32 %v1502, %v1466
  %v1504 = vadd.f32 %v1503, %v1471
  %v1505 = vrot.slane %v1504, 4
  %v1506 = vadd.f32 %v1504, %v1505
  %v1507 = vrot.slane %v1506, 2
  %v1508 = vadd.f32 %v1506, %v1507
  %v1509 = vrot.slane %v1508, 1
  %v1510 = vadd.f32 %v1508, %v1509
  %v1511 = vadd.f32 %v1264, %v1510
  %v1512 = vld [vmem:[%s0 + $0x300] sm:$0xff]
  %v1513 = vld [vmem:[%s0 + $0x308] sm:$0xff]
  %v1514 = vld [vmem:[%s0 + $0x310] sm:$0xff]
  %v1515 = vld [vmem:[%s0 + $0x318] sm:$0xff]
  %v1516 = vld [vmem:[%s0 + $0x320] sm:$0xff]
  %v1517 = vld [vmem:[%s0 + $0x328] sm:$0xff]
  %v1518 = vld [vmem:[%s0 + $0x330] sm:$0xff]
  %v1519 = vld [vmem:[%s0 + $0x338] sm:$0xff]
  %v1520 = vld [vmem:[%s0 + $0x340] sm:$0xff]
  %v1521 = vld [vmem:[%s0 + $0x348] sm:$0xff]
  %v1522 = vld [vmem:[%s0 + $0x350] sm:$0xff]
  %v1523 = vld [vmem:[%s0 + $0x358] sm:$0xff]
  %v1524 = vld [vmem:[%s0 + $0x360] sm:$0xff]
  %v1525 = vld [vmem:[%s0 + $0x368] sm:$0xff]
  %v1526 = vld [vmem:[%s0 + $0x370] sm:$0xff]
  %v1527 = vld [vmem:[%s0 + $0x378] sm:$0xff]
  %v1529 = vsel %vm41, %v1512, 0
  %v1532 = vsel %vm41, %v1513, 0
  %v1535 = vsel %vm41, %v1514, 0
  %v1538 = vsel %vm41, %v1515, 0
  %v1541 = vsel %vm41, %v1516, 0
  %v1544 = vsel %vm41, %v1517, 0
  %v1547 = vsel %vm41, %v1518, 0
  %v1550 = vsel %vm41, %v1519, 0
  %v1553 = vsel %vm41, %v1520, 0
  %v1556 = vsel %vm41, %v1521, 0
  %v1559 = vsel %vm41, %v1522, 0
  %v1562 = vsel %vm41, %v1523, 0
  %v1565 = vsel %vm41, %v1524, 0
  %v1568 = vsel %vm41, %v1525, 0
  %v1571 = vsel %vm41, %v1526, 0
  %v1574 = vsel %vm41, %v1527, 0
  %1576 = vmatprep.subr.mxu0 0.0
  %1577 = vmatpush1.msra.mxu0 0.0
  %1578 = vmatprep.subr.mxu0 0.0
  %1579 = vmatpush1.msra.mxu0 0.0
  %1580 = vmatprep.subr.mxu0 0.0
  %1581 = vmatpush1.msra.mxu0 0.0
  %1582 = vmatprep.subr.mxu0 0.0
  %1583 = vmatpush1.msra.mxu0 0.0
  %1584 = vmatprep.subr.mxu0 0.0
  %1585 = vmatpush1.msra.mxu0 0.0
  %1586 = vmatprep.subr.mxu0 0.0
  %1587 = vmatpush1.msra.mxu0 0.0
  %1588 = vmatprep.subr.mxu0 0.0
  %1589 = vmatpush1.msra.mxu0 0.0
  %1590 = vmatprep.subr.mxu0 0.0
  %1591 = vmatpush1.msra.mxu0 0.0
  %1592 = vmatprep.subr.mxu0 0.0
  %1593 = vmatpush1.msra.mxu0 0.0
  %1594 = vmatprep.subr.mxu0 0.0
  %1595 = vmatpush1.msra.mxu0 0.0
  %1596 = vmatprep.subr.mxu0 0.0
  %1597 = vmatpush1.msra.mxu0 0.0
  %1598 = vmatprep.subr.mxu0 0.0
  %1599 = vmatpush1.msra.mxu0 0.0
  %1600 = vmatprep.subr.mxu0 0.0
  %1601 = vmatpush1.msra.mxu0 %v92
  %1602 = vmatprep.subr.mxu0 0.0
  %1603 = vmatpush1.msra.mxu0 %v23
  %1604 = vmatprep.subr.mxu0 0.0
  %1605 = vmatpush1.msra.mxu0 %v22
  %1606 = vmatprep.subr.mxu0 0.0
  %1607 = vmatpush1.msra.mxu0 %v21
  %1608 = vmatprep.subr.mxu0 0.0
  %1609 = vmatpush2.msra.mxu0 0.0
  %1610 = vmatprep.subr.mxu0 0.0
  %1611 = vmatpush2.msra.mxu0 0.0
  %1612 = vmatprep.subr.mxu0 0.0
  %1613 = vmatpush2.msra.mxu0 0.0
  %1614 = vmatprep.subr.mxu0 0.0
  %1615 = vmatpush2.msra.mxu0 0.0
  %1616 = vmatprep.subr.mxu0 0.0
  %1617 = vmatpush2.msra.mxu0 0.0
  %1618 = vmatprep.subr.mxu0 0.0
  %1619 = vmatpush2.msra.mxu0 0.0
  %1620 = vmatprep.subr.mxu0 0.0
  %1621 = vmatpush2.msra.mxu0 0.0
  %1622 = vmatprep.subr.mxu0 0.0
  %1623 = vmatpush2.msra.mxu0 0.0
  %1624 = vmatprep.subr.mxu0 0.0
  %1625 = vmatpush2.msra.mxu0 0.0
  %1626 = vmatprep.subr.mxu0 0.0
  %1627 = vmatpush2.msra.mxu0 0.0
  %1628 = vmatprep.subr.mxu0 0.0
  %1629 = vmatpush2.msra.mxu0 0.0
  %1630 = vmatprep.subr.mxu0 0.0
  %1631 = vmatpush2.msra.mxu0 0.0
  %1632 = vmatprep.subr.mxu0 0.0
  %1633 = vmatpush2.msra.mxu0 0.0
  %1634 = vmatprep.subr.mxu0 0.0
  %1635 = vmatpush2.msra.mxu0 0.0
  %1636 = vmatprep.subr.mxu0 0.0
  %1637 = vmatpush2.msra.mxu0 0.0
  %1638 = vmatprep.subr.mxu0 0.0
  %1639 = vmatpush2.msra.mxu0 0.0
  %1640 = vmatprep.mubr.f32.mxu0 0.0
  %1641 = vmatmul.mubr.f32.gmra.mxu0 %v1529
  %v1642 = vpop.f32.mrf.mxu0
  %v1643 = vadd.f32 0.0, %v1642
  %v1644 = vpop.f32.mrf.mxu0
  %1645 = vmatprep.mubr.f32.mxu0 0.0
  %1646 = vmatmul.mubr.f32.gmra.mxu0 %v1532
  %v1647 = vpop.f32.mrf.mxu0
  %v1648 = vadd.f32 0.0, %v1647
  %v1649 = vpop.f32.mrf.mxu0
  %1650 = vmatprep.mubr.f32.mxu0 0.0
  %1651 = vmatmul.mubr.f32.gmra.mxu0 %v1535
  %v1652 = vpop.f32.mrf.mxu0
  %v1653 = vadd.f32 0.0, %v1652
  %v1654 = vpop.f32.mrf.mxu0
  %1655 = vmatprep.mubr.f32.mxu0 0.0
  %1656 = vmatmul.mubr.f32.gmra.mxu0 %v1538
  %v1657 = vpop.f32.mrf.mxu0
  %v1658 = vadd.f32 0.0, %v1657
  %v1659 = vpop.f32.mrf.mxu0
  %1660 = vmatprep.mubr.f32.mxu0 0.0
  %1661 = vmatmul.mubr.f32.gmra.mxu0 %v1541
  %v1662 = vpop.f32.mrf.mxu0
  %v1663 = vadd.f32 0.0, %v1662
  %v1664 = vpop.f32.mrf.mxu0
  %1665 = vmatprep.mubr.f32.mxu0 0.0
  %1666 = vmatmul.mubr.f32.gmra.mxu0 %v1544
  %v1667 = vpop.f32.mrf.mxu0
  %v1668 = vadd.f32 0.0, %v1667
  %v1669 = vpop.f32.mrf.mxu0
  %1670 = vmatprep.mubr.f32.mxu0 0.0
  %1671 = vmatmul.mubr.f32.gmra.mxu0 %v1547
  %v1672 = vpop.f32.mrf.mxu0
  %v1673 = vadd.f32 0.0, %v1672
  %v1674 = vpop.f32.mrf.mxu0
  %1675 = vmatprep.mubr.f32.mxu0 0.0
  %1676 = vmatmul.mubr.f32.gmra.mxu0 %v1550
  %v1677 = vpop.f32.mrf.mxu0
  %v1678 = vadd.f32 0.0, %v1677
  %v1679 = vpop.f32.mrf.mxu0
  %1680 = vmatprep.mubr.f32.mxu0 0.0
  %1681 = vmatmul.mubr.f32.gmra.mxu0 %v1553
  %v1682 = vpop.f32.mrf.mxu0
  %v1683 = vadd.f32 0.0, %v1682
  %v1684 = vpop.f32.mrf.mxu0
  %1685 = vmatprep.mubr.f32.mxu0 0.0
  %1686 = vmatmul.mubr.f32.gmra.mxu0 %v1556
  %v1687 = vpop.f32.mrf.mxu0
  %v1688 = vadd.f32 0.0, %v1687
  %v1689 = vpop.f32.mrf.mxu0
  %1690 = vmatprep.mubr.f32.mxu0 0.0
  %1691 = vmatmul.mubr.f32.gmra.mxu0 %v1559
  %v1692 = vpop.f32.mrf.mxu0
  %v1693 = vadd.f32 0.0, %v1692
  %v1694 = vpop.f32.mrf.mxu0
  %1695 = vmatprep.mubr.f32.mxu0 0.0
  %1696 = vmatmul.mubr.f32.gmra.mxu0 %v1562
  %v1697 = vpop.f32.mrf.mxu0
  %v1698 = vadd.f32 0.0, %v1697
  %v1699 = vpop.f32.mrf.mxu0
  %1700 = vmatprep.mubr.f32.mxu0 0.0
  %1701 = vmatmul.mubr.f32.gmra.mxu0 %v1565
  %v1702 = vpop.f32.mrf.mxu0
  %v1703 = vadd.f32 0.0, %v1702
  %v1704 = vpop.f32.mrf.mxu0
  %1705 = vmatprep.mubr.f32.mxu0 0.0
  %1706 = vmatmul.mubr.f32.gmra.mxu0 %v1568
  %v1707 = vpop.f32.mrf.mxu0
  %v1708 = vadd.f32 0.0, %v1707
  %v1709 = vpop.f32.mrf.mxu0
  %1710 = vmatprep.mubr.f32.mxu0 0.0
  %1711 = vmatmul.mubr.f32.gmra.mxu0 %v1571
  %v1712 = vpop.f32.mrf.mxu0
  %v1713 = vadd.f32 0.0, %v1712
  %v1714 = vpop.f32.mrf.mxu0
  %1715 = vmatprep.mubr.f32.mxu0 0.0
  %1716 = vmatmul.mubr.f32.gmra.mxu0 %v1574
  %v1717 = vpop.f32.mrf.mxu0
  %v1718 = vadd.f32 0.0, %v1717
  %v1719 = vpop.f32.mrf.mxu0
  %1720 = vdwg.mxu0
  %1721 = vst [vmem:[#allocation2 + $0x300] sm:$0xff] %v1643
  %1722 = vst [vmem:[#allocation2 + $0x308] sm:$0xff] %v1648
  %1723 = vst [vmem:[#allocation2 + $0x310] sm:$0xff] %v1653
  %1724 = vst [vmem:[#allocation2 + $0x318] sm:$0xff] %v1658
  %1725 = vst [vmem:[#allocation2 + $0x320] sm:$0xff] %v1663
  %1726 = vst [vmem:[#allocation2 + $0x328] sm:$0xff] %v1668
  %1727 = vst [vmem:[#allocation2 + $0x330] sm:$0xff] %v1673
  %1728 = vst [vmem:[#allocation2 + $0x338] sm:$0xff] %v1678
  %1729 = vst [vmem:[#allocation2 + $0x340] sm:$0xff] %v1683
  %1730 = vst [vmem:[#allocation2 + $0x348] sm:$0xff] %v1688
  %1731 = vst [vmem:[#allocation2 + $0x350] sm:$0xff] %v1693
  %1732 = vst [vmem:[#allocation2 + $0x358] sm:$0xff] %v1698
  %1733 = vst [vmem:[#allocation2 + $0x360] sm:$0xff] %v1703
  %1734 = vst [vmem:[#allocation2 + $0x368] sm:$0xff] %v1708
  %1735 = vst [vmem:[#allocation2 + $0x370] sm:$0xff] %v1713
  %1736 = vst [vmem:[#allocation2 + $0x378] sm:$0xff] %v1718
  %v1737 = vadd.f32 %v1643, %v1648
  %v1738 = vadd.f32 %v1737, %v1653
  %v1739 = vadd.f32 %v1738, %v1658
  %v1740 = vadd.f32 %v1739, %v1663
  %v1741 = vadd.f32 %v1740, %v1668
  %v1742 = vadd.f32 %v1741, %v1673
  %v1743 = vadd.f32 %v1742, %v1678
  %v1744 = vadd.f32 %v1743, %v1683
  %v1745 = vadd.f32 %v1744, %v1688
  %v1746 = vadd.f32 %v1745, %v1693
  %v1747 = vadd.f32 %v1746, %v1698
  %v1748 = vadd.f32 %v1747, %v1703
  %v1749 = vadd.f32 %v1748, %v1708
  %v1750 = vadd.f32 %v1749, %v1713
  %v1751 = vadd.f32 %v1750, %v1718
  %v1752 = vrot.slane %v1751, 4
  %v1753 = vadd.f32 %v1751, %v1752
  %v1754 = vrot.slane %v1753, 2
  %v1755 = vadd.f32 %v1753, %v1754
  %v1756 = vrot.slane %v1755, 1
  %v1757 = vadd.f32 %v1755, %v1756
  %v1758 = vadd.f32 %v1511, %v1757
  %v1759 = vld [vmem:[%s0 + $0x380] sm:$0xff]
  %v1760 = vld [vmem:[%s0 + $0x388] sm:$0xff]
  %v1761 = vld [vmem:[%s0 + $0x390] sm:$0xff]
  %v1762 = vld [vmem:[%s0 + $0x398] sm:$0xff]
  %v1763 = vld [vmem:[%s0 + $0x3a0] sm:$0xff]
  %v1764 = vld [vmem:[%s0 + $0x3a8] sm:$0xff]
  %v1765 = vld [vmem:[%s0 + $0x3b0] sm:$0xff]
  %v1766 = vld [vmem:[%s0 + $0x3b8] sm:$0xff]
  %v1767 = vld [vmem:[%s0 + $0x3c0] sm:$0xff]
  %v1768 = vld [vmem:[%s0 + $0x3c8] sm:$0xff]
  %v1769 = vld [vmem:[%s0 + $0x3d0] sm:$0xff]
  %v1770 = vld [vmem:[%s0 + $0x3d8] sm:$0xff]
  %v1771 = vld [vmem:[%s0 + $0x3e0] sm:$0xff]
  %v1772 = vld [vmem:[%s0 + $0x3e8] sm:$0xff]
  %v1773 = vld [vmem:[%s0 + $0x3f0] sm:$0xff]
  %v1774 = vld [vmem:[%s0 + $0x3f8] sm:$0xff]
  %v1776 = vsel %vm41, %v1759, 0
  %v1779 = vsel %vm41, %v1760, 0
  %v1782 = vsel %vm41, %v1761, 0
  %v1785 = vsel %vm41, %v1762, 0
  %v1788 = vsel %vm41, %v1763, 0
  %v1791 = vsel %vm41, %v1764, 0
  %v1794 = vsel %vm41, %v1765, 0
  %v1797 = vsel %vm41, %v1766, 0
  %v1800 = vsel %vm41, %v1767, 0
  %v1803 = vsel %vm41, %v1768, 0
  %v1806 = vsel %vm41, %v1769, 0
  %v1809 = vsel %vm41, %v1770, 0
  %v1812 = vsel %vm41, %v1771, 0
  %v1815 = vsel %vm41, %v1772, 0
  %v1818 = vsel %vm41, %v1773, 0
  %v1821 = vsel %vm41, %v1774, 0
  %1823 = vmatprep.subr.mxu0 0.0
  %1824 = vmatpush1.msra.mxu0 0.0
  %1825 = vmatprep.subr.mxu0 0.0
  %1826 = vmatpush1.msra.mxu0 0.0
  %1827 = vmatprep.subr.mxu0 0.0
  %1828 = vmatpush1.msra.mxu0 0.0
  %1829 = vmatprep.subr.mxu0 0.0
  %1830 = vmatpush1.msra.mxu0 0.0
  %1831 = vmatprep.subr.mxu0 0.0
  %1832 = vmatpush1.msra.mxu0 0.0
  %1833 = vmatprep.subr.mxu0 0.0
  %1834 = vmatpush1.msra.mxu0 0.0
  %1835 = vmatprep.subr.mxu0 0.0
  %1836 = vmatpush1.msra.mxu0 0.0
  %1837 = vmatprep.subr.mxu0 0.0
  %1838 = vmatpush1.msra.mxu0 0.0
  %1839 = vmatprep.subr.mxu0 0.0
  %1840 = vmatpush1.msra.mxu0 0.0
  %1841 = vmatprep.subr.mxu0 0.0
  %1842 = vmatpush1.msra.mxu0 0.0
  %1843 = vmatprep.subr.mxu0 0.0
  %1844 = vmatpush1.msra.mxu0 0.0
  %1845 = vmatprep.subr.mxu0 0.0
  %1846 = vmatpush1.msra.mxu0 0.0
  %1847 = vmatprep.subr.mxu0 0.0
  %1848 = vmatpush1.msra.mxu0 %v92
  %1849 = vmatprep.subr.mxu0 0.0
  %1850 = vmatpush1.msra.mxu0 %v23
  %1851 = vmatprep.subr.mxu0 0.0
  %1852 = vmatpush1.msra.mxu0 %v22
  %1853 = vmatprep.subr.mxu0 0.0
  %1854 = vmatpush1.msra.mxu0 %v21
  %1855 = vmatprep.subr.mxu0 0.0
  %1856 = vmatpush2.msra.mxu0 0.0
  %1857 = vmatprep.subr.mxu0 0.0
  %1858 = vmatpush2.msra.mxu0 0.0
  %1859 = vmatprep.subr.mxu0 0.0
  %1860 = vmatpush2.msra.mxu0 0.0
  %1861 = vmatprep.subr.mxu0 0.0
  %1862 = vmatpush2.msra.mxu0 0.0
  %1863 = vmatprep.subr.mxu0 0.0
  %1864 = vmatpush2.msra.mxu0 0.0
  %1865 = vmatprep.subr.mxu0 0.0
  %1866 = vmatpush2.msra.mxu0 0.0
  %1867 = vmatprep.subr.mxu0 0.0
  %1868 = vmatpush2.msra.mxu0 0.0
  %1869 = vmatprep.subr.mxu0 0.0
  %1870 = vmatpush2.msra.mxu0 0.0
  %1871 = vmatprep.subr.mxu0 0.0
  %1872 = vmatpush2.msra.mxu0 0.0
  %1873 = vmatprep.subr.mxu0 0.0
  %1874 = vmatpush2.msra.mxu0 0.0
  %1875 = vmatprep.subr.mxu0 0.0
  %1876 = vmatpush2.msra.mxu0 0.0
  %1877 = vmatprep.subr.mxu0 0.0
  %1878 = vmatpush2.msra.mxu0 0.0
  %1879 = vmatprep.subr.mxu0 0.0
  %1880 = vmatpush2.msra.mxu0 0.0
  %1881 = vmatprep.subr.mxu0 0.0
  %1882 = vmatpush2.msra.mxu0 0.0
  %1883 = vmatprep.subr.mxu0 0.0
  %1884 = vmatpush2.msra.mxu0 0.0
  %1885 = vmatprep.subr.mxu0 0.0
  %1886 = vmatpush2.msra.mxu0 0.0
  %1887 = vmatprep.mubr.f32.mxu0 0.0
  %1888 = vmatmul.mubr.f32.gmra.mxu0 %v1776
  %v1889 = vpop.f32.mrf.mxu0
  %v1890 = vadd.f32 0.0, %v1889
  %v1891 = vpop.f32.mrf.mxu0
  %1892 = vmatprep.mubr.f32.mxu0 0.0
  %1893 = vmatmul.mubr.f32.gmra.mxu0 %v1779
  %v1894 = vpop.f32.mrf.mxu0
  %v1895 = vadd.f32 0.0, %v1894
  %v1896 = vpop.f32.mrf.mxu0
  %1897 = vmatprep.mubr.f32.mxu0 0.0
  %1898 = vmatmul.mubr.f32.gmra.mxu0 %v1782
  %v1899 = vpop.f32.mrf.mxu0
  %v1900 = vadd.f32 0.0, %v1899
  %v1901 = vpop.f32.mrf.mxu0
  %1902 = vmatprep.mubr.f32.mxu0 0.0
  %1903 = vmatmul.mubr.f32.gmra.mxu0 %v1785
  %v1904 = vpop.f32.mrf.mxu0
  %v1905 = vadd.f32 0.0, %v1904
  %v1906 = vpop.f32.mrf.mxu0
  %1907 = vmatprep.mubr.f32.mxu0 0.0
  %1908 = vmatmul.mubr.f32.gmra.mxu0 %v1788
  %v1909 = vpop.f32.mrf.mxu0
  %v1910 = vadd.f32 0.0, %v1909
  %v1911 = vpop.f32.mrf.mxu0
  %1912 = vmatprep.mubr.f32.mxu0 0.0
  %1913 = vmatmul.mubr.f32.gmra.mxu0 %v1791
  %v1914 = vpop.f32.mrf.mxu0
  %v1915 = vadd.f32 0.0, %v1914
  %v1916 = vpop.f32.mrf.mxu0
  %1917 = vmatprep.mubr.f32.mxu0 0.0
  %1918 = vmatmul.mubr.f32.gmra.mxu0 %v1794
  %v1919 = vpop.f32.mrf.mxu0
  %v1920 = vadd.f32 0.0, %v1919
  %v1921 = vpop.f32.mrf.mxu0
  %1922 = vmatprep.mubr.f32.mxu0 0.0
  %1923 = vmatmul.mubr.f32.gmra.mxu0 %v1797
  %v1924 = vpop.f32.mrf.mxu0
  %v1925 = vadd.f32 0.0, %v1924
  %v1926 = vpop.f32.mrf.mxu0
  %1927 = vmatprep.mubr.f32.mxu0 0.0
  %1928 = vmatmul.mubr.f32.gmra.mxu0 %v1800
  %v1929 = vpop.f32.mrf.mxu0
  %v1930 = vadd.f32 0.0, %v1929
  %v1931 = vpop.f32.mrf.mxu0
  %1932 = vmatprep.mubr.f32.mxu0 0.0
  %1933 = vmatmul.mubr.f32.gmra.mxu0 %v1803
  %v1934 = vpop.f32.mrf.mxu0
  %v1935 = vadd.f32 0.0, %v1934
  %v1936 = vpop.f32.mrf.mxu0
  %1937 = vmatprep.mubr.f32.mxu0 0.0
  %1938 = vmatmul.mubr.f32.gmra.mxu0 %v1806
  %v1939 = vpop.f32.mrf.mxu0
  %v1940 = vadd.f32 0.0, %v1939
  %v1941 = vpop.f32.mrf.mxu0
  %1942 = vmatprep.mubr.f32.mxu0 0.0
  %1943 = vmatmul.mubr.f32.gmra.mxu0 %v1809
  %v1944 = vpop.f32.mrf.mxu0
  %v1945 = vadd.f32 0.0, %v1944
  %v1946 = vpop.f32.mrf.mxu0
  %1947 = vmatprep.mubr.f32.mxu0 0.0
  %1948 = vmatmul.mubr.f32.gmra.mxu0 %v1812
  %v1949 = vpop.f32.mrf.mxu0
  %v1950 = vadd.f32 0.0, %v1949
  %v1951 = vpop.f32.mrf.mxu0
  %1952 = vmatprep.mubr.f32.mxu0 0.0
  %1953 = vmatmul.mubr.f32.gmra.mxu0 %v1815
  %v1954 = vpop.f32.mrf.mxu0
  %v1955 = vadd.f32 0.0, %v1954
  %v1956 = vpop.f32.mrf.mxu0
  %1957 = vmatprep.mubr.f32.mxu0 0.0
  %1958 = vmatmul.mubr.f32.gmra.mxu0 %v1818
  %v1959 = vpop.f32.mrf.mxu0
  %v1960 = vadd.f32 0.0, %v1959
  %v1961 = vpop.f32.mrf.mxu0
  %1962 = vmatprep.mubr.f32.mxu0 0.0
  %1963 = vmatmul.mubr.f32.gmra.mxu0 %v1821
  %v1964 = vpop.f32.mrf.mxu0
  %v1965 = vadd.f32 0.0, %v1964
  %v1966 = vpop.f32.mrf.mxu0
  %1967 = vdwg.mxu0
  %1968 = vst [vmem:[#allocation2 + $0x380] sm:$0xff] %v1890
  %1969 = vst [vmem:[#allocation2 + $0x388] sm:$0xff] %v1895
  %1970 = vst [vmem:[#allocation2 + $0x390] sm:$0xff] %v1900
  %1971 = vst [vmem:[#allocation2 + $0x398] sm:$0xff] %v1905
  %1972 = vst [vmem:[#allocation2 + $0x3a0] sm:$0xff] %v1910
  %1973 = vst [vmem:[#allocation2 + $0x3a8] sm:$0xff] %v1915
  %1974 = vst [vmem:[#allocation2 + $0x3b0] sm:$0xff] %v1920
  %1975 = vst [vmem:[#allocation2 + $0x3b8] sm:$0xff] %v1925
  %1976 = vst [vmem:[#allocation2 + $0x3c0] sm:$0xff] %v1930
  %1977 = vst [vmem:[#allocation2 + $0x3c8] sm:$0xff] %v1935
  %1978 = vst [vmem:[#allocation2 + $0x3d0] sm:$0xff] %v1940
  %1979 = vst [vmem:[#allocation2 + $0x3d8] sm:$0xff] %v1945
  %1980 = vst [vmem:[#allocation2 + $0x3e0] sm:$0xff] %v1950
  %1981 = vst [vmem:[#allocation2 + $0x3e8] sm:$0xff] %v1955
  %1982 = vst [vmem:[#allocation2 + $0x3f0] sm:$0xff] %v1960
  %1983 = vst [vmem:[#allocation2 + $0x3f8] sm:$0xff] %v1965
  %v1984 = vadd.f32 %v1890, %v1895
  %v1985 = vadd.f32 %v1984, %v1900
  %v1986 = vadd.f32 %v1985, %v1905
  %v1987 = vadd.f32 %v1986, %v1910
  %v1988 = vadd.f32 %v1987, %v1915
  %v1989 = vadd.f32 %v1988, %v1920
  %v1990 = vadd.f32 %v1989, %v1925
  %v1991 = vadd.f32 %v1990, %v1930
  %v1992 = vadd.f32 %v1991, %v1935
  %v1993 = vadd.f32 %v1992, %v1940
  %v1994 = vadd.f32 %v1993, %v1945
  %v1995 = vadd.f32 %v1994, %v1950
  %v1996 = vadd.f32 %v1995, %v1955
  %v1997 = vadd.f32 %v1996, %v1960
  %v1998 = vadd.f32 %v1997, %v1965
  %v1999 = vrot.slane %v1998, 4
  %v2000 = vadd.f32 %v1998, %v1999
  %v2001 = vrot.slane %v2000, 2
  %v2002 = vadd.f32 %v2000, %v2001
  %v2003 = vrot.slane %v2002, 1
  %v2004 = vadd.f32 %v2002, %v2003
  %v2005 = vadd.f32 %v1758, %v2004
  %v2006 = vld [vmem:[%s0 + $0x400] sm:$0xff]
  %v2007 = vld [vmem:[%s0 + $0x408] sm:$0xff]
  %v2008 = vld [vmem:[%s0 + $0x410] sm:$0xff]
  %v2009 = vld [vmem:[%s0 + $0x418] sm:$0xff]
  %v2010 = vld [vmem:[%s0 + $0x420] sm:$0xff]
  %v2011 = vld [vmem:[%s0 + $0x428] sm:$0xff]
  %v2012 = vld [vmem:[%s0 + $0x430] sm:$0xff]
  %v2013 = vld [vmem:[%s0 + $0x438] sm:$0xff]
  %v2014 = vld [vmem:[%s0 + $0x440] sm:$0xff]
  %v2015 = vld [vmem:[%s0 + $0x448] sm:$0xff]
  %v2016 = vld [vmem:[%s0 + $0x450] sm:$0xff]
  %v2017 = vld [vmem:[%s0 + $0x458] sm:$0xff]
  %v2018 = vld [vmem:[%s0 + $0x460] sm:$0xff]
  %v2019 = vld [vmem:[%s0 + $0x468] sm:$0xff]
  %v2020 = vld [vmem:[%s0 + $0x470] sm:$0xff]
  %v2021 = vld [vmem:[%s0 + $0x478] sm:$0xff]
  %v2023 = vsel %vm41, %v2006, 0
  %v2026 = vsel %vm41, %v2007, 0
  %v2029 = vsel %vm41, %v2008, 0
  %v2032 = vsel %vm41, %v2009, 0
  %v2035 = vsel %vm41, %v2010, 0
  %v2038 = vsel %vm41, %v2011, 0
  %v2041 = vsel %vm41, %v2012, 0
  %v2044 = vsel %vm41, %v2013, 0
  %v2047 = vsel %vm41, %v2014, 0
  %v2050 = vsel %vm41, %v2015, 0
  %v2053 = vsel %vm41, %v2016, 0
  %v2056 = vsel %vm41, %v2017, 0
  %v2059 = vsel %vm41, %v2018, 0
  %v2062 = vsel %vm41, %v2019, 0
  %v2065 = vsel %vm41, %v2020, 0
  %v2068 = vsel %vm41, %v2021, 0
  %2070 = vmatprep.subr.mxu0 0.0
  %2071 = vmatpush1.msra.mxu0 0.0
  %2072 = vmatprep.subr.mxu0 0.0
  %2073 = vmatpush1.msra.mxu0 0.0
  %2074 = vmatprep.subr.mxu0 0.0
  %2075 = vmatpush1.msra.mxu0 0.0
  %2076 = vmatprep.subr.mxu0 0.0
  %2077 = vmatpush1.msra.mxu0 0.0
  %2078 = vmatprep.subr.mxu0 0.0
  %2079 = vmatpush1.msra.mxu0 0.0
  %2080 = vmatprep.subr.mxu0 0.0
  %2081 = vmatpush1.msra.mxu0 0.0
  %2082 = vmatprep.subr.mxu0 0.0
  %2083 = vmatpush1.msra.mxu0 0.0
  %2084 = vmatprep.subr.mxu0 0.0
  %2085 = vmatpush1.msra.mxu0 0.0
  %2086 = vmatprep.subr.mxu0 0.0
  %2087 = vmatpush1.msra.mxu0 0.0
  %2088 = vmatprep.subr.mxu0 0.0
  %2089 = vmatpush1.msra.mxu0 0.0
  %2090 = vmatprep.subr.mxu0 0.0
  %2091 = vmatpush1.msra.mxu0 0.0
  %2092 = vmatprep.subr.mxu0 0.0
  %2093 = vmatpush1.msra.mxu0 0.0
  %2094 = vmatprep.subr.mxu0 0.0
  %2095 = vmatpush1.msra.mxu0 %v92
  %2096 = vmatprep.subr.mxu0 0.0
  %2097 = vmatpush1.msra.mxu0 %v23
  %2098 = vmatprep.subr.mxu0 0.0
  %2099 = vmatpush1.msra.mxu0 %v22
  %2100 = vmatprep.subr.mxu0 0.0
  %2101 = vmatpush1.msra.mxu0 %v21
  %2102 = vmatprep.subr.mxu0 0.0
  %2103 = vmatpush2.msra.mxu0 0.0
  %2104 = vmatprep.subr.mxu0 0.0
  %2105 = vmatpush2.msra.mxu0 0.0
  %2106 = vmatprep.subr.mxu0 0.0
  %2107 = vmatpush2.msra.mxu0 0.0
  %2108 = vmatprep.subr.mxu0 0.0
  %2109 = vmatpush2.msra.mxu0 0.0
  %2110 = vmatprep.subr.mxu0 0.0
  %2111 = vmatpush2.msra.mxu0 0.0
  %2112 = vmatprep.subr.mxu0 0.0
  %2113 = vmatpush2.msra.mxu0 0.0
  %2114 = vmatprep.subr.mxu0 0.0
  %2115 = vmatpush2.msra.mxu0 0.0
  %2116 = vmatprep.subr.mxu0 0.0
  %2117 = vmatpush2.msra.mxu0 0.0
  %2118 = vmatprep.subr.mxu0 0.0
  %2119 = vmatpush2.msra.mxu0 0.0
  %2120 = vmatprep.subr.mxu0 0.0
  %2121 = vmatpush2.msra.mxu0 0.0
  %2122 = vmatprep.subr.mxu0 0.0
  %2123 = vmatpush2.msra.mxu0 0.0
  %2124 = vmatprep.subr.mxu0 0.0
  %2125 = vmatpush2.msra.mxu0 0.0
  %2126 = vmatprep.subr.mxu0 0.0
  %2127 = vmatpush2.msra.mxu0 0.0
  %2128 = vmatprep.subr.mxu0 0.0
  %2129 = vmatpush2.msra.mxu0 0.0
  %2130 = vmatprep.subr.mxu0 0.0
  %2131 = vmatpush2.msra.mxu0 0.0
  %2132 = vmatprep.subr.mxu0 0.0
  %2133 = vmatpush2.msra.mxu0 0.0
  %2134 = vmatprep.mubr.f32.mxu0 0.0
  %2135 = vmatmul.mubr.f32.gmra.mxu0 %v2023
  %v2136 = vpop.f32.mrf.mxu0
  %v2137 = vadd.f32 0.0, %v2136
  %v2138 = vpop.f32.mrf.mxu0
  %2139 = vmatprep.mubr.f32.mxu0 0.0
  %2140 = vmatmul.mubr.f32.gmra.mxu0 %v2026
  %v2141 = vpop.f32.mrf.mxu0
  %v2142 = vadd.f32 0.0, %v2141
  %v2143 = vpop.f32.mrf.mxu0
  %2144 = vmatprep.mubr.f32.mxu0 0.0
  %2145 = vmatmul.mubr.f32.gmra.mxu0 %v2029
  %v2146 = vpop.f32.mrf.mxu0
  %v2147 = vadd.f32 0.0, %v2146
  %v2148 = vpop.f32.mrf.mxu0
  %2149 = vmatprep.mubr.f32.mxu0 0.0
  %2150 = vmatmul.mubr.f32.gmra.mxu0 %v2032
  %v2151 = vpop.f32.mrf.mxu0
  %v2152 = vadd.f32 0.0, %v2151
  %v2153 = vpop.f32.mrf.mxu0
  %2154 = vmatprep.mubr.f32.mxu0 0.0
  %2155 = vmatmul.mubr.f32.gmra.mxu0 %v2035
  %v2156 = vpop.f32.mrf.mxu0
  %v2157 = vadd.f32 0.0, %v2156
  %v2158 = vpop.f32.mrf.mxu0
  %2159 = vmatprep.mubr.f32.mxu0 0.0
  %2160 = vmatmul.mubr.f32.gmra.mxu0 %v2038
  %v2161 = vpop.f32.mrf.mxu0
  %v2162 = vadd.f32 0.0, %v2161
  %v2163 = vpop.f32.mrf.mxu0
  %2164 = vmatprep.mubr.f32.mxu0 0.0
  %2165 = vmatmul.mubr.f32.gmra.mxu0 %v2041
  %v2166 = vpop.f32.mrf.mxu0
  %v2167 = vadd.f32 0.0, %v2166
  %v2168 = vpop.f32.mrf.mxu0
  %2169 = vmatprep.mubr.f32.mxu0 0.0
  %2170 = vmatmul.mubr.f32.gmra.mxu0 %v2044
  %v2171 = vpop.f32.mrf.mxu0
  %v2172 = vadd.f32 0.0, %v2171
  %v2173 = vpop.f32.mrf.mxu0
  %2174 = vmatprep.mubr.f32.mxu0 0.0
  %2175 = vmatmul.mubr.f32.gmra.mxu0 %v2047
  %v2176 = vpop.f32.mrf.mxu0
  %v2177 = vadd.f32 0.0, %v2176
  %v2178 = vpop.f32.mrf.mxu0
  %2179 = vmatprep.mubr.f32.mxu0 0.0
  %2180 = vmatmul.mubr.f32.gmra.mxu0 %v2050
  %v2181 = vpop.f32.mrf.mxu0
  %v2182 = vadd.f32 0.0, %v2181
  %v2183 = vpop.f32.mrf.mxu0
  %2184 = vmatprep.mubr.f32.mxu0 0.0
  %2185 = vmatmul.mubr.f32.gmra.mxu0 %v2053
  %v2186 = vpop.f32.mrf.mxu0
  %v2187 = vadd.f32 0.0, %v2186
  %v2188 = vpop.f32.mrf.mxu0
  %2189 = vmatprep.mubr.f32.mxu0 0.0
  %2190 = vmatmul.mubr.f32.gmra.mxu0 %v2056
  %v2191 = vpop.f32.mrf.mxu0
  %v2192 = vadd.f32 0.0, %v2191
  %v2193 = vpop.f32.mrf.mxu0
  %2194 = vmatprep.mubr.f32.mxu0 0.0
  %2195 = vmatmul.mubr.f32.gmra.mxu0 %v2059
  %v2196 = vpop.f32.mrf.mxu0
  %v2197 = vadd.f32 0.0, %v2196
  %v2198 = vpop.f32.mrf.mxu0
  %2199 = vmatprep.mubr.f32.mxu0 0.0
  %2200 = vmatmul.mubr.f32.gmra.mxu0 %v2062
  %v2201 = vpop.f32.mrf.mxu0
  %v2202 = vadd.f32 0.0, %v2201
  %v2203 = vpop.f32.mrf.mxu0
  %2204 = vmatprep.mubr.f32.mxu0 0.0
  %2205 = vmatmul.mubr.f32.gmra.mxu0 %v2065
  %v2206 = vpop.f32.mrf.mxu0
  %v2207 = vadd.f32 0.0, %v2206
  %v2208 = vpop.f32.mrf.mxu0
  %2209 = vmatprep.mubr.f32.mxu0 0.0
  %2210 = vmatmul.mubr.f32.gmra.mxu0 %v2068
  %v2211 = vpop.f32.mrf.mxu0
  %v2212 = vadd.f32 0.0, %v2211
  %v2213 = vpop.f32.mrf.mxu0
  %2214 = vdwg.mxu0
  %2215 = vst [vmem:[#allocation2 + $0x400] sm:$0xff] %v2137
  %2216 = vst [vmem:[#allocation2 + $0x408] sm:$0xff] %v2142
  %2217 = vst [vmem:[#allocation2 + $0x410] sm:$0xff] %v2147
  %2218 = vst [vmem:[#allocation2 + $0x418] sm:$0xff] %v2152
  %2219 = vst [vmem:[#allocation2 + $0x420] sm:$0xff] %v2157
  %2220 = vst [vmem:[#allocation2 + $0x428] sm:$0xff] %v2162
  %2221 = vst [vmem:[#allocation2 + $0x430] sm:$0xff] %v2167
  %2222 = vst [vmem:[#allocation2 + $0x438] sm:$0xff] %v2172
  %2223 = vst [vmem:[#allocation2 + $0x440] sm:$0xff] %v2177
  %2224 = vst [vmem:[#allocation2 + $0x448] sm:$0xff] %v2182
  %2225 = vst [vmem:[#allocation2 + $0x450] sm:$0xff] %v2187
  %2226 = vst [vmem:[#allocation2 + $0x458] sm:$0xff] %v2192
  %2227 = vst [vmem:[#allocation2 + $0x460] sm:$0xff] %v2197
  %2228 = vst [vmem:[#allocation2 + $0x468] sm:$0xff] %v2202
  %2229 = vst [vmem:[#allocation2 + $0x470] sm:$0xff] %v2207
  %2230 = vst [vmem:[#allocation2 + $0x478] sm:$0xff] %v2212
  %v2231 = vadd.f32 %v2137, %v2142
  %v2232 = vadd.f32 %v2231, %v2147
  %v2233 = vadd.f32 %v2232, %v2152
  %v2234 = vadd.f32 %v2233, %v2157
  %v2235 = vadd.f32 %v2234, %v2162
  %v2236 = vadd.f32 %v2235, %v2167
  %v2237 = vadd.f32 %v2236, %v2172
  %v2238 = vadd.f32 %v2237, %v2177
  %v2239 = vadd.f32 %v2238, %v2182
  %v2240 = vadd.f32 %v2239, %v2187
  %v2241 = vadd.f32 %v2240, %v2192
  %v2242 = vadd.f32 %v2241, %v2197
  %v2243 = vadd.f32 %v2242, %v2202
  %v2244 = vadd.f32 %v2243, %v2207
  %v2245 = vadd.f32 %v2244, %v2212
  %v2246 = vrot.slane %v2245, 4
  %v2247 = vadd.f32 %v2245, %v2246
  %v2248 = vrot.slane %v2247, 2
  %v2249 = vadd.f32 %v2247, %v2248
  %v2250 = vrot.slane %v2249, 1
  %v2251 = vadd.f32 %v2249, %v2250
  %v2252 = vadd.f32 %v2005, %v2251
  %v2253 = vmul.f32 %v2252, 0.00086805556
  %v2254 = vld [vmem:[#allocation2] sm:$0xff]
  %v2255 = vld [vmem:[#allocation2 + $0x8] sm:$0xff]
  %v2256 = vld [vmem:[#allocation2 + $0x10] sm:$0xff]
  %v2257 = vld [vmem:[#allocation2 + $0x18] sm:$0xff]
  %v2258 = vld [vmem:[#allocation2 + $0x20] sm:$0xff]
  %v2259 = vld [vmem:[#allocation2 + $0x28] sm:$0xff]
  %v2260 = vld [vmem:[#allocation2 + $0x30] sm:$0xff]
  %v2261 = vld [vmem:[#allocation2 + $0x38] sm:$0xff]
  %v2262 = vld [vmem:[#allocation2 + $0x40] sm:$0xff]
  %v2263 = vld [vmem:[#allocation2 + $0x48] sm:$0xff]
  %v2264 = vld [vmem:[#allocation2 + $0x50] sm:$0xff]
  %v2265 = vld [vmem:[#allocation2 + $0x58] sm:$0xff]
  %v2266 = vld [vmem:[#allocation2 + $0x60] sm:$0xff]
  %v2267 = vld [vmem:[#allocation2 + $0x68] sm:$0xff]
  %v2268 = vld [vmem:[#allocation2 + $0x70] sm:$0xff]
  %v2269 = vld [vmem:[#allocation2 + $0x78] sm:$0xff]
  %v2270 = vsub.f32 %v2254, %v2253
  %v2271 = vsub.f32 %v2255, %v2253
  %v2272 = vsub.f32 %v2256, %v2253
  %v2273 = vsub.f32 %v2257, %v2253
  %v2274 = vsub.f32 %v2258, %v2253
  %v2275 = vsub.f32 %v2259, %v2253
  %v2276 = vsub.f32 %v2260, %v2253
  %v2277 = vsub.f32 %v2261, %v2253
  %v2278 = vsub.f32 %v2262, %v2253
  %v2279 = vsub.f32 %v2263, %v2253
  %v2280 = vsub.f32 %v2264, %v2253
  %v2281 = vsub.f32 %v2265, %v2253
  %v2282 = vsub.f32 %v2266, %v2253
  %v2283 = vsub.f32 %v2267, %v2253
  %v2284 = vsub.f32 %v2268, %v2253
  %v2285 = vsub.f32 %v2269, %v2253
  %v2286 = vmul.f32 %v2270, %v2270
  %v2287 = vmul.f32 %v2271, %v2271
  %v2288 = vmul.f32 %v2272, %v2272
  %v2289 = vmul.f32 %v2273, %v2273
  %v2290 = vmul.f32 %v2274, %v2274
  %v2291 = vmul.f32 %v2275, %v2275
  %v2292 = vmul.f32 %v2276, %v2276
  %v2293 = vmul.f32 %v2277, %v2277
  %v2294 = vmul.f32 %v2278, %v2278
  %v2295 = vmul.f32 %v2279, %v2279
  %v2296 = vmul.f32 %v2280, %v2280
  %v2297 = vmul.f32 %v2281, %v2281
  %v2298 = vmul.f32 %v2282, %v2282
  %v2299 = vmul.f32 %v2283, %v2283
  %v2300 = vmul.f32 %v2284, %v2284
  %v2301 = vmul.f32 %v2285, %v2285
  %v2302 = vadd.f32 %v2286, %v2287
  %v2303 = vadd.f32 %v2302, %v2288
  %v2304 = vadd.f32 %v2303, %v2289
  %v2305 = vadd.f32 %v2304, %v2290
  %v2306 = vadd.f32 %v2305, %v2291
  %v2307 = vadd.f32 %v2306, %v2292
  %v2308 = vadd.f32 %v2307, %v2293
  %v2309 = vadd.f32 %v2308, %v2294
  %v2310 = vadd.f32 %v2309, %v2295
  %v2311 = vadd.f32 %v2310, %v2296
  %v2312 = vadd.f32 %v2311, %v2297
  %v2313 = vadd.f32 %v2312, %v2298
  %v2314 = vadd.f32 %v2313, %v2299
  %v2315 = vadd.f32 %v2314, %v2300
  %v2316 = vadd.f32 %v2315, %v2301
  %v2317 = vrot.slane %v2316, 4
  %v2318 = vadd.f32 %v2316, %v2317
  %v2319 = vrot.slane %v2318, 2
  %v2320 = vadd.f32 %v2318, %v2319
  %v2321 = vrot.slane %v2320, 1
  %v2322 = vadd.f32 %v2320, %v2321
  %v2323 = vadd.f32 %v2322, 0.0
  %v2324 = vld [vmem:[#allocation2 + $0x80] sm:$0xff]
  %v2325 = vld [vmem:[#allocation2 + $0x88] sm:$0xff]
  %v2326 = vld [vmem:[#allocation2 + $0x90] sm:$0xff]
  %v2327 = vld [vmem:[#allocation2 + $0x98] sm:$0xff]
  %v2328 = vld [vmem:[#allocation2 + $0xa0] sm:$0xff]
  %v2329 = vld [vmem:[#allocation2 + $0xa8] sm:$0xff]
  %v2330 = vld [vmem:[#allocation2 + $0xb0] sm:$0xff]
  %v2331 = vld [vmem:[#allocation2 + $0xb8] sm:$0xff]
  %v2332 = vld [vmem:[#allocation2 + $0xc0] sm:$0xff]
  %v2333 = vld [vmem:[#allocation2 + $0xc8] sm:$0xff]
  %v2334 = vld [vmem:[#allocation2 + $0xd0] sm:$0xff]
  %v2335 = vld [vmem:[#allocation2 + $0xd8] sm:$0xff]
  %v2336 = vld [vmem:[#allocation2 + $0xe0] sm:$0xff]
  %v2337 = vld [vmem:[#allocation2 + $0xe8] sm:$0xff]
  %v2338 = vld [vmem:[#allocation2 + $0xf0] sm:$0xff]
  %v2339 = vld [vmem:[#allocation2 + $0xf8] sm:$0xff]
  %v2340 = vsub.f32 %v2324, %v2253
  %v2341 = vsub.f32 %v2325, %v2253
  %v2342 = vsub.f32 %v2326, %v2253
  %v2343 = vsub.f32 %v2327, %v2253
  %v2344 = vsub.f32 %v2328, %v2253
  %v2345 = vsub.f32 %v2329, %v2253
  %v2346 = vsub.f32 %v2330, %v2253
  %v2347 = vsub.f32 %v2331, %v2253
  %v2348 = vsub.f32 %v2332, %v2253
  %v2349 = vsub.f32 %v2333, %v2253
  %v2350 = vsub.f32 %v2334, %v2253
  %v2351 = vsub.f32 %v2335, %v2253
  %v2352 = vsub.f32 %v2336, %v2253
  %v2353 = vsub.f32 %v2337, %v2253
  %v2354 = vsub.f32 %v2338, %v2253
  %v2355 = vsub.f32 %v2339, %v2253
  %v2356 = vmul.f32 %v2340, %v2340
  %v2357 = vmul.f32 %v2341, %v2341
  %v2358 = vmul.f32 %v2342, %v2342
  %v2359 = vmul.f32 %v2343, %v2343
  %v2360 = vmul.f32 %v2344, %v2344
  %v2361 = vmul.f32 %v2345, %v2345
  %v2362 = vmul.f32 %v2346, %v2346
  %v2363 = vmul.f32 %v2347, %v2347
  %v2364 = vmul.f32 %v2348, %v2348
  %v2365 = vmul.f32 %v2349, %v2349
  %v2366 = vmul.f32 %v2350, %v2350
  %v2367 = vmul.f32 %v2351, %v2351
  %v2368 = vmul.f32 %v2352, %v2352
  %v2369 = vmul.f32 %v2353, %v2353
  %v2370 = vmul.f32 %v2354, %v2354
  %v2371 = vmul.f32 %v2355, %v2355
  %v2372 = vadd.f32 %v2356, %v2357
  %v2373 = vadd.f32 %v2372, %v2358
  %v2374 = vadd.f32 %v2373, %v2359
  %v2375 = vadd.f32 %v2374, %v2360
  %v2376 = vadd.f32 %v2375, %v2361
  %v2377 = vadd.f32 %v2376, %v2362
  %v2378 = vadd.f32 %v2377, %v2363
  %v2379 = vadd.f32 %v2378, %v2364
  %v2380 = vadd.f32 %v2379, %v2365
  %v2381 = vadd.f32 %v2380, %v2366
  %v2382 = vadd.f32 %v2381, %v2367
  %v2383 = vadd.f32 %v2382, %v2368
  %v2384 = vadd.f32 %v2383, %v2369
  %v2385 = vadd.f32 %v2384, %v2370
  %v2386 = vadd.f32 %v2385, %v2371
  %v2387 = vrot.slane %v2386, 4
  %v2388 = vadd.f32 %v2386, %v2387
  %v2389 = vrot.slane %v2388, 2
  %v2390 = vadd.f32 %v2388, %v2389
  %v2391 = vrot.slane %v2390, 1
  %v2392 = vadd.f32 %v2390, %v2391
  %v2393 = vadd.f32 %v2323, %v2392
  %v2394 = vld [vmem:[#allocation2 + $0x100] sm:$0xff]
  %v2395 = vld [vmem:[#allocation2 + $0x108] sm:$0xff]
  %v2396 = vld [vmem:[#allocation2 + $0x110] sm:$0xff]
  %v2397 = vld [vmem:[#allocation2 + $0x118] sm:$0xff]
  %v2398 = vld [vmem:[#allocation2 + $0x120] sm:$0xff]
  %v2399 = vld [vmem:[#allocation2 + $0x128] sm:$0xff]
  %v2400 = vld [vmem:[#allocation2 + $0x130] sm:$0xff]
  %v2401 = vld [vmem:[#allocation2 + $0x138] sm:$0xff]
  %v2402 = vld [vmem:[#allocation2 + $0x140] sm:$0xff]
  %v2403 = vld [vmem:[#allocation2 + $0x148] sm:$0xff]
  %v2404 = vld [vmem:[#allocation2 + $0x150] sm:$0xff]
  %v2405 = vld [vmem:[#allocation2 + $0x158] sm:$0xff]
  %v2406 = vld [vmem:[#allocation2 + $0x160] sm:$0xff]
  %v2407 = vld [vmem:[#allocation2 + $0x168] sm:$0xff]
  %v2408 = vld [vmem:[#allocation2 + $0x170] sm:$0xff]
  %v2409 = vld [vmem:[#allocation2 + $0x178] sm:$0xff]
  %v2410 = vsub.f32 %v2394, %v2253
  %v2411 = vsub.f32 %v2395, %v2253
  %v2412 = vsub.f32 %v2396, %v2253
  %v2413 = vsub.f32 %v2397, %v2253
  %v2414 = vsub.f32 %v2398, %v2253
  %v2415 = vsub.f32 %v2399, %v2253
  %v2416 = vsub.f32 %v2400, %v2253
  %v2417 = vsub.f32 %v2401, %v2253
  %v2418 = vsub.f32 %v2402, %v2253
  %v2419 = vsub.f32 %v2403, %v2253
  %v2420 = vsub.f32 %v2404, %v2253
  %v2421 = vsub.f32 %v2405, %v2253
  %v2422 = vsub.f32 %v2406, %v2253
  %v2423 = vsub.f32 %v2407, %v2253
  %v2424 = vsub.f32 %v2408, %v2253
  %v2425 = vsub.f32 %v2409, %v2253
  %v2426 = vmul.f32 %v2410, %v2410
  %v2427 = vmul.f32 %v2411, %v2411
  %v2428 = vmul.f32 %v2412, %v2412
  %v2429 = vmul.f32 %v2413, %v2413
  %v2430 = vmul.f32 %v2414, %v2414
  %v2431 = vmul.f32 %v2415, %v2415
  %v2432 = vmul.f32 %v2416, %v2416
  %v2433 = vmul.f32 %v2417, %v2417
  %v2434 = vmul.f32 %v2418, %v2418
  %v2435 = vmul.f32 %v2419, %v2419
  %v2436 = vmul.f32 %v2420, %v2420
  %v2437 = vmul.f32 %v2421, %v2421
  %v2438 = vmul.f32 %v2422, %v2422
  %v2439 = vmul.f32 %v2423, %v2423
  %v2440 = vmul.f32 %v2424, %v2424
  %v2441 = vmul.f32 %v2425, %v2425
  %v2442 = vadd.f32 %v2426, %v2427
  %v2443 = vadd.f32 %v2442, %v2428
  %v2444 = vadd.f32 %v2443, %v2429
  %v2445 = vadd.f32 %v2444, %v2430
  %v2446 = vadd.f32 %v2445, %v2431
  %v2447 = vadd.f32 %v2446, %v2432
  %v2448 = vadd.f32 %v2447, %v2433
  %v2449 = vadd.f32 %v2448, %v2434
  %v2450 = vadd.f32 %v2449, %v2435
  %v2451 = vadd.f32 %v2450, %v2436
  %v2452 = vadd.f32 %v2451, %v2437
  %v2453 = vadd.f32 %v2452, %v2438
  %v2454 = vadd.f32 %v2453, %v2439
  %v2455 = vadd.f32 %v2454, %v2440
  %v2456 = vadd.f32 %v2455, %v2441
  %v2457 = vrot.slane %v2456, 4
  %v2458 = vadd.f32 %v2456, %v2457
  %v2459 = vrot.slane %v2458, 2
  %v2460 = vadd.f32 %v2458, %v2459
  %v2461 = vrot.slane %v2460, 1
  %v2462 = vadd.f32 %v2460, %v2461
  %v2463 = vadd.f32 %v2393, %v2462
  %v2464 = vld [vmem:[#allocation2 + $0x180] sm:$0xff]
  %v2465 = vld [vmem:[#allocation2 + $0x188] sm:$0xff]
  %v2466 = vld [vmem:[#allocation2 + $0x190] sm:$0xff]
  %v2467 = vld [vmem:[#allocation2 + $0x198] sm:$0xff]
  %v2468 = vld [vmem:[#allocation2 + $0x1a0] sm:$0xff]
  %v2469 = vld [vmem:[#allocation2 + $0x1a8] sm:$0xff]
  %v2470 = vld [vmem:[#allocation2 + $0x1b0] sm:$0xff]
  %v2471 = vld [vmem:[#allocation2 + $0x1b8] sm:$0xff]
  %v2472 = vld [vmem:[#allocation2 + $0x1c0] sm:$0xff]
  %v2473 = vld [vmem:[#allocation2 + $0x1c8] sm:$0xff]
  %v2474 = vld [vmem:[#allocation2 + $0x1d0] sm:$0xff]
  %v2475 = vld [vmem:[#allocation2 + $0x1d8] sm:$0xff]
  %v2476 = vld [vmem:[#allocation2 + $0x1e0] sm:$0xff]
  %v2477 = vld [vmem:[#allocation2 + $0x1e8] sm:$0xff]
  %v2478 = vld [vmem:[#allocation2 + $0x1f0] sm:$0xff]
  %v2479 = vld [vmem:[#allocation2 + $0x1f8] sm:$0xff]
  %v2480 = vsub.f32 %v2464, %v2253
  %v2481 = vsub.f32 %v2465, %v2253
  %v2482 = vsub.f32 %v2466, %v2253
  %v2483 = vsub.f32 %v2467, %v2253
  %v2484 = vsub.f32 %v2468, %v2253
  %v2485 = vsub.f32 %v2469, %v2253
  %v2486 = vsub.f32 %v2470, %v2253
  %v2487 = vsub.f32 %v2471, %v2253
  %v2488 = vsub.f32 %v2472, %v2253
  %v2489 = vsub.f32 %v2473, %v2253
  %v2490 = vsub.f32 %v2474, %v2253
  %v2491 = vsub.f32 %v2475, %v2253
  %v2492 = vsub.f32 %v2476, %v2253
  %v2493 = vsub.f32 %v2477, %v2253
  %v2494 = vsub.f32 %v2478, %v2253
  %v2495 = vsub.f32 %v2479, %v2253
  %v2496 = vmul.f32 %v2480, %v2480
  %v2497 = vmul.f32 %v2481, %v2481
  %v2498 = vmul.f32 %v2482, %v2482
  %v2499 = vmul.f32 %v2483, %v2483
  %v2500 = vmul.f32 %v2484, %v2484
  %v2501 = vmul.f32 %v2485, %v2485
  %v2502 = vmul.f32 %v2486, %v2486
  %v2503 = vmul.f32 %v2487, %v2487
  %v2504 = vmul.f32 %v2488, %v2488
  %v2505 = vmul.f32 %v2489, %v2489
  %v2506 = vmul.f32 %v2490, %v2490
  %v2507 = vmul.f32 %v2491, %v2491
  %v2508 = vmul.f32 %v2492, %v2492
  %v2509 = vmul.f32 %v2493, %v2493
  %v2510 = vmul.f32 %v2494, %v2494
  %v2511 = vmul.f32 %v2495, %v2495
  %v2512 = vadd.f32 %v2496, %v2497
  %v2513 = vadd.f32 %v2512, %v2498
  %v2514 = vadd.f32 %v2513, %v2499
  %v2515 = vadd.f32 %v2514, %v2500
  %v2516 = vadd.f32 %v2515, %v2501
  %v2517 = vadd.f32 %v2516, %v2502
  %v2518 = vadd.f32 %v2517, %v2503
  %v2519 = vadd.f32 %v2518, %v2504
  %v2520 = vadd.f32 %v2519, %v2505
  %v2521 = vadd.f32 %v2520, %v2506
  %v2522 = vadd.f32 %v2521, %v2507
  %v2523 = vadd.f32 %v2522, %v2508
  %v2524 = vadd.f32 %v2523, %v2509
  %v2525 = vadd.f32 %v2524, %v2510
  %v2526 = vadd.f32 %v2525, %v2511
  %v2527 = vrot.slane %v2526, 4
  %v2528 = vadd.f32 %v2526, %v2527
  %v2529 = vrot.slane %v2528, 2
  %v2530 = vadd.f32 %v2528, %v2529
  %v2531 = vrot.slane %v2530, 1
  %v2532 = vadd.f32 %v2530, %v2531
  %v2533 = vadd.f32 %v2463, %v2532
  %v2534 = vld [vmem:[#allocation2 + $0x200] sm:$0xff]
  %v2535 = vld [vmem:[#allocation2 + $0x208] sm:$0xff]
  %v2536 = vld [vmem:[#allocation2 + $0x210] sm:$0xff]
  %v2537 = vld [vmem:[#allocation2 + $0x218] sm:$0xff]
  %v2538 = vld [vmem:[#allocation2 + $0x220] sm:$0xff]
  %v2539 = vld [vmem:[#allocation2 + $0x228] sm:$0xff]
  %v2540 = vld [vmem:[#allocation2 + $0x230] sm:$0xff]
  %v2541 = vld [vmem:[#allocation2 + $0x238] sm:$0xff]
  %v2542 = vld [vmem:[#allocation2 + $0x240] sm:$0xff]
  %v2543 = vld [vmem:[#allocation2 + $0x248] sm:$0xff]
  %v2544 = vld [vmem:[#allocation2 + $0x250] sm:$0xff]
  %v2545 = vld [vmem:[#allocation2 + $0x258] sm:$0xff]
  %v2546 = vld [vmem:[#allocation2 + $0x260] sm:$0xff]
  %v2547 = vld [vmem:[#allocation2 + $0x268] sm:$0xff]
  %v2548 = vld [vmem:[#allocation2 + $0x270] sm:$0xff]
  %v2549 = vld [vmem:[#allocation2 + $0x278] sm:$0xff]
  %v2550 = vsub.f32 %v2534, %v2253
  %v2551 = vsub.f32 %v2535, %v2253
  %v2552 = vsub.f32 %v2536, %v2253
  %v2553 = vsub.f32 %v2537, %v2253
  %v2554 = vsub.f32 %v2538, %v2253
  %v2555 = vsub.f32 %v2539, %v2253
  %v2556 = vsub.f32 %v2540, %v2253
  %v2557 = vsub.f32 %v2541, %v2253
  %v2558 = vsub.f32 %v2542, %v2253
  %v2559 = vsub.f32 %v2543, %v2253
  %v2560 = vsub.f32 %v2544, %v2253
  %v2561 = vsub.f32 %v2545, %v2253
  %v2562 = vsub.f32 %v2546, %v2253
  %v2563 = vsub.f32 %v2547, %v2253
  %v2564 = vsub.f32 %v2548, %v2253
  %v2565 = vsub.f32 %v2549, %v2253
  %v2566 = vmul.f32 %v2550, %v2550
  %v2567 = vmul.f32 %v2551, %v2551
  %v2568 = vmul.f32 %v2552, %v2552
  %v2569 = vmul.f32 %v2553, %v2553
  %v2570 = vmul.f32 %v2554, %v2554
  %v2571 = vmul.f32 %v2555, %v2555
  %v2572 = vmul.f32 %v2556, %v2556
  %v2573 = vmul.f32 %v2557, %v2557
  %v2574 = vmul.f32 %v2558, %v2558
  %v2575 = vmul.f32 %v2559, %v2559
  %v2576 = vmul.f32 %v2560, %v2560
  %v2577 = vmul.f32 %v2561, %v2561
  %v2578 = vmul.f32 %v2562, %v2562
  %v2579 = vmul.f32 %v2563, %v2563
  %v2580 = vmul.f32 %v2564, %v2564
  %v2581 = vmul.f32 %v2565, %v2565
  %v2582 = vadd.f32 %v2566, %v2567
  %v2583 = vadd.f32 %v2582, %v2568
  %v2584 = vadd.f32 %v2583, %v2569
  %v2585 = vadd.f32 %v2584, %v2570
  %v2586 = vadd.f32 %v2585, %v2571
  %v2587 = vadd.f32 %v2586, %v2572
  %v2588 = vadd.f32 %v2587, %v2573
  %v2589 = vadd.f32 %v2588, %v2574
  %v2590 = vadd.f32 %v2589, %v2575
  %v2591 = vadd.f32 %v2590, %v2576
  %v2592 = vadd.f32 %v2591, %v2577
  %v2593 = vadd.f32 %v2592, %v2578
  %v2594 = vadd.f32 %v2593, %v2579
  %v2595 = vadd.f32 %v2594, %v2580
  %v2596 = vadd.f32 %v2595, %v2581
  %v2597 = vrot.slane %v2596, 4
  %v2598 = vadd.f32 %v2596, %v2597
  %v2599 = vrot.slane %v2598, 2
  %v2600 = vadd.f32 %v2598, %v2599
  %v2601 = vrot.slane %v2600, 1
  %v2602 = vadd.f32 %v2600, %v2601
  %v2603 = vadd.f32 %v2533, %v2602
  %v2604 = vld [vmem:[#allocation2 + $0x280] sm:$0xff]
  %v2605 = vld [vmem:[#allocation2 + $0x288] sm:$0xff]
  %v2606 = vld [vmem:[#allocation2 + $0x290] sm:$0xff]
  %v2607 = vld [vmem:[#allocation2 + $0x298] sm:$0xff]
  %v2608 = vld [vmem:[#allocation2 + $0x2a0] sm:$0xff]
  %v2609 = vld [vmem:[#allocation2 + $0x2a8] sm:$0xff]
  %v2610 = vld [vmem:[#allocation2 + $0x2b0] sm:$0xff]
  %v2611 = vld [vmem:[#allocation2 + $0x2b8] sm:$0xff]
  %v2612 = vld [vmem:[#allocation2 + $0x2c0] sm:$0xff]
  %v2613 = vld [vmem:[#allocation2 + $0x2c8] sm:$0xff]
  %v2614 = vld [vmem:[#allocation2 + $0x2d0] sm:$0xff]
  %v2615 = vld [vmem:[#allocation2 + $0x2d8] sm:$0xff]
  %v2616 = vld [vmem:[#allocation2 + $0x2e0] sm:$0xff]
  %v2617 = vld [vmem:[#allocation2 + $0x2e8] sm:$0xff]
  %v2618 = vld [vmem:[#allocation2 + $0x2f0] sm:$0xff]
  %v2619 = vld [vmem:[#allocation2 + $0x2f8] sm:$0xff]
  %v2620 = vsub.f32 %v2604, %v2253
  %v2621 = vsub.f32 %v2605, %v2253
  %v2622 = vsub.f32 %v2606, %v2253
  %v2623 = vsub.f32 %v2607, %v2253
  %v2624 = vsub.f32 %v2608, %v2253
  %v2625 = vsub.f32 %v2609, %v2253
  %v2626 = vsub.f32 %v2610, %v2253
  %v2627 = vsub.f32 %v2611, %v2253
  %v2628 = vsub.f32 %v2612, %v2253
  %v2629 = vsub.f32 %v2613, %v2253
  %v2630 = vsub.f32 %v2614, %v2253
  %v2631 = vsub.f32 %v2615, %v2253
  %v2632 = vsub.f32 %v2616, %v2253
  %v2633 = vsub.f32 %v2617, %v2253
  %v2634 = vsub.f32 %v2618, %v2253
  %v2635 = vsub.f32 %v2619, %v2253
  %v2636 = vmul.f32 %v2620, %v2620
  %v2637 = vmul.f32 %v2621, %v2621
  %v2638 = vmul.f32 %v2622, %v2622
  %v2639 = vmul.f32 %v2623, %v2623
  %v2640 = vmul.f32 %v2624, %v2624
  %v2641 = vmul.f32 %v2625, %v2625
  %v2642 = vmul.f32 %v2626, %v2626
  %v2643 = vmul.f32 %v2627, %v2627
  %v2644 = vmul.f32 %v2628, %v2628
  %v2645 = vmul.f32 %v2629, %v2629
  %v2646 = vmul.f32 %v2630, %v2630
  %v2647 = vmul.f32 %v2631, %v2631
  %v2648 = vmul.f32 %v2632, %v2632
  %v2649 = vmul.f32 %v2633, %v2633
  %v2650 = vmul.f32 %v2634, %v2634
  %v2651 = vmul.f32 %v2635, %v2635
  %v2652 = vadd.f32 %v2636, %v2637
  %v2653 = vadd.f32 %v2652, %v2638
  %v2654 = vadd.f32 %v2653, %v2639
  %v2655 = vadd.f32 %v2654, %v2640
  %v2656 = vadd.f32 %v2655, %v2641
  %v2657 = vadd.f32 %v2656, %v2642
  %v2658 = vadd.f32 %v2657, %v2643
  %v2659 = vadd.f32 %v2658, %v2644
  %v2660 = vadd.f32 %v2659, %v2645
  %v2661 = vadd.f32 %v2660, %v2646
  %v2662 = vadd.f32 %v2661, %v2647
  %v2663 = vadd.f32 %v2662, %v2648
  %v2664 = vadd.f32 %v2663, %v2649
  %v2665 = vadd.f32 %v2664, %v2650
  %v2666 = vadd.f32 %v2665, %v2651
  %v2667 = vrot.slane %v2666, 4
  %v2668 = vadd.f32 %v2666, %v2667
  %v2669 = vrot.slane %v2668, 2
  %v2670 = vadd.f32 %v2668, %v2669
  %v2671 = vrot.slane %v2670, 1
  %v2672 = vadd.f32 %v2670, %v2671
  %v2673 = vadd.f32 %v2603, %v2672
  %v2674 = vld [vmem:[#allocation2 + $0x300] sm:$0xff]
  %v2675 = vld [vmem:[#allocation2 + $0x308] sm:$0xff]
  %v2676 = vld [vmem:[#allocation2 + $0x310] sm:$0xff]
  %v2677 = vld [vmem:[#allocation2 + $0x318] sm:$0xff]
  %v2678 = vld [vmem:[#allocation2 + $0x320] sm:$0xff]
  %v2679 = vld [vmem:[#allocation2 + $0x328] sm:$0xff]
  %v2680 = vld [vmem:[#allocation2 + $0x330] sm:$0xff]
  %v2681 = vld [vmem:[#allocation2 + $0x338] sm:$0xff]
  %v2682 = vld [vmem:[#allocation2 + $0x340] sm:$0xff]
  %v2683 = vld [vmem:[#allocation2 + $0x348] sm:$0xff]
  %v2684 = vld [vmem:[#allocation2 + $0x350] sm:$0xff]
  %v2685 = vld [vmem:[#allocation2 + $0x358] sm:$0xff]
  %v2686 = vld [vmem:[#allocation2 + $0x360] sm:$0xff]
  %v2687 = vld [vmem:[#allocation2 + $0x368] sm:$0xff]
  %v2688 = vld [vmem:[#allocation2 + $0x370] sm:$0xff]
  %v2689 = vld [vmem:[#allocation2 + $0x378] sm:$0xff]
  %v2690 = vsub.f32 %v2674, %v2253
  %v2691 = vsub.f32 %v2675, %v2253
  %v2692 = vsub.f32 %v2676, %v2253
  %v2693 = vsub.f32 %v2677, %v2253
  %v2694 = vsub.f32 %v2678, %v2253
  %v2695 = vsub.f32 %v2679, %v2253
  %v2696 = vsub.f32 %v2680, %v2253
  %v2697 = vsub.f32 %v2681, %v2253
  %v2698 = vsub.f32 %v2682, %v2253
  %v2699 = vsub.f32 %v2683, %v2253
  %v2700 = vsub.f32 %v2684, %v2253
  %v2701 = vsub.f32 %v2685, %v2253
  %v2702 = vsub.f32 %v2686, %v2253
  %v2703 = vsub.f32 %v2687, %v2253
  %v2704 = vsub.f32 %v2688, %v2253
  %v2705 = vsub.f32 %v2689, %v2253
  %v2706 = vmul.f32 %v2690, %v2690
  %v2707 = vmul.f32 %v2691, %v2691
  %v2708 = vmul.f32 %v2692, %v2692
  %v2709 = vmul.f32 %v2693, %v2693
  %v2710 = vmul.f32 %v2694, %v2694
  %v2711 = vmul.f32 %v2695, %v2695
  %v2712 = vmul.f32 %v2696, %v2696
  %v2713 = vmul.f32 %v2697, %v2697
  %v2714 = vmul.f32 %v2698, %v2698
  %v2715 = vmul.f32 %v2699, %v2699
  %v2716 = vmul.f32 %v2700, %v2700
  %v2717 = vmul.f32 %v2701, %v2701
  %v2718 = vmul.f32 %v2702, %v2702
  %v2719 = vmul.f32 %v2703, %v2703
  %v2720 = vmul.f32 %v2704, %v2704
  %v2721 = vmul.f32 %v2705, %v2705
  %v2722 = vadd.f32 %v2706, %v2707
  %v2723 = vadd.f32 %v2722, %v2708
  %v2724 = vadd.f32 %v2723, %v2709
  %v2725 = vadd.f32 %v2724, %v2710
  %v2726 = vadd.f32 %v2725, %v2711
  %v2727 = vadd.f32 %v2726, %v2712
  %v2728 = vadd.f32 %v2727, %v2713
  %v2729 = vadd.f32 %v2728, %v2714
  %v2730 = vadd.f32 %v2729, %v2715
  %v2731 = vadd.f32 %v2730, %v2716
  %v2732 = vadd.f32 %v2731, %v2717
  %v2733 = vadd.f32 %v2732, %v2718
  %v2734 = vadd.f32 %v2733, %v2719
  %v2735 = vadd.f32 %v2734, %v2720
  %v2736 = vadd.f32 %v2735, %v2721
  %v2737 = vrot.slane %v2736, 4
  %v2738 = vadd.f32 %v2736, %v2737
  %v2739 = vrot.slane %v2738, 2
  %v2740 = vadd.f32 %v2738, %v2739
  %v2741 = vrot.slane %v2740, 1
  %v2742 = vadd.f32 %v2740, %v2741
  %v2743 = vadd.f32 %v2673, %v2742
  %v2744 = vld [vmem:[#allocation2 + $0x380] sm:$0xff]
  %v2745 = vld [vmem:[#allocation2 + $0x388] sm:$0xff]
  %v2746 = vld [vmem:[#allocation2 + $0x390] sm:$0xff]
  %v2747 = vld [vmem:[#allocation2 + $0x398] sm:$0xff]
  %v2748 = vld [vmem:[#allocation2 + $0x3a0] sm:$0xff]
  %v2749 = vld [vmem:[#allocation2 + $0x3a8] sm:$0xff]
  %v2750 = vld [vmem:[#allocation2 + $0x3b0] sm:$0xff]
  %v2751 = vld [vmem:[#allocation2 + $0x3b8] sm:$0xff]
  %v2752 = vld [vmem:[#allocation2 + $0x3c0] sm:$0xff]
  %v2753 = vld [vmem:[#allocation2 + $0x3c8] sm:$0xff]
  %v2754 = vld [vmem:[#allocation2 + $0x3d0] sm:$0xff]
  %v2755 = vld [vmem:[#allocation2 + $0x3d8] sm:$0xff]
  %v2756 = vld [vmem:[#allocation2 + $0x3e0] sm:$0xff]
  %v2757 = vld [vmem:[#allocation2 + $0x3e8] sm:$0xff]
  %v2758 = vld [vmem:[#allocation2 + $0x3f0] sm:$0xff]
  %v2759 = vld [vmem:[#allocation2 + $0x3f8] sm:$0xff]
  %v2760 = vsub.f32 %v2744, %v2253
  %v2761 = vsub.f32 %v2745, %v2253
  %v2762 = vsub.f32 %v2746, %v2253
  %v2763 = vsub.f32 %v2747, %v2253
  %v2764 = vsub.f32 %v2748, %v2253
  %v2765 = vsub.f32 %v2749, %v2253
  %v2766 = vsub.f32 %v2750, %v2253
  %v2767 = vsub.f32 %v2751, %v2253
  %v2768 = vsub.f32 %v2752, %v2253
  %v2769 = vsub.f32 %v2753, %v2253
  %v2770 = vsub.f32 %v2754, %v2253
  %v2771 = vsub.f32 %v2755, %v2253
  %v2772 = vsub.f32 %v2756, %v2253
  %v2773 = vsub.f32 %v2757, %v2253
  %v2774 = vsub.f32 %v2758, %v2253
  %v2775 = vsub.f32 %v2759, %v2253
  %v2776 = vmul.f32 %v2760, %v2760
  %v2777 = vmul.f32 %v2761, %v2761
  %v2778 = vmul.f32 %v2762, %v2762
  %v2779 = vmul.f32 %v2763, %v2763
  %v2780 = vmul.f32 %v2764, %v2764
  %v2781 = vmul.f32 %v2765, %v2765
  %v2782 = vmul.f32 %v2766, %v2766
  %v2783 = vmul.f32 %v2767, %v2767
  %v2784 = vmul.f32 %v2768, %v2768
  %v2785 = vmul.f32 %v2769, %v2769
  %v2786 = vmul.f32 %v2770, %v2770
  %v2787 = vmul.f32 %v2771, %v2771
  %v2788 = vmul.f32 %v2772, %v2772
  %v2789 = vmul.f32 %v2773, %v2773
  %v2790 = vmul.f32 %v2774, %v2774
  %v2791 = vmul.f32 %v2775, %v2775
  %v2792 = vadd.f32 %v2776, %v2777
  %v2793 = vadd.f32 %v2792, %v2778
  %v2794 = vadd.f32 %v2793, %v2779
  %v2795 = vadd.f32 %v2794, %v2780
  %v2796 = vadd.f32 %v2795, %v2781
  %v2797 = vadd.f32 %v2796, %v2782
  %v2798 = vadd.f32 %v2797, %v2783
  %v2799 = vadd.f32 %v2798, %v2784
  %v2800 = vadd.f32 %v2799, %v2785
  %v2801 = vadd.f32 %v2800, %v2786
  %v2802 = vadd.f32 %v2801, %v2787
  %v2803 = vadd.f32 %v2802, %v2788
  %v2804 = vadd.f32 %v2803, %v2789
  %v2805 = vadd.f32 %v2804, %v2790
  %v2806 = vadd.f32 %v2805, %v2791
  %v2807 = vrot.slane %v2806, 4
  %v2808 = vadd.f32 %v2806, %v2807
  %v2809 = vrot.slane %v2808, 2
  %v2810 = vadd.f32 %v2808, %v2809
  %v2811 = vrot.slane %v2810, 1
  %v2812 = vadd.f32 %v2810, %v2811
  %v2813 = vadd.f32 %v2743, %v2812
  %v2814 = vld [vmem:[#allocation2 + $0x400] sm:$0xff]
  %v2815 = vld [vmem:[#allocation2 + $0x408] sm:$0xff]
  %v2816 = vld [vmem:[#allocation2 + $0x410] sm:$0xff]
  %v2817 = vld [vmem:[#allocation2 + $0x418] sm:$0xff]
  %v2818 = vld [vmem:[#allocation2 + $0x420] sm:$0xff]
  %v2819 = vld [vmem:[#allocation2 + $0x428] sm:$0xff]
  %v2820 = vld [vmem:[#allocation2 + $0x430] sm:$0xff]
  %v2821 = vld [vmem:[#allocation2 + $0x438] sm:$0xff]
  %v2822 = vld [vmem:[#allocation2 + $0x440] sm:$0xff]
  %v2823 = vld [vmem:[#allocation2 + $0x448] sm:$0xff]
  %v2824 = vld [vmem:[#allocation2 + $0x450] sm:$0xff]
  %v2825 = vld [vmem:[#allocation2 + $0x458] sm:$0xff]
  %v2826 = vld [vmem:[#allocation2 + $0x460] sm:$0xff]
  %v2827 = vld [vmem:[#allocation2 + $0x468] sm:$0xff]
  %v2828 = vld [vmem:[#allocation2 + $0x470] sm:$0xff]
  %v2829 = vld [vmem:[#allocation2 + $0x478] sm:$0xff]
  %v2830 = vsub.f32 %v2814, %v2253
  %v2831 = vsub.f32 %v2815, %v2253
  %v2832 = vsub.f32 %v2816, %v2253
  %v2833 = vsub.f32 %v2817, %v2253
  %v2834 = vsub.f32 %v2818, %v2253
  %v2835 = vsub.f32 %v2819, %v2253
  %v2836 = vsub.f32 %v2820, %v2253
  %v2837 = vsub.f32 %v2821, %v2253
  %v2838 = vsub.f32 %v2822, %v2253
  %v2839 = vsub.f32 %v2823, %v2253
  %v2840 = vsub.f32 %v2824, %v2253
  %v2841 = vsub.f32 %v2825, %v2253
  %v2842 = vsub.f32 %v2826, %v2253
  %v2843 = vsub.f32 %v2827, %v2253
  %v2844 = vsub.f32 %v2828, %v2253
  %v2845 = vsub.f32 %v2829, %v2253
  %v2846 = vmul.f32 %v2830, %v2830
  %v2847 = vmul.f32 %v2831, %v2831
  %v2848 = vmul.f32 %v2832, %v2832
  %v2849 = vmul.f32 %v2833, %v2833
  %v2850 = vmul.f32 %v2834, %v2834
  %v2851 = vmul.f32 %v2835, %v2835
  %v2852 = vmul.f32 %v2836, %v2836
  %v2853 = vmul.f32 %v2837, %v2837
  %v2854 = vmul.f32 %v2838, %v2838
  %v2855 = vmul.f32 %v2839, %v2839
  %v2856 = vmul.f32 %v2840, %v2840
  %v2857 = vmul.f32 %v2841, %v2841
  %v2858 = vmul.f32 %v2842, %v2842
  %v2859 = vmul.f32 %v2843, %v2843
  %v2860 = vmul.f32 %v2844, %v2844
  %v2861 = vmul.f32 %v2845, %v2845
  %v2862 = vadd.f32 %v2846, %v2847
  %v2863 = vadd.f32 %v2862, %v2848
  %v2864 = vadd.f32 %v2863, %v2849
  %v2865 = vadd.f32 %v2864, %v2850
  %v2866 = vadd.f32 %v2865, %v2851
  %v2867 = vadd.f32 %v2866, %v2852
  %v2868 = vadd.f32 %v2867, %v2853
  %v2869 = vadd.f32 %v2868, %v2854
  %v2870 = vadd.f32 %v2869, %v2855
  %v2871 = vadd.f32 %v2870, %v2856
  %v2872 = vadd.f32 %v2871, %v2857
  %v2873 = vadd.f32 %v2872, %v2858
  %v2874 = vadd.f32 %v2873, %v2859
  %v2875 = vadd.f32 %v2874, %v2860
  %v2876 = vadd.f32 %v2875, %v2861
  %v2877 = vrot.slane %v2876, 4
  %v2878 = vadd.f32 %v2876, %v2877
  %v2879 = vrot.slane %v2878, 2
  %v2880 = vadd.f32 %v2878, %v2879
  %v2881 = vrot.slane %v2880, 1
  %v2882 = vadd.f32 %v2880, %v2881
  %v2883 = vadd.f32 %v2813, %v2882
  %v2884 = vmul.f32 %v2883, 0.00086805556
  %v2885 = vadd.f32 %v2884, 1e-05
  %v2886 = vrsqrt.pop %v2885
  %v2887 = vmul.f32 %v20, %v2886
  %v2888 = vmul.f32 %v2253, %v2887
  %v2890 = vrot.slane %v2888, 7
  %v2892 = vsub.f32 %v20, %v2890
  %v2893 = vlaneseq
  %v2894 = vshrl.u32 %v2893, 7
  %v2895 = vsub.s32 0, %v2894
  %v2896 = vrot.slane %v2887, %v2895
  %v2897 = vmul.f32 %v2254, %v2896
  %v2898 = vmul.f32 %v2255, %v2896
  %v2899 = vmul.f32 %v2256, %v2896
  %v2900 = vmul.f32 %v2257, %v2896
  %v2901 = vmul.f32 %v2258, %v2896
  %v2902 = vmul.f32 %v2259, %v2896
  %v2903 = vmul.f32 %v2260, %v2896
  %v2904 = vmul.f32 %v2261, %v2896
  %v2905 = vmul.f32 %v2262, %v2896
  %v2906 = vmul.f32 %v2263, %v2896
  %v2907 = vmul.f32 %v2264, %v2896
  %v2908 = vmul.f32 %v2265, %v2896
  %v2909 = vmul.f32 %v2266, %v2896
  %v2910 = vmul.f32 %v2267, %v2896
  %v2911 = vmul.f32 %v2268, %v2896
  %v2912 = vmul.f32 %v2269, %v2896
  %v2913 = vlaneseq
  %v2914 = vshrl.u32 %v2913, 7
  %v2915 = vsub.s32 1, %v2914
  %v2916 = vrot.slane %v2892, %v2915
  %v2917 = vadd.f32 %v2897, %v2916
  %v2918 = vadd.f32 %v2898, %v2916
  %v2919 = vadd.f32 %v2899, %v2916
  %v2920 = vadd.f32 %v2900, %v2916
  %v2921 = vadd.f32 %v2901, %v2916
  %v2922 = vadd.f32 %v2902, %v2916
  %v2923 = vadd.f32 %v2903, %v2916
  %v2924 = vadd.f32 %v2904, %v2916
  %v2925 = vadd.f32 %v2905, %v2916
  %v2926 = vadd.f32 %v2906, %v2916
  %v2927 = vadd.f32 %v2907, %v2916
  %v2928 = vadd.f32 %v2908, %v2916
  %v2929 = vadd.f32 %v2909, %v2916
  %v2930 = vadd.f32 %v2910, %v2916
  %v2931 = vadd.f32 %v2911, %v2916
  %v2932 = vadd.f32 %v2912, %v2916
  %v2933 = vmax.f32 %v2917, 0.0
  %v2934 = vmax.f32 %v2918, 0.0
  %v2935 = vmax.f32 %v2919, 0.0
  %v2936 = vmax.f32 %v2920, 0.0
  %v2937 = vmax.f32 %v2921, 0.0
  %v2938 = vmax.f32 %v2922, 0.0
  %v2939 = vmax.f32 %v2923, 0.0
  %v2940 = vmax.f32 %v2924, 0.0
  %v2941 = vmax.f32 %v2925, 0.0
  %v2942 = vmax.f32 %v2926, 0.0
  %v2943 = vmax.f32 %v2927, 0.0
  %v2944 = vmax.f32 %v2928, 0.0
  %v2945 = vmax.f32 %v2929, 0.0
  %v2946 = vmax.f32 %v2930, 0.0
  %v2947 = vmax.f32 %v2931, 0.0
  %v2948 = vmax.f32 %v2932, 0.0
  %2949 = vst [vmem:[#allocation2] sm:$0xff] %v2933
  %2950 = vst [vmem:[#allocation2 + $0x8] sm:$0xff] %v2934
  %2951 = vst [vmem:[#allocation2 + $0x10] sm:$0xff] %v2935
  %2952 = vst [vmem:[#allocation2 + $0x18] sm:$0xff] %v2936
  %2953 = vst [vmem:[#allocation2 + $0x20] sm:$0xff] %v2937
  %2954 = vst [vmem:[#allocation2 + $0x28] sm:$0xff] %v2938
  %2955 = vst [vmem:[#allocation2 + $0x30] sm:$0xff] %v2939
  %2956 = vst [vmem:[#allocation2 + $0x38] sm:$0xff] %v2940
  %2957 = vst [vmem:[#allocation2 + $0x40] sm:$0xff] %v2941
  %2958 = vst [vmem:[#allocation2 + $0x48] sm:$0xff] %v2942
  %2959 = vst [vmem:[#allocation2 + $0x50] sm:$0xff] %v2943
  %2960 = vst [vmem:[#allocation2 + $0x58] sm:$0xff] %v2944
  %2961 = vst [vmem:[#allocation2 + $0x60] sm:$0xff] %v2945
  %2962 = vst [vmem:[#allocation2 + $0x68] sm:$0xff] %v2946
  %2963 = vst [vmem:[#allocation2 + $0x70] sm:$0xff] %v2947
  %2964 = vst [vmem:[#allocation2 + $0x78] sm:$0xff] %v2948
  %v2965 = vld [vmem:[#allocation2 + $0x80] sm:$0xff]
  %v2966 = vld [vmem:[#allocation2 + $0x88] sm:$0xff]
  %v2967 = vld [vmem:[#allocation2 + $0x90] sm:$0xff]
  %v2968 = vld [vmem:[#allocation2 + $0x98] sm:$0xff]
  %v2969 = vld [vmem:[#allocation2 + $0xa0] sm:$0xff]
  %v2970 = vld [vmem:[#allocation2 + $0xa8] sm:$0xff]
  %v2971 = vld [vmem:[#allocation2 + $0xb0] sm:$0xff]
  %v2972 = vld [vmem:[#allocation2 + $0xb8] sm:$0xff]
  %v2973 = vld [vmem:[#allocation2 + $0xc0] sm:$0xff]
  %v2974 = vld [vmem:[#allocation2 + $0xc8] sm:$0xff]
  %v2975 = vld [vmem:[#allocation2 + $0xd0] sm:$0xff]
  %v2976 = vld [vmem:[#allocation2 + $0xd8] sm:$0xff]
  %v2977 = vld [vmem:[#allocation2 + $0xe0] sm:$0xff]
  %v2978 = vld [vmem:[#allocation2 + $0xe8] sm:$0xff]
  %v2979 = vld [vmem:[#allocation2 + $0xf0] sm:$0xff]
  %v2980 = vld [vmem:[#allocation2 + $0xf8] sm:$0xff]
  %v2981 = vmul.f32 %v2965, %v2896
  %v2982 = vmul.f32 %v2966, %v2896
  %v2983 = vmul.f32 %v2967, %v2896
  %v2984 = vmul.f32 %v2968, %v2896
  %v2985 = vmul.f32 %v2969, %v2896
  %v2986 = vmul.f32 %v2970, %v2896
  %v2987 = vmul.f32 %v2971, %v2896
  %v2988 = vmul.f32 %v2972, %v2896
  %v2989 = vmul.f32 %v2973, %v2896
  %v2990 = vmul.f32 %v2974, %v2896
  %v2991 = vmul.f32 %v2975, %v2896
  %v2992 = vmul.f32 %v2976, %v2896
  %v2993 = vmul.f32 %v2977, %v2896
  %v2994 = vmul.f32 %v2978, %v2896
  %v2995 = vmul.f32 %v2979, %v2896
  %v2996 = vmul.f32 %v2980, %v2896
  %v2997 = vadd.f32 %v2981, %v2916
  %v2998 = vadd.f32 %v2982, %v2916
  %v2999 = vadd.f32 %v2983, %v2916
  %v3000 = vadd.f32 %v2984, %v2916
  %v3001 = vadd.f32 %v2985, %v2916
  %v3002 = vadd.f32 %v2986, %v2916
  %v3003 = vadd.f32 %v2987, %v2916
  %v3004 = vadd.f32 %v2988, %v2916
  %v3005 = vadd.f32 %v2989, %v2916
  %v3006 = vadd.f32 %v2990, %v2916
  %v3007 = vadd.f32 %v2991, %v2916
  %v3008 = vadd.f32 %v2992, %v2916
  %v3009 = vadd.f32 %v2993, %v2916
  %v3010 = vadd.f32 %v2994, %v2916
  %v3011 = vadd.f32 %v2995, %v2916
  %v3012 = vadd.f32 %v2996, %v2916
  %v3013 = vmax.f32 %v2997, 0.0
  %v3014 = vmax.f32 %v2998, 0.0
  %v3015 = vmax.f32 %v2999, 0.0
  %v3016 = vmax.f32 %v3000, 0.0
  %v3017 = vmax.f32 %v3001, 0.0
  %v3018 = vmax.f32 %v3002, 0.0
  %v3019 = vmax.f32 %v3003, 0.0
  %v3020 = vmax.f32 %v3004, 0.0
  %v3021 = vmax.f32 %v3005, 0.0
  %v3022 = vmax.f32 %v3006, 0.0
  %v3023 = vmax.f32 %v3007, 0.0
  %v3024 = vmax.f32 %v3008, 0.0
  %v3025 = vmax.f32 %v3009, 0.0
  %v3026 = vmax.f32 %v3010, 0.0
  %v3027 = vmax.f32 %v3011, 0.0
  %v3028 = vmax.f32 %v3012, 0.0
  %3029 = vst [vmem:[#allocation2 + $0x80] sm:$0xff] %v3013
  %3030 = vst [vmem:[#allocation2 + $0x88] sm:$0xff] %v3014
  %3031 = vst [vmem:[#allocation2 + $0x90] sm:$0xff] %v3015
  %3032 = vst [vmem:[#allocation2 + $0x98] sm:$0xff] %v3016
  %3033 = vst [vmem:[#allocation2 + $0xa0] sm:$0xff] %v3017
  %3034 = vst [vmem:[#allocation2 + $0xa8] sm:$0xff] %v3018
  %3035 = vst [vmem:[#allocation2 + $0xb0] sm:$0xff] %v3019
  %3036 = vst [vmem:[#allocation2 + $0xb8] sm:$0xff] %v3020
  %3037 = vst [vmem:[#allocation2 + $0xc0] sm:$0xff] %v3021
  %3038 = vst [vmem:[#allocation2 + $0xc8] sm:$0xff] %v3022
  %3039 = vst [vmem:[#allocation2 + $0xd0] sm:$0xff] %v3023
  %3040 = vst [vmem:[#allocation2 + $0xd8] sm:$0xff] %v3024
  %3041 = vst [vmem:[#allocation2 + $0xe0] sm:$0xff] %v3025
  %3042 = vst [vmem:[#allocation2 + $0xe8] sm:$0xff] %v3026
  %3043 = vst [vmem:[#allocation2 + $0xf0] sm:$0xff] %v3027
  %3044 = vst [vmem:[#allocation2 + $0xf8] sm:$0xff] %v3028
  %v3045 = vld [vmem:[#allocation2 + $0x100] sm:$0xff]
  %v3046 = vld [vmem:[#allocation2 + $0x108] sm:$0xff]
  %v3047 = vld [vmem:[#allocation2 + $0x110] sm:$0xff]
  %v3048 = vld [vmem:[#allocation2 + $0x118] sm:$0xff]
  %v3049 = vld [vmem:[#allocation2 + $0x120] sm:$0xff]
  %v3050 = vld [vmem:[#allocation2 + $0x128] sm:$0xff]
  %v3051 = vld [vmem:[#allocation2 + $0x130] sm:$0xff]
  %v3052 = vld [vmem:[#allocation2 + $0x138] sm:$0xff]
  %v3053 = vld [vmem:[#allocation2 + $0x140] sm:$0xff]
  %v3054 = vld [vmem:[#allocation2 + $0x148] sm:$0xff]
  %v3055 = vld [vmem:[#allocation2 + $0x150] sm:$0xff]
  %v3056 = vld [vmem:[#allocation2 + $0x158] sm:$0xff]
  %v3057 = vld [vmem:[#allocation2 + $0x160] sm:$0xff]
  %v3058 = vld [vmem:[#allocation2 + $0x168] sm:$0xff]
  %v3059 = vld [vmem:[#allocation2 + $0x170] sm:$0xff]
  %v3060 = vld [vmem:[#allocation2 + $0x178] sm:$0xff]
  %v3061 = vmul.f32 %v3045, %v2896
  %v3062 = vmul.f32 %v3046, %v2896
  %v3063 = vmul.f32 %v3047, %v2896
  %v3064 = vmul.f32 %v3048, %v2896
  %v3065 = vmul.f32 %v3049, %v2896
  %v3066 = vmul.f32 %v3050, %v2896
  %v3067 = vmul.f32 %v3051, %v2896
  %v3068 = vmul.f32 %v3052, %v2896
  %v3069 = vmul.f32 %v3053, %v2896
  %v3070 = vmul.f32 %v3054, %v2896
  %v3071 = vmul.f32 %v3055, %v2896
  %v3072 = vmul.f32 %v3056, %v2896
  %v3073 = vmul.f32 %v3057, %v2896
  %v3074 = vmul.f32 %v3058, %v2896
  %v3075 = vmul.f32 %v3059, %v2896
  %v3076 = vmul.f32 %v3060, %v2896
  %v3077 = vadd.f32 %v3061, %v2916
  %v3078 = vadd.f32 %v3062, %v2916
  %v3079 = vadd.f32 %v3063, %v2916
  %v3080 = vadd.f32 %v3064, %v2916
  %v3081 = vadd.f32 %v3065, %v2916
  %v3082 = vadd.f32 %v3066, %v2916
  %v3083 = vadd.f32 %v3067, %v2916
  %v3084 = vadd.f32 %v3068, %v2916
  %v3085 = vadd.f32 %v3069, %v2916
  %v3086 = vadd.f32 %v3070, %v2916
  %v3087 = vadd.f32 %v3071, %v2916
  %v3088 = vadd.f32 %v3072, %v2916
  %v3089 = vadd.f32 %v3073, %v2916
  %v3090 = vadd.f32 %v3074, %v2916
  %v3091 = vadd.f32 %v3075, %v2916
  %v3092 = vadd.f32 %v3076, %v2916
  %v3093 = vmax.f32 %v3077, 0.0
  %v3094 = vmax.f32 %v3078, 0.0
  %v3095 = vmax.f32 %v3079, 0.0
  %v3096 = vmax.f32 %v3080, 0.0
  %v3097 = vmax.f32 %v3081, 0.0
  %v3098 = vmax.f32 %v3082, 0.0
  %v3099 = vmax.f32 %v3083, 0.0
  %v3100 = vmax.f32 %v3084, 0.0
  %v3101 = vmax.f32 %v3085, 0.0
  %v3102 = vmax.f32 %v3086, 0.0
  %v3103 = vmax.f32 %v3087, 0.0
  %v3104 = vmax.f32 %v3088, 0.0
  %v3105 = vmax.f32 %v3089, 0.0
  %v3106 = vmax.f32 %v3090, 0.0
  %v3107 = vmax.f32 %v3091, 0.0
  %v3108 = vmax.f32 %v3092, 0.0
  %3109 = vst [vmem:[#allocation2 + $0x100] sm:$0xff] %v3093
  %3110 = vst [vmem:[#allocation2 + $0x108] sm:$0xff] %v3094
  %3111 = vst [vmem:[#allocation2 + $0x110] sm:$0xff] %v3095
  %3112 = vst [vmem:[#allocation2 + $0x118] sm:$0xff] %v3096
  %3113 = vst [vmem:[#allocation2 + $0x120] sm:$0xff] %v3097
  %3114 = vst [vmem:[#allocation2 + $0x128] sm:$0xff] %v3098
  %3115 = vst [vmem:[#allocation2 + $0x130] sm:$0xff] %v3099
  %3116 = vst [vmem:[#allocation2 + $0x138] sm:$0xff] %v3100
  %3117 = vst [vmem:[#allocation2 + $0x140] sm:$0xff] %v3101
  %3118 = vst [vmem:[#allocation2 + $0x148] sm:$0xff] %v3102
  %3119 = vst [vmem:[#allocation2 + $0x150] sm:$0xff] %v3103
  %3120 = vst [vmem:[#allocation2 + $0x158] sm:$0xff] %v3104
  %3121 = vst [vmem:[#allocation2 + $0x160] sm:$0xff] %v3105
  %3122 = vst [vmem:[#allocation2 + $0x168] sm:$0xff] %v3106
  %3123 = vst [vmem:[#allocation2 + $0x170] sm:$0xff] %v3107
  %3124 = vst [vmem:[#allocation2 + $0x178] sm:$0xff] %v3108
  %v3125 = vld [vmem:[#allocation2 + $0x180] sm:$0xff]
  %v3126 = vld [vmem:[#allocation2 + $0x188] sm:$0xff]
  %v3127 = vld [vmem:[#allocation2 + $0x190] sm:$0xff]
  %v3128 = vld [vmem:[#allocation2 + $0x198] sm:$0xff]
  %v3129 = vld [vmem:[#allocation2 + $0x1a0] sm:$0xff]
  %v3130 = vld [vmem:[#allocation2 + $0x1a8] sm:$0xff]
  %v3131 = vld [vmem:[#allocation2 + $0x1b0] sm:$0xff]
  %v3132 = vld [vmem:[#allocation2 + $0x1b8] sm:$0xff]
  %v3133 = vld [vmem:[#allocation2 + $0x1c0] sm:$0xff]
  %v3134 = vld [vmem:[#allocation2 + $0x1c8] sm:$0xff]
  %v3135 = vld [vmem:[#allocation2 + $0x1d0] sm:$0xff]
  %v3136 = vld [vmem:[#allocation2 + $0x1d8] sm:$0xff]
  %v3137 = vld [vmem:[#allocation2 + $0x1e0] sm:$0xff]
  %v3138 = vld [vmem:[#allocation2 + $0x1e8] sm:$0xff]
  %v3139 = vld [vmem:[#allocation2 + $0x1f0] sm:$0xff]
  %v3140 = vld [vmem:[#allocation2 + $0x1f8] sm:$0xff]
  %v3141 = vmul.f32 %v3125, %v2896
  %v3142 = vmul.f32 %v3126, %v2896
  %v3143 = vmul.f32 %v3127, %v2896
  %v3144 = vmul.f32 %v3128, %v2896
  %v3145 = vmul.f32 %v3129, %v2896
  %v3146 = vmul.f32 %v3130, %v2896
  %v3147 = vmul.f32 %v3131, %v2896
  %v3148 = vmul.f32 %v3132, %v2896
  %v3149 = vmul.f32 %v3133, %v2896
  %v3150 = vmul.f32 %v3134, %v2896
  %v3151 = vmul.f32 %v3135, %v2896
  %v3152 = vmul.f32 %v3136, %v2896
  %v3153 = vmul.f32 %v3137, %v2896
  %v3154 = vmul.f32 %v3138, %v2896
  %v3155 = vmul.f32 %v3139, %v2896
  %v3156 = vmul.f32 %v3140, %v2896
  %v3157 = vadd.f32 %v3141, %v2916
  %v3158 = vadd.f32 %v3142, %v2916
  %v3159 = vadd.f32 %v3143, %v2916
  %v3160 = vadd.f32 %v3144, %v2916
  %v3161 = vadd.f32 %v3145, %v2916
  %v3162 = vadd.f32 %v3146, %v2916
  %v3163 = vadd.f32 %v3147, %v2916
  %v3164 = vadd.f32 %v3148, %v2916
  %v3165 = vadd.f32 %v3149, %v2916
  %v3166 = vadd.f32 %v3150, %v2916
  %v3167 = vadd.f32 %v3151, %v2916
  %v3168 = vadd.f32 %v3152, %v2916
  %v3169 = vadd.f32 %v3153, %v2916
  %v3170 = vadd.f32 %v3154, %v2916
  %v3171 = vadd.f32 %v3155, %v2916
  %v3172 = vadd.f32 %v3156, %v2916
  %v3173 = vmax.f32 %v3157, 0.0
  %v3174 = vmax.f32 %v3158, 0.0
  %v3175 = vmax.f32 %v3159, 0.0
  %v3176 = vmax.f32 %v3160, 0.0
  %v3177 = vmax.f32 %v3161, 0.0
  %v3178 = vmax.f32 %v3162, 0.0
  %v3179 = vmax.f32 %v3163, 0.0
  %v3180 = vmax.f32 %v3164, 0.0
  %v3181 = vmax.f32 %v3165, 0.0
  %v3182 = vmax.f32 %v3166, 0.0
  %v3183 = vmax.f32 %v3167, 0.0
  %v3184 = vmax.f32 %v3168, 0.0
  %v3185 = vmax.f32 %v3169, 0.0
  %v3186 = vmax.f32 %v3170, 0.0
  %v3187 = vmax.f32 %v3171, 0.0
  %v3188 = vmax.f32 %v3172, 0.0
  %3189 = vst [vmem:[#allocation2 + $0x180] sm:$0xff] %v3173
  %3190 = vst [vmem:[#allocation2 + $0x188] sm:$0xff] %v3174
  %3191 = vst [vmem:[#allocation2 + $0x190] sm:$0xff] %v3175
  %3192 = vst [vmem:[#allocation2 + $0x198] sm:$0xff] %v3176
  %3193 = vst [vmem:[#allocation2 + $0x1a0] sm:$0xff] %v3177
  %3194 = vst [vmem:[#allocation2 + $0x1a8] sm:$0xff] %v3178
  %3195 = vst [vmem:[#allocation2 + $0x1b0] sm:$0xff] %v3179
  %3196 = vst [vmem:[#allocation2 + $0x1b8] sm:$0xff] %v3180
  %3197 = vst [vmem:[#allocation2 + $0x1c0] sm:$0xff] %v3181
  %3198 = vst [vmem:[#allocation2 + $0x1c8] sm:$0xff] %v3182
  %3199 = vst [vmem:[#allocation2 + $0x1d0] sm:$0xff] %v3183
  %3200 = vst [vmem:[#allocation2 + $0x1d8] sm:$0xff] %v3184
  %3201 = vst [vmem:[#allocation2 + $0x1e0] sm:$0xff] %v3185
  %3202 = vst [vmem:[#allocation2 + $0x1e8] sm:$0xff] %v3186
  %3203 = vst [vmem:[#allocation2 + $0x1f0] sm:$0xff] %v3187
  %3204 = vst [vmem:[#allocation2 + $0x1f8] sm:$0xff] %v3188
  %v3205 = vld [vmem:[#allocation2 + $0x200] sm:$0xff]
  %v3206 = vld [vmem:[#allocation2 + $0x208] sm:$0xff]
  %v3207 = vld [vmem:[#allocation2 + $0x210] sm:$0xff]
  %v3208 = vld [vmem:[#allocation2 + $0x218] sm:$0xff]
  %v3209 = vld [vmem:[#allocation2 + $0x220] sm:$0xff]
  %v3210 = vld [vmem:[#allocation2 + $0x228] sm:$0xff]
  %v3211 = vld [vmem:[#allocation2 + $0x230] sm:$0xff]
  %v3212 = vld [vmem:[#allocation2 + $0x238] sm:$0xff]
  %v3213 = vld [vmem:[#allocation2 + $0x240] sm:$0xff]
  %v3214 = vld [vmem:[#allocation2 + $0x248] sm:$0xff]
  %v3215 = vld [vmem:[#allocation2 + $0x250] sm:$0xff]
  %v3216 = vld [vmem:[#allocation2 + $0x258] sm:$0xff]
  %v3217 = vld [vmem:[#allocation2 + $0x260] sm:$0xff]
  %v3218 = vld [vmem:[#allocation2 + $0x268] sm:$0xff]
  %v3219 = vld [vmem:[#allocation2 + $0x270] sm:$0xff]
  %v3220 = vld [vmem:[#allocation2 + $0x278] sm:$0xff]
  %v3221 = vmul.f32 %v3205, %v2896
  %v3222 = vmul.f32 %v3206, %v2896
  %v3223 = vmul.f32 %v3207, %v2896
  %v3224 = vmul.f32 %v3208, %v2896
  %v3225 = vmul.f32 %v3209, %v2896
  %v3226 = vmul.f32 %v3210, %v2896
  %v3227 = vmul.f32 %v3211, %v2896
  %v3228 = vmul.f32 %v3212, %v2896
  %v3229 = vmul.f32 %v3213, %v2896
  %v3230 = vmul.f32 %v3214, %v2896
  %v3231 = vmul.f32 %v3215, %v2896
  %v3232 = vmul.f32 %v3216, %v2896
  %v3233 = vmul.f32 %v3217, %v2896
  %v3234 = vmul.f32 %v3218, %v2896
  %v3235 = vmul.f32 %v3219, %v2896
  %v3236 = vmul.f32 %v3220, %v2896
  %v3237 = vadd.f32 %v3221, %v2916
  %v3238 = vadd.f32 %v3222, %v2916
  %v3239 = vadd.f32 %v3223, %v2916
  %v3240 = vadd.f32 %v3224, %v2916
  %v3241 = vadd.f32 %v3225, %v2916
  %v3242 = vadd.f32 %v3226, %v2916
  %v3243 = vadd.f32 %v3227, %v2916
  %v3244 = vadd.f32 %v3228, %v2916
  %v3245 = vadd.f32 %v3229, %v2916
  %v3246 = vadd.f32 %v3230, %v2916
  %v3247 = vadd.f32 %v3231, %v2916
  %v3248 = vadd.f32 %v3232, %v2916
  %v3249 = vadd.f32 %v3233, %v2916
  %v3250 = vadd.f32 %v3234, %v2916
  %v3251 = vadd.f32 %v3235, %v2916
  %v3252 = vadd.f32 %v3236, %v2916
  %v3253 = vmax.f32 %v3237, 0.0
  %v3254 = vmax.f32 %v3238, 0.0
  %v3255 = vmax.f32 %v3239, 0.0
  %v3256 = vmax.f32 %v3240, 0.0
  %v3257 = vmax.f32 %v3241, 0.0
  %v3258 = vmax.f32 %v3242, 0.0
  %v3259 = vmax.f32 %v3243, 0.0
  %v3260 = vmax.f32 %v3244, 0.0
  %v3261 = vmax.f32 %v3245, 0.0
  %v3262 = vmax.f32 %v3246, 0.0
  %v3263 = vmax.f32 %v3247, 0.0
  %v3264 = vmax.f32 %v3248, 0.0
  %v3265 = vmax.f32 %v3249, 0.0
  %v3266 = vmax.f32 %v3250, 0.0
  %v3267 = vmax.f32 %v3251, 0.0
  %v3268 = vmax.f32 %v3252, 0.0
  %3269 = vst [vmem:[#allocation2 + $0x200] sm:$0xff] %v3253
  %3270 = vst [vmem:[#allocation2 + $0x208] sm:$0xff] %v3254
  %3271 = vst [vmem:[#allocation2 + $0x210] sm:$0xff] %v3255
  %3272 = vst [vmem:[#allocation2 + $0x218] sm:$0xff] %v3256
  %3273 = vst [vmem:[#allocation2 + $0x220] sm:$0xff] %v3257
  %3274 = vst [vmem:[#allocation2 + $0x228] sm:$0xff] %v3258
  %3275 = vst [vmem:[#allocation2 + $0x230] sm:$0xff] %v3259
  %3276 = vst [vmem:[#allocation2 + $0x238] sm:$0xff] %v3260
  %3277 = vst [vmem:[#allocation2 + $0x240] sm:$0xff] %v3261
  %3278 = vst [vmem:[#allocation2 + $0x248] sm:$0xff] %v3262
  %3279 = vst [vmem:[#allocation2 + $0x250] sm:$0xff] %v3263
  %3280 = vst [vmem:[#allocation2 + $0x258] sm:$0xff] %v3264
  %3281 = vst [vmem:[#allocation2 + $0x260] sm:$0xff] %v3265
  %3282 = vst [vmem:[#allocation2 + $0x268] sm:$0xff] %v3266
  %3283 = vst [vmem:[#allocation2 + $0x270] sm:$0xff] %v3267
  %3284 = vst [vmem:[#allocation2 + $0x278] sm:$0xff] %v3268
  %v3285 = vld [vmem:[#allocation2 + $0x280] sm:$0xff]
  %v3286 = vld [vmem:[#allocation2 + $0x288] sm:$0xff]
  %v3287 = vld [vmem:[#allocation2 + $0x290] sm:$0xff]
  %v3288 = vld [vmem:[#allocation2 + $0x298] sm:$0xff]
  %v3289 = vld [vmem:[#allocation2 + $0x2a0] sm:$0xff]
  %v3290 = vld [vmem:[#allocation2 + $0x2a8] sm:$0xff]
  %v3291 = vld [vmem:[#allocation2 + $0x2b0] sm:$0xff]
  %v3292 = vld [vmem:[#allocation2 + $0x2b8] sm:$0xff]
  %v3293 = vld [vmem:[#allocation2 + $0x2c0] sm:$0xff]
  %v3294 = vld [vmem:[#allocation2 + $0x2c8] sm:$0xff]
  %v3295 = vld [vmem:[#allocation2 + $0x2d0] sm:$0xff]
  %v3296 = vld [vmem:[#allocation2 + $0x2d8] sm:$0xff]
  %v3297 = vld [vmem:[#allocation2 + $0x2e0] sm:$0xff]
  %v3298 = vld [vmem:[#allocation2 + $0x2e8] sm:$0xff]
  %v3299 = vld [vmem:[#allocation2 + $0x2f0] sm:$0xff]
  %v3300 = vld [vmem:[#allocation2 + $0x2f8] sm:$0xff]
  %v3301 = vmul.f32 %v3285, %v2896
  %v3302 = vmul.f32 %v3286, %v2896
  %v3303 = vmul.f32 %v3287, %v2896
  %v3304 = vmul.f32 %v3288, %v2896
  %v3305 = vmul.f32 %v3289, %v2896
  %v3306 = vmul.f32 %v3290, %v2896
  %v3307 = vmul.f32 %v3291, %v2896
  %v3308 = vmul.f32 %v3292, %v2896
  %v3309 = vmul.f32 %v3293, %v2896
  %v3310 = vmul.f32 %v3294, %v2896
  %v3311 = vmul.f32 %v3295, %v2896
  %v3312 = vmul.f32 %v3296, %v2896
  %v3313 = vmul.f32 %v3297, %v2896
  %v3314 = vmul.f32 %v3298, %v2896
  %v3315 = vmul.f32 %v3299, %v2896
  %v3316 = vmul.f32 %v3300, %v2896
  %v3317 = vadd.f32 %v3301, %v2916
  %v3318 = vadd.f32 %v3302, %v2916
  %v3319 = vadd.f32 %v3303, %v2916
  %v3320 = vadd.f32 %v3304, %v2916
  %v3321 = vadd.f32 %v3305, %v2916
  %v3322 = vadd.f32 %v3306, %v2916
  %v3323 = vadd.f32 %v3307, %v2916
  %v3324 = vadd.f32 %v3308, %v2916
  %v3325 = vadd.f32 %v3309, %v2916
  %v3326 = vadd.f32 %v3310, %v2916
  %v3327 = vadd.f32 %v3311, %v2916
  %v3328 = vadd.f32 %v3312, %v2916
  %v3329 = vadd.f32 %v3313, %v2916
  %v3330 = vadd.f32 %v3314, %v2916
  %v3331 = vadd.f32 %v3315, %v2916
  %v3332 = vadd.f32 %v3316, %v2916
  %v3333 = vmax.f32 %v3317, 0.0
  %v3334 = vmax.f32 %v3318, 0.0
  %v3335 = vmax.f32 %v3319, 0.0
  %v3336 = vmax.f32 %v3320, 0.0
  %v3337 = vmax.f32 %v3321, 0.0
  %v3338 = vmax.f32 %v3322, 0.0
  %v3339 = vmax.f32 %v3323, 0.0
  %v3340 = vmax.f32 %v3324, 0.0
  %v3341 = vmax.f32 %v3325, 0.0
  %v3342 = vmax.f32 %v3326, 0.0
  %v3343 = vmax.f32 %v3327, 0.0
  %v3344 = vmax.f32 %v3328, 0.0
  %v3345 = vmax.f32 %v3329, 0.0
  %v3346 = vmax.f32 %v3330, 0.0
  %v3347 = vmax.f32 %v3331, 0.0
  %v3348 = vmax.f32 %v3332, 0.0
  %3349 = vst [vmem:[#allocation2 + $0x280] sm:$0xff] %v3333
  %3350 = vst [vmem:[#allocation2 + $0x288] sm:$0xff] %v3334
  %3351 = vst [vmem:[#allocation2 + $0x290] sm:$0xff] %v3335
  %3352 = vst [vmem:[#allocation2 + $0x298] sm:$0xff] %v3336
  %3353 = vst [vmem:[#allocation2 + $0x2a0] sm:$0xff] %v3337
  %3354 = vst [vmem:[#allocation2 + $0x2a8] sm:$0xff] %v3338
  %3355 = vst [vmem:[#allocation2 + $0x2b0] sm:$0xff] %v3339
  %3356 = vst [vmem:[#allocation2 + $0x2b8] sm:$0xff] %v3340
  %3357 = vst [vmem:[#allocation2 + $0x2c0] sm:$0xff] %v3341
  %3358 = vst [vmem:[#allocation2 + $0x2c8] sm:$0xff] %v3342
  %3359 = vst [vmem:[#allocation2 + $0x2d0] sm:$0xff] %v3343
  %3360 = vst [vmem:[#allocation2 + $0x2d8] sm:$0xff] %v3344
  %3361 = vst [vmem:[#allocation2 + $0x2e0] sm:$0xff] %v3345
  %3362 = vst [vmem:[#allocation2 + $0x2e8] sm:$0xff] %v3346
  %3363 = vst [vmem:[#allocation2 + $0x2f0] sm:$0xff] %v3347
  %3364 = vst [vmem:[#allocation2 + $0x2f8] sm:$0xff] %v3348
  %v3365 = vld [vmem:[#allocation2 + $0x300] sm:$0xff]
  %v3366 = vld [vmem:[#allocation2 + $0x308] sm:$0xff]
  %v3367 = vld [vmem:[#allocation2 + $0x310] sm:$0xff]
  %v3368 = vld [vmem:[#allocation2 + $0x318] sm:$0xff]
  %v3369 = vld [vmem:[#allocation2 + $0x320] sm:$0xff]
  %v3370 = vld [vmem:[#allocation2 + $0x328] sm:$0xff]
  %v3371 = vld [vmem:[#allocation2 + $0x330] sm:$0xff]
  %v3372 = vld [vmem:[#allocation2 + $0x338] sm:$0xff]
  %v3373 = vld [vmem:[#allocation2 + $0x340] sm:$0xff]
  %v3374 = vld [vmem:[#allocation2 + $0x348] sm:$0xff]
  %v3375 = vld [vmem:[#allocation2 + $0x350] sm:$0xff]
  %v3376 = vld [vmem:[#allocation2 + $0x358] sm:$0xff]
  %v3377 = vld [vmem:[#allocation2 + $0x360] sm:$0xff]
  %v3378 = vld [vmem:[#allocation2 + $0x368] sm:$0xff]
  %v3379 = vld [vmem:[#allocation2 + $0x370] sm:$0xff]
  %v3380 = vld [vmem:[#allocation2 + $0x378] sm:$0xff]
  %v3381 = vmul.f32 %v3365, %v2896
  %v3382 = vmul.f32 %v3366, %v2896
  %v3383 = vmul.f32 %v3367, %v2896
  %v3384 = vmul.f32 %v3368, %v2896
  %v3385 = vmul.f32 %v3369, %v2896
  %v3386 = vmul.f32 %v3370, %v2896
  %v3387 = vmul.f32 %v3371, %v2896
  %v3388 = vmul.f32 %v3372, %v2896
  %v3389 = vmul.f32 %v3373, %v2896
  %v3390 = vmul.f32 %v3374, %v2896
  %v3391 = vmul.f32 %v3375, %v2896
  %v3392 = vmul.f32 %v3376, %v2896
  %v3393 = vmul.f32 %v3377, %v2896
  %v3394 = vmul.f32 %v3378, %v2896
  %v3395 = vmul.f32 %v3379, %v2896
  %v3396 = vmul.f32 %v3380, %v2896
  %v3397 = vadd.f32 %v3381, %v2916
  %v3398 = vadd.f32 %v3382, %v2916
  %v3399 = vadd.f32 %v3383, %v2916
  %v3400 = vadd.f32 %v3384, %v2916
  %v3401 = vadd.f32 %v3385, %v2916
  %v3402 = vadd.f32 %v3386, %v2916
  %v3403 = vadd.f32 %v3387, %v2916
  %v3404 = vadd.f32 %v3388, %v2916
  %v3405 = vadd.f32 %v3389, %v2916
  %v3406 = vadd.f32 %v3390, %v2916
  %v3407 = vadd.f32 %v3391, %v2916
  %v3408 = vadd.f32 %v3392, %v2916
  %v3409 = vadd.f32 %v3393, %v2916
  %v3410 = vadd.f32 %v3394, %v2916
  %v3411 = vadd.f32 %v3395, %v2916
  %v3412 = vadd.f32 %v3396, %v2916
  %v3413 = vmax.f32 %v3397, 0.0
  %v3414 = vmax.f32 %v3398, 0.0
  %v3415 = vmax.f32 %v3399, 0.0
  %v3416 = vmax.f32 %v3400, 0.0
  %v3417 = vmax.f32 %v3401, 0.0
  %v3418 = vmax.f32 %v3402, 0.0
  %v3419 = vmax.f32 %v3403, 0.0
  %v3420 = vmax.f32 %v3404, 0.0
  %v3421 = vmax.f32 %v3405, 0.0
  %v3422 = vmax.f32 %v3406, 0.0
  %v3423 = vmax.f32 %v3407, 0.0
  %v3424 = vmax.f32 %v3408, 0.0
  %v3425 = vmax.f32 %v3409, 0.0
  %v3426 = vmax.f32 %v3410, 0.0
  %v3427 = vmax.f32 %v3411, 0.0
  %v3428 = vmax.f32 %v3412, 0.0
  %3429 = vst [vmem:[#allocation2 + $0x300] sm:$0xff] %v3413
  %3430 = vst [vmem:[#allocation2 + $0x308] sm:$0xff] %v3414
  %3431 = vst [vmem:[#allocation2 + $0x310] sm:$0xff] %v3415
  %3432 = vst [vmem:[#allocation2 + $0x318] sm:$0xff] %v3416
  %3433 = vst [vmem:[#allocation2 + $0x320] sm:$0xff] %v3417
  %3434 = vst [vmem:[#allocation2 + $0x328] sm:$0xff] %v3418
  %3435 = vst [vmem:[#allocation2 + $0x330] sm:$0xff] %v3419
  %3436 = vst [vmem:[#allocation2 + $0x338] sm:$0xff] %v3420
  %3437 = vst [vmem:[#allocation2 + $0x340] sm:$0xff] %v3421
  %3438 = vst [vmem:[#allocation2 + $0x348] sm:$0xff] %v3422
  %3439 = vst [vmem:[#allocation2 + $0x350] sm:$0xff] %v3423
  %3440 = vst [vmem:[#allocation2 + $0x358] sm:$0xff] %v3424
  %3441 = vst [vmem:[#allocation2 + $0x360] sm:$0xff] %v3425
  %3442 = vst [vmem:[#allocation2 + $0x368] sm:$0xff] %v3426
  %3443 = vst [vmem:[#allocation2 + $0x370] sm:$0xff] %v3427
  %3444 = vst [vmem:[#allocation2 + $0x378] sm:$0xff] %v3428
  %v3445 = vld [vmem:[#allocation2 + $0x380] sm:$0xff]
  %v3446 = vld [vmem:[#allocation2 + $0x388] sm:$0xff]
  %v3447 = vld [vmem:[#allocation2 + $0x390] sm:$0xff]
  %v3448 = vld [vmem:[#allocation2 + $0x398] sm:$0xff]
  %v3449 = vld [vmem:[#allocation2 + $0x3a0] sm:$0xff]
  %v3450 = vld [vmem:[#allocation2 + $0x3a8] sm:$0xff]
  %v3451 = vld [vmem:[#allocation2 + $0x3b0] sm:$0xff]
  %v3452 = vld [vmem:[#allocation2 + $0x3b8] sm:$0xff]
  %v3453 = vld [vmem:[#allocation2 + $0x3c0] sm:$0xff]
  %v3454 = vld [vmem:[#allocation2 + $0x3c8] sm:$0xff]
  %v3455 = vld [vmem:[#allocation2 + $0x3d0] sm:$0xff]
  %v3456 = vld [vmem:[#allocation2 + $0x3d8] sm:$0xff]
  %v3457 = vld [vmem:[#allocation2 + $0x3e0] sm:$0xff]
  %v3458 = vld [vmem:[#allocation2 + $0x3e8] sm:$0xff]
  %v3459 = vld [vmem:[#allocation2 + $0x3f0] sm:$0xff]
  %v3460 = vld [vmem:[#allocation2 + $0x3f8] sm:$0xff]
  %v3461 = vmul.f32 %v3445, %v2896
  %v3462 = vmul.f32 %v3446, %v2896
  %v3463 = vmul.f32 %v3447, %v2896
  %v3464 = vmul.f32 %v3448, %v2896
  %v3465 = vmul.f32 %v3449, %v2896
  %v3466 = vmul.f32 %v3450, %v2896
  %v3467 = vmul.f32 %v3451, %v2896
  %v3468 = vmul.f32 %v3452, %v2896
  %v3469 = vmul.f32 %v3453, %v2896
  %v3470 = vmul.f32 %v3454, %v2896
  %v3471 = vmul.f32 %v3455, %v2896
  %v3472 = vmul.f32 %v3456, %v2896
  %v3473 = vmul.f32 %v3457, %v2896
  %v3474 = vmul.f32 %v3458, %v2896
  %v3475 = vmul.f32 %v3459, %v2896
  %v3476 = vmul.f32 %v3460, %v2896
  %v3477 = vadd.f32 %v3461, %v2916
  %v3478 = vadd.f32 %v3462, %v2916
  %v3479 = vadd.f32 %v3463, %v2916
  %v3480 = vadd.f32 %v3464, %v2916
  %v3481 = vadd.f32 %v3465, %v2916
  %v3482 = vadd.f32 %v3466, %v2916
  %v3483 = vadd.f32 %v3467, %v2916
  %v3484 = vadd.f32 %v3468, %v2916
  %v3485 = vadd.f32 %v3469, %v2916
  %v3486 = vadd.f32 %v3470, %v2916
  %v3487 = vadd.f32 %v3471, %v2916
  %v3488 = vadd.f32 %v3472, %v2916
  %v3489 = vadd.f32 %v3473, %v2916
  %v3490 = vadd.f32 %v3474, %v2916
  %v3491 = vadd.f32 %v3475, %v2916
  %v3492 = vadd.f32 %v3476, %v2916
  %v3493 = vmax.f32 %v3477, 0.0
  %v3494 = vmax.f32 %v3478, 0.0
  %v3495 = vmax.f32 %v3479, 0.0
  %v3496 = vmax.f32 %v3480, 0.0
  %v3497 = vmax.f32 %v3481, 0.0
  %v3498 = vmax.f32 %v3482, 0.0
  %v3499 = vmax.f32 %v3483, 0.0
  %v3500 = vmax.f32 %v3484, 0.0
  %v3501 = vmax.f32 %v3485, 0.0
  %v3502 = vmax.f32 %v3486, 0.0
  %v3503 = vmax.f32 %v3487, 0.0
  %v3504 = vmax.f32 %v3488, 0.0
  %v3505 = vmax.f32 %v3489, 0.0
  %v3506 = vmax.f32 %v3490, 0.0
  %v3507 = vmax.f32 %v3491, 0.0
  %v3508 = vmax.f32 %v3492, 0.0
  %3509 = vst [vmem:[#allocation2 + $0x380] sm:$0xff] %v3493
  %3510 = vst [vmem:[#allocation2 + $0x388] sm:$0xff] %v3494
  %3511 = vst [vmem:[#allocation2 + $0x390] sm:$0xff] %v3495
  %3512 = vst [vmem:[#allocation2 + $0x398] sm:$0xff] %v3496
  %3513 = vst [vmem:[#allocation2 + $0x3a0] sm:$0xff] %v3497
  %3514 = vst [vmem:[#allocation2 + $0x3a8] sm:$0xff] %v3498
  %3515 = vst [vmem:[#allocation2 + $0x3b0] sm:$0xff] %v3499
  %3516 = vst [vmem:[#allocation2 + $0x3b8] sm:$0xff] %v3500
  %3517 = vst [vmem:[#allocation2 + $0x3c0] sm:$0xff] %v3501
  %3518 = vst [vmem:[#allocation2 + $0x3c8] sm:$0xff] %v3502
  %3519 = vst [vmem:[#allocation2 + $0x3d0] sm:$0xff] %v3503
  %3520 = vst [vmem:[#allocation2 + $0x3d8] sm:$0xff] %v3504
  %3521 = vst [vmem:[#allocation2 + $0x3e0] sm:$0xff] %v3505
  %3522 = vst [vmem:[#allocation2 + $0x3e8] sm:$0xff] %v3506
  %3523 = vst [vmem:[#allocation2 + $0x3f0] sm:$0xff] %v3507
  %3524 = vst [vmem:[#allocation2 + $0x3f8] sm:$0xff] %v3508
  %v3525 = vld [vmem:[#allocation2 + $0x400] sm:$0xff]
  %v3526 = vld [vmem:[#allocation2 + $0x408] sm:$0xff]
  %v3527 = vld [vmem:[#allocation2 + $0x410] sm:$0xff]
  %v3528 = vld [vmem:[#allocation2 + $0x418] sm:$0xff]
  %v3529 = vld [vmem:[#allocation2 + $0x420] sm:$0xff]
  %v3530 = vld [vmem:[#allocation2 + $0x428] sm:$0xff]
  %v3531 = vld [vmem:[#allocation2 + $0x430] sm:$0xff]
  %v3532 = vld [vmem:[#allocation2 + $0x438] sm:$0xff]
  %v3533 = vld [vmem:[#allocation2 + $0x440] sm:$0xff]
  %v3534 = vld [vmem:[#allocation2 + $0x448] sm:$0xff]
  %v3535 = vld [vmem:[#allocation2 + $0x450] sm:$0xff]
  %v3536 = vld [vmem:[#allocation2 + $0x458] sm:$0xff]
  %v3537 = vld [vmem:[#allocation2 + $0x460] sm:$0xff]
  %v3538 = vld [vmem:[#allocation2 + $0x468] sm:$0xff]
  %v3539 = vld [vmem:[#allocation2 + $0x470] sm:$0xff]
  %v3540 = vld [vmem:[#allocation2 + $0x478] sm:$0xff]
  %v3541 = vmul.f32 %v3525, %v2896
  %v3542 = vmul.f32 %v3526, %v2896
  %v3543 = vmul.f32 %v3527, %v2896
  %v3544 = vmul.f32 %v3528, %v2896
  %v3545 = vmul.f32 %v3529, %v2896
  %v3546 = vmul.f32 %v3530, %v2896
  %v3547 = vmul.f32 %v3531, %v2896
  %v3548 = vmul.f32 %v3532, %v2896
  %v3549 = vmul.f32 %v3533, %v2896
  %v3550 = vmul.f32 %v3534, %v2896
  %v3551 = vmul.f32 %v3535, %v2896
  %v3552 = vmul.f32 %v3536, %v2896
  %v3553 = vmul.f32 %v3537, %v2896
  %v3554 = vmul.f32 %v3538, %v2896
  %v3555 = vmul.f32 %v3539, %v2896
  %v3556 = vmul.f32 %v3540, %v2896
  %v3557 = vadd.f32 %v3541, %v2916
  %v3558 = vadd.f32 %v3542, %v2916
  %v3559 = vadd.f32 %v3543, %v2916
  %v3560 = vadd.f32 %v3544, %v2916
  %v3561 = vadd.f32 %v3545, %v2916
  %v3562 = vadd.f32 %v3546, %v2916
  %v3563 = vadd.f32 %v3547, %v2916
  %v3564 = vadd.f32 %v3548, %v2916
  %v3565 = vadd.f32 %v3549, %v2916
  %v3566 = vadd.f32 %v3550, %v2916
  %v3567 = vadd.f32 %v3551, %v2916
  %v3568 = vadd.f32 %v3552, %v2916
  %v3569 = vadd.f32 %v3553, %v2916
  %v3570 = vadd.f32 %v3554, %v2916
  %v3571 = vadd.f32 %v3555, %v2916
  %v3572 = vadd.f32 %v3556, %v2916
  %v3573 = vmax.f32 %v3557, 0.0
  %v3574 = vmax.f32 %v3558, 0.0
  %v3575 = vmax.f32 %v3559, 0.0
  %v3576 = vmax.f32 %v3560, 0.0
  %v3577 = vmax.f32 %v3561, 0.0
  %v3578 = vmax.f32 %v3562, 0.0
  %v3579 = vmax.f32 %v3563, 0.0
  %v3580 = vmax.f32 %v3564, 0.0
  %v3581 = vmax.f32 %v3565, 0.0
  %v3582 = vmax.f32 %v3566, 0.0
  %v3583 = vmax.f32 %v3567, 0.0
  %v3584 = vmax.f32 %v3568, 0.0
  %v3585 = vmax.f32 %v3569, 0.0
  %v3586 = vmax.f32 %v3570, 0.0
  %v3587 = vmax.f32 %v3571, 0.0
  %v3588 = vmax.f32 %v3572, 0.0
  %3589 = vst [vmem:[#allocation2 + $0x400] sm:$0xff] %v3573
  %3590 = vst [vmem:[#allocation2 + $0x408] sm:$0xff] %v3574
  %3591 = vst [vmem:[#allocation2 + $0x410] sm:$0xff] %v3575
  %3592 = vst [vmem:[#allocation2 + $0x418] sm:$0xff] %v3576
  %3593 = vst [vmem:[#allocation2 + $0x420] sm:$0xff] %v3577
  %3594 = vst [vmem:[#allocation2 + $0x428] sm:$0xff] %v3578
  %3595 = vst [vmem:[#allocation2 + $0x430] sm:$0xff] %v3579
  %3596 = vst [vmem:[#allocation2 + $0x438] sm:$0xff] %v3580
  %3597 = vst [vmem:[#allocation2 + $0x440] sm:$0xff] %v3581
  %3598 = vst [vmem:[#allocation2 + $0x448] sm:$0xff] %v3582
  %3599 = vst [vmem:[#allocation2 + $0x450] sm:$0xff] %v3583
  %3600 = vst [vmem:[#allocation2 + $0x458] sm:$0xff] %v3584
  %3601 = vst [vmem:[#allocation2 + $0x460] sm:$0xff] %v3585
  %3602 = vst [vmem:[#allocation2 + $0x468] sm:$0xff] %v3586
  %3603 = vst [vmem:[#allocation2 + $0x470] sm:$0xff] %v3587
  %3604 = vst [vmem:[#allocation2 + $0x478] sm:$0xff] %v3588
  %v3605 = vld [vmem:[#allocation2] ss:$2 sm:$0xff]
  %s3606 = scalar_lea.vmem [#allocation2], 16
  %v3607 = vld [vmem:[%s3606] ss:$2 sm:$0xf]
  %s3608 = scalar_lea.vmem [#allocation2], 1
  %v3609 = vld [vmem:[%s3608] ss:$2 sm:$0xff]
  %s3610 = scalar_lea.vmem [#allocation2], 17
  %v3611 = vld [vmem:[%s3610] ss:$2 sm:$0xf]
  %s3612 = scalar_lea.vmem [#allocation2], 24
  %v3613 = vld [vmem:[%s3612] ss:$2 sm:$0xff]
  %s3614 = scalar_lea.vmem [#allocation2], 40
  %v3615 = vld [vmem:[%s3614] ss:$2 sm:$0xf]
  %s3616 = scalar_lea.vmem [#allocation2], 25
  %v3617 = vld [vmem:[%s3616] ss:$2 sm:$0xff]
  %s3618 = scalar_lea.vmem [#allocation2], 41
  %v3619 = vld [vmem:[%s3618] ss:$2 sm:$0xf]
  %v3620 = vmax.f32 %v3605, %v3609
  %v3621 = vmax.f32 %v3607, %v3611
  %v3622 = vmax.f32 %v3613, %v3617
  %v3623 = vmax.f32 %v3615, %v3619
  %v3624 = vmax.f32 %v3620, %v3622
  %v3625 = vmax.f32 %v3621, %v3623
  %vm3626 = vcmask 261120
  %3627 = vst.msk [vmem:[#allocation3] sm:$0xff] %vm3626, %v3624
  %vm3628 = vcmask 257024
  %3629 = vst.msk [vmem:[#allocation3 + $0x8] sm:$0xf] %vm3628, %v3625
  %s3630 = scalar_lea.vmem [#allocation2], 48
  %v3631 = vld [vmem:[%s3630] ss:$2 sm:$0xff]
  %s3632 = scalar_lea.vmem [#allocation2], 64
  %v3633 = vld [vmem:[%s3632] ss:$2 sm:$0xf]
  %s3634 = scalar_lea.vmem [#allocation2], 49
  %v3635 = vld [vmem:[%s3634] ss:$2 sm:$0xff]
  %s3636 = scalar_lea.vmem [#allocation2], 65
  %v3637 = vld [vmem:[%s3636] ss:$2 sm:$0xf]
  %s3638 = scalar_lea.vmem [#allocation2], 72
  %v3639 = vld [vmem:[%s3638] ss:$2 sm:$0xff]
  %s3640 = scalar_lea.vmem [#allocation2], 88
  %v3641 = vld [vmem:[%s3640] ss:$2 sm:$0xf]
  %s3642 = scalar_lea.vmem [#allocation2], 73
  %v3643 = vld [vmem:[%s3642] ss:$2 sm:$0xff]
  %s3644 = scalar_lea.vmem [#allocation2], 89
  %v3645 = vld [vmem:[%s3644] ss:$2 sm:$0xf]
  %v3646 = vmax.f32 %v3631, %v3635
  %v3647 = vmax.f32 %v3633, %v3637
  %v3648 = vmax.f32 %v3639, %v3643
  %v3649 = vmax.f32 %v3641, %v3645
  %v3650 = vmax.f32 %v3646, %v3648
  %v3651 = vmax.f32 %v3647, %v3649
  %3652 = vst.msk [vmem:[#allocation3 + $0xc] sm:$0xff] %vm3626, %v3650
  %3653 = vst.msk [vmem:[#allocation3 + $0x14] sm:$0xf] %vm3628, %v3651
  %s3654 = scalar_lea.vmem [#allocation2], 96
  %v3655 = vld [vmem:[%s3654] ss:$2 sm:$0xff]
  %s3656 = scalar_lea.vmem [#allocation2], 112
  %v3657 = vld [vmem:[%s3656] ss:$2 sm:$0xf]
  %s3658 = scalar_lea.vmem [#allocation2], 97
  %v3659 = vld [vmem:[%s3658] ss:$2 sm:$0xff]
  %s3660 = scalar_lea.vmem [#allocation2], 113
  %v3661 = vld [vmem:[%s3660] ss:$2 sm:$0xf]
  %s3662 = scalar_lea.vmem [#allocation2], 120
  %v3663 = vld [vmem:[%s3662] ss:$2 sm:$0xff]
  %s3664 = scalar_lea.vmem [#allocation2], 136
  %v3665 = vld [vmem:[%s3664] ss:$2 sm:$0xf]
  %s3666 = scalar_lea.vmem [#allocation2], 121
  %v3667 = vld [vmem:[%s3666] ss:$2 sm:$0xff]
  %s3668 = scalar_lea.vmem [#allocation2], 137
  %v3669 = vld [vmem:[%s3668] ss:$2 sm:$0xf]
  %v3670 = vmax.f32 %v3655, %v3659
  %v3671 = vmax.f32 %v3657, %v3661
  %v3672 = vmax.f32 %v3663, %v3667
  %v3673 = vmax.f32 %v3665, %v3669
  %v3674 = vmax.f32 %v3670, %v3672
  %v3675 = vmax.f32 %v3671, %v3673
  %3676 = vst.msk [vmem:[#allocation3 + $0x18] sm:$0xff] %vm3626, %v3674
  %3677 = vst.msk [vmem:[#allocation3 + $0x20] sm:$0xf] %vm3628, %v3675
  %s3678 = scalar_lea.vmem [#allocation2], 144
  %v3679 = vld [vmem:[%s3678] ss:$2 sm:$0xff]
  %s3680 = scalar_lea.vmem [#allocation2], 160
  %v3681 = vld [vmem:[%s3680] ss:$2 sm:$0xf]
  %s3682 = scalar_lea.vmem [#allocation2], 145
  %v3683 = vld [vmem:[%s3682] ss:$2 sm:$0xff]
  %s3684 = scalar_lea.vmem [#allocation2], 161
  %v3685 = vld [vmem:[%s3684] ss:$2 sm:$0xf]
  %s3686 = scalar_lea.vmem [#allocation2], 168
  %v3687 = vld [vmem:[%s3686] ss:$2 sm:$0xff]
  %s3688 = scalar_lea.vmem [#allocation2], 184
  %v3689 = vld [vmem:[%s3688] ss:$2 sm:$0xf]
  %s3690 = scalar_lea.vmem [#allocation2], 169
  %v3691 = vld [vmem:[%s3690] ss:$2 sm:$0xff]
  %s3692 = scalar_lea.vmem [#allocation2], 185
  %v3693 = vld [vmem:[%s3692] ss:$2 sm:$0xf]
  %v3694 = vmax.f32 %v3679, %v3683
  %v3695 = vmax.f32 %v3681, %v3685
  %v3696 = vmax.f32 %v3687, %v3691
  %v3697 = vmax.f32 %v3689, %v3693
  %v3698 = vmax.f32 %v3694, %v3696
  %v3699 = vmax.f32 %v3695, %v3697
  %3700 = vst.msk [vmem:[#allocation3 + $0x24] sm:$0xff] %vm3626, %v3698
  %3701 = vst.msk [vmem:[#allocation3 + $0x2c] sm:$0xf] %vm3628, %v3699
  %s3702 = scalar_lea.vmem [#allocation2], 192
  %v3703 = vld [vmem:[%s3702] ss:$2 sm:$0xff]
  %s3704 = scalar_lea.vmem [#allocation2], 208
  %v3705 = vld [vmem:[%s3704] ss:$2 sm:$0xf]
  %s3706 = scalar_lea.vmem [#allocation2], 193
  %v3707 = vld [vmem:[%s3706] ss:$2 sm:$0xff]
  %s3708 = scalar_lea.vmem [#allocation2], 209
  %v3709 = vld [vmem:[%s3708] ss:$2 sm:$0xf]
  %s3710 = scalar_lea.vmem [#allocation2], 216
  %v3711 = vld [vmem:[%s3710] ss:$2 sm:$0xff]
  %s3712 = scalar_lea.vmem [#allocation2], 232
  %v3713 = vld [vmem:[%s3712] ss:$2 sm:$0xf]
  %s3714 = scalar_lea.vmem [#allocation2], 217
  %v3715 = vld [vmem:[%s3714] ss:$2 sm:$0xff]
  %s3716 = scalar_lea.vmem [#allocation2], 233
  %v3717 = vld [vmem:[%s3716] ss:$2 sm:$0xf]
  %v3718 = vmax.f32 %v3703, %v3707
  %v3719 = vmax.f32 %v3705, %v3709
  %v3720 = vmax.f32 %v3711, %v3715
  %v3721 = vmax.f32 %v3713, %v3717
  %v3722 = vmax.f32 %v3718, %v3720
  %v3723 = vmax.f32 %v3719, %v3721
  %3724 = vst.msk [vmem:[#allocation3 + $0x30] sm:$0xff] %vm3626, %v3722
  %3725 = vst.msk [vmem:[#allocation3 + $0x38] sm:$0xf] %vm3628, %v3723
  %s3726 = scalar_lea.vmem [#allocation2], 240
  %v3727 = vld [vmem:[%s3726] ss:$2 sm:$0xff]
  %s3728 = scalar_lea.vmem [#allocation2], 256
  %v3729 = vld [vmem:[%s3728] ss:$2 sm:$0xf]
  %s3730 = scalar_lea.vmem [#allocation2], 241
  %v3731 = vld [vmem:[%s3730] ss:$2 sm:$0xff]
  %s3732 = scalar_lea.vmem [#allocation2], 257
  %v3733 = vld [vmem:[%s3732] ss:$2 sm:$0xf]
  %s3734 = scalar_lea.vmem [#allocation2], 264
  %v3735 = vld [vmem:[%s3734] ss:$2 sm:$0xff]
  %s3736 = scalar_lea.vmem [#allocation2], 280
  %v3737 = vld [vmem:[%s3736] ss:$2 sm:$0xf]
  %s3738 = scalar_lea.vmem [#allocation2], 265
  %v3739 = vld [vmem:[%s3738] ss:$2 sm:$0xff]
  %s3740 = scalar_lea.vmem [#allocation2], 281
  %v3741 = vld [vmem:[%s3740] ss:$2 sm:$0xf]
  %v3742 = vmax.f32 %v3727, %v3731
  %v3743 = vmax.f32 %v3729, %v3733
  %v3744 = vmax.f32 %v3735, %v3739
  %v3745 = vmax.f32 %v3737, %v3741
  %v3746 = vmax.f32 %v3742, %v3744
  %v3747 = vmax.f32 %v3743, %v3745
  %3748 = vst.msk [vmem:[#allocation3 + $0x3c] sm:$0xff] %vm3626, %v3746
  %3749 = vst.msk [vmem:[#allocation3 + $0x44] sm:$0xf] %vm3628, %v3747
  %s3750 = scalar_lea.vmem [#allocation2], 288
  %v3751 = vld [vmem:[%s3750] ss:$2 sm:$0xff]
  %s3752 = scalar_lea.vmem [#allocation2], 304
  %v3753 = vld [vmem:[%s3752] ss:$2 sm:$0xf]
  %s3754 = scalar_lea.vmem [#allocation2], 289
  %v3755 = vld [vmem:[%s3754] ss:$2 sm:$0xff]
  %s3756 = scalar_lea.vmem [#allocation2], 305
  %v3757 = vld [vmem:[%s3756] ss:$2 sm:$0xf]
  %s3758 = scalar_lea.vmem [#allocation2], 312
  %v3759 = vld [vmem:[%s3758] ss:$2 sm:$0xff]
  %s3760 = scalar_lea.vmem [#allocation2], 328
  %v3761 = vld [vmem:[%s3760] ss:$2 sm:$0xf]
  %s3762 = scalar_lea.vmem [#allocation2], 313
  %v3763 = vld [vmem:[%s3762] ss:$2 sm:$0xff]
  %s3764 = scalar_lea.vmem [#allocation2], 329
  %v3765 = vld [vmem:[%s3764] ss:$2 sm:$0xf]
  %v3766 = vmax.f32 %v3751, %v3755
  %v3767 = vmax.f32 %v3753, %v3757
  %v3768 = vmax.f32 %v3759, %v3763
  %v3769 = vmax.f32 %v3761, %v3765
  %v3770 = vmax.f32 %v3766, %v3768
  %v3771 = vmax.f32 %v3767, %v3769
  %3772 = vst.msk [vmem:[#allocation3 + $0x48] sm:$0xff] %vm3626, %v3770
  %3773 = vst.msk [vmem:[#allocation3 + $0x50] sm:$0xf] %vm3628, %v3771
  %s3774 = scalar_lea.vmem [#allocation2], 336
  %v3775 = vld [vmem:[%s3774] ss:$2 sm:$0xff]
  %s3776 = scalar_lea.vmem [#allocation2], 352
  %v3777 = vld [vmem:[%s3776] ss:$2 sm:$0xf]
  %s3778 = scalar_lea.vmem [#allocation2], 337
  %v3779 = vld [vmem:[%s3778] ss:$2 sm:$0xff]
  %s3780 = scalar_lea.vmem [#allocation2], 353
  %v3781 = vld [vmem:[%s3780] ss:$2 sm:$0xf]
  %s3782 = scalar_lea.vmem [#allocation2], 360
  %v3783 = vld [vmem:[%s3782] ss:$2 sm:$0xff]
  %s3784 = scalar_lea.vmem [#allocation2], 376
  %v3785 = vld [vmem:[%s3784] ss:$2 sm:$0xf]
  %s3786 = scalar_lea.vmem [#allocation2], 361
  %v3787 = vld [vmem:[%s3786] ss:$2 sm:$0xff]
  %s3788 = scalar_lea.vmem [#allocation2], 377
  %v3789 = vld [vmem:[%s3788] ss:$2 sm:$0xf]
  %v3790 = vmax.f32 %v3775, %v3779
  %v3791 = vmax.f32 %v3777, %v3781
  %v3792 = vmax.f32 %v3783, %v3787
  %v3793 = vmax.f32 %v3785, %v3789
  %v3794 = vmax.f32 %v3790, %v3792
  %v3795 = vmax.f32 %v3791, %v3793
  %3796 = vst.msk [vmem:[#allocation3 + $0x54] sm:$0xff] %vm3626, %v3794
  %3797 = vst.msk [vmem:[#allocation3 + $0x5c] sm:$0xf] %vm3628, %v3795
  %s3798 = scalar_lea.vmem [#allocation2], 384
  %v3799 = vld [vmem:[%s3798] ss:$2 sm:$0xff]
  %s3800 = scalar_lea.vmem [#allocation2], 400
  %v3801 = vld [vmem:[%s3800] ss:$2 sm:$0xf]
  %s3802 = scalar_lea.vmem [#allocation2], 385
  %v3803 = vld [vmem:[%s3802] ss:$2 sm:$0xff]
  %s3804 = scalar_lea.vmem [#allocation2], 401
  %v3805 = vld [vmem:[%s3804] ss:$2 sm:$0xf]
  %s3806 = scalar_lea.vmem [#allocation2], 408
  %v3807 = vld [vmem:[%s3806] ss:$2 sm:$0xff]
  %s3808 = scalar_lea.vmem [#allocation2], 424
  %v3809 = vld [vmem:[%s3808] ss:$2 sm:$0xf]
  %s3810 = scalar_lea.vmem [#allocation2], 409
  %v3811 = vld [vmem:[%s3810] ss:$2 sm:$0xff]
  %s3812 = scalar_lea.vmem [#allocation2], 425
  %v3813 = vld [vmem:[%s3812] ss:$2 sm:$0xf]
  %v3814 = vmax.f32 %v3799, %v3803
  %v3815 = vmax.f32 %v3801, %v3805
  %v3816 = vmax.f32 %v3807, %v3811
  %v3817 = vmax.f32 %v3809, %v3813
  %v3818 = vmax.f32 %v3814, %v3816
  %v3819 = vmax.f32 %v3815, %v3817
  %3820 = vst.msk [vmem:[#allocation3 + $0x60] sm:$0xff] %vm3626, %v3818
  %3821 = vst.msk [vmem:[#allocation3 + $0x68] sm:$0xf] %vm3628, %v3819
  %s3822 = scalar_lea.vmem [#allocation2], 432
  %v3823 = vld [vmem:[%s3822] ss:$2 sm:$0xff]
  %s3824 = scalar_lea.vmem [#allocation2], 448
  %v3825 = vld [vmem:[%s3824] ss:$2 sm:$0xf]
  %s3826 = scalar_lea.vmem [#allocation2], 433
  %v3827 = vld [vmem:[%s3826] ss:$2 sm:$0xff]
  %s3828 = scalar_lea.vmem [#allocation2], 449
  %v3829 = vld [vmem:[%s3828] ss:$2 sm:$0xf]
  %s3830 = scalar_lea.vmem [#allocation2], 456
  %v3831 = vld [vmem:[%s3830] ss:$2 sm:$0xff]
  %s3832 = scalar_lea.vmem [#allocation2], 472
  %v3833 = vld [vmem:[%s3832] ss:$2 sm:$0xf]
  %s3834 = scalar_lea.vmem [#allocation2], 457
  %v3835 = vld [vmem:[%s3834] ss:$2 sm:$0xff]
  %s3836 = scalar_lea.vmem [#allocation2], 473
  %v3837 = vld [vmem:[%s3836] ss:$2 sm:$0xf]
  %v3838 = vmax.f32 %v3823, %v3827
  %v3839 = vmax.f32 %v3825, %v3829
  %v3840 = vmax.f32 %v3831, %v3835
  %v3841 = vmax.f32 %v3833, %v3837
  %v3842 = vmax.f32 %v3838, %v3840
  %v3843 = vmax.f32 %v3839, %v3841
  %3844 = vst.msk [vmem:[#allocation3 + $0x6c] sm:$0xff] %vm3626, %v3842
  %3845 = vst.msk [vmem:[#allocation3 + $0x74] sm:$0xf] %vm3628, %v3843
  %s3846 = scalar_lea.vmem [#allocation2], 480
  %v3847 = vld [vmem:[%s3846] ss:$2 sm:$0xff]
  %s3848 = scalar_lea.vmem [#allocation2], 496
  %v3849 = vld [vmem:[%s3848] ss:$2 sm:$0xf]
  %s3850 = scalar_lea.vmem [#allocation2], 481
  %v3851 = vld [vmem:[%s3850] ss:$2 sm:$0xff]
  %s3852 = scalar_lea.vmem [#allocation2], 497
  %v3853 = vld [vmem:[%s3852] ss:$2 sm:$0xf]
  %s3854 = scalar_lea.vmem [#allocation2], 504
  %v3855 = vld [vmem:[%s3854] ss:$2 sm:$0xff]
  %s3856 = scalar_lea.vmem [#allocation2], 520
  %v3857 = vld [vmem:[%s3856] ss:$2 sm:$0xf]
  %s3858 = scalar_lea.vmem [#allocation2], 505
  %v3859 = vld [vmem:[%s3858] ss:$2 sm:$0xff]
  %s3860 = scalar_lea.vmem [#allocation2], 521
  %v3861 = vld [vmem:[%s3860] ss:$2 sm:$0xf]
  %v3862 = vmax.f32 %v3847, %v3851
  %v3863 = vmax.f32 %v3849, %v3853
  %v3864 = vmax.f32 %v3855, %v3859
  %v3865 = vmax.f32 %v3857, %v3861
  %v3866 = vmax.f32 %v3862, %v3864
  %v3867 = vmax.f32 %v3863, %v3865
  %3868 = vst.msk [vmem:[#allocation3 + $0x78] sm:$0xff] %vm3626, %v3866
  %3869 = vst.msk [vmem:[#allocation3 + $0x80] sm:$0xf] %vm3628, %v3867
  %s3870 = scalar_lea.vmem [#allocation2], 528
  %v3871 = vld [vmem:[%s3870] ss:$2 sm:$0xff]
  %s3872 = scalar_lea.vmem [#allocation2], 544
  %v3873 = vld [vmem:[%s3872] ss:$2 sm:$0xf]
  %s3874 = scalar_lea.vmem [#allocation2], 529
  %v3875 = vld [vmem:[%s3874] ss:$2 sm:$0xff]
  %s3876 = scalar_lea.vmem [#allocation2], 545
  %v3877 = vld [vmem:[%s3876] ss:$2 sm:$0xf]
  %s3878 = scalar_lea.vmem [#allocation2], 552
  %v3879 = vld [vmem:[%s3878] ss:$2 sm:$0xff]
  %s3880 = scalar_lea.vmem [#allocation2], 568
  %v3881 = vld [vmem:[%s3880] ss:$2 sm:$0xf]
  %s3882 = scalar_lea.vmem [#allocation2], 553
  %v3883 = vld [vmem:[%s3882] ss:$2 sm:$0xff]
  %s3884 = scalar_lea.vmem [#allocation2], 569
  %v3885 = vld [vmem:[%s3884] ss:$2 sm:$0xf]
  %v3886 = vmax.f32 %v3871, %v3875
  %v3887 = vmax.f32 %v3873, %v3877
  %v3888 = vmax.f32 %v3879, %v3883
  %v3889 = vmax.f32 %v3881, %v3885
  %v3890 = vmax.f32 %v3886, %v3888
  %v3891 = vmax.f32 %v3887, %v3889
  %3892 = vst.msk [vmem:[#allocation3 + $0x84] sm:$0xff] %vm3626, %v3890
  %3893 = vst.msk [vmem:[#allocation3 + $0x8c] sm:$0xf] %vm3628, %v3891
  %s3894 = scalar_lea.vmem [#allocation2], 576
  %v3895 = vld [vmem:[%s3894] ss:$2 sm:$0xff]
  %s3896 = scalar_lea.vmem [#allocation2], 592
  %v3897 = vld [vmem:[%s3896] ss:$2 sm:$0xf]
  %s3898 = scalar_lea.vmem [#allocation2], 577
  %v3899 = vld [vmem:[%s3898] ss:$2 sm:$0xff]
  %s3900 = scalar_lea.vmem [#allocation2], 593
  %v3901 = vld [vmem:[%s3900] ss:$2 sm:$0xf]
  %s3902 = scalar_lea.vmem [#allocation2], 600
  %v3903 = vld [vmem:[%s3902] ss:$2 sm:$0xff]
  %s3904 = scalar_lea.vmem [#allocation2], 616
  %v3905 = vld [vmem:[%s3904] ss:$2 sm:$0xf]
  %s3906 = scalar_lea.vmem [#allocation2], 601
  %v3907 = vld [vmem:[%s3906] ss:$2 sm:$0xff]
  %s3908 = scalar_lea.vmem [#allocation2], 617
  %v3909 = vld [vmem:[%s3908] ss:$2 sm:$0xf]
  %v3910 = vmax.f32 %v3895, %v3899
  %v3911 = vmax.f32 %v3897, %v3901
  %v3912 = vmax.f32 %v3903, %v3907
  %v3913 = vmax.f32 %v3905, %v3909
  %v3914 = vmax.f32 %v3910, %v3912
  %v3915 = vmax.f32 %v3911, %v3913
  %3916 = vst.msk [vmem:[#allocation3 + $0x90] sm:$0xff] %vm3626, %v3914
  %3917 = vst.msk [vmem:[#allocation3 + $0x98] sm:$0xf] %vm3628, %v3915
  %s3918 = scalar_lea.vmem [#allocation2], 624
  %v3919 = vld [vmem:[%s3918] ss:$2 sm:$0xff]
  %s3920 = scalar_lea.vmem [#allocation2], 640
  %v3921 = vld [vmem:[%s3920] ss:$2 sm:$0xf]
  %s3922 = scalar_lea.vmem [#allocation2], 625
  %v3923 = vld [vmem:[%s3922] ss:$2 sm:$0xff]
  %s3924 = scalar_lea.vmem [#allocation2], 641
  %v3925 = vld [vmem:[%s3924] ss:$2 sm:$0xf]
  %s3926 = scalar_lea.vmem [#allocation2], 648
  %v3927 = vld [vmem:[%s3926] ss:$2 sm:$0xff]
  %s3928 = scalar_lea.vmem [#allocation2], 664
  %v3929 = vld [vmem:[%s3928] ss:$2 sm:$0xf]
  %s3930 = scalar_lea.vmem [#allocation2], 649
  %v3931 = vld [vmem:[%s3930] ss:$2 sm:$0xff]
  %s3932 = scalar_lea.vmem [#allocation2], 665
  %v3933 = vld [vmem:[%s3932] ss:$2 sm:$0xf]
  %v3934 = vmax.f32 %v3919, %v3923
  %v3935 = vmax.f32 %v3921, %v3925
  %v3936 = vmax.f32 %v3927, %v3931
  %v3937 = vmax.f32 %v3929, %v3933
  %v3938 = vmax.f32 %v3934, %v3936
  %v3939 = vmax.f32 %v3935, %v3937
  %3940 = vst.msk [vmem:[#allocation3 + $0x9c] sm:$0xff] %vm3626, %v3938
  %3941 = vst.msk [vmem:[#allocation3 + $0xa4] sm:$0xf] %vm3628, %v3939
  %s3942 = scalar_lea.vmem [#allocation2], 672
  %v3943 = vld [vmem:[%s3942] ss:$2 sm:$0xff]
  %s3944 = scalar_lea.vmem [#allocation2], 688
  %v3945 = vld [vmem:[%s3944] ss:$2 sm:$0xf]
  %s3946 = scalar_lea.vmem [#allocation2], 673
  %v3947 = vld [vmem:[%s3946] ss:$2 sm:$0xff]
  %s3948 = scalar_lea.vmem [#allocation2], 689
  %v3949 = vld [vmem:[%s3948] ss:$2 sm:$0xf]
  %s3950 = scalar_lea.vmem [#allocation2], 696
  %v3951 = vld [vmem:[%s3950] ss:$2 sm:$0xff]
  %s3952 = scalar_lea.vmem [#allocation2], 712
  %v3953 = vld [vmem:[%s3952] ss:$2 sm:$0xf]
  %s3954 = scalar_lea.vmem [#allocation2], 697
  %v3955 = vld [vmem:[%s3954] ss:$2 sm:$0xff]
  %s3956 = scalar_lea.vmem [#allocation2], 713
  %v3957 = vld [vmem:[%s3956] ss:$2 sm:$0xf]
  %v3958 = vmax.f32 %v3943, %v3947
  %v3959 = vmax.f32 %v3945, %v3949
  %v3960 = vmax.f32 %v3951, %v3955
  %v3961 = vmax.f32 %v3953, %v3957
  %v3962 = vmax.f32 %v3958, %v3960
  %v3963 = vmax.f32 %v3959, %v3961
  %3964 = vst.msk [vmem:[#allocation3 + $0xa8] sm:$0xff] %vm3626, %v3962
  %3965 = vst.msk [vmem:[#allocation3 + $0xb0] sm:$0xf] %vm3628, %v3963
  %s3966 = scalar_lea.vmem [#allocation2], 720
  %v3967 = vld [vmem:[%s3966] ss:$2 sm:$0xff]
  %s3968 = scalar_lea.vmem [#allocation2], 736
  %v3969 = vld [vmem:[%s3968] ss:$2 sm:$0xf]
  %s3970 = scalar_lea.vmem [#allocation2], 721
  %v3971 = vld [vmem:[%s3970] ss:$2 sm:$0xff]
  %s3972 = scalar_lea.vmem [#allocation2], 737
  %v3973 = vld [vmem:[%s3972] ss:$2 sm:$0xf]
  %s3974 = scalar_lea.vmem [#allocation2], 744
  %v3975 = vld [vmem:[%s3974] ss:$2 sm:$0xff]
  %s3976 = scalar_lea.vmem [#allocation2], 760
  %v3977 = vld [vmem:[%s3976] ss:$2 sm:$0xf]
  %s3978 = scalar_lea.vmem [#allocation2], 745
  %v3979 = vld [vmem:[%s3978] ss:$2 sm:$0xff]
  %s3980 = scalar_lea.vmem [#allocation2], 761
  %v3981 = vld [vmem:[%s3980] ss:$2 sm:$0xf]
  %v3982 = vmax.f32 %v3967, %v3971
  %v3983 = vmax.f32 %v3969, %v3973
  %v3984 = vmax.f32 %v3975, %v3979
  %v3985 = vmax.f32 %v3977, %v3981
  %v3986 = vmax.f32 %v3982, %v3984
  %v3987 = vmax.f32 %v3983, %v3985
  %3988 = vst.msk [vmem:[#allocation3 + $0xb4] sm:$0xff] %vm3626, %v3986
  %3989 = vst.msk [vmem:[#allocation3 + $0xbc] sm:$0xf] %vm3628, %v3987
  %s3990 = scalar_lea.vmem [#allocation2], 768
  %v3991 = vld [vmem:[%s3990] ss:$2 sm:$0xff]
  %s3992 = scalar_lea.vmem [#allocation2], 784
  %v3993 = vld [vmem:[%s3992] ss:$2 sm:$0xf]
  %s3994 = scalar_lea.vmem [#allocation2], 769
  %v3995 = vld [vmem:[%s3994] ss:$2 sm:$0xff]
  %s3996 = scalar_lea.vmem [#allocation2], 785
  %v3997 = vld [vmem:[%s3996] ss:$2 sm:$0xf]
  %s3998 = scalar_lea.vmem [#allocation2], 792
  %v3999 = vld [vmem:[%s3998] ss:$2 sm:$0xff]
  %s4000 = scalar_lea.vmem [#allocation2], 808
  %v4001 = vld [vmem:[%s4000] ss:$2 sm:$0xf]
  %s4002 = scalar_lea.vmem [#allocation2], 793
  %v4003 = vld [vmem:[%s4002] ss:$2 sm:$0xff]
  %s4004 = scalar_lea.vmem [#allocation2], 809
  %v4005 = vld [vmem:[%s4004] ss:$2 sm:$0xf]
  %v4006 = vmax.f32 %v3991, %v3995
  %v4007 = vmax.f32 %v3993, %v3997
  %v4008 = vmax.f32 %v3999, %v4003
  %v4009 = vmax.f32 %v4001, %v4005
  %v4010 = vmax.f32 %v4006, %v4008
  %v4011 = vmax.f32 %v4007, %v4009
  %4012 = vst.msk [vmem:[#allocation3 + $0xc0] sm:$0xff] %vm3626, %v4010
  %4013 = vst.msk [vmem:[#allocation3 + $0xc8] sm:$0xf] %vm3628, %v4011
  %s4014 = scalar_lea.vmem [#allocation2], 816
  %v4015 = vld [vmem:[%s4014] ss:$2 sm:$0xff]
  %s4016 = scalar_lea.vmem [#allocation2], 832
  %v4017 = vld [vmem:[%s4016] ss:$2 sm:$0xf]
  %s4018 = scalar_lea.vmem [#allocation2], 817
  %v4019 = vld [vmem:[%s4018] ss:$2 sm:$0xff]
  %s4020 = scalar_lea.vmem [#allocation2], 833
  %v4021 = vld [vmem:[%s4020] ss:$2 sm:$0xf]
  %s4022 = scalar_lea.vmem [#allocation2], 840
  %v4023 = vld [vmem:[%s4022] ss:$2 sm:$0xff]
  %s4024 = scalar_lea.vmem [#allocation2], 856
  %v4025 = vld [vmem:[%s4024] ss:$2 sm:$0xf]
  %s4026 = scalar_lea.vmem [#allocation2], 841
  %v4027 = vld [vmem:[%s4026] ss:$2 sm:$0xff]
  %s4028 = scalar_lea.vmem [#allocation2], 857
  %v4029 = vld [vmem:[%s4028] ss:$2 sm:$0xf]
  %v4030 = vmax.f32 %v4015, %v4019
  %v4031 = vmax.f32 %v4017, %v4021
  %v4032 = vmax.f32 %v4023, %v4027
  %v4033 = vmax.f32 %v4025, %v4029
  %v4034 = vmax.f32 %v4030, %v4032
  %v4035 = vmax.f32 %v4031, %v4033
  %4036 = vst.msk [vmem:[#allocation3 + $0xcc] sm:$0xff] %vm3626, %v4034
  %4037 = vst.msk [vmem:[#allocation3 + $0xd4] sm:$0xf] %vm3628, %v4035
  %s4038 = scalar_lea.vmem [#allocation2], 864
  %v4039 = vld [vmem:[%s4038] ss:$2 sm:$0xff]
  %s4040 = scalar_lea.vmem [#allocation2], 880
  %v4041 = vld [vmem:[%s4040] ss:$2 sm:$0xf]
  %s4042 = scalar_lea.vmem [#allocation2], 865
  %v4043 = vld [vmem:[%s4042] ss:$2 sm:$0xff]
  %s4044 = scalar_lea.vmem [#allocation2], 881
  %v4045 = vld [vmem:[%s4044] ss:$2 sm:$0xf]
  %s4046 = scalar_lea.vmem [#allocation2], 888
  %v4047 = vld [vmem:[%s4046] ss:$2 sm:$0xff]
  %s4048 = scalar_lea.vmem [#allocation2], 904
  %v4049 = vld [vmem:[%s4048] ss:$2 sm:$0xf]
  %s4050 = scalar_lea.vmem [#allocation2], 889
  %v4051 = vld [vmem:[%s4050] ss:$2 sm:$0xff]
  %s4052 = scalar_lea.vmem [#allocation2], 905
  %v4053 = vld [vmem:[%s4052] ss:$2 sm:$0xf]
  %v4054 = vmax.f32 %v4039, %v4043
  %v4055 = vmax.f32 %v4041, %v4045
  %v4056 = vmax.f32 %v4047, %v4051
  %v4057 = vmax.f32 %v4049, %v4053
  %v4058 = vmax.f32 %v4054, %v4056
  %v4059 = vmax.f32 %v4055, %v4057
  %4060 = vst.msk [vmem:[#allocation3 + $0xd8] sm:$0xff] %vm3626, %v4058
  %4061 = vst.msk [vmem:[#allocation3 + $0xe0] sm:$0xf] %vm3628, %v4059
  %s4062 = scalar_lea.vmem [#allocation2], 912
  %v4063 = vld [vmem:[%s4062] ss:$2 sm:$0xff]
  %s4064 = scalar_lea.vmem [#allocation2], 928
  %v4065 = vld [vmem:[%s4064] ss:$2 sm:$0xf]
  %s4066 = scalar_lea.vmem [#allocation2], 913
  %v4067 = vld [vmem:[%s4066] ss:$2 sm:$0xff]
  %s4068 = scalar_lea.vmem [#allocation2], 929
  %v4069 = vld [vmem:[%s4068] ss:$2 sm:$0xf]
  %s4070 = scalar_lea.vmem [#allocation2], 936
  %v4071 = vld [vmem:[%s4070] ss:$2 sm:$0xff]
  %s4072 = scalar_lea.vmem [#allocation2], 952
  %v4073 = vld [vmem:[%s4072] ss:$2 sm:$0xf]
  %s4074 = scalar_lea.vmem [#allocation2], 937
  %v4075 = vld [vmem:[%s4074] ss:$2 sm:$0xff]
  %s4076 = scalar_lea.vmem [#allocation2], 953
  %v4077 = vld [vmem:[%s4076] ss:$2 sm:$0xf]
  %v4078 = vmax.f32 %v4063, %v4067
  %v4079 = vmax.f32 %v4065, %v4069
  %v4080 = vmax.f32 %v4071, %v4075
  %v4081 = vmax.f32 %v4073, %v4077
  %v4082 = vmax.f32 %v4078, %v4080
  %v4083 = vmax.f32 %v4079, %v4081
  %4084 = vst.msk [vmem:[#allocation3 + $0xe4] sm:$0xff] %vm3626, %v4082
  %4085 = vst.msk [vmem:[#allocation3 + $0xec] sm:$0xf] %vm3628, %v4083
  %s4086 = scalar_lea.vmem [#allocation2], 960
  %v4087 = vld [vmem:[%s4086] ss:$2 sm:$0xff]
  %s4088 = scalar_lea.vmem [#allocation2], 976
  %v4089 = vld [vmem:[%s4088] ss:$2 sm:$0xf]
  %s4090 = scalar_lea.vmem [#allocation2], 961
  %v4091 = vld [vmem:[%s4090] ss:$2 sm:$0xff]
  %s4092 = scalar_lea.vmem [#allocation2], 977
  %v4093 = vld [vmem:[%s4092] ss:$2 sm:$0xf]
  %s4094 = scalar_lea.vmem [#allocation2], 984
  %v4095 = vld [vmem:[%s4094] ss:$2 sm:$0xff]
  %s4096 = scalar_lea.vmem [#allocation2], 1000
  %v4097 = vld [vmem:[%s4096] ss:$2 sm:$0xf]
  %s4098 = scalar_lea.vmem [#allocation2], 985
  %v4099 = vld [vmem:[%s4098] ss:$2 sm:$0xff]
  %s4100 = scalar_lea.vmem [#allocation2], 1001
  %v4101 = vld [vmem:[%s4100] ss:$2 sm:$0xf]
  %v4102 = vmax.f32 %v4087, %v4091
  %v4103 = vmax.f32 %v4089, %v4093
  %v4104 = vmax.f32 %v4095, %v4099
  %v4105 = vmax.f32 %v4097, %v4101
  %v4106 = vmax.f32 %v4102, %v4104
  %v4107 = vmax.f32 %v4103, %v4105
  %4108 = vst.msk [vmem:[#allocation3 + $0xf0] sm:$0xff] %vm3626, %v4106
  %4109 = vst.msk [vmem:[#allocation3 + $0xf8] sm:$0xf] %vm3628, %v4107
  %s4110 = scalar_lea.vmem [#allocation2], 1008
  %v4111 = vld [vmem:[%s4110] ss:$2 sm:$0xff]
  %s4112 = scalar_lea.vmem [#allocation2], 1024
  %v4113 = vld [vmem:[%s4112] ss:$2 sm:$0xf]
  %s4114 = scalar_lea.vmem [#allocation2], 1009
  %v4115 = vld [vmem:[%s4114] ss:$2 sm:$0xff]
  %s4116 = scalar_lea.vmem [#allocation2], 1025
  %v4117 = vld [vmem:[%s4116] ss:$2 sm:$0xf]
  %s4118 = scalar_lea.vmem [#allocation2], 1032
  %v4119 = vld [vmem:[%s4118] ss:$2 sm:$0xff]
  %s4120 = scalar_lea.vmem [#allocation2], 1048
  %v4121 = vld [vmem:[%s4120] ss:$2 sm:$0xf]
  %s4122 = scalar_lea.vmem [#allocation2], 1033
  %v4123 = vld [vmem:[%s4122] ss:$2 sm:$0xff]
  %s4124 = scalar_lea.vmem [#allocation2], 1049
  %v4125 = vld [vmem:[%s4124] ss:$2 sm:$0xf]
  %v4126 = vmax.f32 %v4111, %v4115
  %v4127 = vmax.f32 %v4113, %v4117
  %v4128 = vmax.f32 %v4119, %v4123
  %v4129 = vmax.f32 %v4121, %v4125
  %v4130 = vmax.f32 %v4126, %v4128
  %v4131 = vmax.f32 %v4127, %v4129
  %4132 = vst.msk [vmem:[#allocation3 + $0xfc] sm:$0xff] %vm3626, %v4130
  %4133 = vst.msk [vmem:[#allocation3 + $0x104] sm:$0xf] %vm3628, %v4131
  %s4134 = scalar_lea.vmem [#allocation2], 1056
  %v4135 = vld [vmem:[%s4134] ss:$2 sm:$0xff]
  %s4136 = scalar_lea.vmem [#allocation2], 1072
  %v4137 = vld [vmem:[%s4136] ss:$2 sm:$0xf]
  %s4138 = scalar_lea.vmem [#allocation2], 1057
  %v4139 = vld [vmem:[%s4138] ss:$2 sm:$0xff]
  %s4140 = scalar_lea.vmem [#allocation2], 1073
  %v4141 = vld [vmem:[%s4140] ss:$2 sm:$0xf]
  %s4142 = scalar_lea.vmem [#allocation2], 1080
  %v4143 = vld [vmem:[%s4142] ss:$2 sm:$0xff]
  %s4144 = scalar_lea.vmem [#allocation2], 1096
  %v4145 = vld [vmem:[%s4144] ss:$2 sm:$0xf]
  %s4146 = scalar_lea.vmem [#allocation2], 1081
  %v4147 = vld [vmem:[%s4146] ss:$2 sm:$0xff]
  %s4148 = scalar_lea.vmem [#allocation2], 1097
  %v4149 = vld [vmem:[%s4148] ss:$2 sm:$0xf]
  %v4150 = vmax.f32 %v4135, %v4139
  %v4151 = vmax.f32 %v4137, %v4141
  %v4152 = vmax.f32 %v4143, %v4147
  %v4153 = vmax.f32 %v4145, %v4149
  %v4154 = vmax.f32 %v4150, %v4152
  %v4155 = vmax.f32 %v4151, %v4153
  %4156 = vst.msk [vmem:[#allocation3 + $0x108] sm:$0xff] %vm3626, %v4154
  %4157 = vst.msk [vmem:[#allocation3 + $0x110] sm:$0xf] %vm3628, %v4155
  %s4158 = scalar_lea.vmem [#allocation2], 1104
  %v4159 = vld [vmem:[%s4158] ss:$2 sm:$0xff]
  %s4160 = scalar_lea.vmem [#allocation2], 1120
  %v4161 = vld [vmem:[%s4160] ss:$2 sm:$0xf]
  %s4162 = scalar_lea.vmem [#allocation2], 1105
  %v4163 = vld [vmem:[%s4162] ss:$2 sm:$0xff]
  %s4164 = scalar_lea.vmem [#allocation2], 1121
  %v4165 = vld [vmem:[%s4164] ss:$2 sm:$0xf]
  %s4166 = scalar_lea.vmem [#allocation2], 1128
  %v4167 = vld [vmem:[%s4166] ss:$2 sm:$0xff]
  %s4168 = scalar_lea.vmem [#allocation2], 1144
  %v4169 = vld [vmem:[%s4168] ss:$2 sm:$0xf]
  %s4170 = scalar_lea.vmem [#allocation2], 1129
  %v4171 = vld [vmem:[%s4170] ss:$2 sm:$0xff]
  %s4172 = scalar_lea.vmem [#allocation2], 1145
  %v4173 = vld [vmem:[%s4172] ss:$2 sm:$0xf]
  %v4174 = vmax.f32 %v4159, %v4163
  %v4175 = vmax.f32 %v4161, %v4165
  %v4176 = vmax.f32 %v4167, %v4171
  %v4177 = vmax.f32 %v4169, %v4173
  %v4178 = vmax.f32 %v4174, %v4176
  %v4179 = vmax.f32 %v4175, %v4177
  %4180 = vst.msk [vmem:[#allocation3 + $0x114] sm:$0xff] %vm3626, %v4178
  %4181 = vst.msk [vmem:[#allocation3 + $0x11c] sm:$0xf] %vm3628, %v4179
  loop: start=0, step=1, limit=10
  $region22: #{encoder_forward.1} parent=0 // loop_pre_header
    _
  $region23: #{encoder_forward.1} parent=0 // loop_header
    %s4183 = sphi 0, %s4187
    %p4184 = scmp.ge.s32.totalorder %s4183, 10
    %v4188 = vphi 0.0, %v5027
  $region24: #{encoder_forward.1} parent=0 // loop_header_branch
    %4186 = sbr.rel (%p4184) target = $region28
  $region25: #{encoder_forward.1} parent=0 // loop_body
    %s4189 = smul.u32 %s4183, 12
    %s4190 = scalar_lea.vmem [#allocation3], %s4189
    %v4191 = vld [vmem:[%s4190] sm:$0xff]
    %v4192 = vld [vmem:[%s4190 + $0x8] sm:$0x3]
    %v4193 = vld [vmem:[%s2] sm:$0xff]
    %v4194 = vld [vmem:[%s2 + $0x8] sm:$0xff]
    %v4195 = vld [vmem:[%s2 + $0x10] sm:$0xff]
    %v4196 = vld [vmem:[%s2 + $0x18] sm:$0xff]
    %s4197 = sadd.s32 %s4189, 1
    %s4198 = scalar_lea.vmem [#allocation3], %s4197
    %v4199 = vld [vmem:[%s4198] sm:$0xff]
    %v4200 = vld [vmem:[%s4198 + $0x8] sm:$0x3]
    %s4201 = scalar_lea.vmem %s2, 32
    %v4202 = vld [vmem:[%s4201] sm:$0xff]
    %v4203 = vld [vmem:[%s4201 + $0x8] sm:$0xff]
    %v4204 = vld [vmem:[%s4201 + $0x10] sm:$0xff]
    %v4205 = vld [vmem:[%s4201 + $0x18] sm:$0xff]
    %v4207 = vsel %vm3626, %v4199, 0
    %v4210 = vsel %vm3626, %v4200, 0
    %4212 = vmatprep.subr.mxu0 0.0
    %4213 = vmatpush1.msra.mxu0 0.0
    %4214 = vmatprep.subr.mxu0 0.0
    %4215 = vmatpush1.msra.mxu0 0.0
    %4216 = vmatprep.subr.mxu0 0.0
    %4217 = vmatpush1.msra.mxu0 0.0
    %4218 = vmatprep.subr.mxu0 0.0
    %4219 = vmatpush1.msra.mxu0 0.0
    %4220 = vmatprep.subr.mxu0 0.0
    %4221 = vmatpush1.msra.mxu0 0.0
    %4222 = vmatprep.subr.mxu0 0.0
    %4223 = vmatpush1.msra.mxu0 0.0
    %4224 = vmatprep.subr.mxu0 0.0
    %4225 = vmatpush1.msra.mxu0 0.0
    %4226 = vmatprep.subr.mxu0 0.0
    %4227 = vmatpush1.msra.mxu0 0.0
    %4228 = vmatprep.subr.mxu0 0.0
    %4229 = vmatpush1.msra.mxu0 0.0
    %4230 = vmatprep.subr.mxu0 0.0
    %4231 = vmatpush1.msra.mxu0 0.0
    %4232 = vmatprep.subr.mxu0 0.0
    %4233 = vmatpush1.msra.mxu0 0.0
    %4234 = vmatprep.subr.mxu0 0.0
    %4235 = vmatpush1.msra.mxu0 0.0
    %4236 = vmatprep.subr.mxu0 0.0
    %4237 = vmatpush1.msra.mxu0 %v4205
    %4238 = vmatprep.subr.mxu0 0.0
    %4239 = vmatpush1.msra.mxu0 %v4204
    %4240 = vmatprep.subr.mxu0 0.0
    %4241 = vmatpush1.msra.mxu0 %v4203
    %4242 = vmatprep.subr.mxu0 0.0
    %4243 = vmatpush1.msra.mxu0 %v4202
    %4244 = vmatprep.subr.mxu0 0.0
    %4245 = vmatpush2.msra.mxu0 0.0
    %4246 = vmatprep.subr.mxu0 0.0
    %4247 = vmatpush2.msra.mxu0 0.0
    %4248 = vmatprep.subr.mxu0 0.0
    %4249 = vmatpush2.msra.mxu0 0.0
    %4250 = vmatprep.subr.mxu0 0.0
    %4251 = vmatpush2.msra.mxu0 0.0
    %4252 = vmatprep.subr.mxu0 0.0
    %4253 = vmatpush2.msra.mxu0 0.0
    %4254 = vmatprep.subr.mxu0 0.0
    %4255 = vmatpush2.msra.mxu0 0.0
    %4256 = vmatprep.subr.mxu0 0.0
    %4257 = vmatpush2.msra.mxu0 0.0
    %4258 = vmatprep.subr.mxu0 0.0
    %4259 = vmatpush2.msra.mxu0 0.0
    %4260 = vmatprep.subr.mxu0 0.0
    %4261 = vmatpush2.msra.mxu0 0.0
    %4262 = vmatprep.subr.mxu0 0.0
    %4263 = vmatpush2.msra.mxu0 0.0
    %4264 = vmatprep.subr.mxu0 0.0
    %4265 = vmatpush2.msra.mxu0 0.0
    %4266 = vmatprep.subr.mxu0 0.0
    %4267 = vmatpush2.msra.mxu0 0.0
    %4268 = vmatprep.subr.mxu0 0.0
    %4269 = vmatpush2.msra.mxu0 0.0
    %4270 = vmatprep.subr.mxu0 0.0
    %4271 = vmatpush2.msra.mxu0 0.0
    %4272 = vmatprep.subr.mxu0 0.0
    %4273 = vmatpush2.msra.mxu0 0.0
    %4274 = vmatprep.subr.mxu0 0.0
    %4275 = vmatpush2.msra.mxu0 0.0
    %4276 = vmatprep.mubr.f32.mxu0 0.0
    %4277 = vmatmul.mubr.f32.gmra.mxu0 %v4207
    %v4278 = vpop.f32.mrf.mxu0
    %v4279 = vadd.f32 0.0, %v4278
    %v4280 = vpop.f32.mrf.mxu0
    %4281 = vmatprep.mubr.f32.mxu0 0.0
    %4282 = vmatmul.mubr.f32.gmra.mxu0 %v4210
    %v4283 = vpop.f32.mrf.mxu0
    %v4284 = vadd.f32 0.0, %v4283
    %v4285 = vpop.f32.mrf.mxu0
    %4286 = vdwg.mxu0
    %v4288 = vsel %vm3626, %v4191, 0
    %v4291 = vsel %vm3626, %v4192, 0
    %4293 = vmatprep.subr.mxu0 0.0
    %4294 = vmatpush1.msra.mxu0 0.0
    %4295 = vmatprep.subr.mxu0 0.0
    %4296 = vmatpush1.msra.mxu0 0.0
    %4297 = vmatprep.subr.mxu0 0.0
    %4298 = vmatpush1.msra.mxu0 0.0
    %4299 = vmatprep.subr.mxu0 0.0
    %4300 = vmatpush1.msra.mxu0 0.0
    %4301 = vmatprep.subr.mxu0 0.0
    %4302 = vmatpush1.msra.mxu0 0.0
    %4303 = vmatprep.subr.mxu0 0.0
    %4304 = vmatpush1.msra.mxu0 0.0
    %4305 = vmatprep.subr.mxu0 0.0
    %4306 = vmatpush1.msra.mxu0 0.0
    %4307 = vmatprep.subr.mxu0 0.0
    %4308 = vmatpush1.msra.mxu0 0.0
    %4309 = vmatprep.subr.mxu0 0.0
    %4310 = vmatpush1.msra.mxu0 0.0
    %4311 = vmatprep.subr.mxu0 0.0
    %4312 = vmatpush1.msra.mxu0 0.0
    %4313 = vmatprep.subr.mxu0 0.0
    %4314 = vmatpush1.msra.mxu0 0.0
    %4315 = vmatprep.subr.mxu0 0.0
    %4316 = vmatpush1.msra.mxu0 0.0
    %4317 = vmatprep.subr.mxu0 0.0
    %4318 = vmatpush1.msra.mxu0 %v4196
    %4319 = vmatprep.subr.mxu0 0.0
    %4320 = vmatpush1.msra.mxu0 %v4195
    %4321 = vmatprep.subr.mxu0 0.0
    %4322 = vmatpush1.msra.mxu0 %v4194
    %4323 = vmatprep.subr.mxu0 0.0
    %4324 = vmatpush1.msra.mxu0 %v4193
    %4325 = vmatprep.subr.mxu0 0.0
    %4326 = vmatpush2.msra.mxu0 0.0
    %4327 = vmatprep.subr.mxu0 0.0
    %4328 = vmatpush2.msra.mxu0 0.0
    %4329 = vmatprep.subr.mxu0 0.0
    %4330 = vmatpush2.msra.mxu0 0.0
    %4331 = vmatprep.subr.mxu0 0.0
    %4332 = vmatpush2.msra.mxu0 0.0
    %4333 = vmatprep.subr.mxu0 0.0
    %4334 = vmatpush2.msra.mxu0 0.0
    %4335 = vmatprep.subr.mxu0 0.0
    %4336 = vmatpush2.msra.mxu0 0.0
    %4337 = vmatprep.subr.mxu0 0.0
    %4338 = vmatpush2.msra.mxu0 0.0
    %4339 = vmatprep.subr.mxu0 0.0
    %4340 = vmatpush2.msra.mxu0 0.0
    %4341 = vmatprep.subr.mxu0 0.0
    %4342 = vmatpush2.msra.mxu0 0.0
    %4343 = vmatprep.subr.mxu0 0.0
    %4344 = vmatpush2.msra.mxu0 0.0
    %4345 = vmatprep.subr.mxu0 0.0
    %4346 = vmatpush2.msra.mxu0 0.0
    %4347 = vmatprep.subr.mxu0 0.0
    %4348 = vmatpush2.msra.mxu0 0.0
    %4349 = vmatprep.subr.mxu0 0.0
    %4350 = vmatpush2.msra.mxu0 0.0
    %4351 = vmatprep.subr.mxu0 0.0
    %4352 = vmatpush2.msra.mxu0 0.0
    %4353 = vmatprep.subr.mxu0 0.0
    %4354 = vmatpush2.msra.mxu0 0.0
    %4355 = vmatprep.subr.mxu0 0.0
    %4356 = vmatpush2.msra.mxu0 0.0
    %4357 = vmatprep.mubr.f32.mxu0 0.0
    %4358 = vmatmul.mubr.f32.gmra.mxu0 %v4288
    %v4359 = vpop.f32.mrf.mxu0
    %v4360 = vadd.f32 %v4279, %v4359
    %v4361 = vpop.f32.mrf.mxu0
    %4362 = vmatprep.mubr.f32.mxu0 0.0
    %4363 = vmatmul.mubr.f32.gmra.mxu0 %v4291
    %v4364 = vpop.f32.mrf.mxu0
    %v4365 = vadd.f32 %v4284, %v4364
    %v4366 = vpop.f32.mrf.mxu0
    %4367 = vdwg.mxu0
    %s4368 = sadd.s32 %s4189, 2
    %s4369 = scalar_lea.vmem [#allocation3], %s4368
    %v4370 = vld [vmem:[%s4369] sm:$0xff]
    %v4371 = vld [vmem:[%s4369 + $0x8] sm:$0x3]
    %s4372 = scalar_lea.vmem %s2, 64
    %v4373 = vld [vmem:[%s4372] sm:$0xff]
    %v4374 = vld [vmem:[%s4372 + $0x8] sm:$0xff]
    %v4375 = vld [vmem:[%s4372 + $0x10] sm:$0xff]
    %v4376 = vld [vmem:[%s4372 + $0x18] sm:$0xff]
    %v4378 = vsel %vm3626, %v4370, 0
    %v4381 = vsel %vm3626, %v4371, 0
    %4383 = vmatprep.subr.mxu0 0.0
    %4384 = vmatpush1.msra.mxu0 0.0
    %4385 = vmatprep.subr.mxu0 0.0
    %4386 = vmatpush1.msra.mxu0 0.0
    %4387 = vmatprep.subr.mxu0 0.0
    %4388 = vmatpush1.msra.mxu0 0.0
    %4389 = vmatprep.subr.mxu0 0.0
    %4390 = vmatpush1.msra.mxu0 0.0
    %4391 = vmatprep.subr.mxu0 0.0
    %4392 = vmatpush1.msra.mxu0 0.0
    %4393 = vmatprep.subr.mxu0 0.0
    %4394 = vmatpush1.msra.mxu0 0.0
    %4395 = vmatprep.subr.mxu0 0.0
    %4396 = vmatpush1.msra.mxu0 0.0
    %4397 = vmatprep.subr.mxu0 0.0
    %4398 = vmatpush1.msra.mxu0 0.0
    %4399 = vmatprep.subr.mxu0 0.0
    %4400 = vmatpush1.msra.mxu0 0.0
    %4401 = vmatprep.subr.mxu0 0.0
    %4402 = vmatpush1.msra.mxu0 0.0
    %4403 = vmatprep.subr.mxu0 0.0
    %4404 = vmatpush1.msra.mxu0 0.0
    %4405 = vmatprep.subr.mxu0 0.0
    %4406 = vmatpush1.msra.mxu0 0.0
    %4407 = vmatprep.subr.mxu0 0.0
    %4408 = vmatpush1.msra.mxu0 %v4376
    %4409 = vmatprep.subr.mxu0 0.0
    %4410 = vmatpush1.msra.mxu0 %v4375
    %4411 = vmatprep.subr.mxu0 0.0
    %4412 = vmatpush1.msra.mxu0 %v4374
    %4413 = vmatprep.subr.mxu0 0.0
    %4414 = vmatpush1.msra.mxu0 %v4373
    %4415 = vmatprep.subr.mxu0 0.0
    %4416 = vmatpush2.msra.mxu0 0.0
    %4417 = vmatprep.subr.mxu0 0.0
    %4418 = vmatpush2.msra.mxu0 0.0
    %4419 = vmatprep.subr.mxu0 0.0
    %4420 = vmatpush2.msra.mxu0 0.0
    %4421 = vmatprep.subr.mxu0 0.0
    %4422 = vmatpush2.msra.mxu0 0.0
    %4423 = vmatprep.subr.mxu0 0.0
    %4424 = vmatpush2.msra.mxu0 0.0
    %4425 = vmatprep.subr.mxu0 0.0
    %4426 = vmatpush2.msra.mxu0 0.0
    %4427 = vmatprep.subr.mxu0 0.0
    %4428 = vmatpush2.msra.mxu0 0.0
    %4429 = vmatprep.subr.mxu0 0.0
    %4430 = vmatpush2.msra.mxu0 0.0
    %4431 = vmatprep.subr.mxu0 0.0
    %4432 = vmatpush2.msra.mxu0 0.0
    %4433 = vmatprep.subr.mxu0 0.0
    %4434 = vmatpush2.msra.mxu0 0.0
    %4435 = vmatprep.subr.mxu0 0.0
    %4436 = vmatpush2.msra.mxu0 0.0
    %4437 = vmatprep.subr.mxu0 0.0
    %4438 = vmatpush2.msra.mxu0 0.0
    %4439 = vmatprep.subr.mxu0 0.0
    %4440 = vmatpush2.msra.mxu0 0.0
    %4441 = vmatprep.subr.mxu0 0.0
    %4442 = vmatpush2.msra.mxu0 0.0
    %4443 = vmatprep.subr.mxu0 0.0
    %4444 = vmatpush2.msra.mxu0 0.0
    %4445 = vmatprep.subr.mxu0 0.0
    %4446 = vmatpush2.msra.mxu0 0.0
    %4447 = vmatprep.mubr.f32.mxu0 0.0
    %4448 = vmatmul.mubr.f32.gmra.mxu0 %v4378
    %v4449 = vpop.f32.mrf.mxu0
    %v4450 = vadd.f32 0.0, %v4449
    %v4451 = vpop.f32.mrf.mxu0
    %4452 = vmatprep.mubr.f32.mxu0 0.0
    %4453 = vmatmul.mubr.f32.gmra.mxu0 %v4381
    %v4454 = vpop.f32.mrf.mxu0
    %v4455 = vadd.f32 0.0, %v4454
    %v4456 = vpop.f32.mrf.mxu0
    %4457 = vdwg.mxu0
    %v4458 = vadd.f32 %v4360, %v4450
    %v4459 = vadd.f32 %v4365, %v4455
    %s4460 = sadd.s32 %s4183, 1
    %s4461 = smul.u32 %s4460, 12
    %s4462 = scalar_lea.vmem [#allocation3], %s4461
    %v4463 = vld [vmem:[%s4462] sm:$0xff]
    %v4464 = vld [vmem:[%s4462 + $0x8] sm:$0x3]
    %s4465 = scalar_lea.vmem %s2, 96
    %v4466 = vld [vmem:[%s4465] sm:$0xff]
    %v4467 = vld [vmem:[%s4465 + $0x8] sm:$0xff]
    %v4468 = vld [vmem:[%s4465 + $0x10] sm:$0xff]
    %v4469 = vld [vmem:[%s4465 + $0x18] sm:$0xff]
    %v4471 = vsel %vm3626, %v4463, 0
    %v4474 = vsel %vm3626, %v4464, 0
    %4476 = vmatprep.subr.mxu0 0.0
    %4477 = vmatpush1.msra.mxu0 0.0
    %4478 = vmatprep.subr.mxu0 0.0
    %4479 = vmatpush1.msra.mxu0 0.0
    %4480 = vmatprep.subr.mxu0 0.0
    %4481 = vmatpush1.msra.mxu0 0.0
    %4482 = vmatprep.subr.mxu0 0.0
    %4483 = vmatpush1.msra.mxu0 0.0
    %4484 = vmatprep.subr.mxu0 0.0
    %4485 = vmatpush1.msra.mxu0 0.0
    %4486 = vmatprep.subr.mxu0 0.0
    %4487 = vmatpush1.msra.mxu0 0.0
    %4488 = vmatprep.subr.mxu0 0.0
    %4489 = vmatpush1.msra.mxu0 0.0
    %4490 = vmatprep.subr.mxu0 0.0
    %4491 = vmatpush1.msra.mxu0 0.0
    %4492 = vmatprep.subr.mxu0 0.0
    %4493 = vmatpush1.msra.mxu0 0.0
    %4494 = vmatprep.subr.mxu0 0.0
    %4495 = vmatpush1.msra.mxu0 0.0
    %4496 = vmatprep.subr.mxu0 0.0
    %4497 = vmatpush1.msra.mxu0 0.0
    %4498 = vmatprep.subr.mxu0 0.0
    %4499 = vmatpush1.msra.mxu0 0.0
    %4500 = vmatprep.subr.mxu0 0.0
    %4501 = vmatpush1.msra.mxu0 %v4469
    %4502 = vmatprep.subr.mxu0 0.0
    %4503 = vmatpush1.msra.mxu0 %v4468
    %4504 = vmatprep.subr.mxu0 0.0
    %4505 = vmatpush1.msra.mxu0 %v4467
    %4506 = vmatprep.subr.mxu0 0.0
    %4507 = vmatpush1.msra.mxu0 %v4466
    %4508 = vmatprep.subr.mxu0 0.0
    %4509 = vmatpush2.msra.mxu0 0.0
    %4510 = vmatprep.subr.mxu0 0.0
    %4511 = vmatpush2.msra.mxu0 0.0
    %4512 = vmatprep.subr.mxu0 0.0
    %4513 = vmatpush2.msra.mxu0 0.0
    %4514 = vmatprep.subr.mxu0 0.0
    %4515 = vmatpush2.msra.mxu0 0.0
    %4516 = vmatprep.subr.mxu0 0.0
    %4517 = vmatpush2.msra.mxu0 0.0
    %4518 = vmatprep.subr.mxu0 0.0
    %4519 = vmatpush2.msra.mxu0 0.0
    %4520 = vmatprep.subr.mxu0 0.0
    %4521 = vmatpush2.msra.mxu0 0.0
    %4522 = vmatprep.subr.mxu0 0.0
    %4523 = vmatpush2.msra.mxu0 0.0
    %4524 = vmatprep.subr.mxu0 0.0
    %4525 = vmatpush2.msra.mxu0 0.0
    %4526 = vmatprep.subr.mxu0 0.0
    %4527 = vmatpush2.msra.mxu0 0.0
    %4528 = vmatprep.subr.mxu0 0.0
    %4529 = vmatpush2.msra.mxu0 0.0
    %4530 = vmatprep.subr.mxu0 0.0
    %4531 = vmatpush2.msra.mxu0 0.0
    %4532 = vmatprep.subr.mxu0 0.0
    %4533 = vmatpush2.msra.mxu0 0.0
    %4534 = vmatprep.subr.mxu0 0.0
    %4535 = vmatpush2.msra.mxu0 0.0
    %4536 = vmatprep.subr.mxu0 0.0
    %4537 = vmatpush2.msra.mxu0 0.0
    %4538 = vmatprep.subr.mxu0 0.0
    %4539 = vmatpush2.msra.mxu0 0.0
    %4540 = vmatprep.mubr.f32.mxu0 0.0
    %4541 = vmatmul.mubr.f32.gmra.mxu0 %v4471
    %v4542 = vpop.f32.mrf.mxu0
    %v4543 = vadd.f32 0.0, %v4542
    %v4544 = vpop.f32.mrf.mxu0
    %4545 = vmatprep.mubr.f32.mxu0 0.0
    %4546 = vmatmul.mubr.f32.gmra.mxu0 %v4474
    %v4547 = vpop.f32.mrf.mxu0
    %v4548 = vadd.f32 0.0, %v4547
    %v4549 = vpop.f32.mrf.mxu0
    %4550 = vdwg.mxu0
    %v4551 = vadd.f32 %v4458, %v4543
    %v4552 = vadd.f32 %v4459, %v4548
    %s4553 = sadd.s32 %s4461, 1
    %s4554 = scalar_lea.vmem [#allocation3], %s4553
    %v4555 = vld [vmem:[%s4554] sm:$0xff]
    %v4556 = vld [vmem:[%s4554 + $0x8] sm:$0x3]
    %s4557 = scalar_lea.vmem %s2, 128
    %v4558 = vld [vmem:[%s4557] sm:$0xff]
    %v4559 = vld [vmem:[%s4557 + $0x8] sm:$0xff]
    %v4560 = vld [vmem:[%s4557 + $0x10] sm:$0xff]
    %v4561 = vld [vmem:[%s4557 + $0x18] sm:$0xff]
    %v4563 = vsel %vm3626, %v4555, 0
    %v4566 = vsel %vm3626, %v4556, 0
    %4568 = vmatprep.subr.mxu0 0.0
    %4569 = vmatpush1.msra.mxu0 0.0
    %4570 = vmatprep.subr.mxu0 0.0
    %4571 = vmatpush1.msra.mxu0 0.0
    %4572 = vmatprep.subr.mxu0 0.0
    %4573 = vmatpush1.msra.mxu0 0.0
    %4574 = vmatprep.subr.mxu0 0.0
    %4575 = vmatpush1.msra.mxu0 0.0
    %4576 = vmatprep.subr.mxu0 0.0
    %4577 = vmatpush1.msra.mxu0 0.0
    %4578 = vmatprep.subr.mxu0 0.0
    %4579 = vmatpush1.msra.mxu0 0.0
    %4580 = vmatprep.subr.mxu0 0.0
    %4581 = vmatpush1.msra.mxu0 0.0
    %4582 = vmatprep.subr.mxu0 0.0
    %4583 = vmatpush1.msra.mxu0 0.0
    %4584 = vmatprep.subr.mxu0 0.0
    %4585 = vmatpush1.msra.mxu0 0.0
    %4586 = vmatprep.subr.mxu0 0.0
    %4587 = vmatpush1.msra.mxu0 0.0
    %4588 = vmatprep.subr.mxu0 0.0
    %4589 = vmatpush1.msra.mxu0 0.0
    %4590 = vmatprep.subr.mxu0 0.0
    %4591 = vmatpush1.msra.mxu0 0.0
    %4592 = vmatprep.subr.mxu0 0.0
    %4593 = vmatpush1.msra.mxu0 %v4561
    %4594 = vmatprep.subr.mxu0 0.0
    %4595 = vmatpush1.msra.mxu0 %v4560
    %4596 = vmatprep.subr.mxu0 0.0
    %4597 = vmatpush1.msra.mxu0 %v4559
    %4598 = vmatprep.subr.mxu0 0.0
    %4599 = vmatpush1.msra.mxu0 %v4558
    %4600 = vmatprep.subr.mxu0 0.0
    %4601 = vmatpush2.msra.mxu0 0.0
    %4602 = vmatprep.subr.mxu0 0.0
    %4603 = vmatpush2.msra.mxu0 0.0
    %4604 = vmatprep.subr.mxu0 0.0
    %4605 = vmatpush2.msra.mxu0 0.0
    %4606 = vmatprep.subr.mxu0 0.0
    %4607 = vmatpush2.msra.mxu0 0.0
    %4608 = vmatprep.subr.mxu0 0.0
    %4609 = vmatpush2.msra.mxu0 0.0
    %4610 = vmatprep.subr.mxu0 0.0
    %4611 = vmatpush2.msra.mxu0 0.0
    %4612 = vmatprep.subr.mxu0 0.0
    %4613 = vmatpush2.msra.mxu0 0.0
    %4614 = vmatprep.subr.mxu0 0.0
    %4615 = vmatpush2.msra.mxu0 0.0
    %4616 = vmatprep.subr.mxu0 0.0
    %4617 = vmatpush2.msra.mxu0 0.0
    %4618 = vmatprep.subr.mxu0 0.0
    %4619 = vmatpush2.msra.mxu0 0.0
    %4620 = vmatprep.subr.mxu0 0.0
    %4621 = vmatpush2.msra.mxu0 0.0
    %4622 = vmatprep.subr.mxu0 0.0
    %4623 = vmatpush2.msra.mxu0 0.0
    %4624 = vmatprep.subr.mxu0 0.0
    %4625 = vmatpush2.msra.mxu0 0.0
    %4626 = vmatprep.subr.mxu0 0.0
    %4627 = vmatpush2.msra.mxu0 0.0
    %4628 = vmatprep.subr.mxu0 0.0
    %4629 = vmatpush2.msra.mxu0 0.0
    %4630 = vmatprep.subr.mxu0 0.0
    %4631 = vmatpush2.msra.mxu0 0.0
    %4632 = vmatprep.mubr.f32.mxu0 0.0
    %4633 = vmatmul.mubr.f32.gmra.mxu0 %v4563
    %v4634 = vpop.f32.mrf.mxu0
    %v4635 = vadd.f32 0.0, %v4634
    %v4636 = vpop.f32.mrf.mxu0
    %4637 = vmatprep.mubr.f32.mxu0 0.0
    %4638 = vmatmul.mubr.f32.gmra.mxu0 %v4566
    %v4639 = vpop.f32.mrf.mxu0
    %v4640 = vadd.f32 0.0, %v4639
    %v4641 = vpop.f32.mrf.mxu0
    %4642 = vdwg.mxu0
    %v4643 = vadd.f32 %v4551, %v4635
    %v4644 = vadd.f32 %v4552, %v4640
    %s4645 = sadd.s32 %s4461, 2
    %s4646 = scalar_lea.vmem [#allocation3], %s4645
    %v4647 = vld [vmem:[%s4646] sm:$0xff]
    %v4648 = vld [vmem:[%s4646 + $0x8] sm:$0x3]
    %s4649 = scalar_lea.vmem %s2, 160
    %v4650 = vld [vmem:[%s4649] sm:$0xff]
    %v4651 = vld [vmem:[%s4649 + $0x8] sm:$0xff]
    %v4652 = vld [vmem:[%s4649 + $0x10] sm:$0xff]
    %v4653 = vld [vmem:[%s4649 + $0x18] sm:$0xff]
    %v4655 = vsel %vm3626, %v4647, 0
    %v4658 = vsel %vm3626, %v4648, 0
    %4660 = vmatprep.subr.mxu0 0.0
    %4661 = vmatpush1.msra.mxu0 0.0
    %4662 = vmatprep.subr.mxu0 0.0
    %4663 = vmatpush1.msra.mxu0 0.0
    %4664 = vmatprep.subr.mxu0 0.0
    %4665 = vmatpush1.msra.mxu0 0.0
    %4666 = vmatprep.subr.mxu0 0.0
    %4667 = vmatpush1.msra.mxu0 0.0
    %4668 = vmatprep.subr.mxu0 0.0
    %4669 = vmatpush1.msra.mxu0 0.0
    %4670 = vmatprep.subr.mxu0 0.0
    %4671 = vmatpush1.msra.mxu0 0.0
    %4672 = vmatprep.subr.mxu0 0.0
    %4673 = vmatpush1.msra.mxu0 0.0
    %4674 = vmatprep.subr.mxu0 0.0
    %4675 = vmatpush1.msra.mxu0 0.0
    %4676 = vmatprep.subr.mxu0 0.0
    %4677 = vmatpush1.msra.mxu0 0.0
    %4678 = vmatprep.subr.mxu0 0.0
    %4679 = vmatpush1.msra.mxu0 0.0
    %4680 = vmatprep.subr.mxu0 0.0
    %4681 = vmatpush1.msra.mxu0 0.0
    %4682 = vmatprep.subr.mxu0 0.0
    %4683 = vmatpush1.msra.mxu0 0.0
    %4684 = vmatprep.subr.mxu0 0.0
    %4685 = vmatpush1.msra.mxu0 %v4653
    %4686 = vmatprep.subr.mxu0 0.0
    %4687 = vmatpush1.msra.mxu0 %v4652
    %4688 = vmatprep.subr.mxu0 0.0
    %4689 = vmatpush1.msra.mxu0 %v4651
    %4690 = vmatprep.subr.mxu0 0.0
    %4691 = vmatpush1.msra.mxu0 %v4650
    %4692 = vmatprep.subr.mxu0 0.0
    %4693 = vmatpush2.msra.mxu0 0.0
    %4694 = vmatprep.subr.mxu0 0.0
    %4695 = vmatpush2.msra.mxu0 0.0
    %4696 = vmatprep.subr.mxu0 0.0
    %4697 = vmatpush2.msra.mxu0 0.0
    %4698 = vmatprep.subr.mxu0 0.0
    %4699 = vmatpush2.msra.mxu0 0.0
    %4700 = vmatprep.subr.mxu0 0.0
    %4701 = vmatpush2.msra.mxu0 0.0
    %4702 = vmatprep.subr.mxu0 0.0
    %4703 = vmatpush2.msra.mxu0 0.0
    %4704 = vmatprep.subr.mxu0 0.0
    %4705 = vmatpush2.msra.mxu0 0.0
    %4706 = vmatprep.subr.mxu0 0.0
    %4707 = vmatpush2.msra.mxu0 0.0
    %4708 = vmatprep.subr.mxu0 0.0
    %4709 = vmatpush2.msra.mxu0 0.0
    %4710 = vmatprep.subr.mxu0 0.0
    %4711 = vmatpush2.msra.mxu0 0.0
    %4712 = vmatprep.subr.mxu0 0.0
    %4713 = vmatpush2.msra.mxu0 0.0
    %4714 = vmatprep.subr.mxu0 0.0
    %4715 = vmatpush2.msra.mxu0 0.0
    %4716 = vmatprep.subr.mxu0 0.0
    %4717 = vmatpush2.msra.mxu0 0.0
    %4718 = vmatprep.subr.mxu0 0.0
    %4719 = vmatpush2.msra.mxu0 0.0
    %4720 = vmatprep.subr.mxu0 0.0
    %4721 = vmatpush2.msra.mxu0 0.0
    %4722 = vmatprep.subr.mxu0 0.0
    %4723 = vmatpush2.msra.mxu0 0.0
    %4724 = vmatprep.mubr.f32.mxu0 0.0
    %4725 = vmatmul.mubr.f32.gmra.mxu0 %v4655
    %v4726 = vpop.f32.mrf.mxu0
    %v4727 = vadd.f32 0.0, %v4726
    %v4728 = vpop.f32.mrf.mxu0
    %4729 = vmatprep.mubr.f32.mxu0 0.0
    %4730 = vmatmul.mubr.f32.gmra.mxu0 %v4658
    %v4731 = vpop.f32.mrf.mxu0
    %v4732 = vadd.f32 0.0, %v4731
    %v4733 = vpop.f32.mrf.mxu0
    %4734 = vdwg.mxu0
    %v4735 = vadd.f32 %v4643, %v4727
    %v4736 = vadd.f32 %v4644, %v4732
    %s4737 = sadd.s32 %s4183, 2
    %s4738 = smul.u32 %s4737, 12
    %s4739 = scalar_lea.vmem [#allocation3], %s4738
    %v4740 = vld [vmem:[%s4739] sm:$0xff]
    %v4741 = vld [vmem:[%s4739 + $0x8] sm:$0x3]
    %s4742 = scalar_lea.vmem %s2, 192
    %v4743 = vld [vmem:[%s4742] sm:$0xff]
    %v4744 = vld [vmem:[%s4742 + $0x8] sm:$0xff]
    %v4745 = vld [vmem:[%s4742 + $0x10] sm:$0xff]
    %v4746 = vld [vmem:[%s4742 + $0x18] sm:$0xff]
    %v4748 = vsel %vm3626, %v4740, 0
    %v4751 = vsel %vm3626, %v4741, 0
    %4753 = vmatprep.subr.mxu0 0.0
    %4754 = vmatpush1.msra.mxu0 0.0
    %4755 = vmatprep.subr.mxu0 0.0
    %4756 = vmatpush1.msra.mxu0 0.0
    %4757 = vmatprep.subr.mxu0 0.0
    %4758 = vmatpush1.msra.mxu0 0.0
    %4759 = vmatprep.subr.mxu0 0.0
    %4760 = vmatpush1.msra.mxu0 0.0
    %4761 = vmatprep.subr.mxu0 0.0
    %4762 = vmatpush1.msra.mxu0 0.0
    %4763 = vmatprep.subr.mxu0 0.0
    %4764 = vmatpush1.msra.mxu0 0.0
    %4765 = vmatprep.subr.mxu0 0.0
    %4766 = vmatpush1.msra.mxu0 0.0
    %4767 = vmatprep.subr.mxu0 0.0
    %4768 = vmatpush1.msra.mxu0 0.0
    %4769 = vmatprep.subr.mxu0 0.0
    %4770 = vmatpush1.msra.mxu0 0.0
    %4771 = vmatprep.subr.mxu0 0.0
    %4772 = vmatpush1.msra.mxu0 0.0
    %4773 = vmatprep.subr.mxu0 0.0
    %4774 = vmatpush1.msra.mxu0 0.0
    %4775 = vmatprep.subr.mxu0 0.0
    %4776 = vmatpush1.msra.mxu0 0.0
    %4777 = vmatprep.subr.mxu0 0.0
    %4778 = vmatpush1.msra.mxu0 %v4746
    %4779 = vmatprep.subr.mxu0 0.0
    %4780 = vmatpush1.msra.mxu0 %v4745
    %4781 = vmatprep.subr.mxu0 0.0
    %4782 = vmatpush1.msra.mxu0 %v4744
    %4783 = vmatprep.subr.mxu0 0.0
    %4784 = vmatpush1.msra.mxu0 %v4743
    %4785 = vmatprep.subr.mxu0 0.0
    %4786 = vmatpush2.msra.mxu0 0.0
    %4787 = vmatprep.subr.mxu0 0.0
    %4788 = vmatpush2.msra.mxu0 0.0
    %4789 = vmatprep.subr.mxu0 0.0
    %4790 = vmatpush2.msra.mxu0 0.0
    %4791 = vmatprep.subr.mxu0 0.0
    %4792 = vmatpush2.msra.mxu0 0.0
    %4793 = vmatprep.subr.mxu0 0.0
    %4794 = vmatpush2.msra.mxu0 0.0
    %4795 = vmatprep.subr.mxu0 0.0
    %4796 = vmatpush2.msra.mxu0 0.0
    %4797 = vmatprep.subr.mxu0 0.0
    %4798 = vmatpush2.msra.mxu0 0.0
    %4799 = vmatprep.subr.mxu0 0.0
    %4800 = vmatpush2.msra.mxu0 0.0
    %4801 = vmatprep.subr.mxu0 0.0
    %4802 = vmatpush2.msra.mxu0 0.0
    %4803 = vmatprep.subr.mxu0 0.0
    %4804 = vmatpush2.msra.mxu0 0.0
    %4805 = vmatprep.subr.mxu0 0.0
    %4806 = vmatpush2.msra.mxu0 0.0
    %4807 = vmatprep.subr.mxu0 0.0
    %4808 = vmatpush2.msra.mxu0 0.0
    %4809 = vmatprep.subr.mxu0 0.0
    %4810 = vmatpush2.msra.mxu0 0.0
    %4811 = vmatprep.subr.mxu0 0.0
    %4812 = vmatpush2.msra.mxu0 0.0
    %4813 = vmatprep.subr.mxu0 0.0
    %4814 = vmatpush2.msra.mxu0 0.0
    %4815 = vmatprep.subr.mxu0 0.0
    %4816 = vmatpush2.msra.mxu0 0.0
    %4817 = vmatprep.mubr.f32.mxu0 0.0
    %4818 = vmatmul.mubr.f32.gmra.mxu0 %v4748
    %v4819 = vpop.f32.mrf.mxu0
    %v4820 = vadd.f32 0.0, %v4819
    %v4821 = vpop.f32.mrf.mxu0
    %4822 = vmatprep.mubr.f32.mxu0 0.0
    %4823 = vmatmul.mubr.f32.gmra.mxu0 %v4751
    %v4824 = vpop.f32.mrf.mxu0
    %v4825 = vadd.f32 0.0, %v4824
    %v4826 = vpop.f32.mrf.mxu0
    %4827 = vdwg.mxu0
    %v4828 = vadd.f32 %v4735, %v4820
    %v4829 = vadd.f32 %v4736, %v4825
    %s4830 = sadd.s32 %s4738, 1
    %s4831 = scalar_lea.vmem [#allocation3], %s4830
    %v4832 = vld [vmem:[%s4831] sm:$0xff]
    %v4833 = vld [vmem:[%s4831 + $0x8] sm:$0x3]
    %s4834 = scalar_lea.vmem %s2, 224
    %v4835 = vld [vmem:[%s4834] sm:$0xff]
    %v4836 = vld [vmem:[%s4834 + $0x8] sm:$0xff]
    %v4837 = vld [vmem:[%s4834 + $0x10] sm:$0xff]
    %v4838 = vld [vmem:[%s4834 + $0x18] sm:$0xff]
    %v4840 = vsel %vm3626, %v4832, 0
    %v4843 = vsel %vm3626, %v4833, 0
    %4845 = vmatprep.subr.mxu0 0.0
    %4846 = vmatpush1.msra.mxu0 0.0
    %4847 = vmatprep.subr.mxu0 0.0
    %4848 = vmatpush1.msra.mxu0 0.0
    %4849 = vmatprep.subr.mxu0 0.0
    %4850 = vmatpush1.msra.mxu0 0.0
    %4851 = vmatprep.subr.mxu0 0.0
    %4852 = vmatpush1.msra.mxu0 0.0
    %4853 = vmatprep.subr.mxu0 0.0
    %4854 = vmatpush1.msra.mxu0 0.0
    %4855 = vmatprep.subr.mxu0 0.0
    %4856 = vmatpush1.msra.mxu0 0.0
    %4857 = vmatprep.subr.mxu0 0.0
    %4858 = vmatpush1.msra.mxu0 0.0
    %4859 = vmatprep.subr.mxu0 0.0
    %4860 = vmatpush1.msra.mxu0 0.0
    %4861 = vmatprep.subr.mxu0 0.0
    %4862 = vmatpush1.msra.mxu0 0.0
    %4863 = vmatprep.subr.mxu0 0.0
    %4864 = vmatpush1.msra.mxu0 0.0
    %4865 = vmatprep.subr.mxu0 0.0
    %4866 = vmatpush1.msra.mxu0 0.0
    %4867 = vmatprep.subr.mxu0 0.0
    %4868 = vmatpush1.msra.mxu0 0.0
    %4869 = vmatprep.subr.mxu0 0.0
    %4870 = vmatpush1.msra.mxu0 %v4838
    %4871 = vmatprep.subr.mxu0 0.0
    %4872 = vmatpush1.msra.mxu0 %v4837
    %4873 = vmatprep.subr.mxu0 0.0
    %4874 = vmatpush1.msra.mxu0 %v4836
    %4875 = vmatprep.subr.mxu0 0.0
    %4876 = vmatpush1.msra.mxu0 %v4835
    %4877 = vmatprep.subr.mxu0 0.0
    %4878 = vmatpush2.msra.mxu0 0.0
    %4879 = vmatprep.subr.mxu0 0.0
    %4880 = vmatpush2.msra.mxu0 0.0
    %4881 = vmatprep.subr.mxu0 0.0
    %4882 = vmatpush2.msra.mxu0 0.0
    %4883 = vmatprep.subr.mxu0 0.0
    %4884 = vmatpush2.msra.mxu0 0.0
    %4885 = vmatprep.subr.mxu0 0.0
    %4886 = vmatpush2.msra.mxu0 0.0
    %4887 = vmatprep.subr.mxu0 0.0
    %4888 = vmatpush2.msra.mxu0 0.0
    %4889 = vmatprep.subr.mxu0 0.0
    %4890 = vmatpush2.msra.mxu0 0.0
    %4891 = vmatprep.subr.mxu0 0.0
    %4892 = vmatpush2.msra.mxu0 0.0
    %4893 = vmatprep.subr.mxu0 0.0
    %4894 = vmatpush2.msra.mxu0 0.0
    %4895 = vmatprep.subr.mxu0 0.0
    %4896 = vmatpush2.msra.mxu0 0.0
    %4897 = vmatprep.subr.mxu0 0.0
    %4898 = vmatpush2.msra.mxu0 0.0
    %4899 = vmatprep.subr.mxu0 0.0
    %4900 = vmatpush2.msra.mxu0 0.0
    %4901 = vmatprep.subr.mxu0 0.0
    %4902 = vmatpush2.msra.mxu0 0.0
    %4903 = vmatprep.subr.mxu0 0.0
    %4904 = vmatpush2.msra.mxu0 0.0
    %4905 = vmatprep.subr.mxu0 0.0
    %4906 = vmatpush2.msra.mxu0 0.0
    %4907 = vmatprep.subr.mxu0 0.0
    %4908 = vmatpush2.msra.mxu0 0.0
    %4909 = vmatprep.mubr.f32.mxu0 0.0
    %4910 = vmatmul.mubr.f32.gmra.mxu0 %v4840
    %v4911 = vpop.f32.mrf.mxu0
    %v4912 = vadd.f32 0.0, %v4911
    %v4913 = vpop.f32.mrf.mxu0
    %4914 = vmatprep.mubr.f32.mxu0 0.0
    %4915 = vmatmul.mubr.f32.gmra.mxu0 %v4843
    %v4916 = vpop.f32.mrf.mxu0
    %v4917 = vadd.f32 0.0, %v4916
    %v4918 = vpop.f32.mrf.mxu0
    %4919 = vdwg.mxu0
    %v4920 = vadd.f32 %v4828, %v4912
    %v4921 = vadd.f32 %v4829, %v4917
    %s4922 = sadd.s32 %s4738, 2
    %s4923 = scalar_lea.vmem [#allocation3], %s4922
    %v4924 = vld [vmem:[%s4923] sm:$0xff]
    %v4925 = vld [vmem:[%s4923 + $0x8] sm:$0x3]
    %s4926 = scalar_lea.vmem %s2, 256
    %v4927 = vld [vmem:[%s4926] sm:$0xff]
    %v4928 = vld [vmem:[%s4926 + $0x8] sm:$0xff]
    %v4929 = vld [vmem:[%s4926 + $0x10] sm:$0xff]
    %v4930 = vld [vmem:[%s4926 + $0x18] sm:$0xff]
    %v4932 = vsel %vm3626, %v4924, 0
    %v4935 = vsel %vm3626, %v4925, 0
    %4937 = vmatprep.subr.mxu0 0.0
    %4938 = vmatpush1.msra.mxu0 0.0
    %4939 = vmatprep.subr.mxu0 0.0
    %4940 = vmatpush1.msra.mxu0 0.0
    %4941 = vmatprep.subr.mxu0 0.0
    %4942 = vmatpush1.msra.mxu0 0.0
    %4943 = vmatprep.subr.mxu0 0.0
    %4944 = vmatpush1.msra.mxu0 0.0
    %4945 = vmatprep.subr.mxu0 0.0
    %4946 = vmatpush1.msra.mxu0 0.0
    %4947 = vmatprep.subr.mxu0 0.0
    %4948 = vmatpush1.msra.mxu0 0.0
    %4949 = vmatprep.subr.mxu0 0.0
    %4950 = vmatpush1.msra.mxu0 0.0
    %4951 = vmatprep.subr.mxu0 0.0
    %4952 = vmatpush1.msra.mxu0 0.0
    %4953 = vmatprep.subr.mxu0 0.0
    %4954 = vmatpush1.msra.mxu0 0.0
    %4955 = vmatprep.subr.mxu0 0.0
    %4956 = vmatpush1.msra.mxu0 0.0
    %4957 = vmatprep.subr.mxu0 0.0
    %4958 = vmatpush1.msra.mxu0 0.0
    %4959 = vmatprep.subr.mxu0 0.0
    %4960 = vmatpush1.msra.mxu0 0.0
    %4961 = vmatprep.subr.mxu0 0.0
    %4962 = vmatpush1.msra.mxu0 %v4930
    %4963 = vmatprep.subr.mxu0 0.0
    %4964 = vmatpush1.msra.mxu0 %v4929
    %4965 = vmatprep.subr.mxu0 0.0
    %4966 = vmatpush1.msra.mxu0 %v4928
    %4967 = vmatprep.subr.mxu0 0.0
    %4968 = vmatpush1.msra.mxu0 %v4927
    %4969 = vmatprep.subr.mxu0 0.0
    %4970 = vmatpush2.msra.mxu0 0.0
    %4971 = vmatprep.subr.mxu0 0.0
    %4972 = vmatpush2.msra.mxu0 0.0
    %4973 = vmatprep.subr.mxu0 0.0
    %4974 = vmatpush2.msra.mxu0 0.0
    %4975 = vmatprep.subr.mxu0 0.0
    %4976 = vmatpush2.msra.mxu0 0.0
    %4977 = vmatprep.subr.mxu0 0.0
    %4978 = vmatpush2.msra.mxu0 0.0
    %4979 = vmatprep.subr.mxu0 0.0
    %4980 = vmatpush2.msra.mxu0 0.0
    %4981 = vmatprep.subr.mxu0 0.0
    %4982 = vmatpush2.msra.mxu0 0.0
    %4983 = vmatprep.subr.mxu0 0.0
    %4984 = vmatpush2.msra.mxu0 0.0
    %4985 = vmatprep.subr.mxu0 0.0
    %4986 = vmatpush2.msra.mxu0 0.0
    %4987 = vmatprep.subr.mxu0 0.0
    %4988 = vmatpush2.msra.mxu0 0.0
    %4989 = vmatprep.subr.mxu0 0.0
    %4990 = vmatpush2.msra.mxu0 0.0
    %4991 = vmatprep.subr.mxu0 0.0
    %4992 = vmatpush2.msra.mxu0 0.0
    %4993 = vmatprep.subr.mxu0 0.0
    %4994 = vmatpush2.msra.mxu0 0.0
    %4995 = vmatprep.subr.mxu0 0.0
    %4996 = vmatpush2.msra.mxu0 0.0
    %4997 = vmatprep.subr.mxu0 0.0
    %4998 = vmatpush2.msra.mxu0 0.0
    %4999 = vmatprep.subr.mxu0 0.0
    %5000 = vmatpush2.msra.mxu0 0.0
    %5001 = vmatprep.mubr.f32.mxu0 0.0
    %5002 = vmatmul.mubr.f32.gmra.mxu0 %v4932
    %v5003 = vpop.f32.mrf.mxu0
    %v5004 = vadd.f32 0.0, %v5003
    %v5005 = vpop.f32.mrf.mxu0
    %5006 = vmatprep.mubr.f32.mxu0 0.0
    %5007 = vmatmul.mubr.f32.gmra.mxu0 %v4935
    %v5008 = vpop.f32.mrf.mxu0
    %v5009 = vadd.f32 0.0, %v5008
    %v5010 = vpop.f32.mrf.mxu0
    %5011 = vdwg.mxu0
    %v5012 = vadd.f32 %v4920, %v5004
    %v5013 = vadd.f32 %v4921, %v5009
    %s5014 = smul.u32 %s4183, 10
    %s5015 = scalar_lea.vmem [#allocation4], %s5014
    %5016 = vst [vmem:[%s5015] sm:$0xff] %v5012
    %5017 = vst [vmem:[%s5015 + $0x8] sm:$0x3] %v5013
    %vm5018 = vcmask 1041408
    %v5019 = vsel %vm5018, %v5013, 0.0
    %v5020 = vadd.f32 %v5012, %v5019
    %v5021 = vrot.slane %v5020, 4
    %v5022 = vadd.f32 %v5020, %v5021
    %v5023 = vrot.slane %v5022, 2
    %v5024 = vadd.f32 %v5022, %v5023
    %v5025 = vrot.slane %v5024, 1
    %v5026 = vadd.f32 %v5024, %v5025
    %v5027 = vadd.f32 %v4188, %v5026
  $region26: #{encoder_forward.1} parent=0 // loop_footer
    %s4187 = sadd.s32 1, %s4183
  $region27: #{encoder_forward.1} parent=0 // loop_footer_branch
    %4182 = sbr.rel target = $region23
  $region28: #{encoder_forward.1} parent=0 // loop_exit
    _
  loop: start=0, step=1, limit=10
  $region29: #{encoder_forward.1} parent=0 // loop_pre_header
    _
  $region30: #{encoder_forward.1} parent=0 // loop_header
    %s5029 = sphi 0, %s5033
    %p5030 = scmp.ge.s32.totalorder %s5029, 10
    %v5034 = vphi %v4188, %v5877
  $region31: #{encoder_forward.1} parent=0 // loop_header_branch
    %5032 = sbr.rel (%p5030) target = $region35
  $region32: #{encoder_forward.1} parent=0 // loop_body
    %s5035 = smul.u32 %s5029, 12
    %s5036 = sadd.s32 %s5035, 144
    %s5037 = scalar_lea.vmem [#allocation3], %s5036
    %v5038 = vld [vmem:[%s5037] sm:$0xff]
    %v5039 = vld [vmem:[%s5037 + $0x8] sm:$0x3]
    %v5040 = vld [vmem:[%s2] sm:$0xff]
    %v5041 = vld [vmem:[%s2 + $0x8] sm:$0xff]
    %v5042 = vld [vmem:[%s2 + $0x10] sm:$0xff]
    %v5043 = vld [vmem:[%s2 + $0x18] sm:$0xff]
    %s5044 = sadd.s32 %s5035, 145
    %s5045 = scalar_lea.vmem [#allocation3], %s5044
    %v5046 = vld [vmem:[%s5045] sm:$0xff]
    %v5047 = vld [vmem:[%s5045 + $0x8] sm:$0x3]
    %s5048 = scalar_lea.vmem %s2, 32
    %v5049 = vld [vmem:[%s5048] sm:$0xff]
    %v5050 = vld [vmem:[%s5048 + $0x8] sm:$0xff]
    %v5051 = vld [vmem:[%s5048 + $0x10] sm:$0xff]
    %v5052 = vld [vmem:[%s5048 + $0x18] sm:$0xff]
    %v5054 = vsel %vm3626, %v5046, 0
    %v5057 = vsel %vm3626, %v5047, 0
    %5059 = vmatprep.subr.mxu0 0.0
    %5060 = vmatpush1.msra.mxu0 0.0
    %5061 = vmatprep.subr.mxu0 0.0
    %5062 = vmatpush1.msra.mxu0 0.0
    %5063 = vmatprep.subr.mxu0 0.0
    %5064 = vmatpush1.msra.mxu0 0.0
    %5065 = vmatprep.subr.mxu0 0.0
    %5066 = vmatpush1.msra.mxu0 0.0
    %5067 = vmatprep.subr.mxu0 0.0
    %5068 = vmatpush1.msra.mxu0 0.0
    %5069 = vmatprep.subr.mxu0 0.0
    %5070 = vmatpush1.msra.mxu0 0.0
    %5071 = vmatprep.subr.mxu0 0.0
    %5072 = vmatpush1.msra.mxu0 0.0
    %5073 = vmatprep.subr.mxu0 0.0
    %5074 = vmatpush1.msra.mxu0 0.0
    %5075 = vmatprep.subr.mxu0 0.0
    %5076 = vmatpush1.msra.mxu0 0.0
    %5077 = vmatprep.subr.mxu0 0.0
    %5078 = vmatpush1.msra.mxu0 0.0
    %5079 = vmatprep.subr.mxu0 0.0
    %5080 = vmatpush1.msra.mxu0 0.0
    %5081 = vmatprep.subr.mxu0 0.0
    %5082 = vmatpush1.msra.mxu0 0.0
    %5083 = vmatprep.subr.mxu0 0.0
    %5084 = vmatpush1.msra.mxu0 %v5052
    %5085 = vmatprep.subr.mxu0 0.0
    %5086 = vmatpush1.msra.mxu0 %v5051
    %5087 = vmatprep.subr.mxu0 0.0
    %5088 = vmatpush1.msra.mxu0 %v5050
    %5089 = vmatprep.subr.mxu0 0.0
    %5090 = vmatpush1.msra.mxu0 %v5049
    %5091 = vmatprep.subr.mxu0 0.0
    %5092 = vmatpush2.msra.mxu0 0.0
    %5093 = vmatprep.subr.mxu0 0.0
    %5094 = vmatpush2.msra.mxu0 0.0
    %5095 = vmatprep.subr.mxu0 0.0
    %5096 = vmatpush2.msra.mxu0 0.0
    %5097 = vmatprep.subr.mxu0 0.0
    %5098 = vmatpush2.msra.mxu0 0.0
    %5099 = vmatprep.subr.mxu0 0.0
    %5100 = vmatpush2.msra.mxu0 0.0
    %5101 = vmatprep.subr.mxu0 0.0
    %5102 = vmatpush2.msra.mxu0 0.0
    %5103 = vmatprep.subr.mxu0 0.0
    %5104 = vmatpush2.msra.mxu0 0.0
    %5105 = vmatprep.subr.mxu0 0.0
    %5106 = vmatpush2.msra.mxu0 0.0
    %5107 = vmatprep.subr.mxu0 0.0
    %5108 = vmatpush2.msra.mxu0 0.0
    %5109 = vmatprep.subr.mxu0 0.0
    %5110 = vmatpush2.msra.mxu0 0.0
    %5111 = vmatprep.subr.mxu0 0.0
    %5112 = vmatpush2.msra.mxu0 0.0
    %5113 = vmatprep.subr.mxu0 0.0
    %5114 = vmatpush2.msra.mxu0 0.0
    %5115 = vmatprep.subr.mxu0 0.0
    %5116 = vmatpush2.msra.mxu0 0.0
    %5117 = vmatprep.subr.mxu0 0.0
    %5118 = vmatpush2.msra.mxu0 0.0
    %5119 = vmatprep.subr.mxu0 0.0
    %5120 = vmatpush2.msra.mxu0 0.0
    %5121 = vmatprep.subr.mxu0 0.0
    %5122 = vmatpush2.msra.mxu0 0.0
    %5123 = vmatprep.mubr.f32.mxu0 0.0
    %5124 = vmatmul.mubr.f32.gmra.mxu0 %v5054
    %v5125 = vpop.f32.mrf.mxu0
    %v5126 = vadd.f32 0.0, %v5125
    %v5127 = vpop.f32.mrf.mxu0
    %5128 = vmatprep.mubr.f32.mxu0 0.0
    %5129 = vmatmul.mubr.f32.gmra.mxu0 %v5057
    %v5130 = vpop.f32.mrf.mxu0
    %v5131 = vadd.f32 0.0, %v5130
    %v5132 = vpop.f32.mrf.mxu0
    %5133 = vdwg.mxu0
    %v5135 = vsel %vm3626, %v5038, 0
    %v5138 = vsel %vm3626, %v5039, 0
    %5140 = vmatprep.subr.mxu0 0.0
    %5141 = vmatpush1.msra.mxu0 0.0
    %5142 = vmatprep.subr.mxu0 0.0
    %5143 = vmatpush1.msra.mxu0 0.0
    %5144 = vmatprep.subr.mxu0 0.0
    %5145 = vmatpush1.msra.mxu0 0.0
    %5146 = vmatprep.subr.mxu0 0.0
    %5147 = vmatpush1.msra.mxu0 0.0
    %5148 = vmatprep.subr.mxu0 0.0
    %5149 = vmatpush1.msra.mxu0 0.0
    %5150 = vmatprep.subr.mxu0 0.0
    %5151 = vmatpush1.msra.mxu0 0.0
    %5152 = vmatprep.subr.mxu0 0.0
    %5153 = vmatpush1.msra.mxu0 0.0
    %5154 = vmatprep.subr.mxu0 0.0
    %5155 = vmatpush1.msra.mxu0 0.0
    %5156 = vmatprep.subr.mxu0 0.0
    %5157 = vmatpush1.msra.mxu0 0.0
    %5158 = vmatprep.subr.mxu0 0.0
    %5159 = vmatpush1.msra.mxu0 0.0
    %5160 = vmatprep.subr.mxu0 0.0
    %5161 = vmatpush1.msra.mxu0 0.0
    %5162 = vmatprep.subr.mxu0 0.0
    %5163 = vmatpush1.msra.mxu0 0.0
    %5164 = vmatprep.subr.mxu0 0.0
    %5165 = vmatpush1.msra.mxu0 %v5043
    %5166 = vmatprep.subr.mxu0 0.0
    %5167 = vmatpush1.msra.mxu0 %v5042
    %5168 = vmatprep.subr.mxu0 0.0
    %5169 = vmatpush1.msra.mxu0 %v5041
    %5170 = vmatprep.subr.mxu0 0.0
    %5171 = vmatpush1.msra.mxu0 %v5040
    %5172 = vmatprep.subr.mxu0 0.0
    %5173 = vmatpush2.msra.mxu0 0.0
    %5174 = vmatprep.subr.mxu0 0.0
    %5175 = vmatpush2.msra.mxu0 0.0
    %5176 = vmatprep.subr.mxu0 0.0
    %5177 = vmatpush2.msra.mxu0 0.0
    %5178 = vmatprep.subr.mxu0 0.0
    %5179 = vmatpush2.msra.mxu0 0.0
    %5180 = vmatprep.subr.mxu0 0.0
    %5181 = vmatpush2.msra.mxu0 0.0
    %5182 = vmatprep.subr.mxu0 0.0
    %5183 = vmatpush2.msra.mxu0 0.0
    %5184 = vmatprep.subr.mxu0 0.0
    %5185 = vmatpush2.msra.mxu0 0.0
    %5186 = vmatprep.subr.mxu0 0.0
    %5187 = vmatpush2.msra.mxu0 0.0
    %5188 = vmatprep.subr.mxu0 0.0
    %5189 = vmatpush2.msra.mxu0 0.0
    %5190 = vmatprep.subr.mxu0 0.0
    %5191 = vmatpush2.msra.mxu0 0.0
    %5192 = vmatprep.subr.mxu0 0.0
    %5193 = vmatpush2.msra.mxu0 0.0
    %5194 = vmatprep.subr.mxu0 0.0
    %5195 = vmatpush2.msra.mxu0 0.0
    %5196 = vmatprep.subr.mxu0 0.0
    %5197 = vmatpush2.msra.mxu0 0.0
    %5198 = vmatprep.subr.mxu0 0.0
    %5199 = vmatpush2.msra.mxu0 0.0
    %5200 = vmatprep.subr.mxu0 0.0
    %5201 = vmatpush2.msra.mxu0 0.0
    %5202 = vmatprep.subr.mxu0 0.0
    %5203 = vmatpush2.msra.mxu0 0.0
    %5204 = vmatprep.mubr.f32.mxu0 0.0
    %5205 = vmatmul.mubr.f32.gmra.mxu0 %v5135
    %v5206 = vpop.f32.mrf.mxu0
    %v5207 = vadd.f32 %v5126, %v5206
    %v5208 = vpop.f32.mrf.mxu0
    %5209 = vmatprep.mubr.f32.mxu0 0.0
    %5210 = vmatmul.mubr.f32.gmra.mxu0 %v5138
    %v5211 = vpop.f32.mrf.mxu0
    %v5212 = vadd.f32 %v5131, %v5211
    %v5213 = vpop.f32.mrf.mxu0
    %5214 = vdwg.mxu0
    %s5215 = sadd.s32 %s5035, 146
    %s5216 = scalar_lea.vmem [#allocation3], %s5215
    %v5217 = vld [vmem:[%s5216] sm:$0xff]
    %v5218 = vld [vmem:[%s5216 + $0x8] sm:$0x3]
    %s5219 = scalar_lea.vmem %s2, 64
    %v5220 = vld [vmem:[%s5219] sm:$0xff]
    %v5221 = vld [vmem:[%s5219 + $0x8] sm:$0xff]
    %v5222 = vld [vmem:[%s5219 + $0x10] sm:$0xff]
    %v5223 = vld [vmem:[%s5219 + $0x18] sm:$0xff]
    %v5225 = vsel %vm3626, %v5217, 0
    %v5228 = vsel %vm3626, %v5218, 0
    %5230 = vmatprep.subr.mxu0 0.0
    %5231 = vmatpush1.msra.mxu0 0.0
    %5232 = vmatprep.subr.mxu0 0.0
    %5233 = vmatpush1.msra.mxu0 0.0
    %5234 = vmatprep.subr.mxu0 0.0
    %5235 = vmatpush1.msra.mxu0 0.0
    %5236 = vmatprep.subr.mxu0 0.0
    %5237 = vmatpush1.msra.mxu0 0.0
    %5238 = vmatprep.subr.mxu0 0.0
    %5239 = vmatpush1.msra.mxu0 0.0
    %5240 = vmatprep.subr.mxu0 0.0
    %5241 = vmatpush1.msra.mxu0 0.0
    %5242 = vmatprep.subr.mxu0 0.0
    %5243 = vmatpush1.msra.mxu0 0.0
    %5244 = vmatprep.subr.mxu0 0.0
    %5245 = vmatpush1.msra.mxu0 0.0
    %5246 = vmatprep.subr.mxu0 0.0
    %5247 = vmatpush1.msra.mxu0 0.0
    %5248 = vmatprep.subr.mxu0 0.0
    %5249 = vmatpush1.msra.mxu0 0.0
    %5250 = vmatprep.subr.mxu0 0.0
    %5251 = vmatpush1.msra.mxu0 0.0
    %5252 = vmatprep.subr.mxu0 0.0
    %5253 = vmatpush1.msra.mxu0 0.0
    %5254 = vmatprep.subr.mxu0 0.0
    %5255 = vmatpush1.msra.mxu0 %v5223
    %5256 = vmatprep.subr.mxu0 0.0
    %5257 = vmatpush1.msra.mxu0 %v5222
    %5258 = vmatprep.subr.mxu0 0.0
    %5259 = vmatpush1.msra.mxu0 %v5221
    %5260 = vmatprep.subr.mxu0 0.0
    %5261 = vmatpush1.msra.mxu0 %v5220
    %5262 = vmatprep.subr.mxu0 0.0
    %5263 = vmatpush2.msra.mxu0 0.0
    %5264 = vmatprep.subr.mxu0 0.0
    %5265 = vmatpush2.msra.mxu0 0.0
    %5266 = vmatprep.subr.mxu0 0.0
    %5267 = vmatpush2.msra.mxu0 0.0
    %5268 = vmatprep.subr.mxu0 0.0
    %5269 = vmatpush2.msra.mxu0 0.0
    %5270 = vmatprep.subr.mxu0 0.0
    %5271 = vmatpush2.msra.mxu0 0.0
    %5272 = vmatprep.subr.mxu0 0.0
    %5273 = vmatpush2.msra.mxu0 0.0
    %5274 = vmatprep.subr.mxu0 0.0
    %5275 = vmatpush2.msra.mxu0 0.0
    %5276 = vmatprep.subr.mxu0 0.0
    %5277 = vmatpush2.msra.mxu0 0.0
    %5278 = vmatprep.subr.mxu0 0.0
    %5279 = vmatpush2.msra.mxu0 0.0
    %5280 = vmatprep.subr.mxu0 0.0
    %5281 = vmatpush2.msra.mxu0 0.0
    %5282 = vmatprep.subr.mxu0 0.0
    %5283 = vmatpush2.msra.mxu0 0.0
    %5284 = vmatprep.subr.mxu0 0.0
    %5285 = vmatpush2.msra.mxu0 0.0
    %5286 = vmatprep.subr.mxu0 0.0
    %5287 = vmatpush2.msra.mxu0 0.0
    %5288 = vmatprep.subr.mxu0 0.0
    %5289 = vmatpush2.msra.mxu0 0.0
    %5290 = vmatprep.subr.mxu0 0.0
    %5291 = vmatpush2.msra.mxu0 0.0
    %5292 = vmatprep.subr.mxu0 0.0
    %5293 = vmatpush2.msra.mxu0 0.0
    %5294 = vmatprep.mubr.f32.mxu0 0.0
    %5295 = vmatmul.mubr.f32.gmra.mxu0 %v5225
    %v5296 = vpop.f32.mrf.mxu0
    %v5297 = vadd.f32 0.0, %v5296
    %v5298 = vpop.f32.mrf.mxu0
    %5299 = vmatprep.mubr.f32.mxu0 0.0
    %5300 = vmatmul.mubr.f32.gmra.mxu0 %v5228
    %v5301 = vpop.f32.mrf.mxu0
    %v5302 = vadd.f32 0.0, %v5301
    %v5303 = vpop.f32.mrf.mxu0
    %5304 = vdwg.mxu0
    %v5305 = vadd.f32 %v5207, %v5297
    %v5306 = vadd.f32 %v5212, %v5302
    %s5307 = sadd.s32 %s5029, 1
    %s5308 = smul.u32 %s5307, 12
    %s5309 = sadd.s32 %s5308, 144
    %s5310 = scalar_lea.vmem [#allocation3], %s5309
    %v5311 = vld [vmem:[%s5310] sm:$0xff]
    %v5312 = vld [vmem:[%s5310 + $0x8] sm:$0x3]
    %s5313 = scalar_lea.vmem %s2, 96
    %v5314 = vld [vmem:[%s5313] sm:$0xff]
    %v5315 = vld [vmem:[%s5313 + $0x8] sm:$0xff]
    %v5316 = vld [vmem:[%s5313 + $0x10] sm:$0xff]
    %v5317 = vld [vmem:[%s5313 + $0x18] sm:$0xff]
    %v5319 = vsel %vm3626, %v5311, 0
    %v5322 = vsel %vm3626, %v5312, 0
    %5324 = vmatprep.subr.mxu0 0.0
    %5325 = vmatpush1.msra.mxu0 0.0
    %5326 = vmatprep.subr.mxu0 0.0
    %5327 = vmatpush1.msra.mxu0 0.0
    %5328 = vmatprep.subr.mxu0 0.0
    %5329 = vmatpush1.msra.mxu0 0.0
    %5330 = vmatprep.subr.mxu0 0.0
    %5331 = vmatpush1.msra.mxu0 0.0
    %5332 = vmatprep.subr.mxu0 0.0
    %5333 = vmatpush1.msra.mxu0 0.0
    %5334 = vmatprep.subr.mxu0 0.0
    %5335 = vmatpush1.msra.mxu0 0.0
    %5336 = vmatprep.subr.mxu0 0.0
    %5337 = vmatpush1.msra.mxu0 0.0
    %5338 = vmatprep.subr.mxu0 0.0
    %5339 = vmatpush1.msra.mxu0 0.0
    %5340 = vmatprep.subr.mxu0 0.0
    %5341 = vmatpush1.msra.mxu0 0.0
    %5342 = vmatprep.subr.mxu0 0.0
    %5343 = vmatpush1.msra.mxu0 0.0
    %5344 = vmatprep.subr.mxu0 0.0
    %5345 = vmatpush1.msra.mxu0 0.0
    %5346 = vmatprep.subr.mxu0 0.0
    %5347 = vmatpush1.msra.mxu0 0.0
    %5348 = vmatprep.subr.mxu0 0.0
    %5349 = vmatpush1.msra.mxu0 %v5317
    %5350 = vmatprep.subr.mxu0 0.0
    %5351 = vmatpush1.msra.mxu0 %v5316
    %5352 = vmatprep.subr.mxu0 0.0
    %5353 = vmatpush1.msra.mxu0 %v5315
    %5354 = vmatprep.subr.mxu0 0.0
    %5355 = vmatpush1.msra.mxu0 %v5314
    %5356 = vmatprep.subr.mxu0 0.0
    %5357 = vmatpush2.msra.mxu0 0.0
    %5358 = vmatprep.subr.mxu0 0.0
    %5359 = vmatpush2.msra.mxu0 0.0
    %5360 = vmatprep.subr.mxu0 0.0
    %5361 = vmatpush2.msra.mxu0 0.0
    %5362 = vmatprep.subr.mxu0 0.0
    %5363 = vmatpush2.msra.mxu0 0.0
    %5364 = vmatprep.subr.mxu0 0.0
    %5365 = vmatpush2.msra.mxu0 0.0
    %5366 = vmatprep.subr.mxu0 0.0
    %5367 = vmatpush2.msra.mxu0 0.0
    %5368 = vmatprep.subr.mxu0 0.0
    %5369 = vmatpush2.msra.mxu0 0.0
    %5370 = vmatprep.subr.mxu0 0.0
    %5371 = vmatpush2.msra.mxu0 0.0
    %5372 = vmatprep.subr.mxu0 0.0
    %5373 = vmatpush2.msra.mxu0 0.0
    %5374 = vmatprep.subr.mxu0 0.0
    %5375 = vmatpush2.msra.mxu0 0.0
    %5376 = vmatprep.subr.mxu0 0.0
    %5377 = vmatpush2.msra.mxu0 0.0
    %5378 = vmatprep.subr.mxu0 0.0
    %5379 = vmatpush2.msra.mxu0 0.0
    %5380 = vmatprep.subr.mxu0 0.0
    %5381 = vmatpush2.msra.mxu0 0.0
    %5382 = vmatprep.subr.mxu0 0.0
    %5383 = vmatpush2.msra.mxu0 0.0
    %5384 = vmatprep.subr.mxu0 0.0
    %5385 = vmatpush2.msra.mxu0 0.0
    %5386 = vmatprep.subr.mxu0 0.0
    %5387 = vmatpush2.msra.mxu0 0.0
    %5388 = vmatprep.mubr.f32.mxu0 0.0
    %5389 = vmatmul.mubr.f32.gmra.mxu0 %v5319
    %v5390 = vpop.f32.mrf.mxu0
    %v5391 = vadd.f32 0.0, %v5390
    %v5392 = vpop.f32.mrf.mxu0
    %5393 = vmatprep.mubr.f32.mxu0 0.0
    %5394 = vmatmul.mubr.f32.gmra.mxu0 %v5322
    %v5395 = vpop.f32.mrf.mxu0
    %v5396 = vadd.f32 0.0, %v5395
    %v5397 = vpop.f32.mrf.mxu0
    %5398 = vdwg.mxu0
    %v5399 = vadd.f32 %v5305, %v5391
    %v5400 = vadd.f32 %v5306, %v5396
    %s5401 = sadd.s32 %s5308, 145
    %s5402 = scalar_lea.vmem [#allocation3], %s5401
    %v5403 = vld [vmem:[%s5402] sm:$0xff]
    %v5404 = vld [vmem:[%s5402 + $0x8] sm:$0x3]
    %s5405 = scalar_lea.vmem %s2, 128
    %v5406 = vld [vmem:[%s5405] sm:$0xff]
    %v5407 = vld [vmem:[%s5405 + $0x8] sm:$0xff]
    %v5408 = vld [vmem:[%s5405 + $0x10] sm:$0xff]
    %v5409 = vld [vmem:[%s5405 + $0x18] sm:$0xff]
    %v5411 = vsel %vm3626, %v5403, 0
    %v5414 = vsel %vm3626, %v5404, 0
    %5416 = vmatprep.subr.mxu0 0.0
    %5417 = vmatpush1.msra.mxu0 0.0
    %5418 = vmatprep.subr.mxu0 0.0
    %5419 = vmatpush1.msra.mxu0 0.0
    %5420 = vmatprep.subr.mxu0 0.0
    %5421 = vmatpush1.msra.mxu0 0.0
    %5422 = vmatprep.subr.mxu0 0.0
    %5423 = vmatpush1.msra.mxu0 0.0
    %5424 = vmatprep.subr.mxu0 0.0
    %5425 = vmatpush1.msra.mxu0 0.0
    %5426 = vmatprep.subr.mxu0 0.0
    %5427 = vmatpush1.msra.mxu0 0.0
    %5428 = vmatprep.subr.mxu0 0.0
    %5429 = vmatpush1.msra.mxu0 0.0
    %5430 = vmatprep.subr.mxu0 0.0
    %5431 = vmatpush1.msra.mxu0 0.0
    %5432 = vmatprep.subr.mxu0 0.0
    %5433 = vmatpush1.msra.mxu0 0.0
    %5434 = vmatprep.subr.mxu0 0.0
    %5435 = vmatpush1.msra.mxu0 0.0
    %5436 = vmatprep.subr.mxu0 0.0
    %5437 = vmatpush1.msra.mxu0 0.0
    %5438 = vmatprep.subr.mxu0 0.0
    %5439 = vmatpush1.msra.mxu0 0.0
    %5440 = vmatprep.subr.mxu0 0.0
    %5441 = vmatpush1.msra.mxu0 %v5409
    %5442 = vmatprep.subr.mxu0 0.0
    %5443 = vmatpush1.msra.mxu0 %v5408
    %5444 = vmatprep.subr.mxu0 0.0
    %5445 = vmatpush1.msra.mxu0 %v5407
    %5446 = vmatprep.subr.mxu0 0.0
    %5447 = vmatpush1.msra.mxu0 %v5406
    %5448 = vmatprep.subr.mxu0 0.0
    %5449 = vmatpush2.msra.mxu0 0.0
    %5450 = vmatprep.subr.mxu0 0.0
    %5451 = vmatpush2.msra.mxu0 0.0
    %5452 = vmatprep.subr.mxu0 0.0
    %5453 = vmatpush2.msra.mxu0 0.0
    %5454 = vmatprep.subr.mxu0 0.0
    %5455 = vmatpush2.msra.mxu0 0.0
    %5456 = vmatprep.subr.mxu0 0.0
    %5457 = vmatpush2.msra.mxu0 0.0
    %5458 = vmatprep.subr.mxu0 0.0
    %5459 = vmatpush2.msra.mxu0 0.0
    %5460 = vmatprep.subr.mxu0 0.0
    %5461 = vmatpush2.msra.mxu0 0.0
    %5462 = vmatprep.subr.mxu0 0.0
    %5463 = vmatpush2.msra.mxu0 0.0
    %5464 = vmatprep.subr.mxu0 0.0
    %5465 = vmatpush2.msra.mxu0 0.0
    %5466 = vmatprep.subr.mxu0 0.0
    %5467 = vmatpush2.msra.mxu0 0.0
    %5468 = vmatprep.subr.mxu0 0.0
    %5469 = vmatpush2.msra.mxu0 0.0
    %5470 = vmatprep.subr.mxu0 0.0
    %5471 = vmatpush2.msra.mxu0 0.0
    %5472 = vmatprep.subr.mxu0 0.0
    %5473 = vmatpush2.msra.mxu0 0.0
    %5474 = vmatprep.subr.mxu0 0.0
    %5475 = vmatpush2.msra.mxu0 0.0
    %5476 = vmatprep.subr.mxu0 0.0
    %5477 = vmatpush2.msra.mxu0 0.0
    %5478 = vmatprep.subr.mxu0 0.0
    %5479 = vmatpush2.msra.mxu0 0.0
    %5480 = vmatprep.mubr.f32.mxu0 0.0
    %5481 = vmatmul.mubr.f32.gmra.mxu0 %v5411
    %v5482 = vpop.f32.mrf.mxu0
    %v5483 = vadd.f32 0.0, %v5482
    %v5484 = vpop.f32.mrf.mxu0
    %5485 = vmatprep.mubr.f32.mxu0 0.0
    %5486 = vmatmul.mubr.f32.gmra.mxu0 %v5414
    %v5487 = vpop.f32.mrf.mxu0
    %v5488 = vadd.f32 0.0, %v5487
    %v5489 = vpop.f32.mrf.mxu0
    %5490 = vdwg.mxu0
    %v5491 = vadd.f32 %v5399, %v5483
    %v5492 = vadd.f32 %v5400, %v5488
    %s5493 = sadd.s32 %s5308, 146
    %s5494 = scalar_lea.vmem [#allocation3], %s5493
    %v5495 = vld [vmem:[%s5494] sm:$0xff]
    %v5496 = vld [vmem:[%s5494 + $0x8] sm:$0x3]
    %s5497 = scalar_lea.vmem %s2, 160
    %v5498 = vld [vmem:[%s5497] sm:$0xff]
    %v5499 = vld [vmem:[%s5497 + $0x8] sm:$0xff]
    %v5500 = vld [vmem:[%s5497 + $0x10] sm:$0xff]
    %v5501 = vld [vmem:[%s5497 + $0x18] sm:$0xff]
    %v5503 = vsel %vm3626, %v5495, 0
    %v5506 = vsel %vm3626, %v5496, 0
    %5508 = vmatprep.subr.mxu0 0.0
    %5509 = vmatpush1.msra.mxu0 0.0
    %5510 = vmatprep.subr.mxu0 0.0
    %5511 = vmatpush1.msra.mxu0 0.0
    %5512 = vmatprep.subr.mxu0 0.0
    %5513 = vmatpush1.msra.mxu0 0.0
    %5514 = vmatprep.subr.mxu0 0.0
    %5515 = vmatpush1.msra.mxu0 0.0
    %5516 = vmatprep.subr.mxu0 0.0
    %5517 = vmatpush1.msra.mxu0 0.0
    %5518 = vmatprep.subr.mxu0 0.0
    %5519 = vmatpush1.msra.mxu0 0.0
    %5520 = vmatprep.subr.mxu0 0.0
    %5521 = vmatpush1.msra.mxu0 0.0
    %5522 = vmatprep.subr.mxu0 0.0
    %5523 = vmatpush1.msra.mxu0 0.0
    %5524 = vmatprep.subr.mxu0 0.0
    %5525 = vmatpush1.msra.mxu0 0.0
    %5526 = vmatprep.subr.mxu0 0.0
    %5527 = vmatpush1.msra.mxu0 0.0
    %5528 = vmatprep.subr.mxu0 0.0
    %5529 = vmatpush1.msra.mxu0 0.0
    %5530 = vmatprep.subr.mxu0 0.0
    %5531 = vmatpush1.msra.mxu0 0.0
    %5532 = vmatprep.subr.mxu0 0.0
    %5533 = vmatpush1.msra.mxu0 %v5501
    %5534 = vmatprep.subr.mxu0 0.0
    %5535 = vmatpush1.msra.mxu0 %v5500
    %5536 = vmatprep.subr.mxu0 0.0
    %5537 = vmatpush1.msra.mxu0 %v5499
    %5538 = vmatprep.subr.mxu0 0.0
    %5539 = vmatpush1.msra.mxu0 %v5498
    %5540 = vmatprep.subr.mxu0 0.0
    %5541 = vmatpush2.msra.mxu0 0.0
    %5542 = vmatprep.subr.mxu0 0.0
    %5543 = vmatpush2.msra.mxu0 0.0
    %5544 = vmatprep.subr.mxu0 0.0
    %5545 = vmatpush2.msra.mxu0 0.0
    %5546 = vmatprep.subr.mxu0 0.0
    %5547 = vmatpush2.msra.mxu0 0.0
    %5548 = vmatprep.subr.mxu0 0.0
    %5549 = vmatpush2.msra.mxu0 0.0
    %5550 = vmatprep.subr.mxu0 0.0
    %5551 = vmatpush2.msra.mxu0 0.0
    %5552 = vmatprep.subr.mxu0 0.0
    %5553 = vmatpush2.msra.mxu0 0.0
    %5554 = vmatprep.subr.mxu0 0.0
    %5555 = vmatpush2.msra.mxu0 0.0
    %5556 = vmatprep.subr.mxu0 0.0
    %5557 = vmatpush2.msra.mxu0 0.0
    %5558 = vmatprep.subr.mxu0 0.0
    %5559 = vmatpush2.msra.mxu0 0.0
    %5560 = vmatprep.subr.mxu0 0.0
    %5561 = vmatpush2.msra.mxu0 0.0
    %5562 = vmatprep.subr.mxu0 0.0
    %5563 = vmatpush2.msra.mxu0 0.0
    %5564 = vmatprep.subr.mxu0 0.0
    %5565 = vmatpush2.msra.mxu0 0.0
    %5566 = vmatprep.subr.mxu0 0.0
    %5567 = vmatpush2.msra.mxu0 0.0
    %5568 = vmatprep.subr.mxu0 0.0
    %5569 = vmatpush2.msra.mxu0 0.0
    %5570 = vmatprep.subr.mxu0 0.0
    %5571 = vmatpush2.msra.mxu0 0.0
    %5572 = vmatprep.mubr.f32.mxu0 0.0
    %5573 = vmatmul.mubr.f32.gmra.mxu0 %v5503
    %v5574 = vpop.f32.mrf.mxu0
    %v5575 = vadd.f32 0.0, %v5574
    %v5576 = vpop.f32.mrf.mxu0
    %5577 = vmatprep.mubr.f32.mxu0 0.0
    %5578 = vmatmul.mubr.f32.gmra.mxu0 %v5506
    %v5579 = vpop.f32.mrf.mxu0
    %v5580 = vadd.f32 0.0, %v5579
    %v5581 = vpop.f32.mrf.mxu0
    %5582 = vdwg.mxu0
    %v5583 = vadd.f32 %v5491, %v5575
    %v5584 = vadd.f32 %v5492, %v5580
    %s5585 = sadd.s32 %s5029, 2
    %s5586 = smul.u32 %s5585, 12
    %s5587 = sadd.s32 %s5586, 144
    %s5588 = scalar_lea.vmem [#allocation3], %s5587
    %v5589 = vld [vmem:[%s5588] sm:$0xff]
    %v5590 = vld [vmem:[%s5588 + $0x8] sm:$0x3]
    %s5591 = scalar_lea.vmem %s2, 192
    %v5592 = vld [vmem:[%s5591] sm:$0xff]
    %v5593 = vld [vmem:[%s5591 + $0x8] sm:$0xff]
    %v5594 = vld [vmem:[%s5591 + $0x10] sm:$0xff]
    %v5595 = vld [vmem:[%s5591 + $0x18] sm:$0xff]
    %v5597 = vsel %vm3626, %v5589, 0
    %v5600 = vsel %vm3626, %v5590, 0
    %5602 = vmatprep.subr.mxu0 0.0
    %5603 = vmatpush1.msra.mxu0 0.0
    %5604 = vmatprep.subr.mxu0 0.0
    %5605 = vmatpush1.msra.mxu0 0.0
    %5606 = vmatprep.subr.mxu0 0.0
    %5607 = vmatpush1.msra.mxu0 0.0
    %5608 = vmatprep.subr.mxu0 0.0
    %5609 = vmatpush1.msra.mxu0 0.0
    %5610 = vmatprep.subr.mxu0 0.0
    %5611 = vmatpush1.msra.mxu0 0.0
    %5612 = vmatprep.subr.mxu0 0.0
    %5613 = vmatpush1.msra.mxu0 0.0
    %5614 = vmatprep.subr.mxu0 0.0
    %5615 = vmatpush1.msra.mxu0 0.0
    %5616 = vmatprep.subr.mxu0 0.0
    %5617 = vmatpush1.msra.mxu0 0.0
    %5618 = vmatprep.subr.mxu0 0.0
    %5619 = vmatpush1.msra.mxu0 0.0
    %5620 = vmatprep.subr.mxu0 0.0
    %5621 = vmatpush1.msra.mxu0 0.0
    %5622 = vmatprep.subr.mxu0 0.0
    %5623 = vmatpush1.msra.mxu0 0.0
    %5624 = vmatprep.subr.mxu0 0.0
    %5625 = vmatpush1.msra.mxu0 0.0
    %5626 = vmatprep.subr.mxu0 0.0
    %5627 = vmatpush1.msra.mxu0 %v5595
    %5628 = vmatprep.subr.mxu0 0.0
    %5629 = vmatpush1.msra.mxu0 %v5594
    %5630 = vmatprep.subr.mxu0 0.0
    %5631 = vmatpush1.msra.mxu0 %v5593
    %5632 = vmatprep.subr.mxu0 0.0
    %5633 = vmatpush1.msra.mxu0 %v5592
    %5634 = vmatprep.subr.mxu0 0.0
    %5635 = vmatpush2.msra.mxu0 0.0
    %5636 = vmatprep.subr.mxu0 0.0
    %5637 = vmatpush2.msra.mxu0 0.0
    %5638 = vmatprep.subr.mxu0 0.0
    %5639 = vmatpush2.msra.mxu0 0.0
    %5640 = vmatprep.subr.mxu0 0.0
    %5641 = vmatpush2.msra.mxu0 0.0
    %5642 = vmatprep.subr.mxu0 0.0
    %5643 = vmatpush2.msra.mxu0 0.0
    %5644 = vmatprep.subr.mxu0 0.0
    %5645 = vmatpush2.msra.mxu0 0.0
    %5646 = vmatprep.subr.mxu0 0.0
    %5647 = vmatpush2.msra.mxu0 0.0
    %5648 = vmatprep.subr.mxu0 0.0
    %5649 = vmatpush2.msra.mxu0 0.0
    %5650 = vmatprep.subr.mxu0 0.0
    %5651 = vmatpush2.msra.mxu0 0.0
    %5652 = vmatprep.subr.mxu0 0.0
    %5653 = vmatpush2.msra.mxu0 0.0
    %5654 = vmatprep.subr.mxu0 0.0
    %5655 = vmatpush2.msra.mxu0 0.0
    %5656 = vmatprep.subr.mxu0 0.0
    %5657 = vmatpush2.msra.mxu0 0.0
    %5658 = vmatprep.subr.mxu0 0.0
    %5659 = vmatpush2.msra.mxu0 0.0
    %5660 = vmatprep.subr.mxu0 0.0
    %5661 = vmatpush2.msra.mxu0 0.0
    %5662 = vmatprep.subr.mxu0 0.0
    %5663 = vmatpush2.msra.mxu0 0.0
    %5664 = vmatprep.subr.mxu0 0.0
    %5665 = vmatpush2.msra.mxu0 0.0
    %5666 = vmatprep.mubr.f32.mxu0 0.0
    %5667 = vmatmul.mubr.f32.gmra.mxu0 %v5597
    %v5668 = vpop.f32.mrf.mxu0
    %v5669 = vadd.f32 0.0, %v5668
    %v5670 = vpop.f32.mrf.mxu0
    %5671 = vmatprep.mubr.f32.mxu0 0.0
    %5672 = vmatmul.mubr.f32.gmra.mxu0 %v5600
    %v5673 = vpop.f32.mrf.mxu0
    %v5674 = vadd.f32 0.0, %v5673
    %v5675 = vpop.f32.mrf.mxu0
    %5676 = vdwg.mxu0
    %v5677 = vadd.f32 %v5583, %v5669
    %v5678 = vadd.f32 %v5584, %v5674
    %s5679 = sadd.s32 %s5586, 145
    %s5680 = scalar_lea.vmem [#allocation3], %s5679
    %v5681 = vld [vmem:[%s5680] sm:$0xff]
    %v5682 = vld [vmem:[%s5680 + $0x8] sm:$0x3]
    %s5683 = scalar_lea.vmem %s2, 224
    %v5684 = vld [vmem:[%s5683] sm:$0xff]
    %v5685 = vld [vmem:[%s5683 + $0x8] sm:$0xff]
    %v5686 = vld [vmem:[%s5683 + $0x10] sm:$0xff]
    %v5687 = vld [vmem:[%s5683 + $0x18] sm:$0xff]
    %v5689 = vsel %vm3626, %v5681, 0
    %v5692 = vsel %vm3626, %v5682, 0
    %5694 = vmatprep.subr.mxu0 0.0
    %5695 = vmatpush1.msra.mxu0 0.0
    %5696 = vmatprep.subr.mxu0 0.0
    %5697 = vmatpush1.msra.mxu0 0.0
    %5698 = vmatprep.subr.mxu0 0.0
    %5699 = vmatpush1.msra.mxu0 0.0
    %5700 = vmatprep.subr.mxu0 0.0
    %5701 = vmatpush1.msra.mxu0 0.0
    %5702 = vmatprep.subr.mxu0 0.0
    %5703 = vmatpush1.msra.mxu0 0.0
    %5704 = vmatprep.subr.mxu0 0.0
    %5705 = vmatpush1.msra.mxu0 0.0
    %5706 = vmatprep.subr.mxu0 0.0
    %5707 = vmatpush1.msra.mxu0 0.0
    %5708 = vmatprep.subr.mxu0 0.0
    %5709 = vmatpush1.msra.mxu0 0.0
    %5710 = vmatprep.subr.mxu0 0.0
    %5711 = vmatpush1.msra.mxu0 0.0
    %5712 = vmatprep.subr.mxu0 0.0
    %5713 = vmatpush1.msra.mxu0 0.0
    %5714 = vmatprep.subr.mxu0 0.0
    %5715 = vmatpush1.msra.mxu0 0.0
    %5716 = vmatprep.subr.mxu0 0.0
    %5717 = vmatpush1.msra.mxu0 0.0
    %5718 = vmatprep.subr.mxu0 0.0
    %5719 = vmatpush1.msra.mxu0 %v5687
    %5720 = vmatprep.subr.mxu0 0.0
    %5721 = vmatpush1.msra.mxu0 %v5686
    %5722 = vmatprep.subr.mxu0 0.0
    %5723 = vmatpush1.msra.mxu0 %v5685
    %5724 = vmatprep.subr.mxu0 0.0
    %5725 = vmatpush1.msra.mxu0 %v5684
    %5726 = vmatprep.subr.mxu0 0.0
    %5727 = vmatpush2.msra.mxu0 0.0
    %5728 = vmatprep.subr.mxu0 0.0
    %5729 = vmatpush2.msra.mxu0 0.0
    %5730 = vmatprep.subr.mxu0 0.0
    %5731 = vmatpush2.msra.mxu0 0.0
    %5732 = vmatprep.subr.mxu0 0.0
    %5733 = vmatpush2.msra.mxu0 0.0
    %5734 = vmatprep.subr.mxu0 0.0
    %5735 = vmatpush2.msra.mxu0 0.0
    %5736 = vmatprep.subr.mxu0 0.0
    %5737 = vmatpush2.msra.mxu0 0.0
    %5738 = vmatprep.subr.mxu0 0.0
    %5739 = vmatpush2.msra.mxu0 0.0
    %5740 = vmatprep.subr.mxu0 0.0
    %5741 = vmatpush2.msra.mxu0 0.0
    %5742 = vmatprep.subr.mxu0 0.0
    %5743 = vmatpush2.msra.mxu0 0.0
    %5744 = vmatprep.subr.mxu0 0.0
    %5745 = vmatpush2.msra.mxu0 0.0
    %5746 = vmatprep.subr.mxu0 0.0
    %5747 = vmatpush2.msra.mxu0 0.0
    %5748 = vmatprep.subr.mxu0 0.0
    %5749 = vmatpush2.msra.mxu0 0.0
    %5750 = vmatprep.subr.mxu0 0.0
    %5751 = vmatpush2.msra.mxu0 0.0
    %5752 = vmatprep.subr.mxu0 0.0
    %5753 = vmatpush2.msra.mxu0 0.0
    %5754 = vmatprep.subr.mxu0 0.0
    %5755 = vmatpush2.msra.mxu0 0.0
    %5756 = vmatprep.subr.mxu0 0.0
    %5757 = vmatpush2.msra.mxu0 0.0
    %5758 = vmatprep.mubr.f32.mxu0 0.0
    %5759 = vmatmul.mubr.f32.gmra.mxu0 %v5689
    %v5760 = vpop.f32.mrf.mxu0
    %v5761 = vadd.f32 0.0, %v5760
    %v5762 = vpop.f32.mrf.mxu0
    %5763 = vmatprep.mubr.f32.mxu0 0.0
    %5764 = vmatmul.mubr.f32.gmra.mxu0 %v5692
    %v5765 = vpop.f32.mrf.mxu0
    %v5766 = vadd.f32 0.0, %v5765
    %v5767 = vpop.f32.mrf.mxu0
    %5768 = vdwg.mxu0
    %v5769 = vadd.f32 %v5677, %v5761
    %v5770 = vadd.f32 %v5678, %v5766
    %s5771 = sadd.s32 %s5586, 146
    %s5772 = scalar_lea.vmem [#allocation3], %s5771
    %v5773 = vld [vmem:[%s5772] sm:$0xff]
    %v5774 = vld [vmem:[%s5772 + $0x8] sm:$0x3]
    %s5775 = scalar_lea.vmem %s2, 256
    %v5776 = vld [vmem:[%s5775] sm:$0xff]
    %v5777 = vld [vmem:[%s5775 + $0x8] sm:$0xff]
    %v5778 = vld [vmem:[%s5775 + $0x10] sm:$0xff]
    %v5779 = vld [vmem:[%s5775 + $0x18] sm:$0xff]
    %v5781 = vsel %vm3626, %v5773, 0
    %v5784 = vsel %vm3626, %v5774, 0
    %5786 = vmatprep.subr.mxu0 0.0
    %5787 = vmatpush1.msra.mxu0 0.0
    %5788 = vmatprep.subr.mxu0 0.0
    %5789 = vmatpush1.msra.mxu0 0.0
    %5790 = vmatprep.subr.mxu0 0.0
    %5791 = vmatpush1.msra.mxu0 0.0
    %5792 = vmatprep.subr.mxu0 0.0
    %5793 = vmatpush1.msra.mxu0 0.0
    %5794 = vmatprep.subr.mxu0 0.0
    %5795 = vmatpush1.msra.mxu0 0.0
    %5796 = vmatprep.subr.mxu0 0.0
    %5797 = vmatpush1.msra.mxu0 0.0
    %5798 = vmatprep.subr.mxu0 0.0
    %5799 = vmatpush1.msra.mxu0 0.0
    %5800 = vmatprep.subr.mxu0 0.0
    %5801 = vmatpush1.msra.mxu0 0.0
    %5802 = vmatprep.subr.mxu0 0.0
    %5803 = vmatpush1.msra.mxu0 0.0
    %5804 = vmatprep.subr.mxu0 0.0
    %5805 = vmatpush1.msra.mxu0 0.0
    %5806 = vmatprep.subr.mxu0 0.0
    %5807 = vmatpush1.msra.mxu0 0.0
    %5808 = vmatprep.subr.mxu0 0.0
    %5809 = vmatpush1.msra.mxu0 0.0
    %5810 = vmatprep.subr.mxu0 0.0
    %5811 = vmatpush1.msra.mxu0 %v5779
    %5812 = vmatprep.subr.mxu0 0.0
    %5813 = vmatpush1.msra.mxu0 %v5778
    %5814 = vmatprep.subr.mxu0 0.0
    %5815 = vmatpush1.msra.mxu0 %v5777
    %5816 = vmatprep.subr.mxu0 0.0
    %5817 = vmatpush1.msra.mxu0 %v5776
    %5818 = vmatprep.subr.mxu0 0.0
    %5819 = vmatpush2.msra.mxu0 0.0
    %5820 = vmatprep.subr.mxu0 0.0
    %5821 = vmatpush2.msra.mxu0 0.0
    %5822 = vmatprep.subr.mxu0 0.0
    %5823 = vmatpush2.msra.mxu0 0.0
    %5824 = vmatprep.subr.mxu0 0.0
    %5825 = vmatpush2.msra.mxu0 0.0
    %5826 = vmatprep.subr.mxu0 0.0
    %5827 = vmatpush2.msra.mxu0 0.0
    %5828 = vmatprep.subr.mxu0 0.0
    %5829 = vmatpush2.msra.mxu0 0.0
    %5830 = vmatprep.subr.mxu0 0.0
    %5831 = vmatpush2.msra.mxu0 0.0
    %5832 = vmatprep.subr.mxu0 0.0
    %5833 = vmatpush2.msra.mxu0 0.0
    %5834 = vmatprep.subr.mxu0 0.0
    %5835 = vmatpush2.msra.mxu0 0.0
    %5836 = vmatprep.subr.mxu0 0.0
    %5837 = vmatpush2.msra.mxu0 0.0
    %5838 = vmatprep.subr.mxu0 0.0
    %5839 = vmatpush2.msra.mxu0 0.0
    %5840 = vmatprep.subr.mxu0 0.0
    %5841 = vmatpush2.msra.mxu0 0.0
    %5842 = vmatprep.subr.mxu0 0.0
    %5843 = vmatpush2.msra.mxu0 0.0
    %5844 = vmatprep.subr.mxu0 0.0
    %5845 = vmatpush2.msra.mxu0 0.0
    %5846 = vmatprep.subr.mxu0 0.0
    %5847 = vmatpush2.msra.mxu0 0.0
    %5848 = vmatprep.subr.mxu0 0.0
    %5849 = vmatpush2.msra.mxu0 0.0
    %5850 = vmatprep.mubr.f32.mxu0 0.0
    %5851 = vmatmul.mubr.f32.gmra.mxu0 %v5781
    %v5852 = vpop.f32.mrf.mxu0
    %v5853 = vadd.f32 0.0, %v5852
    %v5854 = vpop.f32.mrf.mxu0
    %5855 = vmatprep.mubr.f32.mxu0 0.0
    %5856 = vmatmul.mubr.f32.gmra.mxu0 %v5784
    %v5857 = vpop.f32.mrf.mxu0
    %v5858 = vadd.f32 0.0, %v5857
    %v5859 = vpop.f32.mrf.mxu0
    %5860 = vdwg.mxu0
    %v5861 = vadd.f32 %v5769, %v5853
    %v5862 = vadd.f32 %v5770, %v5858
    %s5863 = smul.u32 %s5029, 10
    %s5864 = sadd.s32 %s5863, 100
    %s5865 = scalar_lea.vmem [#allocation4], %s5864
    %5866 = vst [vmem:[%s5865] sm:$0xff] %v5861
    %5867 = vst [vmem:[%s5865 + $0x8] sm:$0x3] %v5862
    %vm5868 = vcmask 1041408
    %v5869 = vsel %vm5868, %v5862, 0.0
    %v5870 = vadd.f32 %v5861, %v5869
    %v5871 = vrot.slane %v5870, 4
    %v5872 = vadd.f32 %v5870, %v5871
    %v5873 = vrot.slane %v5872, 2
    %v5874 = vadd.f32 %v5872, %v5873
    %v5875 = vrot.slane %v5874, 1
    %v5876 = vadd.f32 %v5874, %v5875
    %v5877 = vadd.f32 %v5034, %v5876
  $region33: #{encoder_forward.1} parent=0 // loop_footer
    %s5033 = sadd.s32 1, %s5029
  $region34: #{encoder_forward.1} parent=0 // loop_footer_branch
    %5028 = sbr.rel target = $region30
  $region35: #{encoder_forward.1} parent=0 // loop_exit
    _
  %v5878 = vmul.f32 %v5034, 0.005
  %v5879 = vld [vmem:[#allocation4] sm:$0xff]
  %v5880 = vld [vmem:[#allocation4 + $0x8] sm:$0xff]
  %v5881 = vld [vmem:[#allocation4 + $0x10] sm:$0xff]
  %v5882 = vld [vmem:[#allocation4 + $0x18] sm:$0xff]
  %v5883 = vld [vmem:[#allocation4 + $0x20] sm:$0xff]
  %v5884 = vld [vmem:[#allocation4 + $0x28] sm:$0xff]
  %v5885 = vld [vmem:[#allocation4 + $0x30] sm:$0xff]
  %v5886 = vld [vmem:[#allocation4 + $0x38] sm:$0xff]
  %v5887 = vld [vmem:[#allocation4 + $0x40] sm:$0xff]
  %v5888 = vld [vmem:[#allocation4 + $0x48] sm:$0xff]
  %v5889 = vld [vmem:[#allocation4 + $0x50] sm:$0xff]
  %v5890 = vld [vmem:[#allocation4 + $0x58] sm:$0xff]
  %v5891 = vld [vmem:[#allocation4 + $0x60] sm:$0xff]
  %v5892 = vld [vmem:[#allocation4 + $0x68] sm:$0xff]
  %v5893 = vld [vmem:[#allocation4 + $0x70] sm:$0xff]
  %v5894 = vld [vmem:[#allocation4 + $0x78] sm:$0xff]
  %v5895 = vsub.f32 %v5879, %v5878
  %v5896 = vsub.f32 %v5880, %v5878
  %v5897 = vsub.f32 %v5881, %v5878
  %v5898 = vsub.f32 %v5882, %v5878
  %v5899 = vsub.f32 %v5883, %v5878
  %v5900 = vsub.f32 %v5884, %v5878
  %v5901 = vsub.f32 %v5885, %v5878
  %v5902 = vsub.f32 %v5886, %v5878
  %v5903 = vsub.f32 %v5887, %v5878
  %v5904 = vsub.f32 %v5888, %v5878
  %v5905 = vsub.f32 %v5889, %v5878
  %v5906 = vsub.f32 %v5890, %v5878
  %v5907 = vsub.f32 %v5891, %v5878
  %v5908 = vsub.f32 %v5892, %v5878
  %v5909 = vsub.f32 %v5893, %v5878
  %v5910 = vsub.f32 %v5894, %v5878
  %v5911 = vmul.f32 %v5895, %v5895
  %v5912 = vmul.f32 %v5896, %v5896
  %v5913 = vmul.f32 %v5897, %v5897
  %v5914 = vmul.f32 %v5898, %v5898
  %v5915 = vmul.f32 %v5899, %v5899
  %v5916 = vmul.f32 %v5900, %v5900
  %v5917 = vmul.f32 %v5901, %v5901
  %v5918 = vmul.f32 %v5902, %v5902
  %v5919 = vmul.f32 %v5903, %v5903
  %v5920 = vmul.f32 %v5904, %v5904
  %v5921 = vmul.f32 %v5905, %v5905
  %v5922 = vmul.f32 %v5906, %v5906
  %v5923 = vmul.f32 %v5907, %v5907
  %v5924 = vmul.f32 %v5908, %v5908
  %v5925 = vmul.f32 %v5909, %v5909
  %v5926 = vmul.f32 %v5910, %v5910
  %v5927 = vadd.f32 %v5911, %v5912
  %v5928 = vadd.f32 %v5927, %v5913
  %v5929 = vadd.f32 %v5928, %v5914
  %v5930 = vadd.f32 %v5929, %v5915
  %v5931 = vadd.f32 %v5930, %v5916
  %v5932 = vadd.f32 %v5931, %v5917
  %v5933 = vadd.f32 %v5932, %v5918
  %v5934 = vadd.f32 %v5933, %v5919
  %v5935 = vadd.f32 %v5934, %v5920
  %v5936 = vadd.f32 %v5935, %v5921
  %v5937 = vadd.f32 %v5936, %v5922
  %v5938 = vadd.f32 %v5937, %v5923
  %v5939 = vadd.f32 %v5938, %v5924
  %v5940 = vadd.f32 %v5939, %v5925
  %v5941 = vadd.f32 %v5940, %v5926
  %v5942 = vrot.slane %v5941, 4
  %v5943 = vadd.f32 %v5941, %v5942
  %v5944 = vrot.slane %v5943, 2
  %v5945 = vadd.f32 %v5943, %v5944
  %v5946 = vrot.slane %v5945, 1
  %v5947 = vadd.f32 %v5945, %v5946
  %v5948 = vadd.f32 %v5947, 0.0
  %v5949 = vld [vmem:[#allocation4 + $0x80] sm:$0xff]
  %v5950 = vld [vmem:[#allocation4 + $0x88] sm:$0xff]
  %v5951 = vld [vmem:[#allocation4 + $0x90] sm:$0xff]
  %v5952 = vld [vmem:[#allocation4 + $0x98] sm:$0xff]
  %v5953 = vld [vmem:[#allocation4 + $0xa0] sm:$0xff]
  %v5954 = vld [vmem:[#allocation4 + $0xa8] sm:$0xff]
  %v5955 = vld [vmem:[#allocation4 + $0xb0] sm:$0xff]
  %v5956 = vld [vmem:[#allocation4 + $0xb8] sm:$0xff]
  %v5957 = vld [vmem:[#allocation4 + $0xc0] sm:$0xff]
  %v5958 = vsub.f32 %v5949, %v5878
  %v5959 = vsub.f32 %v5950, %v5878
  %v5960 = vsub.f32 %v5951, %v5878
  %v5961 = vsub.f32 %v5952, %v5878
  %v5962 = vsub.f32 %v5953, %v5878
  %v5963 = vsub.f32 %v5954, %v5878
  %v5964 = vsub.f32 %v5955, %v5878
  %v5965 = vsub.f32 %v5956, %v5878
  %v5966 = vsub.f32 %v5957, %v5878
  %v5967 = vmul.f32 %v5958, %v5958
  %v5968 = vmul.f32 %v5959, %v5959
  %v5969 = vmul.f32 %v5960, %v5960
  %v5970 = vmul.f32 %v5961, %v5961
  %v5971 = vmul.f32 %v5962, %v5962
  %v5972 = vmul.f32 %v5963, %v5963
  %v5973 = vmul.f32 %v5964, %v5964
  %v5974 = vmul.f32 %v5965, %v5965
  %v5975 = vmul.f32 %v5966, %v5966
  %v5976 = vadd.f32 %v5967, %v5968
  %v5977 = vadd.f32 %v5976, %v5969
  %v5978 = vadd.f32 %v5977, %v5970
  %v5979 = vadd.f32 %v5978, %v5971
  %v5980 = vadd.f32 %v5979, %v5972
  %v5981 = vadd.f32 %v5980, %v5973
  %v5982 = vadd.f32 %v5981, %v5974
  %v5983 = vadd.f32 %v5982, %v5975
  %v5984 = vrot.slane %v5983, 4
  %v5985 = vadd.f32 %v5983, %v5984
  %v5986 = vrot.slane %v5985, 2
  %v5987 = vadd.f32 %v5985, %v5986
  %v5988 = vrot.slane %v5987, 1
  %v5989 = vadd.f32 %v5987, %v5988
  %v5990 = vadd.f32 %v5948, %v5989
  %v5991 = vmul.f32 %v5990, 0.005
  %v5992 = vadd.f32 %v5991, 1e-05
  %v5993 = vrsqrt.pop %v5992
  %v5994 = vmul.f32 %v20, %v5993
  %v5995 = vmul.f32 %v5878, %v5994
  %v5997 = vrot.slane %v5995, 7
  %v5999 = vsub.f32 %v20, %v5997
  %v6000 = vlaneseq
  %v6001 = vshrl.u32 %v6000, 7
  %v6002 = vsub.s32 2, %v6001
  %v6003 = vrot.slane %v5994, %v6002
  %v6004 = vmul.f32 %v5879, %v6003
  %v6005 = vmul.f32 %v5880, %v6003
  %v6006 = vmul.f32 %v5881, %v6003
  %v6007 = vmul.f32 %v5882, %v6003
  %v6008 = vmul.f32 %v5883, %v6003
  %v6009 = vmul.f32 %v5884, %v6003
  %v6010 = vmul.f32 %v5885, %v6003
  %v6011 = vmul.f32 %v5886, %v6003
  %v6012 = vmul.f32 %v5887, %v6003
  %v6013 = vmul.f32 %v5888, %v6003
  %v6014 = vmul.f32 %v5889, %v6003
  %v6015 = vmul.f32 %v5890, %v6003
  %v6016 = vmul.f32 %v5891, %v6003
  %v6017 = vmul.f32 %v5892, %v6003
  %v6018 = vmul.f32 %v5893, %v6003
  %v6019 = vmul.f32 %v5894, %v6003
  %v6020 = vlaneseq
  %v6021 = vshrl.u32 %v6020, 7
  %v6022 = vsub.s32 3, %v6021
  %v6023 = vrot.slane %v5999, %v6022
  %v6024 = vadd.f32 %v6004, %v6023
  %v6025 = vadd.f32 %v6005, %v6023
  %v6026 = vadd.f32 %v6006, %v6023
  %v6027 = vadd.f32 %v6007, %v6023
  %v6028 = vadd.f32 %v6008, %v6023
  %v6029 = vadd.f32 %v6009, %v6023
  %v6030 = vadd.f32 %v6010, %v6023
  %v6031 = vadd.f32 %v6011, %v6023
  %v6032 = vadd.f32 %v6012, %v6023
  %v6033 = vadd.f32 %v6013, %v6023
  %v6034 = vadd.f32 %v6014, %v6023
  %v6035 = vadd.f32 %v6015, %v6023
  %v6036 = vadd.f32 %v6016, %v6023
  %v6037 = vadd.f32 %v6017, %v6023
  %v6038 = vadd.f32 %v6018, %v6023
  %v6039 = vadd.f32 %v6019, %v6023
  %v6040 = vmax.f32 %v6024, 0.0
  %v6041 = vmax.f32 %v6025, 0.0
  %v6042 = vmax.f32 %v6026, 0.0
  %v6043 = vmax.f32 %v6027, 0.0
  %v6044 = vmax.f32 %v6028, 0.0
  %v6045 = vmax.f32 %v6029, 0.0
  %v6046 = vmax.f32 %v6030, 0.0
  %v6047 = vmax.f32 %v6031, 0.0
  %v6048 = vmax.f32 %v6032, 0.0
  %v6049 = vmax.f32 %v6033, 0.0
  %v6050 = vmax.f32 %v6034, 0.0
  %v6051 = vmax.f32 %v6035, 0.0
  %v6052 = vmax.f32 %v6036, 0.0
  %v6053 = vmax.f32 %v6037, 0.0
  %v6054 = vmax.f32 %v6038, 0.0
  %v6055 = vmax.f32 %v6039, 0.0
  %6056 = vst [vmem:[#allocation4] sm:$0xff] %v6040
  %6057 = vst [vmem:[#allocation4 + $0x8] sm:$0xff] %v6041
  %6058 = vst [vmem:[#allocation4 + $0x10] sm:$0xff] %v6042
  %6059 = vst [vmem:[#allocation4 + $0x18] sm:$0xff] %v6043
  %6060 = vst [vmem:[#allocation4 + $0x20] sm:$0xff] %v6044
  %6061 = vst [vmem:[#allocation4 + $0x28] sm:$0xff] %v6045
  %6062 = vst [vmem:[#allocation4 + $0x30] sm:$0xff] %v6046
  %6063 = vst [vmem:[#allocation4 + $0x38] sm:$0xff] %v6047
  %6064 = vst [vmem:[#allocation4 + $0x40] sm:$0xff] %v6048
  %6065 = vst [vmem:[#allocation4 + $0x48] sm:$0xff] %v6049
  %6066 = vst [vmem:[#allocation4 + $0x50] sm:$0xff] %v6050
  %6067 = vst [vmem:[#allocation4 + $0x58] sm:$0xff] %v6051
  %6068 = vst [vmem:[#allocation4 + $0x60] sm:$0xff] %v6052
  %6069 = vst [vmem:[#allocation4 + $0x68] sm:$0xff] %v6053
  %6070 = vst [vmem:[#allocation4 + $0x70] sm:$0xff] %v6054
  %6071 = vst [vmem:[#allocation4 + $0x78] sm:$0xff] %v6055
  %v6072 = vld [vmem:[#allocation4 + $0x80] sm:$0xff]
  %v6073 = vld [vmem:[#allocation4 + $0x88] sm:$0xff]
  %v6074 = vld [vmem:[#allocation4 + $0x90] sm:$0xff]
  %v6075 = vld [vmem:[#allocation4 + $0x98] sm:$0xff]
  %v6076 = vld [vmem:[#allocation4 + $0xa0] sm:$0xff]
  %v6077 = vld [vmem:[#allocation4 + $0xa8] sm:$0xff]
  %v6078 = vld [vmem:[#allocation4 + $0xb0] sm:$0xff]
  %v6079 = vld [vmem:[#allocation4 + $0xb8] sm:$0xff]
  %v6080 = vld [vmem:[#allocation4 + $0xc0] sm:$0xff]
  %v6081 = vmul.f32 %v6072, %v6003
  %v6082 = vmul.f32 %v6073, %v6003
  %v6083 = vmul.f32 %v6074, %v6003
  %v6084 = vmul.f32 %v6075, %v6003
  %v6085 = vmul.f32 %v6076, %v6003
  %v6086 = vmul.f32 %v6077, %v6003
  %v6087 = vmul.f32 %v6078, %v6003
  %v6088 = vmul.f32 %v6079, %v6003
  %v6089 = vmul.f32 %v6080, %v6003
  %v6090 = vadd.f32 %v6081, %v6023
  %v6091 = vadd.f32 %v6082, %v6023
  %v6092 = vadd.f32 %v6083, %v6023
  %v6093 = vadd.f32 %v6084, %v6023
  %v6094 = vadd.f32 %v6085, %v6023
  %v6095 = vadd.f32 %v6086, %v6023
  %v6096 = vadd.f32 %v6087, %v6023
  %v6097 = vadd.f32 %v6088, %v6023
  %v6098 = vadd.f32 %v6089, %v6023
  %v6099 = vmax.f32 %v6090, 0.0
  %v6100 = vmax.f32 %v6091, 0.0
  %v6101 = vmax.f32 %v6092, 0.0
  %v6102 = vmax.f32 %v6093, 0.0
  %v6103 = vmax.f32 %v6094, 0.0
  %v6104 = vmax.f32 %v6095, 0.0
  %v6105 = vmax.f32 %v6096, 0.0
  %v6106 = vmax.f32 %v6097, 0.0
  %v6107 = vmax.f32 %v6098, 0.0
  %6108 = vst [vmem:[#allocation4 + $0x80] sm:$0xff] %v6099
  %6109 = vst [vmem:[#allocation4 + $0x88] sm:$0xff] %v6100
  %6110 = vst [vmem:[#allocation4 + $0x90] sm:$0xff] %v6101
  %6111 = vst [vmem:[#allocation4 + $0x98] sm:$0xff] %v6102
  %6112 = vst [vmem:[#allocation4 + $0xa0] sm:$0xff] %v6103
  %6113 = vst [vmem:[#allocation4 + $0xa8] sm:$0xff] %v6104
  %6114 = vst [vmem:[#allocation4 + $0xb0] sm:$0xff] %v6105
  %6115 = vst [vmem:[#allocation4 + $0xb8] sm:$0xff] %v6106
  %6116 = vst [vmem:[#allocation4 + $0xc0] sm:$0xff] %v6107
  loop: start=0, step=1, limit=8
  $region36: #{encoder_forward.1} parent=0 // loop_pre_header
    _
  $region37: #{encoder_forward.1} parent=0 // loop_header
    %s6118 = sphi 0, %s6122
    %p6119 = scmp.ge.s32.totalorder %s6118, 8
    %v6123 = vphi 0.0, %v6907
  $region38: #{encoder_forward.1} parent=0 // loop_header_branch
    %6121 = sbr.rel (%p6119) target = $region42
  $region39: #{encoder_forward.1} parent=0 // loop_body
    %s6124 = smul.u32 %s6118, 10
    %s6125 = scalar_lea.vmem [#allocation4], %s6124
    %v6126 = vld [vmem:[%s6125] sm:$0xff]
    %v6127 = vld [vmem:[%s3] sm:$0xff]
    %v6128 = vld [vmem:[%s3 + $0x8] sm:$0xff]
    %v6129 = vld [vmem:[%s3 + $0x10] sm:$0xff]
    %v6130 = vld [vmem:[%s3 + $0x18] sm:$0xff]
    %v6131 = vld [vmem:[%s3 + $0x20] sm:$0xff]
    %v6132 = vld [vmem:[%s3 + $0x28] sm:$0xff]
    %v6133 = vld [vmem:[%s3 + $0x30] sm:$0xff]
    %v6134 = vld [vmem:[%s3 + $0x38] sm:$0xff]
    %s6135 = sadd.s32 %s6124, 1
    %s6136 = scalar_lea.vmem [#allocation4], %s6135
    %v6137 = vld [vmem:[%s6136] sm:$0xff]
    %s6138 = scalar_lea.vmem %s3, 64
    %v6139 = vld [vmem:[%s6138] sm:$0xff]
    %v6140 = vld [vmem:[%s6138 + $0x8] sm:$0xff]
    %v6141 = vld [vmem:[%s6138 + $0x10] sm:$0xff]
    %v6142 = vld [vmem:[%s6138 + $0x18] sm:$0xff]
    %v6143 = vld [vmem:[%s6138 + $0x20] sm:$0xff]
    %v6144 = vld [vmem:[%s6138 + $0x28] sm:$0xff]
    %v6145 = vld [vmem:[%s6138 + $0x30] sm:$0xff]
    %v6146 = vld [vmem:[%s6138 + $0x38] sm:$0xff]
    %vm6147 = vcmask 523264
    %v6149 = vsel %vm6147, %v6137, 0
    %6151 = vmatprep.subr.mxu0 0.0
    %6152 = vmatpush1.msra.mxu0 0.0
    %6153 = vmatprep.subr.mxu0 0.0
    %6154 = vmatpush1.msra.mxu0 0.0
    %6155 = vmatprep.subr.mxu0 0.0
    %6156 = vmatpush1.msra.mxu0 0.0
    %6157 = vmatprep.subr.mxu0 0.0
    %6158 = vmatpush1.msra.mxu0 0.0
    %6159 = vmatprep.subr.mxu0 0.0
    %6160 = vmatpush1.msra.mxu0 0.0
    %6161 = vmatprep.subr.mxu0 0.0
    %6162 = vmatpush1.msra.mxu0 0.0
    %6163 = vmatprep.subr.mxu0 0.0
    %6164 = vmatpush1.msra.mxu0 0.0
    %6165 = vmatprep.subr.mxu0 0.0
    %6166 = vmatpush1.msra.mxu0 0.0
    %6167 = vmatprep.subr.mxu0 0.0
    %6168 = vmatpush1.msra.mxu0 %v6146
    %6169 = vmatprep.subr.mxu0 0.0
    %6170 = vmatpush1.msra.mxu0 %v6145
    %6171 = vmatprep.subr.mxu0 0.0
    %6172 = vmatpush1.msra.mxu0 %v6144
    %6173 = vmatprep.subr.mxu0 0.0
    %6174 = vmatpush1.msra.mxu0 %v6143
    %6175 = vmatprep.subr.mxu0 0.0
    %6176 = vmatpush1.msra.mxu0 %v6142
    %6177 = vmatprep.subr.mxu0 0.0
    %6178 = vmatpush1.msra.mxu0 %v6141
    %6179 = vmatprep.subr.mxu0 0.0
    %6180 = vmatpush1.msra.mxu0 %v6140
    %6181 = vmatprep.subr.mxu0 0.0
    %6182 = vmatpush1.msra.mxu0 %v6139
    %6183 = vmatprep.subr.mxu0 0.0
    %6184 = vmatpush2.msra.mxu0 0.0
    %6185 = vmatprep.subr.mxu0 0.0
    %6186 = vmatpush2.msra.mxu0 0.0
    %6187 = vmatprep.subr.mxu0 0.0
    %6188 = vmatpush2.msra.mxu0 0.0
    %6189 = vmatprep.subr.mxu0 0.0
    %6190 = vmatpush2.msra.mxu0 0.0
    %6191 = vmatprep.subr.mxu0 0.0
    %6192 = vmatpush2.msra.mxu0 0.0
    %6193 = vmatprep.subr.mxu0 0.0
    %6194 = vmatpush2.msra.mxu0 0.0
    %6195 = vmatprep.subr.mxu0 0.0
    %6196 = vmatpush2.msra.mxu0 0.0
    %6197 = vmatprep.subr.mxu0 0.0
    %6198 = vmatpush2.msra.mxu0 0.0
    %6199 = vmatprep.subr.mxu0 0.0
    %6200 = vmatpush2.msra.mxu0 0.0
    %6201 = vmatprep.subr.mxu0 0.0
    %6202 = vmatpush2.msra.mxu0 0.0
    %6203 = vmatprep.subr.mxu0 0.0
    %6204 = vmatpush2.msra.mxu0 0.0
    %6205 = vmatprep.subr.mxu0 0.0
    %6206 = vmatpush2.msra.mxu0 0.0
    %6207 = vmatprep.subr.mxu0 0.0
    %6208 = vmatpush2.msra.mxu0 0.0
    %6209 = vmatprep.subr.mxu0 0.0
    %6210 = vmatpush2.msra.mxu0 0.0
    %6211 = vmatprep.subr.mxu0 0.0
    %6212 = vmatpush2.msra.mxu0 0.0
    %6213 = vmatprep.subr.mxu0 0.0
    %6214 = vmatpush2.msra.mxu0 0.0
    %6215 = vmatprep.mubr.f32.mxu0 0.0
    %6216 = vmatmul.mubr.f32.gmra.mxu0 %v6149
    %v6217 = vpop.f32.mrf.mxu0
    %v6218 = vadd.f32 0.0, %v6217
    %v6219 = vpop.f32.mrf.mxu0
    %6220 = vdwg.mxu0
    %v6222 = vsel %vm6147, %v6126, 0
    %6224 = vmatprep.subr.mxu0 0.0
    %6225 = vmatpush1.msra.mxu0 0.0
    %6226 = vmatprep.subr.mxu0 0.0
    %6227 = vmatpush1.msra.mxu0 0.0
    %6228 = vmatprep.subr.mxu0 0.0
    %6229 = vmatpush1.msra.mxu0 0.0
    %6230 = vmatprep.subr.mxu0 0.0
    %6231 = vmatpush1.msra.mxu0 0.0
    %6232 = vmatprep.subr.mxu0 0.0
    %6233 = vmatpush1.msra.mxu0 0.0
    %6234 = vmatprep.subr.mxu0 0.0
    %6235 = vmatpush1.msra.mxu0 0.0
    %6236 = vmatprep.subr.mxu0 0.0
    %6237 = vmatpush1.msra.mxu0 0.0
    %6238 = vmatprep.subr.mxu0 0.0
    %6239 = vmatpush1.msra.mxu0 0.0
    %6240 = vmatprep.subr.mxu0 0.0
    %6241 = vmatpush1.msra.mxu0 %v6134
    %6242 = vmatprep.subr.mxu0 0.0
    %6243 = vmatpush1.msra.mxu0 %v6133
    %6244 = vmatprep.subr.mxu0 0.0
    %6245 = vmatpush1.msra.mxu0 %v6132
    %6246 = vmatprep.subr.mxu0 0.0
    %6247 = vmatpush1.msra.mxu0 %v6131
    %6248 = vmatprep.subr.mxu0 0.0
    %6249 = vmatpush1.msra.mxu0 %v6130
    %6250 = vmatprep.subr.mxu0 0.0
    %6251 = vmatpush1.msra.mxu0 %v6129
    %6252 = vmatprep.subr.mxu0 0.0
    %6253 = vmatpush1.msra.mxu0 %v6128
    %6254 = vmatprep.subr.mxu0 0.0
    %6255 = vmatpush1.msra.mxu0 %v6127
    %6256 = vmatprep.subr.mxu0 0.0
    %6257 = vmatpush2.msra.mxu0 0.0
    %6258 = vmatprep.subr.mxu0 0.0
    %6259 = vmatpush2.msra.mxu0 0.0
    %6260 = vmatprep.subr.mxu0 0.0
    %6261 = vmatpush2.msra.mxu0 0.0
    %6262 = vmatprep.subr.mxu0 0.0
    %6263 = vmatpush2.msra.mxu0 0.0
    %6264 = vmatprep.subr.mxu0 0.0
    %6265 = vmatpush2.msra.mxu0 0.0
    %6266 = vmatprep.subr.mxu0 0.0
    %6267 = vmatpush2.msra.mxu0 0.0
    %6268 = vmatprep.subr.mxu0 0.0
    %6269 = vmatpush2.msra.mxu0 0.0
    %6270 = vmatprep.subr.mxu0 0.0
    %6271 = vmatpush2.msra.mxu0 0.0
    %6272 = vmatprep.subr.mxu0 0.0
    %6273 = vmatpush2.msra.mxu0 0.0
    %6274 = vmatprep.subr.mxu0 0.0
    %6275 = vmatpush2.msra.mxu0 0.0
    %6276 = vmatprep.subr.mxu0 0.0
    %6277 = vmatpush2.msra.mxu0 0.0
    %6278 = vmatprep.subr.mxu0 0.0
    %6279 = vmatpush2.msra.mxu0 0.0
    %6280 = vmatprep.subr.mxu0 0.0
    %6281 = vmatpush2.msra.mxu0 0.0
    %6282 = vmatprep.subr.mxu0 0.0
    %6283 = vmatpush2.msra.mxu0 0.0
    %6284 = vmatprep.subr.mxu0 0.0
    %6285 = vmatpush2.msra.mxu0 0.0
    %6286 = vmatprep.subr.mxu0 0.0
    %6287 = vmatpush2.msra.mxu0 0.0
    %6288 = vmatprep.mubr.f32.mxu0 0.0
    %6289 = vmatmul.mubr.f32.gmra.mxu0 %v6222
    %v6290 = vpop.f32.mrf.mxu0
    %v6291 = vadd.f32 %v6218, %v6290
    %v6292 = vpop.f32.mrf.mxu0
    %6293 = vdwg.mxu0
    %s6294 = sadd.s32 %s6124, 2
    %s6295 = scalar_lea.vmem [#allocation4], %s6294
    %v6296 = vld [vmem:[%s6295] sm:$0xff]
    %s6297 = scalar_lea.vmem %s3, 128
    %v6298 = vld [vmem:[%s6297] sm:$0xff]
    %v6299 = vld [vmem:[%s6297 + $0x8] sm:$0xff]
    %v6300 = vld [vmem:[%s6297 + $0x10] sm:$0xff]
    %v6301 = vld [vmem:[%s6297 + $0x18] sm:$0xff]
    %v6302 = vld [vmem:[%s6297 + $0x20] sm:$0xff]
    %v6303 = vld [vmem:[%s6297 + $0x28] sm:$0xff]
    %v6304 = vld [vmem:[%s6297 + $0x30] sm:$0xff]
    %v6305 = vld [vmem:[%s6297 + $0x38] sm:$0xff]
    %v6307 = vsel %vm6147, %v6296, 0
    %6309 = vmatprep.subr.mxu0 0.0
    %6310 = vmatpush1.msra.mxu0 0.0
    %6311 = vmatprep.subr.mxu0 0.0
    %6312 = vmatpush1.msra.mxu0 0.0
    %6313 = vmatprep.subr.mxu0 0.0
    %6314 = vmatpush1.msra.mxu0 0.0
    %6315 = vmatprep.subr.mxu0 0.0
    %6316 = vmatpush1.msra.mxu0 0.0
    %6317 = vmatprep.subr.mxu0 0.0
    %6318 = vmatpush1.msra.mxu0 0.0
    %6319 = vmatprep.subr.mxu0 0.0
    %6320 = vmatpush1.msra.mxu0 0.0
    %6321 = vmatprep.subr.mxu0 0.0
    %6322 = vmatpush1.msra.mxu0 0.0
    %6323 = vmatprep.subr.mxu0 0.0
    %6324 = vmatpush1.msra.mxu0 0.0
    %6325 = vmatprep.subr.mxu0 0.0
    %6326 = vmatpush1.msra.mxu0 %v6305
    %6327 = vmatprep.subr.mxu0 0.0
    %6328 = vmatpush1.msra.mxu0 %v6304
    %6329 = vmatprep.subr.mxu0 0.0
    %6330 = vmatpush1.msra.mxu0 %v6303
    %6331 = vmatprep.subr.mxu0 0.0
    %6332 = vmatpush1.msra.mxu0 %v6302
    %6333 = vmatprep.subr.mxu0 0.0
    %6334 = vmatpush1.msra.mxu0 %v6301
    %6335 = vmatprep.subr.mxu0 0.0
    %6336 = vmatpush1.msra.mxu0 %v6300
    %6337 = vmatprep.subr.mxu0 0.0
    %6338 = vmatpush1.msra.mxu0 %v6299
    %6339 = vmatprep.subr.mxu0 0.0
    %6340 = vmatpush1.msra.mxu0 %v6298
    %6341 = vmatprep.subr.mxu0 0.0
    %6342 = vmatpush2.msra.mxu0 0.0
    %6343 = vmatprep.subr.mxu0 0.0
    %6344 = vmatpush2.msra.mxu0 0.0
    %6345 = vmatprep.subr.mxu0 0.0
    %6346 = vmatpush2.msra.mxu0 0.0
    %6347 = vmatprep.subr.mxu0 0.0
    %6348 = vmatpush2.msra.mxu0 0.0
    %6349 = vmatprep.subr.mxu0 0.0
    %6350 = vmatpush2.msra.mxu0 0.0
    %6351 = vmatprep.subr.mxu0 0.0
    %6352 = vmatpush2.msra.mxu0 0.0
    %6353 = vmatprep.subr.mxu0 0.0
    %6354 = vmatpush2.msra.mxu0 0.0
    %6355 = vmatprep.subr.mxu0 0.0
    %6356 = vmatpush2.msra.mxu0 0.0
    %6357 = vmatprep.subr.mxu0 0.0
    %6358 = vmatpush2.msra.mxu0 0.0
    %6359 = vmatprep.subr.mxu0 0.0
    %6360 = vmatpush2.msra.mxu0 0.0
    %6361 = vmatprep.subr.mxu0 0.0
    %6362 = vmatpush2.msra.mxu0 0.0
    %6363 = vmatprep.subr.mxu0 0.0
    %6364 = vmatpush2.msra.mxu0 0.0
    %6365 = vmatprep.subr.mxu0 0.0
    %6366 = vmatpush2.msra.mxu0 0.0
    %6367 = vmatprep.subr.mxu0 0.0
    %6368 = vmatpush2.msra.mxu0 0.0
    %6369 = vmatprep.subr.mxu0 0.0
    %6370 = vmatpush2.msra.mxu0 0.0
    %6371 = vmatprep.subr.mxu0 0.0
    %6372 = vmatpush2.msra.mxu0 0.0
    %6373 = vmatprep.mubr.f32.mxu0 0.0
    %6374 = vmatmul.mubr.f32.gmra.mxu0 %v6307
    %v6375 = vpop.f32.mrf.mxu0
    %v6376 = vadd.f32 0.0, %v6375
    %v6377 = vpop.f32.mrf.mxu0
    %6378 = vdwg.mxu0
    %v6379 = vadd.f32 %v6291, %v6376
    %s6380 = sadd.s32 %s6118, 1
    %s6381 = smul.u32 %s6380, 10
    %s6382 = scalar_lea.vmem [#allocation4], %s6381
    %v6383 = vld [vmem:[%s6382] sm:$0xff]
    %s6384 = scalar_lea.vmem %s3, 192
    %v6385 = vld [vmem:[%s6384] sm:$0xff]
    %v6386 = vld [vmem:[%s6384 + $0x8] sm:$0xff]
    %v6387 = vld [vmem:[%s6384 + $0x10] sm:$0xff]
    %v6388 = vld [vmem:[%s6384 + $0x18] sm:$0xff]
    %v6389 = vld [vmem:[%s6384 + $0x20] sm:$0xff]
    %v6390 = vld [vmem:[%s6384 + $0x28] sm:$0xff]
    %v6391 = vld [vmem:[%s6384 + $0x30] sm:$0xff]
    %v6392 = vld [vmem:[%s6384 + $0x38] sm:$0xff]
    %v6394 = vsel %vm6147, %v6383, 0
    %6396 = vmatprep.subr.mxu0 0.0
    %6397 = vmatpush1.msra.mxu0 0.0
    %6398 = vmatprep.subr.mxu0 0.0
    %6399 = vmatpush1.msra.mxu0 0.0
    %6400 = vmatprep.subr.mxu0 0.0
    %6401 = vmatpush1.msra.mxu0 0.0
    %6402 = vmatprep.subr.mxu0 0.0
    %6403 = vmatpush1.msra.mxu0 0.0
    %6404 = vmatprep.subr.mxu0 0.0
    %6405 = vmatpush1.msra.mxu0 0.0
    %6406 = vmatprep.subr.mxu0 0.0
    %6407 = vmatpush1.msra.mxu0 0.0
    %6408 = vmatprep.subr.mxu0 0.0
    %6409 = vmatpush1.msra.mxu0 0.0
    %6410 = vmatprep.subr.mxu0 0.0
    %6411 = vmatpush1.msra.mxu0 0.0
    %6412 = vmatprep.subr.mxu0 0.0
    %6413 = vmatpush1.msra.mxu0 %v6392
    %6414 = vmatprep.subr.mxu0 0.0
    %6415 = vmatpush1.msra.mxu0 %v6391
    %6416 = vmatprep.subr.mxu0 0.0
    %6417 = vmatpush1.msra.mxu0 %v6390
    %6418 = vmatprep.subr.mxu0 0.0
    %6419 = vmatpush1.msra.mxu0 %v6389
    %6420 = vmatprep.subr.mxu0 0.0
    %6421 = vmatpush1.msra.mxu0 %v6388
    %6422 = vmatprep.subr.mxu0 0.0
    %6423 = vmatpush1.msra.mxu0 %v6387
    %6424 = vmatprep.subr.mxu0 0.0
    %6425 = vmatpush1.msra.mxu0 %v6386
    %6426 = vmatprep.subr.mxu0 0.0
    %6427 = vmatpush1.msra.mxu0 %v6385
    %6428 = vmatprep.subr.mxu0 0.0
    %6429 = vmatpush2.msra.mxu0 0.0
    %6430 = vmatprep.subr.mxu0 0.0
    %6431 = vmatpush2.msra.mxu0 0.0
    %6432 = vmatprep.subr.mxu0 0.0
    %6433 = vmatpush2.msra.mxu0 0.0
    %6434 = vmatprep.subr.mxu0 0.0
    %6435 = vmatpush2.msra.mxu0 0.0
    %6436 = vmatprep.subr.mxu0 0.0
    %6437 = vmatpush2.msra.mxu0 0.0
    %6438 = vmatprep.subr.mxu0 0.0
    %6439 = vmatpush2.msra.mxu0 0.0
    %6440 = vmatprep.subr.mxu0 0.0
    %6441 = vmatpush2.msra.mxu0 0.0
    %6442 = vmatprep.subr.mxu0 0.0
    %6443 = vmatpush2.msra.mxu0 0.0
    %6444 = vmatprep.subr.mxu0 0.0
    %6445 = vmatpush2.msra.mxu0 0.0
    %6446 = vmatprep.subr.mxu0 0.0
    %6447 = vmatpush2.msra.mxu0 0.0
    %6448 = vmatprep.subr.mxu0 0.0
    %6449 = vmatpush2.msra.mxu0 0.0
    %6450 = vmatprep.subr.mxu0 0.0
    %6451 = vmatpush2.msra.mxu0 0.0
    %6452 = vmatprep.subr.mxu0 0.0
    %6453 = vmatpush2.msra.mxu0 0.0
    %6454 = vmatprep.subr.mxu0 0.0
    %6455 = vmatpush2.msra.mxu0 0.0
    %6456 = vmatprep.subr.mxu0 0.0
    %6457 = vmatpush2.msra.mxu0 0.0
    %6458 = vmatprep.subr.mxu0 0.0
    %6459 = vmatpush2.msra.mxu0 0.0
    %6460 = vmatprep.mubr.f32.mxu0 0.0
    %6461 = vmatmul.mubr.f32.gmra.mxu0 %v6394
    %v6462 = vpop.f32.mrf.mxu0
    %v6463 = vadd.f32 0.0, %v6462
    %v6464 = vpop.f32.mrf.mxu0
    %6465 = vdwg.mxu0
    %v6466 = vadd.f32 %v6379, %v6463
    %s6467 = sadd.s32 %s6381, 1
    %s6468 = scalar_lea.vmem [#allocation4], %s6467
    %v6469 = vld [vmem:[%s6468] sm:$0xff]
    %s6470 = scalar_lea.vmem %s3, 256
    %v6471 = vld [vmem:[%s6470] sm:$0xff]
    %v6472 = vld [vmem:[%s6470 + $0x8] sm:$0xff]
    %v6473 = vld [vmem:[%s6470 + $0x10] sm:$0xff]
    %v6474 = vld [vmem:[%s6470 + $0x18] sm:$0xff]
    %v6475 = vld [vmem:[%s6470 + $0x20] sm:$0xff]
    %v6476 = vld [vmem:[%s6470 + $0x28] sm:$0xff]
    %v6477 = vld [vmem:[%s6470 + $0x30] sm:$0xff]
    %v6478 = vld [vmem:[%s6470 + $0x38] sm:$0xff]
    %v6480 = vsel %vm6147, %v6469, 0
    %6482 = vmatprep.subr.mxu0 0.0
    %6483 = vmatpush1.msra.mxu0 0.0
    %6484 = vmatprep.subr.mxu0 0.0
    %6485 = vmatpush1.msra.mxu0 0.0
    %6486 = vmatprep.subr.mxu0 0.0
    %6487 = vmatpush1.msra.mxu0 0.0
    %6488 = vmatprep.subr.mxu0 0.0
    %6489 = vmatpush1.msra.mxu0 0.0
    %6490 = vmatprep.subr.mxu0 0.0
    %6491 = vmatpush1.msra.mxu0 0.0
    %6492 = vmatprep.subr.mxu0 0.0
    %6493 = vmatpush1.msra.mxu0 0.0
    %6494 = vmatprep.subr.mxu0 0.0
    %6495 = vmatpush1.msra.mxu0 0.0
    %6496 = vmatprep.subr.mxu0 0.0
    %6497 = vmatpush1.msra.mxu0 0.0
    %6498 = vmatprep.subr.mxu0 0.0
    %6499 = vmatpush1.msra.mxu0 %v6478
    %6500 = vmatprep.subr.mxu0 0.0
    %6501 = vmatpush1.msra.mxu0 %v6477
    %6502 = vmatprep.subr.mxu0 0.0
    %6503 = vmatpush1.msra.mxu0 %v6476
    %6504 = vmatprep.subr.mxu0 0.0
    %6505 = vmatpush1.msra.mxu0 %v6475
    %6506 = vmatprep.subr.mxu0 0.0
    %6507 = vmatpush1.msra.mxu0 %v6474
    %6508 = vmatprep.subr.mxu0 0.0
    %6509 = vmatpush1.msra.mxu0 %v6473
    %6510 = vmatprep.subr.mxu0 0.0
    %6511 = vmatpush1.msra.mxu0 %v6472
    %6512 = vmatprep.subr.mxu0 0.0
    %6513 = vmatpush1.msra.mxu0 %v6471
    %6514 = vmatprep.subr.mxu0 0.0
    %6515 = vmatpush2.msra.mxu0 0.0
    %6516 = vmatprep.subr.mxu0 0.0
    %6517 = vmatpush2.msra.mxu0 0.0
    %6518 = vmatprep.subr.mxu0 0.0
    %6519 = vmatpush2.msra.mxu0 0.0
    %6520 = vmatprep.subr.mxu0 0.0
    %6521 = vmatpush2.msra.mxu0 0.0
    %6522 = vmatprep.subr.mxu0 0.0
    %6523 = vmatpush2.msra.mxu0 0.0
    %6524 = vmatprep.subr.mxu0 0.0
    %6525 = vmatpush2.msra.mxu0 0.0
    %6526 = vmatprep.subr.mxu0 0.0
    %6527 = vmatpush2.msra.mxu0 0.0
    %6528 = vmatprep.subr.mxu0 0.0
    %6529 = vmatpush2.msra.mxu0 0.0
    %6530 = vmatprep.subr.mxu0 0.0
    %6531 = vmatpush2.msra.mxu0 0.0
    %6532 = vmatprep.subr.mxu0 0.0
    %6533 = vmatpush2.msra.mxu0 0.0
    %6534 = vmatprep.subr.mxu0 0.0
    %6535 = vmatpush2.msra.mxu0 0.0
    %6536 = vmatprep.subr.mxu0 0.0
    %6537 = vmatpush2.msra.mxu0 0.0
    %6538 = vmatprep.subr.mxu0 0.0
    %6539 = vmatpush2.msra.mxu0 0.0
    %6540 = vmatprep.subr.mxu0 0.0
    %6541 = vmatpush2.msra.mxu0 0.0
    %6542 = vmatprep.subr.mxu0 0.0
    %6543 = vmatpush2.msra.mxu0 0.0
    %6544 = vmatprep.subr.mxu0 0.0
    %6545 = vmatpush2.msra.mxu0 0.0
    %6546 = vmatprep.mubr.f32.mxu0 0.0
    %6547 = vmatmul.mubr.f32.gmra.mxu0 %v6480
    %v6548 = vpop.f32.mrf.mxu0
    %v6549 = vadd.f32 0.0, %v6548
    %v6550 = vpop.f32.mrf.mxu0
    %6551 = vdwg.mxu0
    %v6552 = vadd.f32 %v6466, %v6549
    %s6553 = sadd.s32 %s6381, 2
    %s6554 = scalar_lea.vmem [#allocation4], %s6553
    %v6555 = vld [vmem:[%s6554] sm:$0xff]
    %s6556 = scalar_lea.vmem %s3, 320
    %v6557 = vld [vmem:[%s6556] sm:$0xff]
    %v6558 = vld [vmem:[%s6556 + $0x8] sm:$0xff]
    %v6559 = vld [vmem:[%s6556 + $0x10] sm:$0xff]
    %v6560 = vld [vmem:[%s6556 + $0x18] sm:$0xff]
    %v6561 = vld [vmem:[%s6556 + $0x20] sm:$0xff]
    %v6562 = vld [vmem:[%s6556 + $0x28] sm:$0xff]
    %v6563 = vld [vmem:[%s6556 + $0x30] sm:$0xff]
    %v6564 = vld [vmem:[%s6556 + $0x38] sm:$0xff]
    %v6566 = vsel %vm6147, %v6555, 0
    %6568 = vmatprep.subr.mxu0 0.0
    %6569 = vmatpush1.msra.mxu0 0.0
    %6570 = vmatprep.subr.mxu0 0.0
    %6571 = vmatpush1.msra.mxu0 0.0
    %6572 = vmatprep.subr.mxu0 0.0
    %6573 = vmatpush1.msra.mxu0 0.0
    %6574 = vmatprep.subr.mxu0 0.0
    %6575 = vmatpush1.msra.mxu0 0.0
    %6576 = vmatprep.subr.mxu0 0.0
    %6577 = vmatpush1.msra.mxu0 0.0
    %6578 = vmatprep.subr.mxu0 0.0
    %6579 = vmatpush1.msra.mxu0 0.0
    %6580 = vmatprep.subr.mxu0 0.0
    %6581 = vmatpush1.msra.mxu0 0.0
    %6582 = vmatprep.subr.mxu0 0.0
    %6583 = vmatpush1.msra.mxu0 0.0
    %6584 = vmatprep.subr.mxu0 0.0
    %6585 = vmatpush1.msra.mxu0 %v6564
    %6586 = vmatprep.subr.mxu0 0.0
    %6587 = vmatpush1.msra.mxu0 %v6563
    %6588 = vmatprep.subr.mxu0 0.0
    %6589 = vmatpush1.msra.mxu0 %v6562
    %6590 = vmatprep.subr.mxu0 0.0
    %6591 = vmatpush1.msra.mxu0 %v6561
    %6592 = vmatprep.subr.mxu0 0.0
    %6593 = vmatpush1.msra.mxu0 %v6560
    %6594 = vmatprep.subr.mxu0 0.0
    %6595 = vmatpush1.msra.mxu0 %v6559
    %6596 = vmatprep.subr.mxu0 0.0
    %6597 = vmatpush1.msra.mxu0 %v6558
    %6598 = vmatprep.subr.mxu0 0.0
    %6599 = vmatpush1.msra.mxu0 %v6557
    %6600 = vmatprep.subr.mxu0 0.0
    %6601 = vmatpush2.msra.mxu0 0.0
    %6602 = vmatprep.subr.mxu0 0.0
    %6603 = vmatpush2.msra.mxu0 0.0
    %6604 = vmatprep.subr.mxu0 0.0
    %6605 = vmatpush2.msra.mxu0 0.0
    %6606 = vmatprep.subr.mxu0 0.0
    %6607 = vmatpush2.msra.mxu0 0.0
    %6608 = vmatprep.subr.mxu0 0.0
    %6609 = vmatpush2.msra.mxu0 0.0
    %6610 = vmatprep.subr.mxu0 0.0
    %6611 = vmatpush2.msra.mxu0 0.0
    %6612 = vmatprep.subr.mxu0 0.0
    %6613 = vmatpush2.msra.mxu0 0.0
    %6614 = vmatprep.subr.mxu0 0.0
    %6615 = vmatpush2.msra.mxu0 0.0
    %6616 = vmatprep.subr.mxu0 0.0
    %6617 = vmatpush2.msra.mxu0 0.0
    %6618 = vmatprep.subr.mxu0 0.0
    %6619 = vmatpush2.msra.mxu0 0.0
    %6620 = vmatprep.subr.mxu0 0.0
    %6621 = vmatpush2.msra.mxu0 0.0
    %6622 = vmatprep.subr.mxu0 0.0
    %6623 = vmatpush2.msra.mxu0 0.0
    %6624 = vmatprep.subr.mxu0 0.0
    %6625 = vmatpush2.msra.mxu0 0.0
    %6626 = vmatprep.subr.mxu0 0.0
    %6627 = vmatpush2.msra.mxu0 0.0
    %6628 = vmatprep.subr.mxu0 0.0
    %6629 = vmatpush2.msra.mxu0 0.0
    %6630 = vmatprep.subr.mxu0 0.0
    %6631 = vmatpush2.msra.mxu0 0.0
    %6632 = vmatprep.mubr.f32.mxu0 0.0
    %6633 = vmatmul.mubr.f32.gmra.mxu0 %v6566
    %v6634 = vpop.f32.mrf.mxu0
    %v6635 = vadd.f32 0.0, %v6634
    %v6636 = vpop.f32.mrf.mxu0
    %6637 = vdwg.mxu0
    %v6638 = vadd.f32 %v6552, %v6635
    %s6639 = sadd.s32 %s6118, 2
    %s6640 = smul.u32 %s6639, 10
    %s6641 = scalar_lea.vmem [#allocation4], %s6640
    %v6642 = vld [vmem:[%s6641] sm:$0xff]
    %s6643 = scalar_lea.vmem %s3, 384
    %v6644 = vld [vmem:[%s6643] sm:$0xff]
    %v6645 = vld [vmem:[%s6643 + $0x8] sm:$0xff]
    %v6646 = vld [vmem:[%s6643 + $0x10] sm:$0xff]
    %v6647 = vld [vmem:[%s6643 + $0x18] sm:$0xff]
    %v6648 = vld [vmem:[%s6643 + $0x20] sm:$0xff]
    %v6649 = vld [vmem:[%s6643 + $0x28] sm:$0xff]
    %v6650 = vld [vmem:[%s6643 + $0x30] sm:$0xff]
    %v6651 = vld [vmem:[%s6643 + $0x38] sm:$0xff]
    %v6653 = vsel %vm6147, %v6642, 0
    %6655 = vmatprep.subr.mxu0 0.0
    %6656 = vmatpush1.msra.mxu0 0.0
    %6657 = vmatprep.subr.mxu0 0.0
    %6658 = vmatpush1.msra.mxu0 0.0
    %6659 = vmatprep.subr.mxu0 0.0
    %6660 = vmatpush1.msra.mxu0 0.0
    %6661 = vmatprep.subr.mxu0 0.0
    %6662 = vmatpush1.msra.mxu0 0.0
    %6663 = vmatprep.subr.mxu0 0.0
    %6664 = vmatpush1.msra.mxu0 0.0
    %6665 = vmatprep.subr.mxu0 0.0
    %6666 = vmatpush1.msra.mxu0 0.0
    %6667 = vmatprep.subr.mxu0 0.0
    %6668 = vmatpush1.msra.mxu0 0.0
    %6669 = vmatprep.subr.mxu0 0.0
    %6670 = vmatpush1.msra.mxu0 0.0
    %6671 = vmatprep.subr.mxu0 0.0
    %6672 = vmatpush1.msra.mxu0 %v6651
    %6673 = vmatprep.subr.mxu0 0.0
    %6674 = vmatpush1.msra.mxu0 %v6650
    %6675 = vmatprep.subr.mxu0 0.0
    %6676 = vmatpush1.msra.mxu0 %v6649
    %6677 = vmatprep.subr.mxu0 0.0
    %6678 = vmatpush1.msra.mxu0 %v6648
    %6679 = vmatprep.subr.mxu0 0.0
    %6680 = vmatpush1.msra.mxu0 %v6647
    %6681 = vmatprep.subr.mxu0 0.0
    %6682 = vmatpush1.msra.mxu0 %v6646
    %6683 = vmatprep.subr.mxu0 0.0
    %6684 = vmatpush1.msra.mxu0 %v6645
    %6685 = vmatprep.subr.mxu0 0.0
    %6686 = vmatpush1.msra.mxu0 %v6644
    %6687 = vmatprep.subr.mxu0 0.0
    %6688 = vmatpush2.msra.mxu0 0.0
    %6689 = vmatprep.subr.mxu0 0.0
    %6690 = vmatpush2.msra.mxu0 0.0
    %6691 = vmatprep.subr.mxu0 0.0
    %6692 = vmatpush2.msra.mxu0 0.0
    %6693 = vmatprep.subr.mxu0 0.0
    %6694 = vmatpush2.msra.mxu0 0.0
    %6695 = vmatprep.subr.mxu0 0.0
    %6696 = vmatpush2.msra.mxu0 0.0
    %6697 = vmatprep.subr.mxu0 0.0
    %6698 = vmatpush2.msra.mxu0 0.0
    %6699 = vmatprep.subr.mxu0 0.0
    %6700 = vmatpush2.msra.mxu0 0.0
    %6701 = vmatprep.subr.mxu0 0.0
    %6702 = vmatpush2.msra.mxu0 0.0
    %6703 = vmatprep.subr.mxu0 0.0
    %6704 = vmatpush2.msra.mxu0 0.0
    %6705 = vmatprep.subr.mxu0 0.0
    %6706 = vmatpush2.msra.mxu0 0.0
    %6707 = vmatprep.subr.mxu0 0.0
    %6708 = vmatpush2.msra.mxu0 0.0
    %6709 = vmatprep.subr.mxu0 0.0
    %6710 = vmatpush2.msra.mxu0 0.0
    %6711 = vmatprep.subr.mxu0 0.0
    %6712 = vmatpush2.msra.mxu0 0.0
    %6713 = vmatprep.subr.mxu0 0.0
    %6714 = vmatpush2.msra.mxu0 0.0
    %6715 = vmatprep.subr.mxu0 0.0
    %6716 = vmatpush2.msra.mxu0 0.0
    %6717 = vmatprep.subr.mxu0 0.0
    %6718 = vmatpush2.msra.mxu0 0.0
    %6719 = vmatprep.mubr.f32.mxu0 0.0
    %6720 = vmatmul.mubr.f32.gmra.mxu0 %v6653
    %v6721 = vpop.f32.mrf.mxu0
    %v6722 = vadd.f32 0.0, %v6721
    %v6723 = vpop.f32.mrf.mxu0
    %6724 = vdwg.mxu0
    %v6725 = vadd.f32 %v6638, %v6722
    %s6726 = sadd.s32 %s6640, 1
    %s6727 = scalar_lea.vmem [#allocation4], %s6726
    %v6728 = vld [vmem:[%s6727] sm:$0xff]
    %s6729 = scalar_lea.vmem %s3, 448
    %v6730 = vld [vmem:[%s6729] sm:$0xff]
    %v6731 = vld [vmem:[%s6729 + $0x8] sm:$0xff]
    %v6732 = vld [vmem:[%s6729 + $0x10] sm:$0xff]
    %v6733 = vld [vmem:[%s6729 + $0x18] sm:$0xff]
    %v6734 = vld [vmem:[%s6729 + $0x20] sm:$0xff]
    %v6735 = vld [vmem:[%s6729 + $0x28] sm:$0xff]
    %v6736 = vld [vmem:[%s6729 + $0x30] sm:$0xff]
    %v6737 = vld [vmem:[%s6729 + $0x38] sm:$0xff]
    %v6739 = vsel %vm6147, %v6728, 0
    %6741 = vmatprep.subr.mxu0 0.0
    %6742 = vmatpush1.msra.mxu0 0.0
    %6743 = vmatprep.subr.mxu0 0.0
    %6744 = vmatpush1.msra.mxu0 0.0
    %6745 = vmatprep.subr.mxu0 0.0
    %6746 = vmatpush1.msra.mxu0 0.0
    %6747 = vmatprep.subr.mxu0 0.0
    %6748 = vmatpush1.msra.mxu0 0.0
    %6749 = vmatprep.subr.mxu0 0.0
    %6750 = vmatpush1.msra.mxu0 0.0
    %6751 = vmatprep.subr.mxu0 0.0
    %6752 = vmatpush1.msra.mxu0 0.0
    %6753 = vmatprep.subr.mxu0 0.0
    %6754 = vmatpush1.msra.mxu0 0.0
    %6755 = vmatprep.subr.mxu0 0.0
    %6756 = vmatpush1.msra.mxu0 0.0
    %6757 = vmatprep.subr.mxu0 0.0
    %6758 = vmatpush1.msra.mxu0 %v6737
    %6759 = vmatprep.subr.mxu0 0.0
    %6760 = vmatpush1.msra.mxu0 %v6736
    %6761 = vmatprep.subr.mxu0 0.0
    %6762 = vmatpush1.msra.mxu0 %v6735
    %6763 = vmatprep.subr.mxu0 0.0
    %6764 = vmatpush1.msra.mxu0 %v6734
    %6765 = vmatprep.subr.mxu0 0.0
    %6766 = vmatpush1.msra.mxu0 %v6733
    %6767 = vmatprep.subr.mxu0 0.0
    %6768 = vmatpush1.msra.mxu0 %v6732
    %6769 = vmatprep.subr.mxu0 0.0
    %6770 = vmatpush1.msra.mxu0 %v6731
    %6771 = vmatprep.subr.mxu0 0.0
    %6772 = vmatpush1.msra.mxu0 %v6730
    %6773 = vmatprep.subr.mxu0 0.0
    %6774 = vmatpush2.msra.mxu0 0.0
    %6775 = vmatprep.subr.mxu0 0.0
    %6776 = vmatpush2.msra.mxu0 0.0
    %6777 = vmatprep.subr.mxu0 0.0
    %6778 = vmatpush2.msra.mxu0 0.0
    %6779 = vmatprep.subr.mxu0 0.0
    %6780 = vmatpush2.msra.mxu0 0.0
    %6781 = vmatprep.subr.mxu0 0.0
    %6782 = vmatpush2.msra.mxu0 0.0
    %6783 = vmatprep.subr.mxu0 0.0
    %6784 = vmatpush2.msra.mxu0 0.0
    %6785 = vmatprep.subr.mxu0 0.0
    %6786 = vmatpush2.msra.mxu0 0.0
    %6787 = vmatprep.subr.mxu0 0.0
    %6788 = vmatpush2.msra.mxu0 0.0
    %6789 = vmatprep.subr.mxu0 0.0
    %6790 = vmatpush2.msra.mxu0 0.0
    %6791 = vmatprep.subr.mxu0 0.0
    %6792 = vmatpush2.msra.mxu0 0.0
    %6793 = vmatprep.subr.mxu0 0.0
    %6794 = vmatpush2.msra.mxu0 0.0
    %6795 = vmatprep.subr.mxu0 0.0
    %6796 = vmatpush2.msra.mxu0 0.0
    %6797 = vmatprep.subr.mxu0 0.0
    %6798 = vmatpush2.msra.mxu0 0.0
    %6799 = vmatprep.subr.mxu0 0.0
    %6800 = vmatpush2.msra.mxu0 0.0
    %6801 = vmatprep.subr.mxu0 0.0
    %6802 = vmatpush2.msra.mxu0 0.0
    %6803 = vmatprep.subr.mxu0 0.0
    %6804 = vmatpush2.msra.mxu0 0.0
    %6805 = vmatprep.mubr.f32.mxu0 0.0
    %6806 = vmatmul.mubr.f32.gmra.mxu0 %v6739
    %v6807 = vpop.f32.mrf.mxu0
    %v6808 = vadd.f32 0.0, %v6807
    %v6809 = vpop.f32.mrf.mxu0
    %6810 = vdwg.mxu0
    %v6811 = vadd.f32 %v6725, %v6808
    %s6812 = sadd.s32 %s6640, 2
    %s6813 = scalar_lea.vmem [#allocation4], %s6812
    %v6814 = vld [vmem:[%s6813] sm:$0xff]
    %s6815 = scalar_lea.vmem %s3, 512
    %v6816 = vld [vmem:[%s6815] sm:$0xff]
    %v6817 = vld [vmem:[%s6815 + $0x8] sm:$0xff]
    %v6818 = vld [vmem:[%s6815 + $0x10] sm:$0xff]
    %v6819 = vld [vmem:[%s6815 + $0x18] sm:$0xff]
    %v6820 = vld [vmem:[%s6815 + $0x20] sm:$0xff]
    %v6821 = vld [vmem:[%s6815 + $0x28] sm:$0xff]
    %v6822 = vld [vmem:[%s6815 + $0x30] sm:$0xff]
    %v6823 = vld [vmem:[%s6815 + $0x38] sm:$0xff]
    %v6825 = vsel %vm6147, %v6814, 0
    %6827 = vmatprep.subr.mxu0 0.0
    %6828 = vmatpush1.msra.mxu0 0.0
    %6829 = vmatprep.subr.mxu0 0.0
    %6830 = vmatpush1.msra.mxu0 0.0
    %6831 = vmatprep.subr.mxu0 0.0
    %6832 = vmatpush1.msra.mxu0 0.0
    %6833 = vmatprep.subr.mxu0 0.0
    %6834 = vmatpush1.msra.mxu0 0.0
    %6835 = vmatprep.subr.mxu0 0.0
    %6836 = vmatpush1.msra.mxu0 0.0
    %6837 = vmatprep.subr.mxu0 0.0
    %6838 = vmatpush1.msra.mxu0 0.0
    %6839 = vmatprep.subr.mxu0 0.0
    %6840 = vmatpush1.msra.mxu0 0.0
    %6841 = vmatprep.subr.mxu0 0.0
    %6842 = vmatpush1.msra.mxu0 0.0
    %6843 = vmatprep.subr.mxu0 0.0
    %6844 = vmatpush1.msra.mxu0 %v6823
    %6845 = vmatprep.subr.mxu0 0.0
    %6846 = vmatpush1.msra.mxu0 %v6822
    %6847 = vmatprep.subr.mxu0 0.0
    %6848 = vmatpush1.msra.mxu0 %v6821
    %6849 = vmatprep.subr.mxu0 0.0
    %6850 = vmatpush1.msra.mxu0 %v6820
    %6851 = vmatprep.subr.mxu0 0.0
    %6852 = vmatpush1.msra.mxu0 %v6819
    %6853 = vmatprep.subr.mxu0 0.0
    %6854 = vmatpush1.msra.mxu0 %v6818
    %6855 = vmatprep.subr.mxu0 0.0
    %6856 = vmatpush1.msra.mxu0 %v6817
    %6857 = vmatprep.subr.mxu0 0.0
    %6858 = vmatpush1.msra.mxu0 %v6816
    %6859 = vmatprep.subr.mxu0 0.0
    %6860 = vmatpush2.msra.mxu0 0.0
    %6861 = vmatprep.subr.mxu0 0.0
    %6862 = vmatpush2.msra.mxu0 0.0
    %6863 = vmatprep.subr.mxu0 0.0
    %6864 = vmatpush2.msra.mxu0 0.0
    %6865 = vmatprep.subr.mxu0 0.0
    %6866 = vmatpush2.msra.mxu0 0.0
    %6867 = vmatprep.subr.mxu0 0.0
    %6868 = vmatpush2.msra.mxu0 0.0
    %6869 = vmatprep.subr.mxu0 0.0
    %6870 = vmatpush2.msra.mxu0 0.0
    %6871 = vmatprep.subr.mxu0 0.0
    %6872 = vmatpush2.msra.mxu0 0.0
    %6873 = vmatprep.subr.mxu0 0.0
    %6874 = vmatpush2.msra.mxu0 0.0
    %6875 = vmatprep.subr.mxu0 0.0
    %6876 = vmatpush2.msra.mxu0 0.0
    %6877 = vmatprep.subr.mxu0 0.0
    %6878 = vmatpush2.msra.mxu0 0.0
    %6879 = vmatprep.subr.mxu0 0.0
    %6880 = vmatpush2.msra.mxu0 0.0
    %6881 = vmatprep.subr.mxu0 0.0
    %6882 = vmatpush2.msra.mxu0 0.0
    %6883 = vmatprep.subr.mxu0 0.0
    %6884 = vmatpush2.msra.mxu0 0.0
    %6885 = vmatprep.subr.mxu0 0.0
    %6886 = vmatpush2.msra.mxu0 0.0
    %6887 = vmatprep.subr.mxu0 0.0
    %6888 = vmatpush2.msra.mxu0 0.0
    %6889 = vmatprep.subr.mxu0 0.0
    %6890 = vmatpush2.msra.mxu0 0.0
    %6891 = vmatprep.mubr.f32.mxu0 0.0
    %6892 = vmatmul.mubr.f32.gmra.mxu0 %v6825
    %v6893 = vpop.f32.mrf.mxu0
    %v6894 = vadd.f32 0.0, %v6893
    %v6895 = vpop.f32.mrf.mxu0
    %6896 = vdwg.mxu0
    %v6897 = vadd.f32 %v6811, %v6894
    %s6898 = smul.u32 %s6118, 8
    %s6899 = scalar_lea.vmem [#allocation5], %s6898
    %6900 = vst [vmem:[%s6899] sm:$0xff] %v6897
    %v6901 = vrot.slane %v6897, 4
    %v6902 = vadd.f32 %v6897, %v6901
    %v6903 = vrot.slane %v6902, 2
    %v6904 = vadd.f32 %v6902, %v6903
    %v6905 = vrot.slane %v6904, 1
    %v6906 = vadd.f32 %v6904, %v6905
    %v6907 = vadd.f32 %v6123, %v6906
  $region40: #{encoder_forward.1} parent=0 // loop_footer
    %s6122 = sadd.s32 1, %s6118
  $region41: #{encoder_forward.1} parent=0 // loop_footer_branch
    %6117 = sbr.rel target = $region37
  $region42: #{encoder_forward.1} parent=0 // loop_exit
    _
  loop: start=0, step=1, limit=8
  $region43: #{encoder_forward.1} parent=0 // loop_pre_header
    _
  $region44: #{encoder_forward.1} parent=0 // loop_header
    %s6909 = sphi 0, %s6913
    %p6910 = scmp.ge.s32.totalorder %s6909, 8
    %v6914 = vphi %v6123, %v7702
  $region45: #{encoder_forward.1} parent=0 // loop_header_branch
    %6912 = sbr.rel (%p6910) target = $region49
  $region46: #{encoder_forward.1} parent=0 // loop_body
    %s6915 = smul.u32 %s6909, 10
    %s6916 = sadd.s32 %s6915, 100
    %s6917 = scalar_lea.vmem [#allocation4], %s6916
    %v6918 = vld [vmem:[%s6917] sm:$0xff]
    %v6919 = vld [vmem:[%s3] sm:$0xff]
    %v6920 = vld [vmem:[%s3 + $0x8] sm:$0xff]
    %v6921 = vld [vmem:[%s3 + $0x10] sm:$0xff]
    %v6922 = vld [vmem:[%s3 + $0x18] sm:$0xff]
    %v6923 = vld [vmem:[%s3 + $0x20] sm:$0xff]
    %v6924 = vld [vmem:[%s3 + $0x28] sm:$0xff]
    %v6925 = vld [vmem:[%s3 + $0x30] sm:$0xff]
    %v6926 = vld [vmem:[%s3 + $0x38] sm:$0xff]
    %s6927 = sadd.s32 %s6915, 101
    %s6928 = scalar_lea.vmem [#allocation4], %s6927
    %v6929 = vld [vmem:[%s6928] sm:$0xff]
    %s6930 = scalar_lea.vmem %s3, 64
    %v6931 = vld [vmem:[%s6930] sm:$0xff]
    %v6932 = vld [vmem:[%s6930 + $0x8] sm:$0xff]
    %v6933 = vld [vmem:[%s6930 + $0x10] sm:$0xff]
    %v6934 = vld [vmem:[%s6930 + $0x18] sm:$0xff]
    %v6935 = vld [vmem:[%s6930 + $0x20] sm:$0xff]
    %v6936 = vld [vmem:[%s6930 + $0x28] sm:$0xff]
    %v6937 = vld [vmem:[%s6930 + $0x30] sm:$0xff]
    %v6938 = vld [vmem:[%s6930 + $0x38] sm:$0xff]
    %vm6939 = vcmask 523264
    %v6941 = vsel %vm6939, %v6929, 0
    %6943 = vmatprep.subr.mxu0 0.0
    %6944 = vmatpush1.msra.mxu0 0.0
    %6945 = vmatprep.subr.mxu0 0.0
    %6946 = vmatpush1.msra.mxu0 0.0
    %6947 = vmatprep.subr.mxu0 0.0
    %6948 = vmatpush1.msra.mxu0 0.0
    %6949 = vmatprep.subr.mxu0 0.0
    %6950 = vmatpush1.msra.mxu0 0.0
    %6951 = vmatprep.subr.mxu0 0.0
    %6952 = vmatpush1.msra.mxu0 0.0
    %6953 = vmatprep.subr.mxu0 0.0
    %6954 = vmatpush1.msra.mxu0 0.0
    %6955 = vmatprep.subr.mxu0 0.0
    %6956 = vmatpush1.msra.mxu0 0.0
    %6957 = vmatprep.subr.mxu0 0.0
    %6958 = vmatpush1.msra.mxu0 0.0
    %6959 = vmatprep.subr.mxu0 0.0
    %6960 = vmatpush1.msra.mxu0 %v6938
    %6961 = vmatprep.subr.mxu0 0.0
    %6962 = vmatpush1.msra.mxu0 %v6937
    %6963 = vmatprep.subr.mxu0 0.0
    %6964 = vmatpush1.msra.mxu0 %v6936
    %6965 = vmatprep.subr.mxu0 0.0
    %6966 = vmatpush1.msra.mxu0 %v6935
    %6967 = vmatprep.subr.mxu0 0.0
    %6968 = vmatpush1.msra.mxu0 %v6934
    %6969 = vmatprep.subr.mxu0 0.0
    %6970 = vmatpush1.msra.mxu0 %v6933
    %6971 = vmatprep.subr.mxu0 0.0
    %6972 = vmatpush1.msra.mxu0 %v6932
    %6973 = vmatprep.subr.mxu0 0.0
    %6974 = vmatpush1.msra.mxu0 %v6931
    %6975 = vmatprep.subr.mxu0 0.0
    %6976 = vmatpush2.msra.mxu0 0.0
    %6977 = vmatprep.subr.mxu0 0.0
    %6978 = vmatpush2.msra.mxu0 0.0
    %6979 = vmatprep.subr.mxu0 0.0
    %6980 = vmatpush2.msra.mxu0 0.0
    %6981 = vmatprep.subr.mxu0 0.0
    %6982 = vmatpush2.msra.mxu0 0.0
    %6983 = vmatprep.subr.mxu0 0.0
    %6984 = vmatpush2.msra.mxu0 0.0
    %6985 = vmatprep.subr.mxu0 0.0
    %6986 = vmatpush2.msra.mxu0 0.0
    %6987 = vmatprep.subr.mxu0 0.0
    %6988 = vmatpush2.msra.mxu0 0.0
    %6989 = vmatprep.subr.mxu0 0.0
    %6990 = vmatpush2.msra.mxu0 0.0
    %6991 = vmatprep.subr.mxu0 0.0
    %6992 = vmatpush2.msra.mxu0 0.0
    %6993 = vmatprep.subr.mxu0 0.0
    %6994 = vmatpush2.msra.mxu0 0.0
    %6995 = vmatprep.subr.mxu0 0.0
    %6996 = vmatpush2.msra.mxu0 0.0
    %6997 = vmatprep.subr.mxu0 0.0
    %6998 = vmatpush2.msra.mxu0 0.0
    %6999 = vmatprep.subr.mxu0 0.0
    %7000 = vmatpush2.msra.mxu0 0.0
    %7001 = vmatprep.subr.mxu0 0.0
    %7002 = vmatpush2.msra.mxu0 0.0
    %7003 = vmatprep.subr.mxu0 0.0
    %7004 = vmatpush2.msra.mxu0 0.0
    %7005 = vmatprep.subr.mxu0 0.0
    %7006 = vmatpush2.msra.mxu0 0.0
    %7007 = vmatprep.mubr.f32.mxu0 0.0
    %7008 = vmatmul.mubr.f32.gmra.mxu0 %v6941
    %v7009 = vpop.f32.mrf.mxu0
    %v7010 = vadd.f32 0.0, %v7009
    %v7011 = vpop.f32.mrf.mxu0
    %7012 = vdwg.mxu0
    %v7014 = vsel %vm6939, %v6918, 0
    %7016 = vmatprep.subr.mxu0 0.0
    %7017 = vmatpush1.msra.mxu0 0.0
    %7018 = vmatprep.subr.mxu0 0.0
    %7019 = vmatpush1.msra.mxu0 0.0
    %7020 = vmatprep.subr.mxu0 0.0
    %7021 = vmatpush1.msra.mxu0 0.0
    %7022 = vmatprep.subr.mxu0 0.0
    %7023 = vmatpush1.msra.mxu0 0.0
    %7024 = vmatprep.subr.mxu0 0.0
    %7025 = vmatpush1.msra.mxu0 0.0
    %7026 = vmatprep.subr.mxu0 0.0
    %7027 = vmatpush1.msra.mxu0 0.0
    %7028 = vmatprep.subr.mxu0 0.0
    %7029 = vmatpush1.msra.mxu0 0.0
    %7030 = vmatprep.subr.mxu0 0.0
    %7031 = vmatpush1.msra.mxu0 0.0
    %7032 = vmatprep.subr.mxu0 0.0
    %7033 = vmatpush1.msra.mxu0 %v6926
    %7034 = vmatprep.subr.mxu0 0.0
    %7035 = vmatpush1.msra.mxu0 %v6925
    %7036 = vmatprep.subr.mxu0 0.0
    %7037 = vmatpush1.msra.mxu0 %v6924
    %7038 = vmatprep.subr.mxu0 0.0
    %7039 = vmatpush1.msra.mxu0 %v6923
    %7040 = vmatprep.subr.mxu0 0.0
    %7041 = vmatpush1.msra.mxu0 %v6922
    %7042 = vmatprep.subr.mxu0 0.0
    %7043 = vmatpush1.msra.mxu0 %v6921
    %7044 = vmatprep.subr.mxu0 0.0
    %7045 = vmatpush1.msra.mxu0 %v6920
    %7046 = vmatprep.subr.mxu0 0.0
    %7047 = vmatpush1.msra.mxu0 %v6919
    %7048 = vmatprep.subr.mxu0 0.0
    %7049 = vmatpush2.msra.mxu0 0.0
    %7050 = vmatprep.subr.mxu0 0.0
    %7051 = vmatpush2.msra.mxu0 0.0
    %7052 = vmatprep.subr.mxu0 0.0
    %7053 = vmatpush2.msra.mxu0 0.0
    %7054 = vmatprep.subr.mxu0 0.0
    %7055 = vmatpush2.msra.mxu0 0.0
    %7056 = vmatprep.subr.mxu0 0.0
    %7057 = vmatpush2.msra.mxu0 0.0
    %7058 = vmatprep.subr.mxu0 0.0
    %7059 = vmatpush2.msra.mxu0 0.0
    %7060 = vmatprep.subr.mxu0 0.0
    %7061 = vmatpush2.msra.mxu0 0.0
    %7062 = vmatprep.subr.mxu0 0.0
    %7063 = vmatpush2.msra.mxu0 0.0
    %7064 = vmatprep.subr.mxu0 0.0
    %7065 = vmatpush2.msra.mxu0 0.0
    %7066 = vmatprep.subr.mxu0 0.0
    %7067 = vmatpush2.msra.mxu0 0.0
    %7068 = vmatprep.subr.mxu0 0.0
    %7069 = vmatpush2.msra.mxu0 0.0
    %7070 = vmatprep.subr.mxu0 0.0
    %7071 = vmatpush2.msra.mxu0 0.0
    %7072 = vmatprep.subr.mxu0 0.0
    %7073 = vmatpush2.msra.mxu0 0.0
    %7074 = vmatprep.subr.mxu0 0.0
    %7075 = vmatpush2.msra.mxu0 0.0
    %7076 = vmatprep.subr.mxu0 0.0
    %7077 = vmatpush2.msra.mxu0 0.0
    %7078 = vmatprep.subr.mxu0 0.0
    %7079 = vmatpush2.msra.mxu0 0.0
    %7080 = vmatprep.mubr.f32.mxu0 0.0
    %7081 = vmatmul.mubr.f32.gmra.mxu0 %v7014
    %v7082 = vpop.f32.mrf.mxu0
    %v7083 = vadd.f32 %v7010, %v7082
    %v7084 = vpop.f32.mrf.mxu0
    %7085 = vdwg.mxu0
    %s7086 = sadd.s32 %s6915, 102
    %s7087 = scalar_lea.vmem [#allocation4], %s7086
    %v7088 = vld [vmem:[%s7087] sm:$0xff]
    %s7089 = scalar_lea.vmem %s3, 128
    %v7090 = vld [vmem:[%s7089] sm:$0xff]
    %v7091 = vld [vmem:[%s7089 + $0x8] sm:$0xff]
    %v7092 = vld [vmem:[%s7089 + $0x10] sm:$0xff]
    %v7093 = vld [vmem:[%s7089 + $0x18] sm:$0xff]
    %v7094 = vld [vmem:[%s7089 + $0x20] sm:$0xff]
    %v7095 = vld [vmem:[%s7089 + $0x28] sm:$0xff]
    %v7096 = vld [vmem:[%s7089 + $0x30] sm:$0xff]
    %v7097 = vld [vmem:[%s7089 + $0x38] sm:$0xff]
    %v7099 = vsel %vm6939, %v7088, 0
    %7101 = vmatprep.subr.mxu0 0.0
    %7102 = vmatpush1.msra.mxu0 0.0
    %7103 = vmatprep.subr.mxu0 0.0
    %7104 = vmatpush1.msra.mxu0 0.0
    %7105 = vmatprep.subr.mxu0 0.0
    %7106 = vmatpush1.msra.mxu0 0.0
    %7107 = vmatprep.subr.mxu0 0.0
    %7108 = vmatpush1.msra.mxu0 0.0
    %7109 = vmatprep.subr.mxu0 0.0
    %7110 = vmatpush1.msra.mxu0 0.0
    %7111 = vmatprep.subr.mxu0 0.0
    %7112 = vmatpush1.msra.mxu0 0.0
    %7113 = vmatprep.subr.mxu0 0.0
    %7114 = vmatpush1.msra.mxu0 0.0
    %7115 = vmatprep.subr.mxu0 0.0
    %7116 = vmatpush1.msra.mxu0 0.0
    %7117 = vmatprep.subr.mxu0 0.0
    %7118 = vmatpush1.msra.mxu0 %v7097
    %7119 = vmatprep.subr.mxu0 0.0
    %7120 = vmatpush1.msra.mxu0 %v7096
    %7121 = vmatprep.subr.mxu0 0.0
    %7122 = vmatpush1.msra.mxu0 %v7095
    %7123 = vmatprep.subr.mxu0 0.0
    %7124 = vmatpush1.msra.mxu0 %v7094
    %7125 = vmatprep.subr.mxu0 0.0
    %7126 = vmatpush1.msra.mxu0 %v7093
    %7127 = vmatprep.subr.mxu0 0.0
    %7128 = vmatpush1.msra.mxu0 %v7092
    %7129 = vmatprep.subr.mxu0 0.0
    %7130 = vmatpush1.msra.mxu0 %v7091
    %7131 = vmatprep.subr.mxu0 0.0
    %7132 = vmatpush1.msra.mxu0 %v7090
    %7133 = vmatprep.subr.mxu0 0.0
    %7134 = vmatpush2.msra.mxu0 0.0
    %7135 = vmatprep.subr.mxu0 0.0
    %7136 = vmatpush2.msra.mxu0 0.0
    %7137 = vmatprep.subr.mxu0 0.0
    %7138 = vmatpush2.msra.mxu0 0.0
    %7139 = vmatprep.subr.mxu0 0.0
    %7140 = vmatpush2.msra.mxu0 0.0
    %7141 = vmatprep.subr.mxu0 0.0
    %7142 = vmatpush2.msra.mxu0 0.0
    %7143 = vmatprep.subr.mxu0 0.0
    %7144 = vmatpush2.msra.mxu0 0.0
    %7145 = vmatprep.subr.mxu0 0.0
    %7146 = vmatpush2.msra.mxu0 0.0
    %7147 = vmatprep.subr.mxu0 0.0
    %7148 = vmatpush2.msra.mxu0 0.0
    %7149 = vmatprep.subr.mxu0 0.0
    %7150 = vmatpush2.msra.mxu0 0.0
    %7151 = vmatprep.subr.mxu0 0.0
    %7152 = vmatpush2.msra.mxu0 0.0
    %7153 = vmatprep.subr.mxu0 0.0
    %7154 = vmatpush2.msra.mxu0 0.0
    %7155 = vmatprep.subr.mxu0 0.0
    %7156 = vmatpush2.msra.mxu0 0.0
    %7157 = vmatprep.subr.mxu0 0.0
    %7158 = vmatpush2.msra.mxu0 0.0
    %7159 = vmatprep.subr.mxu0 0.0
    %7160 = vmatpush2.msra.mxu0 0.0
    %7161 = vmatprep.subr.mxu0 0.0
    %7162 = vmatpush2.msra.mxu0 0.0
    %7163 = vmatprep.subr.mxu0 0.0
    %7164 = vmatpush2.msra.mxu0 0.0
    %7165 = vmatprep.mubr.f32.mxu0 0.0
    %7166 = vmatmul.mubr.f32.gmra.mxu0 %v7099
    %v7167 = vpop.f32.mrf.mxu0
    %v7168 = vadd.f32 0.0, %v7167
    %v7169 = vpop.f32.mrf.mxu0
    %7170 = vdwg.mxu0
    %v7171 = vadd.f32 %v7083, %v7168
    %s7172 = sadd.s32 %s6909, 1
    %s7173 = smul.u32 %s7172, 10
    %s7174 = sadd.s32 %s7173, 100
    %s7175 = scalar_lea.vmem [#allocation4], %s7174
    %v7176 = vld [vmem:[%s7175] sm:$0xff]
    %s7177 = scalar_lea.vmem %s3, 192
    %v7178 = vld [vmem:[%s7177] sm:$0xff]
    %v7179 = vld [vmem:[%s7177 + $0x8] sm:$0xff]
    %v7180 = vld [vmem:[%s7177 + $0x10] sm:$0xff]
    %v7181 = vld [vmem:[%s7177 + $0x18] sm:$0xff]
    %v7182 = vld [vmem:[%s7177 + $0x20] sm:$0xff]
    %v7183 = vld [vmem:[%s7177 + $0x28] sm:$0xff]
    %v7184 = vld [vmem:[%s7177 + $0x30] sm:$0xff]
    %v7185 = vld [vmem:[%s7177 + $0x38] sm:$0xff]
    %v7187 = vsel %vm6939, %v7176, 0
    %7189 = vmatprep.subr.mxu0 0.0
    %7190 = vmatpush1.msra.mxu0 0.0
    %7191 = vmatprep.subr.mxu0 0.0
    %7192 = vmatpush1.msra.mxu0 0.0
    %7193 = vmatprep.subr.mxu0 0.0
    %7194 = vmatpush1.msra.mxu0 0.0
    %7195 = vmatprep.subr.mxu0 0.0
    %7196 = vmatpush1.msra.mxu0 0.0
    %7197 = vmatprep.subr.mxu0 0.0
    %7198 = vmatpush1.msra.mxu0 0.0
    %7199 = vmatprep.subr.mxu0 0.0
    %7200 = vmatpush1.msra.mxu0 0.0
    %7201 = vmatprep.subr.mxu0 0.0
    %7202 = vmatpush1.msra.mxu0 0.0
    %7203 = vmatprep.subr.mxu0 0.0
    %7204 = vmatpush1.msra.mxu0 0.0
    %7205 = vmatprep.subr.mxu0 0.0
    %7206 = vmatpush1.msra.mxu0 %v7185
    %7207 = vmatprep.subr.mxu0 0.0
    %7208 = vmatpush1.msra.mxu0 %v7184
    %7209 = vmatprep.subr.mxu0 0.0
    %7210 = vmatpush1.msra.mxu0 %v7183
    %7211 = vmatprep.subr.mxu0 0.0
    %7212 = vmatpush1.msra.mxu0 %v7182
    %7213 = vmatprep.subr.mxu0 0.0
    %7214 = vmatpush1.msra.mxu0 %v7181
    %7215 = vmatprep.subr.mxu0 0.0
    %7216 = vmatpush1.msra.mxu0 %v7180
    %7217 = vmatprep.subr.mxu0 0.0
    %7218 = vmatpush1.msra.mxu0 %v7179
    %7219 = vmatprep.subr.mxu0 0.0
    %7220 = vmatpush1.msra.mxu0 %v7178
    %7221 = vmatprep.subr.mxu0 0.0
    %7222 = vmatpush2.msra.mxu0 0.0
    %7223 = vmatprep.subr.mxu0 0.0
    %7224 = vmatpush2.msra.mxu0 0.0
    %7225 = vmatprep.subr.mxu0 0.0
    %7226 = vmatpush2.msra.mxu0 0.0
    %7227 = vmatprep.subr.mxu0 0.0
    %7228 = vmatpush2.msra.mxu0 0.0
    %7229 = vmatprep.subr.mxu0 0.0
    %7230 = vmatpush2.msra.mxu0 0.0
    %7231 = vmatprep.subr.mxu0 0.0
    %7232 = vmatpush2.msra.mxu0 0.0
    %7233 = vmatprep.subr.mxu0 0.0
    %7234 = vmatpush2.msra.mxu0 0.0
    %7235 = vmatprep.subr.mxu0 0.0
    %7236 = vmatpush2.msra.mxu0 0.0
    %7237 = vmatprep.subr.mxu0 0.0
    %7238 = vmatpush2.msra.mxu0 0.0
    %7239 = vmatprep.subr.mxu0 0.0
    %7240 = vmatpush2.msra.mxu0 0.0
    %7241 = vmatprep.subr.mxu0 0.0
    %7242 = vmatpush2.msra.mxu0 0.0
    %7243 = vmatprep.subr.mxu0 0.0
    %7244 = vmatpush2.msra.mxu0 0.0
    %7245 = vmatprep.subr.mxu0 0.0
    %7246 = vmatpush2.msra.mxu0 0.0
    %7247 = vmatprep.subr.mxu0 0.0
    %7248 = vmatpush2.msra.mxu0 0.0
    %7249 = vmatprep.subr.mxu0 0.0
    %7250 = vmatpush2.msra.mxu0 0.0
    %7251 = vmatprep.subr.mxu0 0.0
    %7252 = vmatpush2.msra.mxu0 0.0
    %7253 = vmatprep.mubr.f32.mxu0 0.0
    %7254 = vmatmul.mubr.f32.gmra.mxu0 %v7187
    %v7255 = vpop.f32.mrf.mxu0
    %v7256 = vadd.f32 0.0, %v7255
    %v7257 = vpop.f32.mrf.mxu0
    %7258 = vdwg.mxu0
    %v7259 = vadd.f32 %v7171, %v7256
    %s7260 = sadd.s32 %s7173, 101
    %s7261 = scalar_lea.vmem [#allocation4], %s7260
    %v7262 = vld [vmem:[%s7261] sm:$0xff]
    %s7263 = scalar_lea.vmem %s3, 256
    %v7264 = vld [vmem:[%s7263] sm:$0xff]
    %v7265 = vld [vmem:[%s7263 + $0x8] sm:$0xff]
    %v7266 = vld [vmem:[%s7263 + $0x10] sm:$0xff]
    %v7267 = vld [vmem:[%s7263 + $0x18] sm:$0xff]
    %v7268 = vld [vmem:[%s7263 + $0x20] sm:$0xff]
    %v7269 = vld [vmem:[%s7263 + $0x28] sm:$0xff]
    %v7270 = vld [vmem:[%s7263 + $0x30] sm:$0xff]
    %v7271 = vld [vmem:[%s7263 + $0x38] sm:$0xff]
    %v7273 = vsel %vm6939, %v7262, 0
    %7275 = vmatprep.subr.mxu0 0.0
    %7276 = vmatpush1.msra.mxu0 0.0
    %7277 = vmatprep.subr.mxu0 0.0
    %7278 = vmatpush1.msra.mxu0 0.0
    %7279 = vmatprep.subr.mxu0 0.0
    %7280 = vmatpush1.msra.mxu0 0.0
    %7281 = vmatprep.subr.mxu0 0.0
    %7282 = vmatpush1.msra.mxu0 0.0
    %7283 = vmatprep.subr.mxu0 0.0
    %7284 = vmatpush1.msra.mxu0 0.0
    %7285 = vmatprep.subr.mxu0 0.0
    %7286 = vmatpush1.msra.mxu0 0.0
    %7287 = vmatprep.subr.mxu0 0.0
    %7288 = vmatpush1.msra.mxu0 0.0
    %7289 = vmatprep.subr.mxu0 0.0
    %7290 = vmatpush1.msra.mxu0 0.0
    %7291 = vmatprep.subr.mxu0 0.0
    %7292 = vmatpush1.msra.mxu0 %v7271
    %7293 = vmatprep.subr.mxu0 0.0
    %7294 = vmatpush1.msra.mxu0 %v7270
    %7295 = vmatprep.subr.mxu0 0.0
    %7296 = vmatpush1.msra.mxu0 %v7269
    %7297 = vmatprep.subr.mxu0 0.0
    %7298 = vmatpush1.msra.mxu0 %v7268
    %7299 = vmatprep.subr.mxu0 0.0
    %7300 = vmatpush1.msra.mxu0 %v7267
    %7301 = vmatprep.subr.mxu0 0.0
    %7302 = vmatpush1.msra.mxu0 %v7266
    %7303 = vmatprep.subr.mxu0 0.0
    %7304 = vmatpush1.msra.mxu0 %v7265
    %7305 = vmatprep.subr.mxu0 0.0
    %7306 = vmatpush1.msra.mxu0 %v7264
    %7307 = vmatprep.subr.mxu0 0.0
    %7308 = vmatpush2.msra.mxu0 0.0
    %7309 = vmatprep.subr.mxu0 0.0
    %7310 = vmatpush2.msra.mxu0 0.0
    %7311 = vmatprep.subr.mxu0 0.0
    %7312 = vmatpush2.msra.mxu0 0.0
    %7313 = vmatprep.subr.mxu0 0.0
    %7314 = vmatpush2.msra.mxu0 0.0
    %7315 = vmatprep.subr.mxu0 0.0
    %7316 = vmatpush2.msra.mxu0 0.0
    %7317 = vmatprep.subr.mxu0 0.0
    %7318 = vmatpush2.msra.mxu0 0.0
    %7319 = vmatprep.subr.mxu0 0.0
    %7320 = vmatpush2.msra.mxu0 0.0
    %7321 = vmatprep.subr.mxu0 0.0
    %7322 = vmatpush2.msra.mxu0 0.0
    %7323 = vmatprep.subr.mxu0 0.0
    %7324 = vmatpush2.msra.mxu0 0.0
    %7325 = vmatprep.subr.mxu0 0.0
    %7326 = vmatpush2.msra.mxu0 0.0
    %7327 = vmatprep.subr.mxu0 0.0
    %7328 = vmatpush2.msra.mxu0 0.0
    %7329 = vmatprep.subr.mxu0 0.0
    %7330 = vmatpush2.msra.mxu0 0.0
    %7331 = vmatprep.subr.mxu0 0.0
    %7332 = vmatpush2.msra.mxu0 0.0
    %7333 = vmatprep.subr.mxu0 0.0
    %7334 = vmatpush2.msra.mxu0 0.0
    %7335 = vmatprep.subr.mxu0 0.0
    %7336 = vmatpush2.msra.mxu0 0.0
    %7337 = vmatprep.subr.mxu0 0.0
    %7338 = vmatpush2.msra.mxu0 0.0
    %7339 = vmatprep.mubr.f32.mxu0 0.0
    %7340 = vmatmul.mubr.f32.gmra.mxu0 %v7273
    %v7341 = vpop.f32.mrf.mxu0
    %v7342 = vadd.f32 0.0, %v7341
    %v7343 = vpop.f32.mrf.mxu0
    %7344 = vdwg.mxu0
    %v7345 = vadd.f32 %v7259, %v7342
    %s7346 = sadd.s32 %s7173, 102
    %s7347 = scalar_lea.vmem [#allocation4], %s7346
    %v7348 = vld [vmem:[%s7347] sm:$0xff]
    %s7349 = scalar_lea.vmem %s3, 320
    %v7350 = vld [vmem:[%s7349] sm:$0xff]
    %v7351 = vld [vmem:[%s7349 + $0x8] sm:$0xff]
    %v7352 = vld [vmem:[%s7349 + $0x10] sm:$0xff]
    %v7353 = vld [vmem:[%s7349 + $0x18] sm:$0xff]
    %v7354 = vld [vmem:[%s7349 + $0x20] sm:$0xff]
    %v7355 = vld [vmem:[%s7349 + $0x28] sm:$0xff]
    %v7356 = vld [vmem:[%s7349 + $0x30] sm:$0xff]
    %v7357 = vld [vmem:[%s7349 + $0x38] sm:$0xff]
    %v7359 = vsel %vm6939, %v7348, 0
    %7361 = vmatprep.subr.mxu0 0.0
    %7362 = vmatpush1.msra.mxu0 0.0
    %7363 = vmatprep.subr.mxu0 0.0
    %7364 = vmatpush1.msra.mxu0 0.0
    %7365 = vmatprep.subr.mxu0 0.0
    %7366 = vmatpush1.msra.mxu0 0.0
    %7367 = vmatprep.subr.mxu0 0.0
    %7368 = vmatpush1.msra.mxu0 0.0
    %7369 = vmatprep.subr.mxu0 0.0
    %7370 = vmatpush1.msra.mxu0 0.0
    %7371 = vmatprep.subr.mxu0 0.0
    %7372 = vmatpush1.msra.mxu0 0.0
    %7373 = vmatprep.subr.mxu0 0.0
    %7374 = vmatpush1.msra.mxu0 0.0
    %7375 = vmatprep.subr.mxu0 0.0
    %7376 = vmatpush1.msra.mxu0 0.0
    %7377 = vmatprep.subr.mxu0 0.0
    %7378 = vmatpush1.msra.mxu0 %v7357
    %7379 = vmatprep.subr.mxu0 0.0
    %7380 = vmatpush1.msra.mxu0 %v7356
    %7381 = vmatprep.subr.mxu0 0.0
    %7382 = vmatpush1.msra.mxu0 %v7355
    %7383 = vmatprep.subr.mxu0 0.0
    %7384 = vmatpush1.msra.mxu0 %v7354
    %7385 = vmatprep.subr.mxu0 0.0
    %7386 = vmatpush1.msra.mxu0 %v7353
    %7387 = vmatprep.subr.mxu0 0.0
    %7388 = vmatpush1.msra.mxu0 %v7352
    %7389 = vmatprep.subr.mxu0 0.0
    %7390 = vmatpush1.msra.mxu0 %v7351
    %7391 = vmatprep.subr.mxu0 0.0
    %7392 = vmatpush1.msra.mxu0 %v7350
    %7393 = vmatprep.subr.mxu0 0.0
    %7394 = vmatpush2.msra.mxu0 0.0
    %7395 = vmatprep.subr.mxu0 0.0
    %7396 = vmatpush2.msra.mxu0 0.0
    %7397 = vmatprep.subr.mxu0 0.0
    %7398 = vmatpush2.msra.mxu0 0.0
    %7399 = vmatprep.subr.mxu0 0.0
    %7400 = vmatpush2.msra.mxu0 0.0
    %7401 = vmatprep.subr.mxu0 0.0
    %7402 = vmatpush2.msra.mxu0 0.0
    %7403 = vmatprep.subr.mxu0 0.0
    %7404 = vmatpush2.msra.mxu0 0.0
    %7405 = vmatprep.subr.mxu0 0.0
    %7406 = vmatpush2.msra.mxu0 0.0
    %7407 = vmatprep.subr.mxu0 0.0
    %7408 = vmatpush2.msra.mxu0 0.0
    %7409 = vmatprep.subr.mxu0 0.0
    %7410 = vmatpush2.msra.mxu0 0.0
    %7411 = vmatprep.subr.mxu0 0.0
    %7412 = vmatpush2.msra.mxu0 0.0
    %7413 = vmatprep.subr.mxu0 0.0
    %7414 = vmatpush2.msra.mxu0 0.0
    %7415 = vmatprep.subr.mxu0 0.0
    %7416 = vmatpush2.msra.mxu0 0.0
    %7417 = vmatprep.subr.mxu0 0.0
    %7418 = vmatpush2.msra.mxu0 0.0
    %7419 = vmatprep.subr.mxu0 0.0
    %7420 = vmatpush2.msra.mxu0 0.0
    %7421 = vmatprep.subr.mxu0 0.0
    %7422 = vmatpush2.msra.mxu0 0.0
    %7423 = vmatprep.subr.mxu0 0.0
    %7424 = vmatpush2.msra.mxu0 0.0
    %7425 = vmatprep.mubr.f32.mxu0 0.0
    %7426 = vmatmul.mubr.f32.gmra.mxu0 %v7359
    %v7427 = vpop.f32.mrf.mxu0
    %v7428 = vadd.f32 0.0, %v7427
    %v7429 = vpop.f32.mrf.mxu0
    %7430 = vdwg.mxu0
    %v7431 = vadd.f32 %v7345, %v7428
    %s7432 = sadd.s32 %s6909, 2
    %s7433 = smul.u32 %s7432, 10
    %s7434 = sadd.s32 %s7433, 100
    %s7435 = scalar_lea.vmem [#allocation4], %s7434
    %v7436 = vld [vmem:[%s7435] sm:$0xff]
    %s7437 = scalar_lea.vmem %s3, 384
    %v7438 = vld [vmem:[%s7437] sm:$0xff]
    %v7439 = vld [vmem:[%s7437 + $0x8] sm:$0xff]
    %v7440 = vld [vmem:[%s7437 + $0x10] sm:$0xff]
    %v7441 = vld [vmem:[%s7437 + $0x18] sm:$0xff]
    %v7442 = vld [vmem:[%s7437 + $0x20] sm:$0xff]
    %v7443 = vld [vmem:[%s7437 + $0x28] sm:$0xff]
    %v7444 = vld [vmem:[%s7437 + $0x30] sm:$0xff]
    %v7445 = vld [vmem:[%s7437 + $0x38] sm:$0xff]
    %v7447 = vsel %vm6939, %v7436, 0
    %7449 = vmatprep.subr.mxu0 0.0
    %7450 = vmatpush1.msra.mxu0 0.0
    %7451 = vmatprep.subr.mxu0 0.0
    %7452 = vmatpush1.msra.mxu0 0.0
    %7453 = vmatprep.subr.mxu0 0.0
    %7454 = vmatpush1.msra.mxu0 0.0
    %7455 = vmatprep.subr.mxu0 0.0
    %7456 = vmatpush1.msra.mxu0 0.0
    %7457 = vmatprep.subr.mxu0 0.0
    %7458 = vmatpush1.msra.mxu0 0.0
    %7459 = vmatprep.subr.mxu0 0.0
    %7460 = vmatpush1.msra.mxu0 0.0
    %7461 = vmatprep.subr.mxu0 0.0
    %7462 = vmatpush1.msra.mxu0 0.0
    %7463 = vmatprep.subr.mxu0 0.0
    %7464 = vmatpush1.msra.mxu0 0.0
    %7465 = vmatprep.subr.mxu0 0.0
    %7466 = vmatpush1.msra.mxu0 %v7445
    %7467 = vmatprep.subr.mxu0 0.0
    %7468 = vmatpush1.msra.mxu0 %v7444
    %7469 = vmatprep.subr.mxu0 0.0
    %7470 = vmatpush1.msra.mxu0 %v7443
    %7471 = vmatprep.subr.mxu0 0.0
    %7472 = vmatpush1.msra.mxu0 %v7442
    %7473 = vmatprep.subr.mxu0 0.0
    %7474 = vmatpush1.msra.mxu0 %v7441
    %7475 = vmatprep.subr.mxu0 0.0
    %7476 = vmatpush1.msra.mxu0 %v7440
    %7477 = vmatprep.subr.mxu0 0.0
    %7478 = vmatpush1.msra.mxu0 %v7439
    %7479 = vmatprep.subr.mxu0 0.0
    %7480 = vmatpush1.msra.mxu0 %v7438
    %7481 = vmatprep.subr.mxu0 0.0
    %7482 = vmatpush2.msra.mxu0 0.0
    %7483 = vmatprep.subr.mxu0 0.0
    %7484 = vmatpush2.msra.mxu0 0.0
    %7485 = vmatprep.subr.mxu0 0.0
    %7486 = vmatpush2.msra.mxu0 0.0
    %7487 = vmatprep.subr.mxu0 0.0
    %7488 = vmatpush2.msra.mxu0 0.0
    %7489 = vmatprep.subr.mxu0 0.0
    %7490 = vmatpush2.msra.mxu0 0.0
    %7491 = vmatprep.subr.mxu0 0.0
    %7492 = vmatpush2.msra.mxu0 0.0
    %7493 = vmatprep.subr.mxu0 0.0
    %7494 = vmatpush2.msra.mxu0 0.0
    %7495 = vmatprep.subr.mxu0 0.0
    %7496 = vmatpush2.msra.mxu0 0.0
    %7497 = vmatprep.subr.mxu0 0.0
    %7498 = vmatpush2.msra.mxu0 0.0
    %7499 = vmatprep.subr.mxu0 0.0
    %7500 = vmatpush2.msra.mxu0 0.0
    %7501 = vmatprep.subr.mxu0 0.0
    %7502 = vmatpush2.msra.mxu0 0.0
    %7503 = vmatprep.subr.mxu0 0.0
    %7504 = vmatpush2.msra.mxu0 0.0
    %7505 = vmatprep.subr.mxu0 0.0
    %7506 = vmatpush2.msra.mxu0 0.0
    %7507 = vmatprep.subr.mxu0 0.0
    %7508 = vmatpush2.msra.mxu0 0.0
    %7509 = vmatprep.subr.mxu0 0.0
    %7510 = vmatpush2.msra.mxu0 0.0
    %7511 = vmatprep.subr.mxu0 0.0
    %7512 = vmatpush2.msra.mxu0 0.0
    %7513 = vmatprep.mubr.f32.mxu0 0.0
    %7514 = vmatmul.mubr.f32.gmra.mxu0 %v7447
    %v7515 = vpop.f32.mrf.mxu0
    %v7516 = vadd.f32 0.0, %v7515
    %v7517 = vpop.f32.mrf.mxu0
    %7518 = vdwg.mxu0
    %v7519 = vadd.f32 %v7431, %v7516
    %s7520 = sadd.s32 %s7433, 101
    %s7521 = scalar_lea.vmem [#allocation4], %s7520
    %v7522 = vld [vmem:[%s7521] sm:$0xff]
    %s7523 = scalar_lea.vmem %s3, 448
    %v7524 = vld [vmem:[%s7523] sm:$0xff]
    %v7525 = vld [vmem:[%s7523 + $0x8] sm:$0xff]
    %v7526 = vld [vmem:[%s7523 + $0x10] sm:$0xff]
    %v7527 = vld [vmem:[%s7523 + $0x18] sm:$0xff]
    %v7528 = vld [vmem:[%s7523 + $0x20] sm:$0xff]
    %v7529 = vld [vmem:[%s7523 + $0x28] sm:$0xff]
    %v7530 = vld [vmem:[%s7523 + $0x30] sm:$0xff]
    %v7531 = vld [vmem:[%s7523 + $0x38] sm:$0xff]
    %v7533 = vsel %vm6939, %v7522, 0
    %7535 = vmatprep.subr.mxu0 0.0
    %7536 = vmatpush1.msra.mxu0 0.0
    %7537 = vmatprep.subr.mxu0 0.0
    %7538 = vmatpush1.msra.mxu0 0.0
    %7539 = vmatprep.subr.mxu0 0.0
    %7540 = vmatpush1.msra.mxu0 0.0
    %7541 = vmatprep.subr.mxu0 0.0
    %7542 = vmatpush1.msra.mxu0 0.0
    %7543 = vmatprep.subr.mxu0 0.0
    %7544 = vmatpush1.msra.mxu0 0.0
    %7545 = vmatprep.subr.mxu0 0.0
    %7546 = vmatpush1.msra.mxu0 0.0
    %7547 = vmatprep.subr.mxu0 0.0
    %7548 = vmatpush1.msra.mxu0 0.0
    %7549 = vmatprep.subr.mxu0 0.0
    %7550 = vmatpush1.msra.mxu0 0.0
    %7551 = vmatprep.subr.mxu0 0.0
    %7552 = vmatpush1.msra.mxu0 %v7531
    %7553 = vmatprep.subr.mxu0 0.0
    %7554 = vmatpush1.msra.mxu0 %v7530
    %7555 = vmatprep.subr.mxu0 0.0
    %7556 = vmatpush1.msra.mxu0 %v7529
    %7557 = vmatprep.subr.mxu0 0.0
    %7558 = vmatpush1.msra.mxu0 %v7528
    %7559 = vmatprep.subr.mxu0 0.0
    %7560 = vmatpush1.msra.mxu0 %v7527
    %7561 = vmatprep.subr.mxu0 0.0
    %7562 = vmatpush1.msra.mxu0 %v7526
    %7563 = vmatprep.subr.mxu0 0.0
    %7564 = vmatpush1.msra.mxu0 %v7525
    %7565 = vmatprep.subr.mxu0 0.0
    %7566 = vmatpush1.msra.mxu0 %v7524
    %7567 = vmatprep.subr.mxu0 0.0
    %7568 = vmatpush2.msra.mxu0 0.0
    %7569 = vmatprep.subr.mxu0 0.0
    %7570 = vmatpush2.msra.mxu0 0.0
    %7571 = vmatprep.subr.mxu0 0.0
    %7572 = vmatpush2.msra.mxu0 0.0
    %7573 = vmatprep.subr.mxu0 0.0
    %7574 = vmatpush2.msra.mxu0 0.0
    %7575 = vmatprep.subr.mxu0 0.0
    %7576 = vmatpush2.msra.mxu0 0.0
    %7577 = vmatprep.subr.mxu0 0.0
    %7578 = vmatpush2.msra.mxu0 0.0
    %7579 = vmatprep.subr.mxu0 0.0
    %7580 = vmatpush2.msra.mxu0 0.0
    %7581 = vmatprep.subr.mxu0 0.0
    %7582 = vmatpush2.msra.mxu0 0.0
    %7583 = vmatprep.subr.mxu0 0.0
    %7584 = vmatpush2.msra.mxu0 0.0
    %7585 = vmatprep.subr.mxu0 0.0
    %7586 = vmatpush2.msra.mxu0 0.0
    %7587 = vmatprep.subr.mxu0 0.0
    %7588 = vmatpush2.msra.mxu0 0.0
    %7589 = vmatprep.subr.mxu0 0.0
    %7590 = vmatpush2.msra.mxu0 0.0
    %7591 = vmatprep.subr.mxu0 0.0
    %7592 = vmatpush2.msra.mxu0 0.0
    %7593 = vmatprep.subr.mxu0 0.0
    %7594 = vmatpush2.msra.mxu0 0.0
    %7595 = vmatprep.subr.mxu0 0.0
    %7596 = vmatpush2.msra.mxu0 0.0
    %7597 = vmatprep.subr.mxu0 0.0
    %7598 = vmatpush2.msra.mxu0 0.0
    %7599 = vmatprep.mubr.f32.mxu0 0.0
    %7600 = vmatmul.mubr.f32.gmra.mxu0 %v7533
    %v7601 = vpop.f32.mrf.mxu0
    %v7602 = vadd.f32 0.0, %v7601
    %v7603 = vpop.f32.mrf.mxu0
    %7604 = vdwg.mxu0
    %v7605 = vadd.f32 %v7519, %v7602
    %s7606 = sadd.s32 %s7433, 102
    %s7607 = scalar_lea.vmem [#allocation4], %s7606
    %v7608 = vld [vmem:[%s7607] sm:$0xff]
    %s7609 = scalar_lea.vmem %s3, 512
    %v7610 = vld [vmem:[%s7609] sm:$0xff]
    %v7611 = vld [vmem:[%s7609 + $0x8] sm:$0xff]
    %v7612 = vld [vmem:[%s7609 + $0x10] sm:$0xff]
    %v7613 = vld [vmem:[%s7609 + $0x18] sm:$0xff]
    %v7614 = vld [vmem:[%s7609 + $0x20] sm:$0xff]
    %v7615 = vld [vmem:[%s7609 + $0x28] sm:$0xff]
    %v7616 = vld [vmem:[%s7609 + $0x30] sm:$0xff]
    %v7617 = vld [vmem:[%s7609 + $0x38] sm:$0xff]
    %v7619 = vsel %vm6939, %v7608, 0
    %7621 = vmatprep.subr.mxu0 0.0
    %7622 = vmatpush1.msra.mxu0 0.0
    %7623 = vmatprep.subr.mxu0 0.0
    %7624 = vmatpush1.msra.mxu0 0.0
    %7625 = vmatprep.subr.mxu0 0.0
    %7626 = vmatpush1.msra.mxu0 0.0
    %7627 = vmatprep.subr.mxu0 0.0
    %7628 = vmatpush1.msra.mxu0 0.0
    %7629 = vmatprep.subr.mxu0 0.0
    %7630 = vmatpush1.msra.mxu0 0.0
    %7631 = vmatprep.subr.mxu0 0.0
    %7632 = vmatpush1.msra.mxu0 0.0
    %7633 = vmatprep.subr.mxu0 0.0
    %7634 = vmatpush1.msra.mxu0 0.0
    %7635 = vmatprep.subr.mxu0 0.0
    %7636 = vmatpush1.msra.mxu0 0.0
    %7637 = vmatprep.subr.mxu0 0.0
    %7638 = vmatpush1.msra.mxu0 %v7617
    %7639 = vmatprep.subr.mxu0 0.0
    %7640 = vmatpush1.msra.mxu0 %v7616
    %7641 = vmatprep.subr.mxu0 0.0
    %7642 = vmatpush1.msra.mxu0 %v7615
    %7643 = vmatprep.subr.mxu0 0.0
    %7644 = vmatpush1.msra.mxu0 %v7614
    %7645 = vmatprep.subr.mxu0 0.0
    %7646 = vmatpush1.msra.mxu0 %v7613
    %7647 = vmatprep.subr.mxu0 0.0
    %7648 = vmatpush1.msra.mxu0 %v7612
    %7649 = vmatprep.subr.mxu0 0.0
    %7650 = vmatpush1.msra.mxu0 %v7611
    %7651 = vmatprep.subr.mxu0 0.0
    %7652 = vmatpush1.msra.mxu0 %v7610
    %7653 = vmatprep.subr.mxu0 0.0
    %7654 = vmatpush2.msra.mxu0 0.0
    %7655 = vmatprep.subr.mxu0 0.0
    %7656 = vmatpush2.msra.mxu0 0.0
    %7657 = vmatprep.subr.mxu0 0.0
    %7658 = vmatpush2.msra.mxu0 0.0
    %7659 = vmatprep.subr.mxu0 0.0
    %7660 = vmatpush2.msra.mxu0 0.0
    %7661 = vmatprep.subr.mxu0 0.0
    %7662 = vmatpush2.msra.mxu0 0.0
    %7663 = vmatprep.subr.mxu0 0.0
    %7664 = vmatpush2.msra.mxu0 0.0
    %7665 = vmatprep.subr.mxu0 0.0
    %7666 = vmatpush2.msra.mxu0 0.0
    %7667 = vmatprep.subr.mxu0 0.0
    %7668 = vmatpush2.msra.mxu0 0.0
    %7669 = vmatprep.subr.mxu0 0.0
    %7670 = vmatpush2.msra.mxu0 0.0
    %7671 = vmatprep.subr.mxu0 0.0
    %7672 = vmatpush2.msra.mxu0 0.0
    %7673 = vmatprep.subr.mxu0 0.0
    %7674 = vmatpush2.msra.mxu0 0.0
    %7675 = vmatprep.subr.mxu0 0.0
    %7676 = vmatpush2.msra.mxu0 0.0
    %7677 = vmatprep.subr.mxu0 0.0
    %7678 = vmatpush2.msra.mxu0 0.0
    %7679 = vmatprep.subr.mxu0 0.0
    %7680 = vmatpush2.msra.mxu0 0.0
    %7681 = vmatprep.subr.mxu0 0.0
    %7682 = vmatpush2.msra.mxu0 0.0
    %7683 = vmatprep.subr.mxu0 0.0
    %7684 = vmatpush2.msra.mxu0 0.0
    %7685 = vmatprep.mubr.f32.mxu0 0.0
    %7686 = vmatmul.mubr.f32.gmra.mxu0 %v7619
    %v7687 = vpop.f32.mrf.mxu0
    %v7688 = vadd.f32 0.0, %v7687
    %v7689 = vpop.f32.mrf.mxu0
    %7690 = vdwg.mxu0
    %v7691 = vadd.f32 %v7605, %v7688
    %s7692 = smul.u32 %s6909, 8
    %s7693 = sadd.s32 %s7692, 64
    %s7694 = scalar_lea.vmem [#allocation5], %s7693
    %7695 = vst [vmem:[%s7694] sm:$0xff] %v7691
    %v7696 = vrot.slane %v7691, 4
    %v7697 = vadd.f32 %v7691, %v7696
    %v7698 = vrot.slane %v7697, 2
    %v7699 = vadd.f32 %v7697, %v7698
    %v7700 = vrot.slane %v7699, 1
    %v7701 = vadd.f32 %v7699, %v7700
    %v7702 = vadd.f32 %v6914, %v7701
  $region47: #{encoder_forward.1} parent=0 // loop_footer
    %s6913 = sadd.s32 1, %s6909
  $region48: #{encoder_forward.1} parent=0 // loop_footer_branch
    %6908 = sbr.rel target = $region44
  $region49: #{encoder_forward.1} parent=0 // loop_exit
    _
  %v7703 = vmul.f32 %v6914, 0.0078125
  %v7704 = vld [vmem:[#allocation5] sm:$0xff]
  %v7705 = vld [vmem:[#allocation5 + $0x8] sm:$0xff]
  %v7706 = vld [vmem:[#allocation5 + $0x10] sm:$0xff]
  %v7707 = vld [vmem:[#allocation5 + $0x18] sm:$0xff]
  %v7708 = vld [vmem:[#allocation5 + $0x20] sm:$0xff]
  %v7709 = vld [vmem:[#allocation5 + $0x28] sm:$0xff]
  %v7710 = vld [vmem:[#allocation5 + $0x30] sm:$0xff]
  %v7711 = vld [vmem:[#allocation5 + $0x38] sm:$0xff]
  %v7712 = vld [vmem:[#allocation5 + $0x40] sm:$0xff]
  %v7713 = vld [vmem:[#allocation5 + $0x48] sm:$0xff]
  %v7714 = vld [vmem:[#allocation5 + $0x50] sm:$0xff]
  %v7715 = vld [vmem:[#allocation5 + $0x58] sm:$0xff]
  %v7716 = vld [vmem:[#allocation5 + $0x60] sm:$0xff]
  %v7717 = vld [vmem:[#allocation5 + $0x68] sm:$0xff]
  %v7718 = vld [vmem:[#allocation5 + $0x70] sm:$0xff]
  %v7719 = vld [vmem:[#allocation5 + $0x78] sm:$0xff]
  %v7720 = vsub.f32 %v7704, %v7703
  %v7721 = vsub.f32 %v7705, %v7703
  %v7722 = vsub.f32 %v7706, %v7703
  %v7723 = vsub.f32 %v7707, %v7703
  %v7724 = vsub.f32 %v7708, %v7703
  %v7725 = vsub.f32 %v7709, %v7703
  %v7726 = vsub.f32 %v7710, %v7703
  %v7727 = vsub.f32 %v7711, %v7703
  %v7728 = vsub.f32 %v7712, %v7703
  %v7729 = vsub.f32 %v7713, %v7703
  %v7730 = vsub.f32 %v7714, %v7703
  %v7731 = vsub.f32 %v7715, %v7703
  %v7732 = vsub.f32 %v7716, %v7703
  %v7733 = vsub.f32 %v7717, %v7703
  %v7734 = vsub.f32 %v7718, %v7703
  %v7735 = vsub.f32 %v7719, %v7703
  %v7736 = vmul.f32 %v7720, %v7720
  %v7737 = vmul.f32 %v7721, %v7721
  %v7738 = vmul.f32 %v7722, %v7722
  %v7739 = vmul.f32 %v7723, %v7723
  %v7740 = vmul.f32 %v7724, %v7724
  %v7741 = vmul.f32 %v7725, %v7725
  %v7742 = vmul.f32 %v7726, %v7726
  %v7743 = vmul.f32 %v7727, %v7727
  %v7744 = vmul.f32 %v7728, %v7728
  %v7745 = vmul.f32 %v7729, %v7729
  %v7746 = vmul.f32 %v7730, %v7730
  %v7747 = vmul.f32 %v7731, %v7731
  %v7748 = vmul.f32 %v7732, %v7732
  %v7749 = vmul.f32 %v7733, %v7733
  %v7750 = vmul.f32 %v7734, %v7734
  %v7751 = vmul.f32 %v7735, %v7735
  %v7752 = vadd.f32 %v7736, %v7737
  %v7753 = vadd.f32 %v7752, %v7738
  %v7754 = vadd.f32 %v7753, %v7739
  %v7755 = vadd.f32 %v7754, %v7740
  %v7756 = vadd.f32 %v7755, %v7741
  %v7757 = vadd.f32 %v7756, %v7742
  %v7758 = vadd.f32 %v7757, %v7743
  %v7759 = vadd.f32 %v7758, %v7744
  %v7760 = vadd.f32 %v7759, %v7745
  %v7761 = vadd.f32 %v7760, %v7746
  %v7762 = vadd.f32 %v7761, %v7747
  %v7763 = vadd.f32 %v7762, %v7748
  %v7764 = vadd.f32 %v7763, %v7749
  %v7765 = vadd.f32 %v7764, %v7750
  %v7766 = vadd.f32 %v7765, %v7751
  %v7767 = vrot.slane %v7766, 4
  %v7768 = vadd.f32 %v7766, %v7767
  %v7769 = vrot.slane %v7768, 2
  %v7770 = vadd.f32 %v7768, %v7769
  %v7771 = vrot.slane %v7770, 1
  %v7772 = vadd.f32 %v7770, %v7771
  %v7773 = vadd.f32 %v7772, 0.0
  %v7774 = vmul.f32 %v7773, 0.0078125
  %v7775 = vadd.f32 %v7774, 1e-05
  %v7776 = vrsqrt.pop %v7775
  %v7777 = vmul.f32 %v20, %v7776
  %v7778 = vmul.f32 %v7703, %v7777
  %v7780 = vrot.slane %v7778, 7
  %v7782 = vsub.f32 %v20, %v7780
  %v7783 = vlaneseq
  %v7784 = vshrl.u32 %v7783, 7
  %v7785 = vsub.s32 4, %v7784
  %v7786 = vrot.slane %v7777, %v7785
  %v7787 = vmul.f32 %v7704, %v7786
  %v7788 = vmul.f32 %v7705, %v7786
  %v7789 = vmul.f32 %v7706, %v7786
  %v7790 = vmul.f32 %v7707, %v7786
  %v7791 = vmul.f32 %v7708, %v7786
  %v7792 = vmul.f32 %v7709, %v7786
  %v7793 = vmul.f32 %v7710, %v7786
  %v7794 = vmul.f32 %v7711, %v7786
  %v7795 = vmul.f32 %v7712, %v7786
  %v7796 = vmul.f32 %v7713, %v7786
  %v7797 = vmul.f32 %v7714, %v7786
  %v7798 = vmul.f32 %v7715, %v7786
  %v7799 = vmul.f32 %v7716, %v7786
  %v7800 = vmul.f32 %v7717, %v7786
  %v7801 = vmul.f32 %v7718, %v7786
  %v7802 = vmul.f32 %v7719, %v7786
  %v7803 = vlaneseq
  %v7804 = vshrl.u32 %v7803, 7
  %v7805 = vsub.s32 5, %v7804
  %v7806 = vrot.slane %v7782, %v7805
  %v7807 = vadd.f32 %v7787, %v7806
  %v7808 = vadd.f32 %v7788, %v7806
  %v7809 = vadd.f32 %v7789, %v7806
  %v7810 = vadd.f32 %v7790, %v7806
  %v7811 = vadd.f32 %v7791, %v7806
  %v7812 = vadd.f32 %v7792, %v7806
  %v7813 = vadd.f32 %v7793, %v7806
  %v7814 = vadd.f32 %v7794, %v7806
  %v7815 = vadd.f32 %v7795, %v7806
  %v7816 = vadd.f32 %v7796, %v7806
  %v7817 = vadd.f32 %v7797, %v7806
  %v7818 = vadd.f32 %v7798, %v7806
  %v7819 = vadd.f32 %v7799, %v7806
  %v7820 = vadd.f32 %v7800, %v7806
  %v7821 = vadd.f32 %v7801, %v7806
  %v7822 = vadd.f32 %v7802, %v7806
  %v7823 = vmax.f32 %v7807, 0.0
  %v7824 = vmax.f32 %v7808, 0.0
  %v7825 = vmax.f32 %v7809, 0.0
  %v7826 = vmax.f32 %v7810, 0.0
  %v7827 = vmax.f32 %v7811, 0.0
  %v7828 = vmax.f32 %v7812, 0.0
  %v7829 = vmax.f32 %v7813, 0.0
  %v7830 = vmax.f32 %v7814, 0.0
  %v7831 = vmax.f32 %v7815, 0.0
  %v7832 = vmax.f32 %v7816, 0.0
  %v7833 = vmax.f32 %v7817, 0.0
  %v7834 = vmax.f32 %v7818, 0.0
  %v7835 = vmax.f32 %v7819, 0.0
  %v7836 = vmax.f32 %v7820, 0.0
  %v7837 = vmax.f32 %v7821, 0.0
  %v7838 = vmax.f32 %v7822, 0.0
  %7839 = vst [vmem:[#allocation5] sm:$0xff] %v7823
  %7840 = vst [vmem:[#allocation5 + $0x8] sm:$0xff] %v7824
  %7841 = vst [vmem:[#allocation5 + $0x10] sm:$0xff] %v7825
  %7842 = vst [vmem:[#allocation5 + $0x18] sm:$0xff] %v7826
  %7843 = vst [vmem:[#allocation5 + $0x20] sm:$0xff] %v7827
  %7844 = vst [vmem:[#allocation5 + $0x28] sm:$0xff] %v7828
  %7845 = vst [vmem:[#allocation5 + $0x30] sm:$0xff] %v7829
  %7846 = vst [vmem:[#allocation5 + $0x38] sm:$0xff] %v7830
  %7847 = vst [vmem:[#allocation5 + $0x40] sm:$0xff] %v7831
  %7848 = vst [vmem:[#allocation5 + $0x48] sm:$0xff] %v7832
  %7849 = vst [vmem:[#allocation5 + $0x50] sm:$0xff] %v7833
  %7850 = vst [vmem:[#allocation5 + $0x58] sm:$0xff] %v7834
  %7851 = vst [vmem:[#allocation5 + $0x60] sm:$0xff] %v7835
  %7852 = vst [vmem:[#allocation5 + $0x68] sm:$0xff] %v7836
  %7853 = vst [vmem:[#allocation5 + $0x70] sm:$0xff] %v7837
  %7854 = vst [vmem:[#allocation5 + $0x78] sm:$0xff] %v7838
  %v7855 = vld [vmem:[#allocation5] ss:$2 sm:$0xf]
  %s7856 = scalar_lea.vmem [#allocation5], 1
  %v7857 = vld [vmem:[%s7856] ss:$2 sm:$0xf]
  %s7858 = scalar_lea.vmem [#allocation5], 8
  %v7859 = vld [vmem:[%s7858] ss:$2 sm:$0xf]
  %s7860 = scalar_lea.vmem [#allocation5], 9
  %v7861 = vld [vmem:[%s7860] ss:$2 sm:$0xf]
  %v7862 = vmax.f32 %v7855, %v7857
  %v7863 = vmax.f32 %v7859, %v7861
  %v7864 = vmax.f32 %v7862, %v7863
  %vm7865 = vcmask 519168
  %7866 = vst.msk [vmem:[%s5] sm:$0xf] %vm7865, %v7864
  %s7867 = scalar_lea.vmem [#allocation5], 16
  %v7868 = vld [vmem:[%s7867] ss:$2 sm:$0xf]
  %s7869 = scalar_lea.vmem [#allocation5], 17
  %v7870 = vld [vmem:[%s7869] ss:$2 sm:$0xf]
  %s7871 = scalar_lea.vmem [#allocation5], 24
  %v7872 = vld [vmem:[%s7871] ss:$2 sm:$0xf]
  %s7873 = scalar_lea.vmem [#allocation5], 25
  %v7874 = vld [vmem:[%s7873] ss:$2 sm:$0xf]
  %v7875 = vmax.f32 %v7868, %v7870
  %v7876 = vmax.f32 %v7872, %v7874
  %v7877 = vmax.f32 %v7875, %v7876
  %7878 = vst.msk [vmem:[%s5 + $0x4] sm:$0xf] %vm7865, %v7877
  %s7879 = scalar_lea.vmem [#allocation5], 32
  %v7880 = vld [vmem:[%s7879] ss:$2 sm:$0xf]
  %s7881 = scalar_lea.vmem [#allocation5], 33
  %v7882 = vld [vmem:[%s7881] ss:$2 sm:$0xf]
  %s7883 = scalar_lea.vmem [#allocation5], 40
  %v7884 = vld [vmem:[%s7883] ss:$2 sm:$0xf]
  %s7885 = scalar_lea.vmem [#allocation5], 41
  %v7886 = vld [vmem:[%s7885] ss:$2 sm:$0xf]
  %v7887 = vmax.f32 %v7880, %v7882
  %v7888 = vmax.f32 %v7884, %v7886
  %v7889 = vmax.f32 %v7887, %v7888
  %7890 = vst.msk [vmem:[%s5 + $0x8] sm:$0xf] %vm7865, %v7889
  %s7891 = scalar_lea.vmem [#allocation5], 48
  %v7892 = vld [vmem:[%s7891] ss:$2 sm:$0xf]
  %s7893 = scalar_lea.vmem [#allocation5], 49
  %v7894 = vld [vmem:[%s7893] ss:$2 sm:$0xf]
  %s7895 = scalar_lea.vmem [#allocation5], 56
  %v7896 = vld [vmem:[%s7895] ss:$2 sm:$0xf]
  %s7897 = scalar_lea.vmem [#allocation5], 57
  %v7898 = vld [vmem:[%s7897] ss:$2 sm:$0xf]
  %v7899 = vmax.f32 %v7892, %v7894
  %v7900 = vmax.f32 %v7896, %v7898
  %v7901 = vmax.f32 %v7899, %v7900
  %7902 = vst.msk [vmem:[%s5 + $0xc] sm:$0xf] %vm7865, %v7901
  %s7903 = scalar_lea.vmem [#allocation5], 64
  %v7904 = vld [vmem:[%s7903] ss:$2 sm:$0xf]
  %s7905 = scalar_lea.vmem [#allocation5], 65
  %v7906 = vld [vmem:[%s7905] ss:$2 sm:$0xf]
  %s7907 = scalar_lea.vmem [#allocation5], 72
  %v7908 = vld [vmem:[%s7907] ss:$2 sm:$0xf]
  %s7909 = scalar_lea.vmem [#allocation5], 73
  %v7910 = vld [vmem:[%s7909] ss:$2 sm:$0xf]
  %v7911 = vmax.f32 %v7904, %v7906
  %v7912 = vmax.f32 %v7908, %v7910
  %v7913 = vmax.f32 %v7911, %v7912
  %s7914 = scalar_lea.vmem %s5, 16
  %7915 = vst.msk [vmem:[%s7914] sm:$0xf] %vm7865, %v7913
  %s7916 = scalar_lea.vmem [#allocation5], 80
  %v7917 = vld [vmem:[%s7916] ss:$2 sm:$0xf]
  %s7918 = scalar_lea.vmem [#allocation5], 81
  %v7919 = vld [vmem:[%s7918] ss:$2 sm:$0xf]
  %s7920 = scalar_lea.vmem [#allocation5], 88
  %v7921 = vld [vmem:[%s7920] ss:$2 sm:$0xf]
  %s7922 = scalar_lea.vmem [#allocation5], 89
  %v7923 = vld [vmem:[%s7922] ss:$2 sm:$0xf]
  %v7924 = vmax.f32 %v7917, %v7919
  %v7925 = vmax.f32 %v7921, %v7923
  %v7926 = vmax.f32 %v7924, %v7925
  %7927 = vst.msk [vmem:[%s7914 + $0x4] sm:$0xf] %vm7865, %v7926
  %s7928 = scalar_lea.vmem [#allocation5], 96
  %v7929 = vld [vmem:[%s7928] ss:$2 sm:$0xf]
  %s7930 = scalar_lea.vmem [#allocation5], 97
  %v7931 = vld [vmem:[%s7930] ss:$2 sm:$0xf]
  %s7932 = scalar_lea.vmem [#allocation5], 104
  %v7933 = vld [vmem:[%s7932] ss:$2 sm:$0xf]
  %s7934 = scalar_lea.vmem [#allocation5], 105
  %v7935 = vld [vmem:[%s7934] ss:$2 sm:$0xf]
  %v7936 = vmax.f32 %v7929, %v7931
  %v7937 = vmax.f32 %v7933, %v7935
  %v7938 = vmax.f32 %v7936, %v7937
  %7939 = vst.msk [vmem:[%s7914 + $0x8] sm:$0xf] %vm7865, %v7938
  %s7940 = scalar_lea.vmem [#allocation5], 112
  %v7941 = vld [vmem:[%s7940] ss:$2 sm:$0xf]
  %s7942 = scalar_lea.vmem [#allocation5], 113
  %v7943 = vld [vmem:[%s7942] ss:$2 sm:$0xf]
  %s7944 = scalar_lea.vmem [#allocation5], 120
  %v7945 = vld [vmem:[%s7944] ss:$2 sm:$0xf]
  %s7946 = scalar_lea.vmem [#allocation5], 121
  %v7947 = vld [vmem:[%s7946] ss:$2 sm:$0xf]
  %v7948 = vmax.f32 %v7941, %v7943
  %v7949 = vmax.f32 %v7945, %v7947
  %v7950 = vmax.f32 %v7948, %v7949
  %7951 = vst.msk [vmem:[%s7914 + $0xc] sm:$0xf] %vm7865, %v7950
  // Predicated region
  $region50: #{encoder_forward.1} parent=0 // pred_check
    _
  $region51: #{encoder_forward.1} parent=0 // pred_check_branch
    %7953 = sbr.rel (0) target = $region53
  $region52: #{encoder_forward.1} parent=0 // pred_region
    _
  $region53: #{encoder_forward.1} parent=0 // pred_fallthru
    _
  // Predicated region
  $region54: #{encoder_forward.1} parent=0 // pred_check
    _
  $region55: #{encoder_forward.1} parent=0 // pred_check_branch
    %7955 = sbr.rel (0) target = $region57
  $region56: #{encoder_forward.1} parent=0 // pred_region
    _
  $region57: #{encoder_forward.1} parent=0 // pred_fallthru
    _

</llo_original>
